<compile_context>
chip_gen: v7x
topology: tpu7x:2x2x1
jax: 0.10.0
libtpu: 0.0.40
codegen_flags: <defaults>
</compile_context>

<pallas_src>
import jax
import jax.numpy as jnp
import numpy as np
from jax import lax
from jax.experimental import pallas as pl
from jax.experimental.pallas import tpu as pltpu

# ----------------------------- model constants ------------------------------
NUM_TURBINES = 10
TIME_STEPS = 24
EMBED = 64            # embed_size
GCN_OUT = 32          # gcn_out_channels
HIDDEN = 64           # informer_out_dim == LSTM hidden size
LSTM_IN = GCN_OUT * NUM_TURBINES      # 320
NT = NUM_TURBINES * TIME_STEPS        # 240


def _full_spec(shape):
    """BlockSpec covering the whole array (grid=(1,))."""
    n = len(shape)
    return pl.BlockSpec(shape, lambda i, _n=n: (0,) * _n)


# ----------------------------------------------------------------------------
# Fused kernel: LatentCorrelation -> GCN (all timesteps) -> LSTM -> Linear
# ----------------------------------------------------------------------------
def _fused_kernel(x_ref, aperm_ref, wq_ref, bq_ref, wk_ref, bk_ref,
                  gw_ref, gb_ref, wih_ref, whh_ref, bl_ref, fcw_ref, fcb_ref,
                  out_ref, attn_ref,
                  q_s, k_s, corr_s, gx_s):
    H = HIDDEN
    x_all = x_ref[...]                                        # (240, 64)

    # ---- Stage 1: batched Q/K projections (one matmul each over N*T rows) ---
    q_s[...] = (jnp.dot(x_all, wq_ref[...], preferred_element_type=jnp.float32)
                + bq_ref[...])
    k_s[...] = (jnp.dot(x_all, wk_ref[...], preferred_element_type=jnp.float32)
                + bk_ref[...])

    # ---- per-turbine scores / softmax / attn @ x (10 small iterations) ------
    scale = 1.0 / (EMBED ** 0.5)
    for n in range(NUM_TURBINES):
        r0 = n * TIME_STEPS
        qn = q_s[pl.ds(r0, TIME_STEPS), :]                    # (24, 64)
        kn = k_s[pl.ds(r0, TIME_STEPS), :]                    # (24, 64)
        s = lax.dot_general(qn, kn, (((1,), (1,)), ((), ())),
                            preferred_element_type=jnp.float32) * scale
        s = s - jnp.max(s, axis=-1, keepdims=True)
        e = jnp.exp(s)
        attn = e / jnp.sum(e, axis=-1, keepdims=True)         # (24, 24)
        attn_ref[n] = attn
        xn = x_ref[pl.ds(r0, TIME_STEPS), :]                  # (24, 64)
        corr_s[pl.ds(r0, TIME_STEPS), :] = jnp.dot(
            attn, xn, preferred_element_type=jnp.float32)     # corr[n, t, :]

    # ---- Stage 2: GCN over all timesteps = two matmuls ----------------------
    corr_all = corr_s[...]                                    # (240, 64)
    agg = jnp.dot(aperm_ref[...], corr_all,
                  preferred_element_type=jnp.float32)         # (240, 64)
    g = jnp.maximum(
        jnp.dot(agg, gw_ref[...], preferred_element_type=jnp.float32)
        + gb_ref[...], 0.0)                                   # (240, 32)
    # rows [24j, 24j+24) of `g`  ==  seq[:, 32j:32j+32]  (torch .view folded
    # into the host-built row-permuted adjacency A_perm).

    # ---- Stage 3: LSTM input projection, hoisted out of the recurrence ------
    gx = jnp.zeros((TIME_STEPS, 4 * H), jnp.float32)
    for j in range(NUM_TURBINES):
        seq_j = g[TIME_STEPS * j: TIME_STEPS * (j + 1), :]    # (24, 32)
        wj = wih_ref[pl.ds(GCN_OUT * j, GCN_OUT), :]          # (32, 256)
        gx = gx + jnp.dot(seq_j, wj, preferred_element_type=jnp.float32)
    gx_s[...] = gx + bl_ref[...]                              # add b_ih+b_hh once

    # ---- Stage 4: LSTM recurrence (fully unrolled) + final Linear -----------
    whh = whh_ref[...]                                        # (64, 256)

    def step(t, carry):
        h, c = carry
        gates = gx_s[pl.ds(t, 1), :] + jnp.dot(
            h, whh, preferred_element_type=jnp.float32)       # (1, 256)
        # gate columns reordered on the host to [i, f, o, g]
        sg = jax.nn.sigmoid(gates[:, :3 * H])
        i_g = sg[:, 0:H]
        f_g = sg[:, H:2 * H]
        o_g = sg[:, 2 * H:3 * H]
        g_g = jnp.tanh(gates[:, 3 * H:4 * H])
        c_new = f_g * c + i_g * g_g
        h_new = o_g * jnp.tanh(c_new)
        return h_new, c_new

    h0 = jnp.zeros((1, H), jnp.float32)
    c0 = jnp.zeros((1, H), jnp.float32)
    h_last, _ = lax.fori_loop(0, TIME_STEPS, step, (h0, c0), unroll=True)

    out_ref[...] = (jnp.dot(h_last, fcw_ref[...],
                            preferred_element_type=jnp.float32) + fcb_ref[...])


# ------------------------------- host-side prep ------------------------------
def _reorder_gates(w):
    """Reorder LSTM gate columns from PyTorch [i, f, g, o] to [i, f, o, g]."""
    H = HIDDEN
    return jnp.concatenate([w[..., :2 * H], w[..., 3 * H:4 * H],
                            w[..., 2 * H:3 * H]], axis=-1)


# Row permutation that folds torch's  (N,T,C).view(1,T,N*C)  scramble into the
# kron-expanded adjacency: new row p = 24*j + r  takes old row i = 10*r + j.
_PERM = np.asarray(NUM_TURBINES * (np.arange(NT) % TIME_STEPS)
                   + (np.arange(NT) // TIME_STEPS))


@jax.jit
def gcn_informer_forward(x, a_hat, params):
    x2d = x.reshape(NT, EMBED)                                    # (240, 64)
    a_big = jnp.kron(a_hat, jnp.eye(TIME_STEPS, dtype=jnp.float32))  # (240,240)
    a_perm = a_big[_PERM, :]
    wih = _reorder_gates(params['w_ih'])
    whh = _reorder_gates(params['w_hh'])
    bl = _reorder_gates(params['b_lstm'])

    inputs = (x2d, a_perm,
              params['wq'], params['bq'], params['wk'], params['bk'],
              params['gcn_w'], params['gcn_b'],
              wih, whh, bl, params['fc1_w'], params['fc1_b'])

    out, attn = pl.pallas_call(
        _fused_kernel,
        out_shape=(jax.ShapeDtypeStruct((1, 1), jnp.float32),
                   jax.ShapeDtypeStruct((NUM_TURBINES, TIME_STEPS, TIME_STEPS),
                                        jnp.float32)),
        grid=(1,),
        in_specs=[_full_spec(a.shape) for a in inputs],
        out_specs=(_full_spec((1, 1)),
                   _full_spec((NUM_TURBINES, TIME_STEPS, TIME_STEPS))),
        scratch_shapes=[pltpu.VMEM((NT, EMBED), jnp.float32),        # Q
                        pltpu.VMEM((NT, EMBED), jnp.float32),        # K
                        pltpu.VMEM((NT, EMBED), jnp.float32),        # corr
                        pltpu.VMEM((TIME_STEPS, 4 * HIDDEN), jnp.float32)],
        compiler_params=pltpu.CompilerParams(
            dimension_semantics=("arbitrary",)),
    )(*inputs)
    # TODO(synk): the reference module's final `self.fc = nn.Linear(64, 1)` is
    # applied to the (1, 1) informer output, which is a shape mismatch (would
    # raise in PyTorch); it is omitted here and `out` corresponds to
    # `informer_out`.
    return out, attn


# ------------------------------ pure-JAX reference ---------------------------
def reference_forward(x, a_hat, p):
    q = jnp.einsum('nte,ef->ntf', x, p['wq']) + p['bq']
    k = jnp.einsum('nte,ef->ntf', x, p['wk']) + p['bk']
    s = jnp.einsum('ntf,nsf->nts', q, k) / (EMBED ** 0.5)
    attn = jax.nn.softmax(s, axis=-1)
    corr = jnp.einsum('nts,nse->nte', attn, x)
    xw = jnp.einsum('nte,ec->ntc', corr, p['gcn_w'])
    gcn = jax.nn.relu(jnp.einsum('nm,mtc->ntc', a_hat, xw) + p['gcn_b'])
    seq = gcn.reshape(1, TIME_STEPS, -1)[0]           # (T, 320), torch .view
    H = HIDDEN

    def step(carry, x_t):
        h, c = carry
        gates = x_t[None, :] @ p['w_ih'] + h @ p['w_hh'] + p['b_lstm']
        i_g = jax.nn.sigmoid(gates[:, 0 * H:1 * H])
        f_g = jax.nn.sigmoid(gates[:, 1 * H:2 * H])
        g_g = jnp.tanh(gates[:, 2 * H:3 * H])
        o_g = jax.nn.sigmoid(gates[:, 3 * H:4 * H])
        c = f_g * c + i_g * g_g
        h = o_g * jnp.tanh(c)
        return (h, c), None

    (h, _), _ = lax.scan(step, (jnp.zeros((1, H), jnp.float32),
                                jnp.zeros((1, H), jnp.float32)), seq)
    out = h @ p['fc1_w'] + p['fc1_b']
    return out, attn


def normalized_adjacency(edge_index, n):
    src, dst = edge_index
    a = jnp.zeros((n, n), jnp.float32).at[dst, src].set(1.0)   # message src -> dst
    a = a + jnp.eye(n, dtype=jnp.float32)                      # GCNConv self loops
    deg = jnp.sum(a, axis=1)
    dinv = lax.rsqrt(deg)
    return a * dinv[:, None] * dinv[None, :]


# ----------------------------------- main ------------------------------------
if __name__ == "__main__":
    key = jax.random.PRNGKey(0)
    ks = jax.random.split(key, 12)

    def u(k, shape, fan_in):
        lim = 1.0 / np.sqrt(fan_in)
        return jax.random.uniform(k, shape, jnp.float32, -lim, lim)

    params = {
        'wq': u(ks[0], (EMBED, EMBED), EMBED),
        'bq': u(ks[1], (1, EMBED), EMBED),
        'wk': u(ks[2], (EMBED, EMBED), EMBED),
        'bk': u(ks[3], (1, EMBED), EMBED),
        'gcn_w': u(ks[4], (EMBED, GCN_OUT), EMBED),
        'gcn_b': u(ks[5], (1, GCN_OUT), EMBED),
        'w_ih': u(ks[6], (LSTM_IN, 4 * HIDDEN), HIDDEN),
        'w_hh': u(ks[7], (HIDDEN, 4 * HIDDEN), HIDDEN),
        'b_lstm': u(ks[8], (1, 4 * HIDDEN), HIDDEN),
        'fc1_w': u(ks[9], (HIDDEN, 1), HIDDEN),
        'fc1_b': u(ks[10], (1, 1), HIDDEN),
    }

    x = jax.random.normal(ks[11], (NUM_TURBINES, TIME_STEPS, EMBED), jnp.float32)

    # Deterministic ring graph over turbines (both directions), PyG edge_index style.
    src = np.arange(NUM_TURBINES)
    dst = (src + 1) % NUM_TURBINES
    edge_index = jnp.asarray(np.stack([np.concatenate([src, dst]),
                                       np.concatenate([dst, src])]), jnp.int32)
    a_hat = normalized_adjacency(edge_index, NUM_TURBINES)

    out, attn = gcn_informer_forward(x, a_hat, params)
    out, attn = jax.block_until_ready((out, attn))

    ref_out, ref_attn = reference_forward(x, a_hat, params)
    assert np.allclose(np.asarray(attn), np.asarray(ref_attn),
                       atol=2e-3, rtol=2e-3), "attention mismatch"
    assert np.allclose(np.asarray(out), np.asarray(ref_out),
                       atol=2e-3, rtol=2e-3), "output mismatch"

    print("KERNEL_OK")
</pallas_src>

<mosaic_0001>
module attributes {stable_mosaic.version = 11 : i64} {
  func.func @_fused_kernel(%arg0: i32, %arg1: memref<240x64xf32, #tpu.memory_space<vmem>>, %arg2: memref<240x240xf32, #tpu.memory_space<vmem>>, %arg3: memref<64x64xf32, #tpu.memory_space<vmem>>, %arg4: memref<1x64xf32, #tpu.memory_space<vmem>>, %arg5: memref<64x64xf32, #tpu.memory_space<vmem>>, %arg6: memref<1x64xf32, #tpu.memory_space<vmem>>, %arg7: memref<64x32xf32, #tpu.memory_space<vmem>>, %arg8: memref<1x32xf32, #tpu.memory_space<vmem>>, %arg9: memref<320x256xf32, #tpu.memory_space<vmem>>, %arg10: memref<64x256xf32, #tpu.memory_space<vmem>>, %arg11: memref<1x256xf32, #tpu.memory_space<vmem>>, %arg12: memref<64x1xf32, #tpu.memory_space<vmem>>, %arg13: memref<1x1xf32, #tpu.memory_space<vmem>>, %arg14: memref<1x1xf32, #tpu.memory_space<vmem>>, %arg15: memref<10x24x24xf32, #tpu.memory_space<vmem>>, %arg16: memref<240x64xf32, #tpu.memory_space<vmem>>, %arg17: memref<240x64xf32, #tpu.memory_space<vmem>>, %arg18: memref<240x64xf32, #tpu.memory_space<vmem>>, %arg19: memref<24x256xf32, #tpu.memory_space<vmem>>) attributes {dimension_semantics = [#tpu.dimension_semantics<arbitrary>], iteration_bounds = array<i64: 1>, scalar_prefetch = 0 : i64, scratch_operands = 4 : i64, tpu.core_type = #tpu.core_type<tc>, window_params = [{pipeline_mode = #tpu.pipeline_mode<synchronous>, transform_indices = @transform_0, window_bounds = array<i64: 240, 64>}, {pipeline_mode = #tpu.pipeline_mode<synchronous>, transform_indices = @transform_1, window_bounds = array<i64: 240, 240>}, {pipeline_mode = #tpu.pipeline_mode<synchronous>, transform_indices = @transform_2, window_bounds = array<i64: 64, 64>}, {pipeline_mode = #tpu.pipeline_mode<synchronous>, transform_indices = @transform_3, window_bounds = array<i64: 1, 64>}, {pipeline_mode = #tpu.pipeline_mode<synchronous>, transform_indices = @transform_4, window_bounds = array<i64: 64, 64>}, {pipeline_mode = #tpu.pipeline_mode<synchronous>, transform_indices = @transform_5, window_bounds = array<i64: 1, 64>}, {pipeline_mode = #tpu.pipeline_mode<synchronous>, transform_indices = @transform_6, window_bounds = array<i64: 64, 32>}, {pipeline_mode = #tpu.pipeline_mode<synchronous>, transform_indices = @transform_7, window_bounds = array<i64: 1, 32>}, {pipeline_mode = #tpu.pipeline_mode<synchronous>, transform_indices = @transform_8, window_bounds = array<i64: 320, 256>}, {pipeline_mode = #tpu.pipeline_mode<synchronous>, transform_indices = @transform_9, window_bounds = array<i64: 64, 256>}, {pipeline_mode = #tpu.pipeline_mode<synchronous>, transform_indices = @transform_10, window_bounds = array<i64: 1, 256>}, {pipeline_mode = #tpu.pipeline_mode<synchronous>, transform_indices = @transform_11, window_bounds = array<i64: 64, 1>}, {pipeline_mode = #tpu.pipeline_mode<synchronous>, transform_indices = @transform_12, window_bounds = array<i64: 1, 1>}, {pipeline_mode = #tpu.pipeline_mode<synchronous>, transform_indices = @transform_13, window_bounds = array<i64: 1, 1>}, {pipeline_mode = #tpu.pipeline_mode<synchronous>, transform_indices = @transform_14, window_bounds = array<i64: 10, 24, 24>}]} {
    %c0 = arith.constant 0 : index
    %c0_0 = arith.constant 0 : index
    %0 = vector.load %arg1[%c0, %c0_0] : memref<240x64xf32, #tpu.memory_space<vmem>>, vector<240x64xf32>
    %c0_1 = arith.constant 0 : index
    %c0_2 = arith.constant 0 : index
    %1 = vector.load %arg3[%c0_1, %c0_2] : memref<64x64xf32, #tpu.memory_space<vmem>>, vector<64x64xf32>
    %cst = arith.constant dense<0.000000e+00> : vector<240x64xf32>
    %2 = tpu.matmul %0, %1, %cst {dimension_numbers = #tpu.dot_dimension_numbers<[1], [0], [0], [1], [0, 0, 1, 1], [], []>} : vector<240x64xf32>, vector<64x64xf32>, vector<240x64xf32> -> vector<240x64xf32>
    %c0_3 = arith.constant 0 : index
    %c0_4 = arith.constant 0 : index
    %3 = vector.load %arg4[%c0_3, %c0_4] : memref<1x64xf32, #tpu.memory_space<vmem>>, vector<1x64xf32>
    %4 = vector.broadcast %3 : vector<1x64xf32> to vector<240x64xf32>
    %5 = arith.addf %2, %4 : vector<240x64xf32>
    %c0_5 = arith.constant 0 : index
    %c0_6 = arith.constant 0 : index
    %6 = vector.load %arg16[%c0_5, %c0_6] : memref<240x64xf32, #tpu.memory_space<vmem>>, vector<240x64xf32>
    tpu.vector_store %arg16[%c0_5, %c0_6], %5 {strides = array<i32>} : memref<240x64xf32, #tpu.memory_space<vmem>>, vector<240x64xf32>,
    %c0_7 = arith.constant 0 : index
    %c0_8 = arith.constant 0 : index
    %7 = vector.load %arg5[%c0_7, %c0_8] : memref<64x64xf32, #tpu.memory_space<vmem>>, vector<64x64xf32>
    %cst_9 = arith.constant dense<0.000000e+00> : vector<240x64xf32>
    %8 = tpu.matmul %0, %7, %cst_9 {dimension_numbers = #tpu.dot_dimension_numbers<[1], [0], [0], [1], [0, 0, 1, 1], [], []>} : vector<240x64xf32>, vector<64x64xf32>, vector<240x64xf32> -> vector<240x64xf32>
    %c0_10 = arith.constant 0 : index
    %c0_11 = arith.constant 0 : index
    %9 = vector.load %arg6[%c0_10, %c0_11] : memref<1x64xf32, #tpu.memory_space<vmem>>, vector<1x64xf32>
    %10 = vector.broadcast %9 : vector<1x64xf32> to vector<240x64xf32>
    %11 = arith.addf %8, %10 : vector<240x64xf32>
    %c0_12 = arith.constant 0 : index
    %c0_13 = arith.constant 0 : index
    %12 = vector.load %arg17[%c0_12, %c0_13] : memref<240x64xf32, #tpu.memory_space<vmem>>, vector<240x64xf32>
    tpu.vector_store %arg17[%c0_12, %c0_13], %11 {strides = array<i32>} : memref<240x64xf32, #tpu.memory_space<vmem>>, vector<240x64xf32>,
    %c0_14 = arith.constant 0 : index
    %c0_15 = arith.constant 0 : index
    %13 = vector.load %arg16[%c0_14, %c0_15] : memref<240x64xf32, #tpu.memory_space<vmem>>, vector<24x64xf32>
    %c0_16 = arith.constant 0 : index
    %c0_17 = arith.constant 0 : index
    %14 = vector.load %arg17[%c0_16, %c0_17] : memref<240x64xf32, #tpu.memory_space<vmem>>, vector<24x64xf32>
    %cst_18 = arith.constant dense<0.000000e+00> : vector<24x24xf32>
    %15 = tpu.matmul %13, %14, %cst_18 {dimension_numbers = #tpu.dot_dimension_numbers<[1], [1], [0], [0], [0, 0, 1, 0], [], []>} : vector<24x64xf32>, vector<24x64xf32>, vector<24x24xf32> -> vector<24x24xf32>
    %cst_19 = arith.constant 1.250000e-01 : f32
    %16 = vector.broadcast %cst_19 : f32 to vector<24x24xf32>
    %17 = arith.mulf %15, %16 : vector<24x24xf32>
    %cst_20 = arith.constant dense<0xFF800000> : vector<24xf32>
    %18 = vector.multi_reduction <maximumf>, %17, %cst_20 [1] : vector<24x24xf32> to vector<24xf32>
    %19 = vector.shape_cast %18 : vector<24xf32> to vector<24x1xf32>
    %20 = vector.broadcast %19 : vector<24x1xf32> to vector<24x24xf32>
    %21 = arith.subf %17, %20 : vector<24x24xf32>
    %22 = math.exp %21 : vector<24x24xf32>
    %cst_21 = arith.constant dense<0.000000e+00> : vector<24xf32>
    %23 = vector.multi_reduction <add>, %22, %cst_21 [1] : vector<24x24xf32> to vector<24xf32>
    %24 = vector.shape_cast %23 : vector<24xf32> to vector<24x1xf32>
    %25 = vector.broadcast %24 : vector<24x1xf32> to vector<24x24xf32>
    %26 = arith.divf %22, %25 : vector<24x24xf32>
    %c0_22 = arith.constant 0 : index
    %c0_23 = arith.constant 0 : index
    %c0_24 = arith.constant 0 : index
    %27 = vector.load %arg15[%c0_22, %c0_23, %c0_24] : memref<10x24x24xf32, #tpu.memory_space<vmem>>, vector<1x24x24xf32>
    %28 = vector.shape_cast %27 : vector<1x24x24xf32> to vector<24x24xf32>
    %29 = vector.shape_cast %26 : vector<24x24xf32> to vector<1x24x24xf32>
    tpu.vector_store %arg15[%c0_22, %c0_23, %c0_24], %29 {strides = array<i32>} : memref<10x24x24xf32, #tpu.memory_space<vmem>>, vector<1x24x24xf32>,
    %c0_25 = arith.constant 0 : index
    %c0_26 = arith.constant 0 : index
    %30 = vector.load %arg1[%c0_25, %c0_26] : memref<240x64xf32, #tpu.memory_space<vmem>>, vector<24x64xf32>
    %cst_27 = arith.constant dense<0.000000e+00> : vector<24x64xf32>
    %31 = tpu.matmul %26, %30, %cst_27 {dimension_numbers = #tpu.dot_dimension_numbers<[1], [0], [0], [1], [0, 0, 1, 1], [], []>} : vector<24x24xf32>, vector<24x64xf32>, vector<24x64xf32> -> vector<24x64xf32>
    %c0_28 = arith.constant 0 : index
    %c0_29 = arith.constant 0 : index
    %32 = vector.load %arg18[%c0_28, %c0_29] : memref<240x64xf32, #tpu.memory_space<vmem>>, vector<24x64xf32>
    tpu.vector_store %arg18[%c0_28, %c0_29], %31 {strides = array<i32>} : memref<240x64xf32, #tpu.memory_space<vmem>>, vector<24x64xf32>,
    %c24 = arith.constant 24 : index
    %c0_30 = arith.constant 0 : index
    %33 = vector.load %arg16[%c24, %c0_30] : memref<240x64xf32, #tpu.memory_space<vmem>>, vector<24x64xf32>
    %c24_31 = arith.constant 24 : index
    %c0_32 = arith.constant 0 : index
    %34 = vector.load %arg17[%c24_31, %c0_32] : memref<240x64xf32, #tpu.memory_space<vmem>>, vector<24x64xf32>
    %cst_33 = arith.constant dense<0.000000e+00> : vector<24x24xf32>
    %35 = tpu.matmul %33, %34, %cst_33 {dimension_numbers = #tpu.dot_dimension_numbers<[1], [1], [0], [0], [0, 0, 1, 0], [], []>} : vector<24x64xf32>, vector<24x64xf32>, vector<24x24xf32> -> vector<24x24xf32>
    %cst_34 = arith.constant 1.250000e-01 : f32
    %36 = vector.broadcast %cst_34 : f32 to vector<24x24xf32>
    %37 = arith.mulf %35, %36 : vector<24x24xf32>
    %cst_35 = arith.constant dense<0xFF800000> : vector<24xf32>
    %38 = vector.multi_reduction <maximumf>, %37, %cst_35 [1] : vector<24x24xf32> to vector<24xf32>
    %39 = vector.shape_cast %38 : vector<24xf32> to vector<24x1xf32>
    %40 = vector.broadcast %39 : vector<24x1xf32> to vector<24x24xf32>
    %41 = arith.subf %37, %40 : vector<24x24xf32>
    %42 = math.exp %41 : vector<24x24xf32>
    %cst_36 = arith.constant dense<0.000000e+00> : vector<24xf32>
    %43 = vector.multi_reduction <add>, %42, %cst_36 [1] : vector<24x24xf32> to vector<24xf32>
    %44 = vector.shape_cast %43 : vector<24xf32> to vector<24x1xf32>
    %45 = vector.broadcast %44 : vector<24x1xf32> to vector<24x24xf32>
    %46 = arith.divf %42, %45 : vector<24x24xf32>
    %c1 = arith.constant 1 : index
    %c0_37 = arith.constant 0 : index
    %c0_38 = arith.constant 0 : index
    %47 = vector.load %arg15[%c1, %c0_37, %c0_38] : memref<10x24x24xf32, #tpu.memory_space<vmem>>, vector<1x24x24xf32>
    %48 = vector.shape_cast %47 : vector<1x24x24xf32> to vector<24x24xf32>
    %49 = vector.shape_cast %46 : vector<24x24xf32> to vector<1x24x24xf32>
    tpu.vector_store %arg15[%c1, %c0_37, %c0_38], %49 {strides = array<i32>} : memref<10x24x24xf32, #tpu.memory_space<vmem>>, vector<1x24x24xf32>,
    %c24_39 = arith.constant 24 : index
    %c0_40 = arith.constant 0 : index
    %50 = vector.load %arg1[%c24_39, %c0_40] : memref<240x64xf32, #tpu.memory_space<vmem>>, vector<24x64xf32>
    %cst_41 = arith.constant dense<0.000000e+00> : vector<24x64xf32>
    %51 = tpu.matmul %46, %50, %cst_41 {dimension_numbers = #tpu.dot_dimension_numbers<[1], [0], [0], [1], [0, 0, 1, 1], [], []>} : vector<24x24xf32>, vector<24x64xf32>, vector<24x64xf32> -> vector<24x64xf32>
    %c24_42 = arith.constant 24 : index
    %c0_43 = arith.constant 0 : index
    %52 = vector.load %arg18[%c24_42, %c0_43] : memref<240x64xf32, #tpu.memory_space<vmem>>, vector<24x64xf32>
    tpu.vector_store %arg18[%c24_42, %c0_43], %51 {strides = array<i32>} : memref<240x64xf32, #tpu.memory_space<vmem>>, vector<24x64xf32>,
    %c48 = arith.constant 48 : index
    %c0_44 = arith.constant 0 : index
    %53 = vector.load %arg16[%c48, %c0_44] : memref<240x64xf32, #tpu.memory_space<vmem>>, vector<24x64xf32>
    %c48_45 = arith.constant 48 : index
    %c0_46 = arith.constant 0 : index
    %54 = vector.load %arg17[%c48_45, %c0_46] : memref<240x64xf32, #tpu.memory_space<vmem>>, vector<24x64xf32>
    %cst_47 = arith.constant dense<0.000000e+00> : vector<24x24xf32>
    %55 = tpu.matmul %53, %54, %cst_47 {dimension_numbers = #tpu.dot_dimension_numbers<[1], [1], [0], [0], [0, 0, 1, 0], [], []>} : vector<24x64xf32>, vector<24x64xf32>, vector<24x24xf32> -> vector<24x24xf32>
    %cst_48 = arith.constant 1.250000e-01 : f32
    %56 = vector.broadcast %cst_48 : f32 to vector<24x24xf32>
    %57 = arith.mulf %55, %56 : vector<24x24xf32>
    %cst_49 = arith.constant dense<0xFF800000> : vector<24xf32>
    %58 = vector.multi_reduction <maximumf>, %57, %cst_49 [1] : vector<24x24xf32> to vector<24xf32>
    %59 = vector.shape_cast %58 : vector<24xf32> to vector<24x1xf32>
    %60 = vector.broadcast %59 : vector<24x1xf32> to vector<24x24xf32>
    %61 = arith.subf %57, %60 : vector<24x24xf32>
    %62 = math.exp %61 : vector<24x24xf32>
    %cst_50 = arith.constant dense<0.000000e+00> : vector<24xf32>
    %63 = vector.multi_reduction <add>, %62, %cst_50 [1] : vector<24x24xf32> to vector<24xf32>
    %64 = vector.shape_cast %63 : vector<24xf32> to vector<24x1xf32>
    %65 = vector.broadcast %64 : vector<24x1xf32> to vector<24x24xf32>
    %66 = arith.divf %62, %65 : vector<24x24xf32>
    %c2 = arith.constant 2 : index
    %c0_51 = arith.constant 0 : index
    %c0_52 = arith.constant 0 : index
    %67 = vector.load %arg15[%c2, %c0_51, %c0_52] : memref<10x24x24xf32, #tpu.memory_space<vmem>>, vector<1x24x24xf32>
    %68 = vector.shape_cast %67 : vector<1x24x24xf32> to vector<24x24xf32>
    %69 = vector.shape_cast %66 : vector<24x24xf32> to vector<1x24x24xf32>
    tpu.vector_store %arg15[%c2, %c0_51, %c0_52], %69 {strides = array<i32>} : memref<10x24x24xf32, #tpu.memory_space<vmem>>, vector<1x24x24xf32>,
    %c48_53 = arith.constant 48 : index
    %c0_54 = arith.constant 0 : index
    %70 = vector.load %arg1[%c48_53, %c0_54] : memref<240x64xf32, #tpu.memory_space<vmem>>, vector<24x64xf32>
    %cst_55 = arith.constant dense<0.000000e+00> : vector<24x64xf32>
    %71 = tpu.matmul %66, %70, %cst_55 {dimension_numbers = #tpu.dot_dimension_numbers<[1], [0], [0], [1], [0, 0, 1, 1], [], []>} : vector<24x24xf32>, vector<24x64xf32>, vector<24x64xf32> -> vector<24x64xf32>
    %c48_56 = arith.constant 48 : index
    %c0_57 = arith.constant 0 : index
    %72 = vector.load %arg18[%c48_56, %c0_57] : memref<240x64xf32, #tpu.memory_space<vmem>>, vector<24x64xf32>
    tpu.vector_store %arg18[%c48_56, %c0_57], %71 {strides = array<i32>} : memref<240x64xf32, #tpu.memory_space<vmem>>, vector<24x64xf32>,
    %c72 = arith.constant 72 : index
    %c0_58 = arith.constant 0 : index
    %73 = vector.load %arg16[%c72, %c0_58] : memref<240x64xf32, #tpu.memory_space<vmem>>, vector<24x64xf32>
    %c72_59 = arith.constant 72 : index
    %c0_60 = arith.constant 0 : index
    %74 = vector.load %arg17[%c72_59, %c0_60] : memref<240x64xf32, #tpu.memory_space<vmem>>, vector<24x64xf32>
    %cst_61 = arith.constant dense<0.000000e+00> : vector<24x24xf32>
    %75 = tpu.matmul %73, %74, %cst_61 {dimension_numbers = #tpu.dot_dimension_numbers<[1], [1], [0], [0], [0, 0, 1, 0], [], []>} : vector<24x64xf32>, vector<24x64xf32>, vector<24x24xf32> -> vector<24x24xf32>
    %cst_62 = arith.constant 1.250000e-01 : f32
    %76 = vector.broadcast %cst_62 : f32 to vector<24x24xf32>
    %77 = arith.mulf %75, %76 : vector<24x24xf32>
    %cst_63 = arith.constant dense<0xFF800000> : vector<24xf32>
    %78 = vector.multi_reduction <maximumf>, %77, %cst_63 [1] : vector<24x24xf32> to vector<24xf32>
    %79 = vector.shape_cast %78 : vector<24xf32> to vector<24x1xf32>
    %80 = vector.broadcast %79 : vector<24x1xf32> to vector<24x24xf32>
    %81 = arith.subf %77, %80 : vector<24x24xf32>
    %82 = math.exp %81 : vector<24x24xf32>
    %cst_64 = arith.constant dense<0.000000e+00> : vector<24xf32>
    %83 = vector.multi_reduction <add>, %82, %cst_64 [1] : vector<24x24xf32> to vector<24xf32>
    %84 = vector.shape_cast %83 : vector<24xf32> to vector<24x1xf32>
    %85 = vector.broadcast %84 : vector<24x1xf32> to vector<24x24xf32>
    %86 = arith.divf %82, %85 : vector<24x24xf32>
    %c3 = arith.constant 3 : index
    %c0_65 = arith.constant 0 : index
    %c0_66 = arith.constant 0 : index
    %87 = vector.load %arg15[%c3, %c0_65, %c0_66] : memref<10x24x24xf32, #tpu.memory_space<vmem>>, vector<1x24x24xf32>
    %88 = vector.shape_cast %87 : vector<1x24x24xf32> to vector<24x24xf32>
    %89 = vector.shape_cast %86 : vector<24x24xf32> to vector<1x24x24xf32>
    tpu.vector_store %arg15[%c3, %c0_65, %c0_66], %89 {strides = array<i32>} : memref<10x24x24xf32, #tpu.memory_space<vmem>>, vector<1x24x24xf32>,
    %c72_67 = arith.constant 72 : index
    %c0_68 = arith.constant 0 : index
    %90 = vector.load %arg1[%c72_67, %c0_68] : memref<240x64xf32, #tpu.memory_space<vmem>>, vector<24x64xf32>
    %cst_69 = arith.constant dense<0.000000e+00> : vector<24x64xf32>
    %91 = tpu.matmul %86, %90, %cst_69 {dimension_numbers = #tpu.dot_dimension_numbers<[1], [0], [0], [1], [0, 0, 1, 1], [], []>} : vector<24x24xf32>, vector<24x64xf32>, vector<24x64xf32> -> vector<24x64xf32>
    %c72_70 = arith.constant 72 : index
    %c0_71 = arith.constant 0 : index
    %92 = vector.load %arg18[%c72_70, %c0_71] : memref<240x64xf32, #tpu.memory_space<vmem>>, vector<24x64xf32>
    tpu.vector_store %arg18[%c72_70, %c0_71], %91 {strides = array<i32>} : memref<240x64xf32, #tpu.memory_space<vmem>>, vector<24x64xf32>,
    %c96 = arith.constant 96 : index
    %c0_72 = arith.constant 0 : index
    %93 = vector.load %arg16[%c96, %c0_72] : memref<240x64xf32, #tpu.memory_space<vmem>>, vector<24x64xf32>
    %c96_73 = arith.constant 96 : index
    %c0_74 = arith.constant 0 : index
    %94 = vector.load %arg17[%c96_73, %c0_74] : memref<240x64xf32, #tpu.memory_space<vmem>>, vector<24x64xf32>
    %cst_75 = arith.constant dense<0.000000e+00> : vector<24x24xf32>
    %95 = tpu.matmul %93, %94, %cst_75 {dimension_numbers = #tpu.dot_dimension_numbers<[1], [1], [0], [0], [0, 0, 1, 0], [], []>} : vector<24x64xf32>, vector<24x64xf32>, vector<24x24xf32> -> vector<24x24xf32>
    %cst_76 = arith.constant 1.250000e-01 : f32
    %96 = vector.broadcast %cst_76 : f32 to vector<24x24xf32>
    %97 = arith.mulf %95, %96 : vector<24x24xf32>
    %cst_77 = arith.constant dense<0xFF800000> : vector<24xf32>
    %98 = vector.multi_reduction <maximumf>, %97, %cst_77 [1] : vector<24x24xf32> to vector<24xf32>
    %99 = vector.shape_cast %98 : vector<24xf32> to vector<24x1xf32>
    %100 = vector.broadcast %99 : vector<24x1xf32> to vector<24x24xf32>
    %101 = arith.subf %97, %100 : vector<24x24xf32>
    %102 = math.exp %101 : vector<24x24xf32>
    %cst_78 = arith.constant dense<0.000000e+00> : vector<24xf32>
    %103 = vector.multi_reduction <add>, %102, %cst_78 [1] : vector<24x24xf32> to vector<24xf32>
    %104 = vector.shape_cast %103 : vector<24xf32> to vector<24x1xf32>
    %105 = vector.broadcast %104 : vector<24x1xf32> to vector<24x24xf32>
    %106 = arith.divf %102, %105 : vector<24x24xf32>
    %c4 = arith.constant 4 : index
    %c0_79 = arith.constant 0 : index
    %c0_80 = arith.constant 0 : index
    %107 = vector.load %arg15[%c4, %c0_79, %c0_80] : memref<10x24x24xf32, #tpu.memory_space<vmem>>, vector<1x24x24xf32>
    %108 = vector.shape_cast %107 : vector<1x24x24xf32> to vector<24x24xf32>
    %109 = vector.shape_cast %106 : vector<24x24xf32> to vector<1x24x24xf32>
    tpu.vector_store %arg15[%c4, %c0_79, %c0_80], %109 {strides = array<i32>} : memref<10x24x24xf32, #tpu.memory_space<vmem>>, vector<1x24x24xf32>,
    %c96_81 = arith.constant 96 : index
    %c0_82 = arith.constant 0 : index
    %110 = vector.load %arg1[%c96_81, %c0_82] : memref<240x64xf32, #tpu.memory_space<vmem>>, vector<24x64xf32>
    %cst_83 = arith.constant dense<0.000000e+00> : vector<24x64xf32>
    %111 = tpu.matmul %106, %110, %cst_83 {dimension_numbers = #tpu.dot_dimension_numbers<[1], [0], [0], [1], [0, 0, 1, 1], [], []>} : vector<24x24xf32>, vector<24x64xf32>, vector<24x64xf32> -> vector<24x64xf32>
    %c96_84 = arith.constant 96 : index
    %c0_85 = arith.constant 0 : index
    %112 = vector.load %arg18[%c96_84, %c0_85] : memref<240x64xf32, #tpu.memory_space<vmem>>, vector<24x64xf32>
    tpu.vector_store %arg18[%c96_84, %c0_85], %111 {strides = array<i32>} : memref<240x64xf32, #tpu.memory_space<vmem>>, vector<24x64xf32>,
    %c120 = arith.constant 120 : index
    %c0_86 = arith.constant 0 : index
    %113 = vector.load %arg16[%c120, %c0_86] : memref<240x64xf32, #tpu.memory_space<vmem>>, vector<24x64xf32>
    %c120_87 = arith.constant 120 : index
    %c0_88 = arith.constant 0 : index
    %114 = vector.load %arg17[%c120_87, %c0_88] : memref<240x64xf32, #tpu.memory_space<vmem>>, vector<24x64xf32>
    %cst_89 = arith.constant dense<0.000000e+00> : vector<24x24xf32>
    %115 = tpu.matmul %113, %114, %cst_89 {dimension_numbers = #tpu.dot_dimension_numbers<[1], [1], [0], [0], [0, 0, 1, 0], [], []>} : vector<24x64xf32>, vector<24x64xf32>, vector<24x24xf32> -> vector<24x24xf32>
    %cst_90 = arith.constant 1.250000e-01 : f32
    %116 = vector.broadcast %cst_90 : f32 to vector<24x24xf32>
    %117 = arith.mulf %115, %116 : vector<24x24xf32>
    %cst_91 = arith.constant dense<0xFF800000> : vector<24xf32>
    %118 = vector.multi_reduction <maximumf>, %117, %cst_91 [1] : vector<24x24xf32> to vector<24xf32>
    %119 = vector.shape_cast %118 : vector<24xf32> to vector<24x1xf32>
    %120 = vector.broadcast %119 : vector<24x1xf32> to vector<24x24xf32>
    %121 = arith.subf %117, %120 : vector<24x24xf32>
    %122 = math.exp %121 : vector<24x24xf32>
    %cst_92 = arith.constant dense<0.000000e+00> : vector<24xf32>
    %123 = vector.multi_reduction <add>, %122, %cst_92 [1] : vector<24x24xf32> to vector<24xf32>
    %124 = vector.shape_cast %123 : vector<24xf32> to vector<24x1xf32>
    %125 = vector.broadcast %124 : vector<24x1xf32> to vector<24x24xf32>
    %126 = arith.divf %122, %125 : vector<24x24xf32>
    %c5 = arith.constant 5 : index
    %c0_93 = arith.constant 0 : index
    %c0_94 = arith.constant 0 : index
    %127 = vector.load %arg15[%c5, %c0_93, %c0_94] : memref<10x24x24xf32, #tpu.memory_space<vmem>>, vector<1x24x24xf32>
    %128 = vector.shape_cast %127 : vector<1x24x24xf32> to vector<24x24xf32>
    %129 = vector.shape_cast %126 : vector<24x24xf32> to vector<1x24x24xf32>
    tpu.vector_store %arg15[%c5, %c0_93, %c0_94], %129 {strides = array<i32>} : memref<10x24x24xf32, #tpu.memory_space<vmem>>, vector<1x24x24xf32>,
    %c120_95 = arith.constant 120 : index
    %c0_96 = arith.constant 0 : index
    %130 = vector.load %arg1[%c120_95, %c0_96] : memref<240x64xf32, #tpu.memory_space<vmem>>, vector<24x64xf32>
    %cst_97 = arith.constant dense<0.000000e+00> : vector<24x64xf32>
    %131 = tpu.matmul %126, %130, %cst_97 {dimension_numbers = #tpu.dot_dimension_numbers<[1], [0], [0], [1], [0, 0, 1, 1], [], []>} : vector<24x24xf32>, vector<24x64xf32>, vector<24x64xf32> -> vector<24x64xf32>
    %c120_98 = arith.constant 120 : index
    %c0_99 = arith.constant 0 : index
    %132 = vector.load %arg18[%c120_98, %c0_99] : memref<240x64xf32, #tpu.memory_space<vmem>>, vector<24x64xf32>
    tpu.vector_store %arg18[%c120_98, %c0_99], %131 {strides = array<i32>} : memref<240x64xf32, #tpu.memory_space<vmem>>, vector<24x64xf32>,
    %c144 = arith.constant 144 : index
    %c0_100 = arith.constant 0 : index
    %133 = vector.load %arg16[%c144, %c0_100] : memref<240x64xf32, #tpu.memory_space<vmem>>, vector<24x64xf32>
    %c144_101 = arith.constant 144 : index
    %c0_102 = arith.constant 0 : index
    %134 = vector.load %arg17[%c144_101, %c0_102] : memref<240x64xf32, #tpu.memory_space<vmem>>, vector<24x64xf32>
    %cst_103 = arith.constant dense<0.000000e+00> : vector<24x24xf32>
    %135 = tpu.matmul %133, %134, %cst_103 {dimension_numbers = #tpu.dot_dimension_numbers<[1], [1], [0], [0], [0, 0, 1, 0], [], []>} : vector<24x64xf32>, vector<24x64xf32>, vector<24x24xf32> -> vector<24x24xf32>
    %cst_104 = arith.constant 1.250000e-01 : f32
    %136 = vector.broadcast %cst_104 : f32 to vector<24x24xf32>
    %137 = arith.mulf %135, %136 : vector<24x24xf32>
    %cst_105 = arith.constant dense<0xFF800000> : vector<24xf32>
    %138 = vector.multi_reduction <maximumf>, %137, %cst_105 [1] : vector<24x24xf32> to vector<24xf32>
    %139 = vector.shape_cast %138 : vector<24xf32> to vector<24x1xf32>
    %140 = vector.broadcast %139 : vector<24x1xf32> to vector<24x24xf32>
    %141 = arith.subf %137, %140 : vector<24x24xf32>
    %142 = math.exp %141 : vector<24x24xf32>
    %cst_106 = arith.constant dense<0.000000e+00> : vector<24xf32>
    %143 = vector.multi_reduction <add>, %142, %cst_106 [1] : vector<24x24xf32> to vector<24xf32>
    %144 = vector.shape_cast %143 : vector<24xf32> to vector<24x1xf32>
    %145 = vector.broadcast %144 : vector<24x1xf32> to vector<24x24xf32>
    %146 = arith.divf %142, %145 : vector<24x24xf32>
    %c6 = arith.constant 6 : index
    %c0_107 = arith.constant 0 : index
    %c0_108 = arith.constant 0 : index
    %147 = vector.load %arg15[%c6, %c0_107, %c0_108] : memref<10x24x24xf32, #tpu.memory_space<vmem>>, vector<1x24x24xf32>
    %148 = vector.shape_cast %147 : vector<1x24x24xf32> to vector<24x24xf32>
    %149 = vector.shape_cast %146 : vector<24x24xf32> to vector<1x24x24xf32>
    tpu.vector_store %arg15[%c6, %c0_107, %c0_108], %149 {strides = array<i32>} : memref<10x24x24xf32, #tpu.memory_space<vmem>>, vector<1x24x24xf32>,
    %c144_109 = arith.constant 144 : index
    %c0_110 = arith.constant 0 : index
    %150 = vector.load %arg1[%c144_109, %c0_110] : memref<240x64xf32, #tpu.memory_space<vmem>>, vector<24x64xf32>
    %cst_111 = arith.constant dense<0.000000e+00> : vector<24x64xf32>
    %151 = tpu.matmul %146, %150, %cst_111 {dimension_numbers = #tpu.dot_dimension_numbers<[1], [0], [0], [1], [0, 0, 1, 1], [], []>} : vector<24x24xf32>, vector<24x64xf32>, vector<24x64xf32> -> vector<24x64xf32>
    %c144_112 = arith.constant 144 : index
    %c0_113 = arith.constant 0 : index
    %152 = vector.load %arg18[%c144_112, %c0_113] : memref<240x64xf32, #tpu.memory_space<vmem>>, vector<24x64xf32>
    tpu.vector_store %arg18[%c144_112, %c0_113], %151 {strides = array<i32>} : memref<240x64xf32, #tpu.memory_space<vmem>>, vector<24x64xf32>,
    %c168 = arith.constant 168 : index
    %c0_114 = arith.constant 0 : index
    %153 = vector.load %arg16[%c168, %c0_114] : memref<240x64xf32, #tpu.memory_space<vmem>>, vector<24x64xf32>
    %c168_115 = arith.constant 168 : index
    %c0_116 = arith.constant 0 : index
    %154 = vector.load %arg17[%c168_115, %c0_116] : memref<240x64xf32, #tpu.memory_space<vmem>>, vector<24x64xf32>
    %cst_117 = arith.constant dense<0.000000e+00> : vector<24x24xf32>
    %155 = tpu.matmul %153, %154, %cst_117 {dimension_numbers = #tpu.dot_dimension_numbers<[1], [1], [0], [0], [0, 0, 1, 0], [], []>} : vector<24x64xf32>, vector<24x64xf32>, vector<24x24xf32> -> vector<24x24xf32>
    %cst_118 = arith.constant 1.250000e-01 : f32
    %156 = vector.broadcast %cst_118 : f32 to vector<24x24xf32>
    %157 = arith.mulf %155, %156 : vector<24x24xf32>
    %cst_119 = arith.constant dense<0xFF800000> : vector<24xf32>
    %158 = vector.multi_reduction <maximumf>, %157, %cst_119 [1] : vector<24x24xf32> to vector<24xf32>
    %159 = vector.shape_cast %158 : vector<24xf32> to vector<24x1xf32>
    %160 = vector.broadcast %159 : vector<24x1xf32> to vector<24x24xf32>
    %161 = arith.subf %157, %160 : vector<24x24xf32>
    %162 = math.exp %161 : vector<24x24xf32>
    %cst_120 = arith.constant dense<0.000000e+00> : vector<24xf32>
    %163 = vector.multi_reduction <add>, %162, %cst_120 [1] : vector<24x24xf32> to vector<24xf32>
    %164 = vector.shape_cast %163 : vector<24xf32> to vector<24x1xf32>
    %165 = vector.broadcast %164 : vector<24x1xf32> to vector<24x24xf32>
    %166 = arith.divf %162, %165 : vector<24x24xf32>
    %c7 = arith.constant 7 : index
    %c0_121 = arith.constant 0 : index
    %c0_122 = arith.constant 0 : index
    %167 = vector.load %arg15[%c7, %c0_121, %c0_122] : memref<10x24x24xf32, #tpu.memory_space<vmem>>, vector<1x24x24xf32>
    %168 = vector.shape_cast %167 : vector<1x24x24xf32> to vector<24x24xf32>
    %169 = vector.shape_cast %166 : vector<24x24xf32> to vector<1x24x24xf32>
    tpu.vector_store %arg15[%c7, %c0_121, %c0_122], %169 {strides = array<i32>} : memref<10x24x24xf32, #tpu.memory_space<vmem>>, vector<1x24x24xf32>,
    %c168_123 = arith.constant 168 : index
    %c0_124 = arith.constant 0 : index
    %170 = vector.load %arg1[%c168_123, %c0_124] : memref<240x64xf32, #tpu.memory_space<vmem>>, vector<24x64xf32>
    %cst_125 = arith.constant dense<0.000000e+00> : vector<24x64xf32>
    %171 = tpu.matmul %166, %170, %cst_125 {dimension_numbers = #tpu.dot_dimension_numbers<[1], [0], [0], [1], [0, 0, 1, 1], [], []>} : vector<24x24xf32>, vector<24x64xf32>, vector<24x64xf32> -> vector<24x64xf32>
    %c168_126 = arith.constant 168 : index
    %c0_127 = arith.constant 0 : index
    %172 = vector.load %arg18[%c168_126, %c0_127] : memref<240x64xf32, #tpu.memory_space<vmem>>, vector<24x64xf32>
    tpu.vector_store %arg18[%c168_126, %c0_127], %171 {strides = array<i32>} : memref<240x64xf32, #tpu.memory_space<vmem>>, vector<24x64xf32>,
    %c192 = arith.constant 192 : index
    %c0_128 = arith.constant 0 : index
    %173 = vector.load %arg16[%c192, %c0_128] : memref<240x64xf32, #tpu.memory_space<vmem>>, vector<24x64xf32>
    %c192_129 = arith.constant 192 : index
    %c0_130 = arith.constant 0 : index
    %174 = vector.load %arg17[%c192_129, %c0_130] : memref<240x64xf32, #tpu.memory_space<vmem>>, vector<24x64xf32>
    %cst_131 = arith.constant dense<0.000000e+00> : vector<24x24xf32>
    %175 = tpu.matmul %173, %174, %cst_131 {dimension_numbers = #tpu.dot_dimension_numbers<[1], [1], [0], [0], [0, 0, 1, 0], [], []>} : vector<24x64xf32>, vector<24x64xf32>, vector<24x24xf32> -> vector<24x24xf32>
    %cst_132 = arith.constant 1.250000e-01 : f32
    %176 = vector.broadcast %cst_132 : f32 to vector<24x24xf32>
    %177 = arith.mulf %175, %176 : vector<24x24xf32>
    %cst_133 = arith.constant dense<0xFF800000> : vector<24xf32>
    %178 = vector.multi_reduction <maximumf>, %177, %cst_133 [1] : vector<24x24xf32> to vector<24xf32>
    %179 = vector.shape_cast %178 : vector<24xf32> to vector<24x1xf32>
    %180 = vector.broadcast %179 : vector<24x1xf32> to vector<24x24xf32>
    %181 = arith.subf %177, %180 : vector<24x24xf32>
    %182 = math.exp %181 : vector<24x24xf32>
    %cst_134 = arith.constant dense<0.000000e+00> : vector<24xf32>
    %183 = vector.multi_reduction <add>, %182, %cst_134 [1] : vector<24x24xf32> to vector<24xf32>
    %184 = vector.shape_cast %183 : vector<24xf32> to vector<24x1xf32>
    %185 = vector.broadcast %184 : vector<24x1xf32> to vector<24x24xf32>
    %186 = arith.divf %182, %185 : vector<24x24xf32>
    %c8 = arith.constant 8 : index
    %c0_135 = arith.constant 0 : index
    %c0_136 = arith.constant 0 : index
    %187 = vector.load %arg15[%c8, %c0_135, %c0_136] : memref<10x24x24xf32, #tpu.memory_space<vmem>>, vector<1x24x24xf32>
    %188 = vector.shape_cast %187 : vector<1x24x24xf32> to vector<24x24xf32>
    %189 = vector.shape_cast %186 : vector<24x24xf32> to vector<1x24x24xf32>
    tpu.vector_store %arg15[%c8, %c0_135, %c0_136], %189 {strides = array<i32>} : memref<10x24x24xf32, #tpu.memory_space<vmem>>, vector<1x24x24xf32>,
    %c192_137 = arith.constant 192 : index
    %c0_138 = arith.constant 0 : index
    %190 = vector.load %arg1[%c192_137, %c0_138] : memref<240x64xf32, #tpu.memory_space<vmem>>, vector<24x64xf32>
    %cst_139 = arith.constant dense<0.000000e+00> : vector<24x64xf32>
    %191 = tpu.matmul %186, %190, %cst_139 {dimension_numbers = #tpu.dot_dimension_numbers<[1], [0], [0], [1], [0, 0, 1, 1], [], []>} : vector<24x24xf32>, vector<24x64xf32>, vector<24x64xf32> -> vector<24x64xf32>
    %c192_140 = arith.constant 192 : index
    %c0_141 = arith.constant 0 : index
    %192 = vector.load %arg18[%c192_140, %c0_141] : memref<240x64xf32, #tpu.memory_space<vmem>>, vector<24x64xf32>
    tpu.vector_store %arg18[%c192_140, %c0_141], %191 {strides = array<i32>} : memref<240x64xf32, #tpu.memory_space<vmem>>, vector<24x64xf32>,
    %c216 = arith.constant 216 : index
    %c0_142 = arith.constant 0 : index
    %193 = vector.load %arg16[%c216, %c0_142] : memref<240x64xf32, #tpu.memory_space<vmem>>, vector<24x64xf32>
    %c216_143 = arith.constant 216 : index
    %c0_144 = arith.constant 0 : index
    %194 = vector.load %arg17[%c216_143, %c0_144] : memref<240x64xf32, #tpu.memory_space<vmem>>, vector<24x64xf32>
    %cst_145 = arith.constant dense<0.000000e+00> : vector<24x24xf32>
    %195 = tpu.matmul %193, %194, %cst_145 {dimension_numbers = #tpu.dot_dimension_numbers<[1], [1], [0], [0], [0, 0, 1, 0], [], []>} : vector<24x64xf32>, vector<24x64xf32>, vector<24x24xf32> -> vector<24x24xf32>
    %cst_146 = arith.constant 1.250000e-01 : f32
    %196 = vector.broadcast %cst_146 : f32 to vector<24x24xf32>
    %197 = arith.mulf %195, %196 : vector<24x24xf32>
    %cst_147 = arith.constant dense<0xFF800000> : vector<24xf32>
    %198 = vector.multi_reduction <maximumf>, %197, %cst_147 [1] : vector<24x24xf32> to vector<24xf32>
    %199 = vector.shape_cast %198 : vector<24xf32> to vector<24x1xf32>
    %200 = vector.broadcast %199 : vector<24x1xf32> to vector<24x24xf32>
    %201 = arith.subf %197, %200 : vector<24x24xf32>
    %202 = math.exp %201 : vector<24x24xf32>
    %cst_148 = arith.constant dense<0.000000e+00> : vector<24xf32>
    %203 = vector.multi_reduction <add>, %202, %cst_148 [1] : vector<24x24xf32> to vector<24xf32>
    %204 = vector.shape_cast %203 : vector<24xf32> to vector<24x1xf32>
    %205 = vector.broadcast %204 : vector<24x1xf32> to vector<24x24xf32>
    %206 = arith.divf %202, %205 : vector<24x24xf32>
    %c9 = arith.constant 9 : index
    %c0_149 = arith.constant 0 : index
    %c0_150 = arith.constant 0 : index
    %207 = vector.load %arg15[%c9, %c0_149, %c0_150] : memref<10x24x24xf32, #tpu.memory_space<vmem>>, vector<1x24x24xf32>
    %208 = vector.shape_cast %207 : vector<1x24x24xf32> to vector<24x24xf32>
    %209 = vector.shape_cast %206 : vector<24x24xf32> to vector<1x24x24xf32>
    tpu.vector_store %arg15[%c9, %c0_149, %c0_150], %209 {strides = array<i32>} : memref<10x24x24xf32, #tpu.memory_space<vmem>>, vector<1x24x24xf32>,
    %c216_151 = arith.constant 216 : index
    %c0_152 = arith.constant 0 : index
    %210 = vector.load %arg1[%c216_151, %c0_152] : memref<240x64xf32, #tpu.memory_space<vmem>>, vector<24x64xf32>
    %cst_153 = arith.constant dense<0.000000e+00> : vector<24x64xf32>
    %211 = tpu.matmul %206, %210, %cst_153 {dimension_numbers = #tpu.dot_dimension_numbers<[1], [0], [0], [1], [0, 0, 1, 1], [], []>} : vector<24x24xf32>, vector<24x64xf32>, vector<24x64xf32> -> vector<24x64xf32>
    %c216_154 = arith.constant 216 : index
    %c0_155 = arith.constant 0 : index
    %212 = vector.load %arg18[%c216_154, %c0_155] : memref<240x64xf32, #tpu.memory_space<vmem>>, vector<24x64xf32>
    tpu.vector_store %arg18[%c216_154, %c0_155], %211 {strides = array<i32>} : memref<240x64xf32, #tpu.memory_space<vmem>>, vector<24x64xf32>,
    %c0_156 = arith.constant 0 : index
    %c0_157 = arith.constant 0 : index
    %213 = vector.load %arg18[%c0_156, %c0_157] : memref<240x64xf32, #tpu.memory_space<vmem>>, vector<240x64xf32>
    %c0_158 = arith.constant 0 : index
    %c0_159 = arith.constant 0 : index
    %214 = vector.load %arg2[%c0_158, %c0_159] : memref<240x240xf32, #tpu.memory_space<vmem>>, vector<240x240xf32>
    %cst_160 = arith.constant dense<0.000000e+00> : vector<240x64xf32>
    %215 = tpu.matmul %214, %213, %cst_160 {dimension_numbers = #tpu.dot_dimension_numbers<[1], [0], [0], [1], [0, 0, 1, 1], [], []>} : vector<240x240xf32>, vector<240x64xf32>, vector<240x64xf32> -> vector<240x64xf32>
    %c0_161 = arith.constant 0 : index
    %c0_162 = arith.constant 0 : index
    %216 = vector.load %arg7[%c0_161, %c0_162] : memref<64x32xf32, #tpu.memory_space<vmem>>, vector<64x32xf32>
    %cst_163 = arith.constant dense<0.000000e+00> : vector<240x32xf32>
    %217 = tpu.matmul %215, %216, %cst_163 {dimension_numbers = #tpu.dot_dimension_numbers<[1], [0], [0], [1], [0, 0, 1, 1], [], []>} : vector<240x64xf32>, vector<64x32xf32>, vector<240x32xf32> -> vector<240x32xf32>
    %c0_164 = arith.constant 0 : index
    %c0_165 = arith.constant 0 : index
    %218 = vector.load %arg8[%c0_164, %c0_165] : memref<1x32xf32, #tpu.memory_space<vmem>>, vector<1x32xf32>
    %219 = vector.broadcast %218 : vector<1x32xf32> to vector<240x32xf32>
    %220 = arith.addf %217, %219 : vector<240x32xf32>
    %cst_166 = arith.constant 0.000000e+00 : f32
    %221 = vector.broadcast %cst_166 : f32 to vector<240x32xf32>
    %222 = arith.maximumf %220, %221 : vector<240x32xf32>
    %cst_167 = arith.constant 0.000000e+00 : f32
    %223 = vector.broadcast %cst_167 : f32 to vector<24x256xf32>
    %224 = vector.extract_strided_slice %222 {offsets = [0, 0], sizes = [24, 32], strides = [1, 1]} : vector<240x32xf32> to vector<24x32xf32>
    %c0_168 = arith.constant 0 : index
    %c0_169 = arith.constant 0 : index
    %225 = vector.load %arg9[%c0_168, %c0_169] : memref<320x256xf32, #tpu.memory_space<vmem>>, vector<32x256xf32>
    %cst_170 = arith.constant dense<0.000000e+00> : vector<24x256xf32>
    %226 = tpu.matmul %224, %225, %cst_170 {dimension_numbers = #tpu.dot_dimension_numbers<[1], [0], [0], [1], [0, 0, 1, 1], [], []>} : vector<24x32xf32>, vector<32x256xf32>, vector<24x256xf32> -> vector<24x256xf32>
    %227 = arith.addf %223, %226 : vector<24x256xf32>
    %228 = vector.extract_strided_slice %222 {offsets = [24, 0], sizes = [24, 32], strides = [1, 1]} : vector<240x32xf32> to vector<24x32xf32>
    %c32 = arith.constant 32 : index
    %c0_171 = arith.constant 0 : index
    %229 = vector.load %arg9[%c32, %c0_171] : memref<320x256xf32, #tpu.memory_space<vmem>>, vector<32x256xf32>
    %cst_172 = arith.constant dense<0.000000e+00> : vector<24x256xf32>
    %230 = tpu.matmul %228, %229, %cst_172 {dimension_numbers = #tpu.dot_dimension_numbers<[1], [0], [0], [1], [0, 0, 1, 1], [], []>} : vector<24x32xf32>, vector<32x256xf32>, vector<24x256xf32> -> vector<24x256xf32>
    %231 = arith.addf %227, %230 : vector<24x256xf32>
    %232 = vector.extract_strided_slice %222 {offsets = [48, 0], sizes = [24, 32], strides = [1, 1]} : vector<240x32xf32> to vector<24x32xf32>
    %c64 = arith.constant 64 : index
    %c0_173 = arith.constant 0 : index
    %233 = vector.load %arg9[%c64, %c0_173] : memref<320x256xf32, #tpu.memory_space<vmem>>, vector<32x256xf32>
    %cst_174 = arith.constant dense<0.000000e+00> : vector<24x256xf32>
    %234 = tpu.matmul %232, %233, %cst_174 {dimension_numbers = #tpu.dot_dimension_numbers<[1], [0], [0], [1], [0, 0, 1, 1], [], []>} : vector<24x32xf32>, vector<32x256xf32>, vector<24x256xf32> -> vector<24x256xf32>
    %235 = arith.addf %231, %234 : vector<24x256xf32>
    %236 = vector.extract_strided_slice %222 {offsets = [72, 0], sizes = [24, 32], strides = [1, 1]} : vector<240x32xf32> to vector<24x32xf32>
    %c96_175 = arith.constant 96 : index
    %c0_176 = arith.constant 0 : index
    %237 = vector.load %arg9[%c96_175, %c0_176] : memref<320x256xf32, #tpu.memory_space<vmem>>, vector<32x256xf32>
    %cst_177 = arith.constant dense<0.000000e+00> : vector<24x256xf32>
    %238 = tpu.matmul %236, %237, %cst_177 {dimension_numbers = #tpu.dot_dimension_numbers<[1], [0], [0], [1], [0, 0, 1, 1], [], []>} : vector<24x32xf32>, vector<32x256xf32>, vector<24x256xf32> -> vector<24x256xf32>
    %239 = arith.addf %235, %238 : vector<24x256xf32>
    %240 = vector.extract_strided_slice %222 {offsets = [96, 0], sizes = [24, 32], strides = [1, 1]} : vector<240x32xf32> to vector<24x32xf32>
    %c128 = arith.constant 128 : index
    %c0_178 = arith.constant 0 : index
    %241 = vector.load %arg9[%c128, %c0_178] : memref<320x256xf32, #tpu.memory_space<vmem>>, vector<32x256xf32>
    %cst_179 = arith.constant dense<0.000000e+00> : vector<24x256xf32>
    %242 = tpu.matmul %240, %241, %cst_179 {dimension_numbers = #tpu.dot_dimension_numbers<[1], [0], [0], [1], [0, 0, 1, 1], [], []>} : vector<24x32xf32>, vector<32x256xf32>, vector<24x256xf32> -> vector<24x256xf32>
    %243 = arith.addf %239, %242 : vector<24x256xf32>
    %244 = vector.extract_strided_slice %222 {offsets = [120, 0], sizes = [24, 32], strides = [1, 1]} : vector<240x32xf32> to vector<24x32xf32>
    %c160 = arith.constant 160 : index
    %c0_180 = arith.constant 0 : index
    %245 = vector.load %arg9[%c160, %c0_180] : memref<320x256xf32, #tpu.memory_space<vmem>>, vector<32x256xf32>
    %cst_181 = arith.constant dense<0.000000e+00> : vector<24x256xf32>
    %246 = tpu.matmul %244, %245, %cst_181 {dimension_numbers = #tpu.dot_dimension_numbers<[1], [0], [0], [1], [0, 0, 1, 1], [], []>} : vector<24x32xf32>, vector<32x256xf32>, vector<24x256xf32> -> vector<24x256xf32>
    %247 = arith.addf %243, %246 : vector<24x256xf32>
    %248 = vector.extract_strided_slice %222 {offsets = [144, 0], sizes = [24, 32], strides = [1, 1]} : vector<240x32xf32> to vector<24x32xf32>
    %c192_182 = arith.constant 192 : index
    %c0_183 = arith.constant 0 : index
    %249 = vector.load %arg9[%c192_182, %c0_183] : memref<320x256xf32, #tpu.memory_space<vmem>>, vector<32x256xf32>
    %cst_184 = arith.constant dense<0.000000e+00> : vector<24x256xf32>
    %250 = tpu.matmul %248, %249, %cst_184 {dimension_numbers = #tpu.dot_dimension_numbers<[1], [0], [0], [1], [0, 0, 1, 1], [], []>} : vector<24x32xf32>, vector<32x256xf32>, vector<24x256xf32> -> vector<24x256xf32>
    %251 = arith.addf %247, %250 : vector<24x256xf32>
    %252 = vector.extract_strided_slice %222 {offsets = [168, 0], sizes = [24, 32], strides = [1, 1]} : vector<240x32xf32> to vector<24x32xf32>
    %c224 = arith.constant 224 : index
    %c0_185 = arith.constant 0 : index
    %253 = vector.load %arg9[%c224, %c0_185] : memref<320x256xf32, #tpu.memory_space<vmem>>, vector<32x256xf32>
    %cst_186 = arith.constant dense<0.000000e+00> : vector<24x256xf32>
    %254 = tpu.matmul %252, %253, %cst_186 {dimension_numbers = #tpu.dot_dimension_numbers<[1], [0], [0], [1], [0, 0, 1, 1], [], []>} : vector<24x32xf32>, vector<32x256xf32>, vector<24x256xf32> -> vector<24x256xf32>
    %255 = arith.addf %251, %254 : vector<24x256xf32>
    %256 = vector.extract_strided_slice %222 {offsets = [192, 0], sizes = [24, 32], strides = [1, 1]} : vector<240x32xf32> to vector<24x32xf32>
    %c256 = arith.constant 256 : index
    %c0_187 = arith.constant 0 : index
    %257 = vector.load %arg9[%c256, %c0_187] : memref<320x256xf32, #tpu.memory_space<vmem>>, vector<32x256xf32>
    %cst_188 = arith.constant dense<0.000000e+00> : vector<24x256xf32>
    %258 = tpu.matmul %256, %257, %cst_188 {dimension_numbers = #tpu.dot_dimension_numbers<[1], [0], [0], [1], [0, 0, 1, 1], [], []>} : vector<24x32xf32>, vector<32x256xf32>, vector<24x256xf32> -> vector<24x256xf32>
    %259 = arith.addf %255, %258 : vector<24x256xf32>
    %260 = vector.extract_strided_slice %222 {offsets = [216, 0], sizes = [24, 32], strides = [1, 1]} : vector<240x32xf32> to vector<24x32xf32>
    %c288 = arith.constant 288 : index
    %c0_189 = arith.constant 0 : index
    %261 = vector.load %arg9[%c288, %c0_189] : memref<320x256xf32, #tpu.memory_space<vmem>>, vector<32x256xf32>
    %cst_190 = arith.constant dense<0.000000e+00> : vector<24x256xf32>
    %262 = tpu.matmul %260, %261, %cst_190 {dimension_numbers = #tpu.dot_dimension_numbers<[1], [0], [0], [1], [0, 0, 1, 1], [], []>} : vector<24x32xf32>, vector<32x256xf32>, vector<24x256xf32> -> vector<24x256xf32>
    %263 = arith.addf %259, %262 : vector<24x256xf32>
    %c0_191 = arith.constant 0 : index
    %c0_192 = arith.constant 0 : index
    %264 = vector.load %arg11[%c0_191, %c0_192] : memref<1x256xf32, #tpu.memory_space<vmem>>, vector<1x256xf32>
    %265 = vector.broadcast %264 : vector<1x256xf32> to vector<24x256xf32>
    %266 = arith.addf %263, %265 : vector<24x256xf32>
    %c0_193 = arith.constant 0 : index
    %c0_194 = arith.constant 0 : index
    %267 = vector.load %arg19[%c0_193, %c0_194] : memref<24x256xf32, #tpu.memory_space<vmem>>, vector<24x256xf32>
    tpu.vector_store %arg19[%c0_193, %c0_194], %266 {strides = array<i32>} : memref<24x256xf32, #tpu.memory_space<vmem>>, vector<24x256xf32>,
    %c0_195 = arith.constant 0 : index
    %c0_196 = arith.constant 0 : index
    %268 = vector.load %arg10[%c0_195, %c0_196] : memref<64x256xf32, #tpu.memory_space<vmem>>, vector<64x256xf32>
    %cst_197 = arith.constant 0.000000e+00 : f32
    %269 = vector.broadcast %cst_197 : f32 to vector<1x64xf32>
    %cst_198 = arith.constant 0.000000e+00 : f32
    %270 = vector.broadcast %cst_198 : f32 to vector<1x64xf32>
    %c0_i32 = arith.constant 0 : i32
    %271 = arith.index_cast %c0_i32 : i32 to index
    %c0_199 = arith.constant 0 : index
    %272 = vector.load %arg19[%271, %c0_199] : memref<24x256xf32, #tpu.memory_space<vmem>>, vector<1x256xf32>
    %cst_200 = arith.constant dense<0.000000e+00> : vector<1x256xf32>
    %273 = tpu.matmul %269, %268, %cst_200 {dimension_numbers = #tpu.dot_dimension_numbers<[1], [0], [0], [1], [0, 0, 1, 1], [], []>} : vector<1x64xf32>, vector<64x256xf32>, vector<1x256xf32> -> vector<1x256xf32>
    %274 = arith.addf %272, %273 : vector<1x256xf32>
    %275 = vector.extract_strided_slice %274 {offsets = [0, 0], sizes = [1, 192], strides = [1, 1]} : vector<1x256xf32> to vector<1x192xf32>
    %276 = arith.negf %275 : vector<1x192xf32>
    %277 = math.exp %276 : vector<1x192xf32>
    %cst_201 = arith.constant 1.000000e+00 : f32
    %278 = vector.broadcast %cst_201 : f32 to vector<1x192xf32>
    %279 = arith.addf %278, %277 : vector<1x192xf32>
    %280 = arith.divf %278, %279 : vector<1x192xf32>
    %281 = vector.extract_strided_slice %280 {offsets = [0, 0], sizes = [1, 64], strides = [1, 1]} : vector<1x192xf32> to vector<1x64xf32>
    %282 = vector.extract_strided_slice %280 {offsets = [0, 64], sizes = [1, 64], strides = [1, 1]} : vector<1x192xf32> to vector<1x64xf32>
    %283 = vector.extract_strided_slice %280 {offsets = [0, 128], sizes = [1, 64], strides = [1, 1]} : vector<1x192xf32> to vector<1x64xf32>
    %284 = vector.extract_strided_slice %274 {offsets = [0, 192], sizes = [1, 64], strides = [1, 1]} : vector<1x256xf32> to vector<1x64xf32>
    %285 = math.tanh %284 : vector<1x64xf32>
    %286 = arith.mulf %282, %270 : vector<1x64xf32>
    %287 = arith.mulf %281, %285 : vector<1x64xf32>
    %288 = arith.addf %286, %287 : vector<1x64xf32>
    %289 = math.tanh %288 : vector<1x64xf32>
    %290 = arith.mulf %283, %289 : vector<1x64xf32>
    %c1_i32 = arith.constant 1 : i32
    %291 = arith.index_cast %c1_i32 : i32 to index
    %c0_202 = arith.constant 0 : index
    %292 = vector.load %arg19[%291, %c0_202] : memref<24x256xf32, #tpu.memory_space<vmem>>, vector<1x256xf32>
    %cst_203 = arith.constant dense<0.000000e+00> : vector<1x256xf32>
    %293 = tpu.matmul %290, %268, %cst_203 {dimension_numbers = #tpu.dot_dimension_numbers<[1], [0], [0], [1], [0, 0, 1, 1], [], []>} : vector<1x64xf32>, vector<64x256xf32>, vector<1x256xf32> -> vector<1x256xf32>
    %294 = arith.addf %292, %293 : vector<1x256xf32>
    %295 = vector.extract_strided_slice %294 {offsets = [0, 0], sizes = [1, 192], strides = [1, 1]} : vector<1x256xf32> to vector<1x192xf32>
    %296 = arith.negf %295 : vector<1x192xf32>
    %297 = math.exp %296 : vector<1x192xf32>
    %cst_204 = arith.constant 1.000000e+00 : f32
    %298 = vector.broadcast %cst_204 : f32 to vector<1x192xf32>
    %299 = arith.addf %298, %297 : vector<1x192xf32>
    %300 = arith.divf %298, %299 : vector<1x192xf32>
    %301 = vector.extract_strided_slice %300 {offsets = [0, 0], sizes = [1, 64], strides = [1, 1]} : vector<1x192xf32> to vector<1x64xf32>
    %302 = vector.extract_strided_slice %300 {offsets = [0, 64], sizes = [1, 64], strides = [1, 1]} : vector<1x192xf32> to vector<1x64xf32>
    %303 = vector.extract_strided_slice %300 {offsets = [0, 128], sizes = [1, 64], strides = [1, 1]} : vector<1x192xf32> to vector<1x64xf32>
    %304 = vector.extract_strided_slice %294 {offsets = [0, 192], sizes = [1, 64], strides = [1, 1]} : vector<1x256xf32> to vector<1x64xf32>
    %305 = math.tanh %304 : vector<1x64xf32>
    %306 = arith.mulf %302, %288 : vector<1x64xf32>
    %307 = arith.mulf %301, %305 : vector<1x64xf32>
    %308 = arith.addf %306, %307 : vector<1x64xf32>
    %309 = math.tanh %308 : vector<1x64xf32>
    %310 = arith.mulf %303, %309 : vector<1x64xf32>
    %c2_i32 = arith.constant 2 : i32
    %311 = arith.index_cast %c2_i32 : i32 to index
    %c0_205 = arith.constant 0 : index
    %312 = vector.load %arg19[%311, %c0_205] : memref<24x256xf32, #tpu.memory_space<vmem>>, vector<1x256xf32>
    %cst_206 = arith.constant dense<0.000000e+00> : vector<1x256xf32>
    %313 = tpu.matmul %310, %268, %cst_206 {dimension_numbers = #tpu.dot_dimension_numbers<[1], [0], [0], [1], [0, 0, 1, 1], [], []>} : vector<1x64xf32>, vector<64x256xf32>, vector<1x256xf32> -> vector<1x256xf32>
    %314 = arith.addf %312, %313 : vector<1x256xf32>
    %315 = vector.extract_strided_slice %314 {offsets = [0, 0], sizes = [1, 192], strides = [1, 1]} : vector<1x256xf32> to vector<1x192xf32>
    %316 = arith.negf %315 : vector<1x192xf32>
    %317 = math.exp %316 : vector<1x192xf32>
    %cst_207 = arith.constant 1.000000e+00 : f32
    %318 = vector.broadcast %cst_207 : f32 to vector<1x192xf32>
    %319 = arith.addf %318, %317 : vector<1x192xf32>
    %320 = arith.divf %318, %319 : vector<1x192xf32>
    %321 = vector.extract_strided_slice %320 {offsets = [0, 0], sizes = [1, 64], strides = [1, 1]} : vector<1x192xf32> to vector<1x64xf32>
    %322 = vector.extract_strided_slice %320 {offsets = [0, 64], sizes = [1, 64], strides = [1, 1]} : vector<1x192xf32> to vector<1x64xf32>
    %323 = vector.extract_strided_slice %320 {offsets = [0, 128], sizes = [1, 64], strides = [1, 1]} : vector<1x192xf32> to vector<1x64xf32>
    %324 = vector.extract_strided_slice %314 {offsets = [0, 192], sizes = [1, 64], strides = [1, 1]} : vector<1x256xf32> to vector<1x64xf32>
    %325 = math.tanh %324 : vector<1x64xf32>
    %326 = arith.mulf %322, %308 : vector<1x64xf32>
    %327 = arith.mulf %321, %325 : vector<1x64xf32>
    %328 = arith.addf %326, %327 : vector<1x64xf32>
    %329 = math.tanh %328 : vector<1x64xf32>
    %330 = arith.mulf %323, %329 : vector<1x64xf32>
    %c3_i32 = arith.constant 3 : i32
    %331 = arith.index_cast %c3_i32 : i32 to index
    %c0_208 = arith.constant 0 : index
    %332 = vector.load %arg19[%331, %c0_208] : memref<24x256xf32, #tpu.memory_space<vmem>>, vector<1x256xf32>
    %cst_209 = arith.constant dense<0.000000e+00> : vector<1x256xf32>
    %333 = tpu.matmul %330, %268, %cst_209 {dimension_numbers = #tpu.dot_dimension_numbers<[1], [0], [0], [1], [0, 0, 1, 1], [], []>} : vector<1x64xf32>, vector<64x256xf32>, vector<1x256xf32> -> vector<1x256xf32>
    %334 = arith.addf %332, %333 : vector<1x256xf32>
    %335 = vector.extract_strided_slice %334 {offsets = [0, 0], sizes = [1, 192], strides = [1, 1]} : vector<1x256xf32> to vector<1x192xf32>
    %336 = arith.negf %335 : vector<1x192xf32>
    %337 = math.exp %336 : vector<1x192xf32>
    %cst_210 = arith.constant 1.000000e+00 : f32
    %338 = vector.broadcast %cst_210 : f32 to vector<1x192xf32>
    %339 = arith.addf %338, %337 : vector<1x192xf32>
    %340 = arith.divf %338, %339 : vector<1x192xf32>
    %341 = vector.extract_strided_slice %340 {offsets = [0, 0], sizes = [1, 64], strides = [1, 1]} : vector<1x192xf32> to vector<1x64xf32>
    %342 = vector.extract_strided_slice %340 {offsets = [0, 64], sizes = [1, 64], strides = [1, 1]} : vector<1x192xf32> to vector<1x64xf32>
    %343 = vector.extract_strided_slice %340 {offsets = [0, 128], sizes = [1, 64], strides = [1, 1]} : vector<1x192xf32> to vector<1x64xf32>
    %344 = vector.extract_strided_slice %334 {offsets = [0, 192], sizes = [1, 64], strides = [1, 1]} : vector<1x256xf32> to vector<1x64xf32>
    %345 = math.tanh %344 : vector<1x64xf32>
    %346 = arith.mulf %342, %328 : vector<1x64xf32>
    %347 = arith.mulf %341, %345 : vector<1x64xf32>
    %348 = arith.addf %346, %347 : vector<1x64xf32>
    %349 = math.tanh %348 : vector<1x64xf32>
    %350 = arith.mulf %343, %349 : vector<1x64xf32>
    %c4_i32 = arith.constant 4 : i32
    %351 = arith.index_cast %c4_i32 : i32 to index
    %c0_211 = arith.constant 0 : index
    %352 = vector.load %arg19[%351, %c0_211] : memref<24x256xf32, #tpu.memory_space<vmem>>, vector<1x256xf32>
    %cst_212 = arith.constant dense<0.000000e+00> : vector<1x256xf32>
    %353 = tpu.matmul %350, %268, %cst_212 {dimension_numbers = #tpu.dot_dimension_numbers<[1], [0], [0], [1], [0, 0, 1, 1], [], []>} : vector<1x64xf32>, vector<64x256xf32>, vector<1x256xf32> -> vector<1x256xf32>
    %354 = arith.addf %352, %353 : vector<1x256xf32>
    %355 = vector.extract_strided_slice %354 {offsets = [0, 0], sizes = [1, 192], strides = [1, 1]} : vector<1x256xf32> to vector<1x192xf32>
    %356 = arith.negf %355 : vector<1x192xf32>
    %357 = math.exp %356 : vector<1x192xf32>
    %cst_213 = arith.constant 1.000000e+00 : f32
    %358 = vector.broadcast %cst_213 : f32 to vector<1x192xf32>
    %359 = arith.addf %358, %357 : vector<1x192xf32>
    %360 = arith.divf %358, %359 : vector<1x192xf32>
    %361 = vector.extract_strided_slice %360 {offsets = [0, 0], sizes = [1, 64], strides = [1, 1]} : vector<1x192xf32> to vector<1x64xf32>
    %362 = vector.extract_strided_slice %360 {offsets = [0, 64], sizes = [1, 64], strides = [1, 1]} : vector<1x192xf32> to vector<1x64xf32>
    %363 = vector.extract_strided_slice %360 {offsets = [0, 128], sizes = [1, 64], strides = [1, 1]} : vector<1x192xf32> to vector<1x64xf32>
    %364 = vector.extract_strided_slice %354 {offsets = [0, 192], sizes = [1, 64], strides = [1, 1]} : vector<1x256xf32> to vector<1x64xf32>
    %365 = math.tanh %364 : vector<1x64xf32>
    %366 = arith.mulf %362, %348 : vector<1x64xf32>
    %367 = arith.mulf %361, %365 : vector<1x64xf32>
    %368 = arith.addf %366, %367 : vector<1x64xf32>
    %369 = math.tanh %368 : vector<1x64xf32>
    %370 = arith.mulf %363, %369 : vector<1x64xf32>
    %c5_i32 = arith.constant 5 : i32
    %371 = arith.index_cast %c5_i32 : i32 to index
    %c0_214 = arith.constant 0 : index
    %372 = vector.load %arg19[%371, %c0_214] : memref<24x256xf32, #tpu.memory_space<vmem>>, vector<1x256xf32>
    %cst_215 = arith.constant dense<0.000000e+00> : vector<1x256xf32>
    %373 = tpu.matmul %370, %268, %cst_215 {dimension_numbers = #tpu.dot_dimension_numbers<[1], [0], [0], [1], [0, 0, 1, 1], [], []>} : vector<1x64xf32>, vector<64x256xf32>, vector<1x256xf32> -> vector<1x256xf32>
    %374 = arith.addf %372, %373 : vector<1x256xf32>
    %375 = vector.extract_strided_slice %374 {offsets = [0, 0], sizes = [1, 192], strides = [1, 1]} : vector<1x256xf32> to vector<1x192xf32>
    %376 = arith.negf %375 : vector<1x192xf32>
    %377 = math.exp %376 : vector<1x192xf32>
    %cst_216 = arith.constant 1.000000e+00 : f32
    %378 = vector.broadcast %cst_216 : f32 to vector<1x192xf32>
    %379 = arith.addf %378, %377 : vector<1x192xf32>
    %380 = arith.divf %378, %379 : vector<1x192xf32>
    %381 = vector.extract_strided_slice %380 {offsets = [0, 0], sizes = [1, 64], strides = [1, 1]} : vector<1x192xf32> to vector<1x64xf32>
    %382 = vector.extract_strided_slice %380 {offsets = [0, 64], sizes = [1, 64], strides = [1, 1]} : vector<1x192xf32> to vector<1x64xf32>
    %383 = vector.extract_strided_slice %380 {offsets = [0, 128], sizes = [1, 64], strides = [1, 1]} : vector<1x192xf32> to vector<1x64xf32>
    %384 = vector.extract_strided_slice %374 {offsets = [0, 192], sizes = [1, 64], strides = [1, 1]} : vector<1x256xf32> to vector<1x64xf32>
    %385 = math.tanh %384 : vector<1x64xf32>
    %386 = arith.mulf %382, %368 : vector<1x64xf32>
    %387 = arith.mulf %381, %385 : vector<1x64xf32>
    %388 = arith.addf %386, %387 : vector<1x64xf32>
    %389 = math.tanh %388 : vector<1x64xf32>
    %390 = arith.mulf %383, %389 : vector<1x64xf32>
    %c6_i32 = arith.constant 6 : i32
    %391 = arith.index_cast %c6_i32 : i32 to index
    %c0_217 = arith.constant 0 : index
    %392 = vector.load %arg19[%391, %c0_217] : memref<24x256xf32, #tpu.memory_space<vmem>>, vector<1x256xf32>
    %cst_218 = arith.constant dense<0.000000e+00> : vector<1x256xf32>
    %393 = tpu.matmul %390, %268, %cst_218 {dimension_numbers = #tpu.dot_dimension_numbers<[1], [0], [0], [1], [0, 0, 1, 1], [], []>} : vector<1x64xf32>, vector<64x256xf32>, vector<1x256xf32> -> vector<1x256xf32>
    %394 = arith.addf %392, %393 : vector<1x256xf32>
    %395 = vector.extract_strided_slice %394 {offsets = [0, 0], sizes = [1, 192], strides = [1, 1]} : vector<1x256xf32> to vector<1x192xf32>
    %396 = arith.negf %395 : vector<1x192xf32>
    %397 = math.exp %396 : vector<1x192xf32>
    %cst_219 = arith.constant 1.000000e+00 : f32
    %398 = vector.broadcast %cst_219 : f32 to vector<1x192xf32>
    %399 = arith.addf %398, %397 : vector<1x192xf32>
    %400 = arith.divf %398, %399 : vector<1x192xf32>
    %401 = vector.extract_strided_slice %400 {offsets = [0, 0], sizes = [1, 64], strides = [1, 1]} : vector<1x192xf32> to vector<1x64xf32>
    %402 = vector.extract_strided_slice %400 {offsets = [0, 64], sizes = [1, 64], strides = [1, 1]} : vector<1x192xf32> to vector<1x64xf32>
    %403 = vector.extract_strided_slice %400 {offsets = [0, 128], sizes = [1, 64], strides = [1, 1]} : vector<1x192xf32> to vector<1x64xf32>
    %404 = vector.extract_strided_slice %394 {offsets = [0, 192], sizes = [1, 64], strides = [1, 1]} : vector<1x256xf32> to vector<1x64xf32>
    %405 = math.tanh %404 : vector<1x64xf32>
    %406 = arith.mulf %402, %388 : vector<1x64xf32>
    %407 = arith.mulf %401, %405 : vector<1x64xf32>
    %408 = arith.addf %406, %407 : vector<1x64xf32>
    %409 = math.tanh %408 : vector<1x64xf32>
    %410 = arith.mulf %403, %409 : vector<1x64xf32>
    %c7_i32 = arith.constant 7 : i32
    %411 = arith.index_cast %c7_i32 : i32 to index
    %c0_220 = arith.constant 0 : index
    %412 = vector.load %arg19[%411, %c0_220] : memref<24x256xf32, #tpu.memory_space<vmem>>, vector<1x256xf32>
    %cst_221 = arith.constant dense<0.000000e+00> : vector<1x256xf32>
    %413 = tpu.matmul %410, %268, %cst_221 {dimension_numbers = #tpu.dot_dimension_numbers<[1], [0], [0], [1], [0, 0, 1, 1], [], []>} : vector<1x64xf32>, vector<64x256xf32>, vector<1x256xf32> -> vector<1x256xf32>
    %414 = arith.addf %412, %413 : vector<1x256xf32>
    %415 = vector.extract_strided_slice %414 {offsets = [0, 0], sizes = [1, 192], strides = [1, 1]} : vector<1x256xf32> to vector<1x192xf32>
    %416 = arith.negf %415 : vector<1x192xf32>
    %417 = math.exp %416 : vector<1x192xf32>
    %cst_222 = arith.constant 1.000000e+00 : f32
    %418 = vector.broadcast %cst_222 : f32 to vector<1x192xf32>
    %419 = arith.addf %418, %417 : vector<1x192xf32>
    %420 = arith.divf %418, %419 : vector<1x192xf32>
    %421 = vector.extract_strided_slice %420 {offsets = [0, 0], sizes = [1, 64], strides = [1, 1]} : vector<1x192xf32> to vector<1x64xf32>
    %422 = vector.extract_strided_slice %420 {offsets = [0, 64], sizes = [1, 64], strides = [1, 1]} : vector<1x192xf32> to vector<1x64xf32>
    %423 = vector.extract_strided_slice %420 {offsets = [0, 128], sizes = [1, 64], strides = [1, 1]} : vector<1x192xf32> to vector<1x64xf32>
    %424 = vector.extract_strided_slice %414 {offsets = [0, 192], sizes = [1, 64], strides = [1, 1]} : vector<1x256xf32> to vector<1x64xf32>
    %425 = math.tanh %424 : vector<1x64xf32>
    %426 = arith.mulf %422, %408 : vector<1x64xf32>
    %427 = arith.mulf %421, %425 : vector<1x64xf32>
    %428 = arith.addf %426, %427 : vector<1x64xf32>
    %429 = math.tanh %428 : vector<1x64xf32>
    %430 = arith.mulf %423, %429 : vector<1x64xf32>
    %c8_i32 = arith.constant 8 : i32
    %431 = arith.index_cast %c8_i32 : i32 to index
    %c0_223 = arith.constant 0 : index
    %432 = vector.load %arg19[%431, %c0_223] : memref<24x256xf32, #tpu.memory_space<vmem>>, vector<1x256xf32>
    %cst_224 = arith.constant dense<0.000000e+00> : vector<1x256xf32>
    %433 = tpu.matmul %430, %268, %cst_224 {dimension_numbers = #tpu.dot_dimension_numbers<[1], [0], [0], [1], [0, 0, 1, 1], [], []>} : vector<1x64xf32>, vector<64x256xf32>, vector<1x256xf32> -> vector<1x256xf32>
    %434 = arith.addf %432, %433 : vector<1x256xf32>
    %435 = vector.extract_strided_slice %434 {offsets = [0, 0], sizes = [1, 192], strides = [1, 1]} : vector<1x256xf32> to vector<1x192xf32>
    %436 = arith.negf %435 : vector<1x192xf32>
    %437 = math.exp %436 : vector<1x192xf32>
    %cst_225 = arith.constant 1.000000e+00 : f32
    %438 = vector.broadcast %cst_225 : f32 to vector<1x192xf32>
    %439 = arith.addf %438, %437 : vector<1x192xf32>
    %440 = arith.divf %438, %439 : vector<1x192xf32>
    %441 = vector.extract_strided_slice %440 {offsets = [0, 0], sizes = [1, 64], strides = [1, 1]} : vector<1x192xf32> to vector<1x64xf32>
    %442 = vector.extract_strided_slice %440 {offsets = [0, 64], sizes = [1, 64], strides = [1, 1]} : vector<1x192xf32> to vector<1x64xf32>
    %443 = vector.extract_strided_slice %440 {offsets = [0, 128], sizes = [1, 64], strides = [1, 1]} : vector<1x192xf32> to vector<1x64xf32>
    %444 = vector.extract_strided_slice %434 {offsets = [0, 192], sizes = [1, 64], strides = [1, 1]} : vector<1x256xf32> to vector<1x64xf32>
    %445 = math.tanh %444 : vector<1x64xf32>
    %446 = arith.mulf %442, %428 : vector<1x64xf32>
    %447 = arith.mulf %441, %445 : vector<1x64xf32>
    %448 = arith.addf %446, %447 : vector<1x64xf32>
    %449 = math.tanh %448 : vector<1x64xf32>
    %450 = arith.mulf %443, %449 : vector<1x64xf32>
    %c9_i32 = arith.constant 9 : i32
    %451 = arith.index_cast %c9_i32 : i32 to index
    %c0_226 = arith.constant 0 : index
    %452 = vector.load %arg19[%451, %c0_226] : memref<24x256xf32, #tpu.memory_space<vmem>>, vector<1x256xf32>
    %cst_227 = arith.constant dense<0.000000e+00> : vector<1x256xf32>
    %453 = tpu.matmul %450, %268, %cst_227 {dimension_numbers = #tpu.dot_dimension_numbers<[1], [0], [0], [1], [0, 0, 1, 1], [], []>} : vector<1x64xf32>, vector<64x256xf32>, vector<1x256xf32> -> vector<1x256xf32>
    %454 = arith.addf %452, %453 : vector<1x256xf32>
    %455 = vector.extract_strided_slice %454 {offsets = [0, 0], sizes = [1, 192], strides = [1, 1]} : vector<1x256xf32> to vector<1x192xf32>
    %456 = arith.negf %455 : vector<1x192xf32>
    %457 = math.exp %456 : vector<1x192xf32>
    %cst_228 = arith.constant 1.000000e+00 : f32
    %458 = vector.broadcast %cst_228 : f32 to vector<1x192xf32>
    %459 = arith.addf %458, %457 : vector<1x192xf32>
    %460 = arith.divf %458, %459 : vector<1x192xf32>
    %461 = vector.extract_strided_slice %460 {offsets = [0, 0], sizes = [1, 64], strides = [1, 1]} : vector<1x192xf32> to vector<1x64xf32>
    %462 = vector.extract_strided_slice %460 {offsets = [0, 64], sizes = [1, 64], strides = [1, 1]} : vector<1x192xf32> to vector<1x64xf32>
    %463 = vector.extract_strided_slice %460 {offsets = [0, 128], sizes = [1, 64], strides = [1, 1]} : vector<1x192xf32> to vector<1x64xf32>
    %464 = vector.extract_strided_slice %454 {offsets = [0, 192], sizes = [1, 64], strides = [1, 1]} : vector<1x256xf32> to vector<1x64xf32>
    %465 = math.tanh %464 : vector<1x64xf32>
    %466 = arith.mulf %462, %448 : vector<1x64xf32>
    %467 = arith.mulf %461, %465 : vector<1x64xf32>
    %468 = arith.addf %466, %467 : vector<1x64xf32>
    %469 = math.tanh %468 : vector<1x64xf32>
    %470 = arith.mulf %463, %469 : vector<1x64xf32>
    %c10_i32 = arith.constant 10 : i32
    %471 = arith.index_cast %c10_i32 : i32 to index
    %c0_229 = arith.constant 0 : index
    %472 = vector.load %arg19[%471, %c0_229] : memref<24x256xf32, #tpu.memory_space<vmem>>, vector<1x256xf32>
    %cst_230 = arith.constant dense<0.000000e+00> : vector<1x256xf32>
    %473 = tpu.matmul %470, %268, %cst_230 {dimension_numbers = #tpu.dot_dimension_numbers<[1], [0], [0], [1], [0, 0, 1, 1], [], []>} : vector<1x64xf32>, vector<64x256xf32>, vector<1x256xf32> -> vector<1x256xf32>
    %474 = arith.addf %472, %473 : vector<1x256xf32>
    %475 = vector.extract_strided_slice %474 {offsets = [0, 0], sizes = [1, 192], strides = [1, 1]} : vector<1x256xf32> to vector<1x192xf32>
    %476 = arith.negf %475 : vector<1x192xf32>
    %477 = math.exp %476 : vector<1x192xf32>
    %cst_231 = arith.constant 1.000000e+00 : f32
    %478 = vector.broadcast %cst_231 : f32 to vector<1x192xf32>
    %479 = arith.addf %478, %477 : vector<1x192xf32>
    %480 = arith.divf %478, %479 : vector<1x192xf32>
    %481 = vector.extract_strided_slice %480 {offsets = [0, 0], sizes = [1, 64], strides = [1, 1]} : vector<1x192xf32> to vector<1x64xf32>
    %482 = vector.extract_strided_slice %480 {offsets = [0, 64], sizes = [1, 64], strides = [1, 1]} : vector<1x192xf32> to vector<1x64xf32>
    %483 = vector.extract_strided_slice %480 {offsets = [0, 128], sizes = [1, 64], strides = [1, 1]} : vector<1x192xf32> to vector<1x64xf32>
    %484 = vector.extract_strided_slice %474 {offsets = [0, 192], sizes = [1, 64], strides = [1, 1]} : vector<1x256xf32> to vector<1x64xf32>
    %485 = math.tanh %484 : vector<1x64xf32>
    %486 = arith.mulf %482, %468 : vector<1x64xf32>
    %487 = arith.mulf %481, %485 : vector<1x64xf32>
    %488 = arith.addf %486, %487 : vector<1x64xf32>
    %489 = math.tanh %488 : vector<1x64xf32>
    %490 = arith.mulf %483, %489 : vector<1x64xf32>
    %c11_i32 = arith.constant 11 : i32
    %491 = arith.index_cast %c11_i32 : i32 to index
    %c0_232 = arith.constant 0 : index
    %492 = vector.load %arg19[%491, %c0_232] : memref<24x256xf32, #tpu.memory_space<vmem>>, vector<1x256xf32>
    %cst_233 = arith.constant dense<0.000000e+00> : vector<1x256xf32>
    %493 = tpu.matmul %490, %268, %cst_233 {dimension_numbers = #tpu.dot_dimension_numbers<[1], [0], [0], [1], [0, 0, 1, 1], [], []>} : vector<1x64xf32>, vector<64x256xf32>, vector<1x256xf32> -> vector<1x256xf32>
    %494 = arith.addf %492, %493 : vector<1x256xf32>
    %495 = vector.extract_strided_slice %494 {offsets = [0, 0], sizes = [1, 192], strides = [1, 1]} : vector<1x256xf32> to vector<1x192xf32>
    %496 = arith.negf %495 : vector<1x192xf32>
    %497 = math.exp %496 : vector<1x192xf32>
    %cst_234 = arith.constant 1.000000e+00 : f32
    %498 = vector.broadcast %cst_234 : f32 to vector<1x192xf32>
    %499 = arith.addf %498, %497 : vector<1x192xf32>
    %500 = arith.divf %498, %499 : vector<1x192xf32>
    %501 = vector.extract_strided_slice %500 {offsets = [0, 0], sizes = [1, 64], strides = [1, 1]} : vector<1x192xf32> to vector<1x64xf32>
    %502 = vector.extract_strided_slice %500 {offsets = [0, 64], sizes = [1, 64], strides = [1, 1]} : vector<1x192xf32> to vector<1x64xf32>
    %503 = vector.extract_strided_slice %500 {offsets = [0, 128], sizes = [1, 64], strides = [1, 1]} : vector<1x192xf32> to vector<1x64xf32>
    %504 = vector.extract_strided_slice %494 {offsets = [0, 192], sizes = [1, 64], strides = [1, 1]} : vector<1x256xf32> to vector<1x64xf32>
    %505 = math.tanh %504 : vector<1x64xf32>
    %506 = arith.mulf %502, %488 : vector<1x64xf32>
    %507 = arith.mulf %501, %505 : vector<1x64xf32>
    %508 = arith.addf %506, %507 : vector<1x64xf32>
    %509 = math.tanh %508 : vector<1x64xf32>
    %510 = arith.mulf %503, %509 : vector<1x64xf32>
    %c12_i32 = arith.constant 12 : i32
    %511 = arith.index_cast %c12_i32 : i32 to index
    %c0_235 = arith.constant 0 : index
    %512 = vector.load %arg19[%511, %c0_235] : memref<24x256xf32, #tpu.memory_space<vmem>>, vector<1x256xf32>
    %cst_236 = arith.constant dense<0.000000e+00> : vector<1x256xf32>
    %513 = tpu.matmul %510, %268, %cst_236 {dimension_numbers = #tpu.dot_dimension_numbers<[1], [0], [0], [1], [0, 0, 1, 1], [], []>} : vector<1x64xf32>, vector<64x256xf32>, vector<1x256xf32> -> vector<1x256xf32>
    %514 = arith.addf %512, %513 : vector<1x256xf32>
    %515 = vector.extract_strided_slice %514 {offsets = [0, 0], sizes = [1, 192], strides = [1, 1]} : vector<1x256xf32> to vector<1x192xf32>
    %516 = arith.negf %515 : vector<1x192xf32>
    %517 = math.exp %516 : vector<1x192xf32>
    %cst_237 = arith.constant 1.000000e+00 : f32
    %518 = vector.broadcast %cst_237 : f32 to vector<1x192xf32>
    %519 = arith.addf %518, %517 : vector<1x192xf32>
    %520 = arith.divf %518, %519 : vector<1x192xf32>
    %521 = vector.extract_strided_slice %520 {offsets = [0, 0], sizes = [1, 64], strides = [1, 1]} : vector<1x192xf32> to vector<1x64xf32>
    %522 = vector.extract_strided_slice %520 {offsets = [0, 64], sizes = [1, 64], strides = [1, 1]} : vector<1x192xf32> to vector<1x64xf32>
    %523 = vector.extract_strided_slice %520 {offsets = [0, 128], sizes = [1, 64], strides = [1, 1]} : vector<1x192xf32> to vector<1x64xf32>
    %524 = vector.extract_strided_slice %514 {offsets = [0, 192], sizes = [1, 64], strides = [1, 1]} : vector<1x256xf32> to vector<1x64xf32>
    %525 = math.tanh %524 : vector<1x64xf32>
    %526 = arith.mulf %522, %508 : vector<1x64xf32>
    %527 = arith.mulf %521, %525 : vector<1x64xf32>
    %528 = arith.addf %526, %527 : vector<1x64xf32>
    %529 = math.tanh %528 : vector<1x64xf32>
    %530 = arith.mulf %523, %529 : vector<1x64xf32>
    %c13_i32 = arith.constant 13 : i32
    %531 = arith.index_cast %c13_i32 : i32 to index
    %c0_238 = arith.constant 0 : index
    %532 = vector.load %arg19[%531, %c0_238] : memref<24x256xf32, #tpu.memory_space<vmem>>, vector<1x256xf32>
    %cst_239 = arith.constant dense<0.000000e+00> : vector<1x256xf32>
    %533 = tpu.matmul %530, %268, %cst_239 {dimension_numbers = #tpu.dot_dimension_numbers<[1], [0], [0], [1], [0, 0, 1, 1], [], []>} : vector<1x64xf32>, vector<64x256xf32>, vector<1x256xf32> -> vector<1x256xf32>
    %534 = arith.addf %532, %533 : vector<1x256xf32>
    %535 = vector.extract_strided_slice %534 {offsets = [0, 0], sizes = [1, 192], strides = [1, 1]} : vector<1x256xf32> to vector<1x192xf32>
    %536 = arith.negf %535 : vector<1x192xf32>
    %537 = math.exp %536 : vector<1x192xf32>
    %cst_240 = arith.constant 1.000000e+00 : f32
    %538 = vector.broadcast %cst_240 : f32 to vector<1x192xf32>
    %539 = arith.addf %538, %537 : vector<1x192xf32>
    %540 = arith.divf %538, %539 : vector<1x192xf32>
    %541 = vector.extract_strided_slice %540 {offsets = [0, 0], sizes = [1, 64], strides = [1, 1]} : vector<1x192xf32> to vector<1x64xf32>
    %542 = vector.extract_strided_slice %540 {offsets = [0, 64], sizes = [1, 64], strides = [1, 1]} : vector<1x192xf32> to vector<1x64xf32>
    %543 = vector.extract_strided_slice %540 {offsets = [0, 128], sizes = [1, 64], strides = [1, 1]} : vector<1x192xf32> to vector<1x64xf32>
    %544 = vector.extract_strided_slice %534 {offsets = [0, 192], sizes = [1, 64], strides = [1, 1]} : vector<1x256xf32> to vector<1x64xf32>
    %545 = math.tanh %544 : vector<1x64xf32>
    %546 = arith.mulf %542, %528 : vector<1x64xf32>
    %547 = arith.mulf %541, %545 : vector<1x64xf32>
    %548 = arith.addf %546, %547 : vector<1x64xf32>
    %549 = math.tanh %548 : vector<1x64xf32>
    %550 = arith.mulf %543, %549 : vector<1x64xf32>
    %c14_i32 = arith.constant 14 : i32
    %551 = arith.index_cast %c14_i32 : i32 to index
    %c0_241 = arith.constant 0 : index
    %552 = vector.load %arg19[%551, %c0_241] : memref<24x256xf32, #tpu.memory_space<vmem>>, vector<1x256xf32>
    %cst_242 = arith.constant dense<0.000000e+00> : vector<1x256xf32>
    %553 = tpu.matmul %550, %268, %cst_242 {dimension_numbers = #tpu.dot_dimension_numbers<[1], [0], [0], [1], [0, 0, 1, 1], [], []>} : vector<1x64xf32>, vector<64x256xf32>, vector<1x256xf32> -> vector<1x256xf32>
    %554 = arith.addf %552, %553 : vector<1x256xf32>
    %555 = vector.extract_strided_slice %554 {offsets = [0, 0], sizes = [1, 192], strides = [1, 1]} : vector<1x256xf32> to vector<1x192xf32>
    %556 = arith.negf %555 : vector<1x192xf32>
    %557 = math.exp %556 : vector<1x192xf32>
    %cst_243 = arith.constant 1.000000e+00 : f32
    %558 = vector.broadcast %cst_243 : f32 to vector<1x192xf32>
    %559 = arith.addf %558, %557 : vector<1x192xf32>
    %560 = arith.divf %558, %559 : vector<1x192xf32>
    %561 = vector.extract_strided_slice %560 {offsets = [0, 0], sizes = [1, 64], strides = [1, 1]} : vector<1x192xf32> to vector<1x64xf32>
    %562 = vector.extract_strided_slice %560 {offsets = [0, 64], sizes = [1, 64], strides = [1, 1]} : vector<1x192xf32> to vector<1x64xf32>
    %563 = vector.extract_strided_slice %560 {offsets = [0, 128], sizes = [1, 64], strides = [1, 1]} : vector<1x192xf32> to vector<1x64xf32>
    %564 = vector.extract_strided_slice %554 {offsets = [0, 192], sizes = [1, 64], strides = [1, 1]} : vector<1x256xf32> to vector<1x64xf32>
    %565 = math.tanh %564 : vector<1x64xf32>
    %566 = arith.mulf %562, %548 : vector<1x64xf32>
    %567 = arith.mulf %561, %565 : vector<1x64xf32>
    %568 = arith.addf %566, %567 : vector<1x64xf32>
    %569 = math.tanh %568 : vector<1x64xf32>
    %570 = arith.mulf %563, %569 : vector<1x64xf32>
    %c15_i32 = arith.constant 15 : i32
    %571 = arith.index_cast %c15_i32 : i32 to index
    %c0_244 = arith.constant 0 : index
    %572 = vector.load %arg19[%571, %c0_244] : memref<24x256xf32, #tpu.memory_space<vmem>>, vector<1x256xf32>
    %cst_245 = arith.constant dense<0.000000e+00> : vector<1x256xf32>
    %573 = tpu.matmul %570, %268, %cst_245 {dimension_numbers = #tpu.dot_dimension_numbers<[1], [0], [0], [1], [0, 0, 1, 1], [], []>} : vector<1x64xf32>, vector<64x256xf32>, vector<1x256xf32> -> vector<1x256xf32>
    %574 = arith.addf %572, %573 : vector<1x256xf32>
    %575 = vector.extract_strided_slice %574 {offsets = [0, 0], sizes = [1, 192], strides = [1, 1]} : vector<1x256xf32> to vector<1x192xf32>
    %576 = arith.negf %575 : vector<1x192xf32>
    %577 = math.exp %576 : vector<1x192xf32>
    %cst_246 = arith.constant 1.000000e+00 : f32
    %578 = vector.broadcast %cst_246 : f32 to vector<1x192xf32>
    %579 = arith.addf %578, %577 : vector<1x192xf32>
    %580 = arith.divf %578, %579 : vector<1x192xf32>
    %581 = vector.extract_strided_slice %580 {offsets = [0, 0], sizes = [1, 64], strides = [1, 1]} : vector<1x192xf32> to vector<1x64xf32>
    %582 = vector.extract_strided_slice %580 {offsets = [0, 64], sizes = [1, 64], strides = [1, 1]} : vector<1x192xf32> to vector<1x64xf32>
    %583 = vector.extract_strided_slice %580 {offsets = [0, 128], sizes = [1, 64], strides = [1, 1]} : vector<1x192xf32> to vector<1x64xf32>
    %584 = vector.extract_strided_slice %574 {offsets = [0, 192], sizes = [1, 64], strides = [1, 1]} : vector<1x256xf32> to vector<1x64xf32>
    %585 = math.tanh %584 : vector<1x64xf32>
    %586 = arith.mulf %582, %568 : vector<1x64xf32>
    %587 = arith.mulf %581, %585 : vector<1x64xf32>
    %588 = arith.addf %586, %587 : vector<1x64xf32>
    %589 = math.tanh %588 : vector<1x64xf32>
    %590 = arith.mulf %583, %589 : vector<1x64xf32>
    %c16_i32 = arith.constant 16 : i32
    %591 = arith.index_cast %c16_i32 : i32 to index
    %c0_247 = arith.constant 0 : index
    %592 = vector.load %arg19[%591, %c0_247] : memref<24x256xf32, #tpu.memory_space<vmem>>, vector<1x256xf32>
    %cst_248 = arith.constant dense<0.000000e+00> : vector<1x256xf32>
    %593 = tpu.matmul %590, %268, %cst_248 {dimension_numbers = #tpu.dot_dimension_numbers<[1], [0], [0], [1], [0, 0, 1, 1], [], []>} : vector<1x64xf32>, vector<64x256xf32>, vector<1x256xf32> -> vector<1x256xf32>
    %594 = arith.addf %592, %593 : vector<1x256xf32>
    %595 = vector.extract_strided_slice %594 {offsets = [0, 0], sizes = [1, 192], strides = [1, 1]} : vector<1x256xf32> to vector<1x192xf32>
    %596 = arith.negf %595 : vector<1x192xf32>
    %597 = math.exp %596 : vector<1x192xf32>
    %cst_249 = arith.constant 1.000000e+00 : f32
    %598 = vector.broadcast %cst_249 : f32 to vector<1x192xf32>
    %599 = arith.addf %598, %597 : vector<1x192xf32>
    %600 = arith.divf %598, %599 : vector<1x192xf32>
    %601 = vector.extract_strided_slice %600 {offsets = [0, 0], sizes = [1, 64], strides = [1, 1]} : vector<1x192xf32> to vector<1x64xf32>
    %602 = vector.extract_strided_slice %600 {offsets = [0, 64], sizes = [1, 64], strides = [1, 1]} : vector<1x192xf32> to vector<1x64xf32>
    %603 = vector.extract_strided_slice %600 {offsets = [0, 128], sizes = [1, 64], strides = [1, 1]} : vector<1x192xf32> to vector<1x64xf32>
    %604 = vector.extract_strided_slice %594 {offsets = [0, 192], sizes = [1, 64], strides = [1, 1]} : vector<1x256xf32> to vector<1x64xf32>
    %605 = math.tanh %604 : vector<1x64xf32>
    %606 = arith.mulf %602, %588 : vector<1x64xf32>
    %607 = arith.mulf %601, %605 : vector<1x64xf32>
    %608 = arith.addf %606, %607 : vector<1x64xf32>
    %609 = math.tanh %608 : vector<1x64xf32>
    %610 = arith.mulf %603, %609 : vector<1x64xf32>
    %c17_i32 = arith.constant 17 : i32
    %611 = arith.index_cast %c17_i32 : i32 to index
    %c0_250 = arith.constant 0 : index
    %612 = vector.load %arg19[%611, %c0_250] : memref<24x256xf32, #tpu.memory_space<vmem>>, vector<1x256xf32>
    %cst_251 = arith.constant dense<0.000000e+00> : vector<1x256xf32>
    %613 = tpu.matmul %610, %268, %cst_251 {dimension_numbers = #tpu.dot_dimension_numbers<[1], [0], [0], [1], [0, 0, 1, 1], [], []>} : vector<1x64xf32>, vector<64x256xf32>, vector<1x256xf32> -> vector<1x256xf32>
    %614 = arith.addf %612, %613 : vector<1x256xf32>
    %615 = vector.extract_strided_slice %614 {offsets = [0, 0], sizes = [1, 192], strides = [1, 1]} : vector<1x256xf32> to vector<1x192xf32>
    %616 = arith.negf %615 : vector<1x192xf32>
    %617 = math.exp %616 : vector<1x192xf32>
    %cst_252 = arith.constant 1.000000e+00 : f32
    %618 = vector.broadcast %cst_252 : f32 to vector<1x192xf32>
    %619 = arith.addf %618, %617 : vector<1x192xf32>
    %620 = arith.divf %618, %619 : vector<1x192xf32>
    %621 = vector.extract_strided_slice %620 {offsets = [0, 0], sizes = [1, 64], strides = [1, 1]} : vector<1x192xf32> to vector<1x64xf32>
    %622 = vector.extract_strided_slice %620 {offsets = [0, 64], sizes = [1, 64], strides = [1, 1]} : vector<1x192xf32> to vector<1x64xf32>
    %623 = vector.extract_strided_slice %620 {offsets = [0, 128], sizes = [1, 64], strides = [1, 1]} : vector<1x192xf32> to vector<1x64xf32>
    %624 = vector.extract_strided_slice %614 {offsets = [0, 192], sizes = [1, 64], strides = [1, 1]} : vector<1x256xf32> to vector<1x64xf32>
    %625 = math.tanh %624 : vector<1x64xf32>
    %626 = arith.mulf %622, %608 : vector<1x64xf32>
    %627 = arith.mulf %621, %625 : vector<1x64xf32>
    %628 = arith.addf %626, %627 : vector<1x64xf32>
    %629 = math.tanh %628 : vector<1x64xf32>
    %630 = arith.mulf %623, %629 : vector<1x64xf32>
    %c18_i32 = arith.constant 18 : i32
    %631 = arith.index_cast %c18_i32 : i32 to index
    %c0_253 = arith.constant 0 : index
    %632 = vector.load %arg19[%631, %c0_253] : memref<24x256xf32, #tpu.memory_space<vmem>>, vector<1x256xf32>
    %cst_254 = arith.constant dense<0.000000e+00> : vector<1x256xf32>
    %633 = tpu.matmul %630, %268, %cst_254 {dimension_numbers = #tpu.dot_dimension_numbers<[1], [0], [0], [1], [0, 0, 1, 1], [], []>} : vector<1x64xf32>, vector<64x256xf32>, vector<1x256xf32> -> vector<1x256xf32>
    %634 = arith.addf %632, %633 : vector<1x256xf32>
    %635 = vector.extract_strided_slice %634 {offsets = [0, 0], sizes = [1, 192], strides = [1, 1]} : vector<1x256xf32> to vector<1x192xf32>
    %636 = arith.negf %635 : vector<1x192xf32>
    %637 = math.exp %636 : vector<1x192xf32>
    %cst_255 = arith.constant 1.000000e+00 : f32
    %638 = vector.broadcast %cst_255 : f32 to vector<1x192xf32>
    %639 = arith.addf %638, %637 : vector<1x192xf32>
    %640 = arith.divf %638, %639 : vector<1x192xf32>
    %641 = vector.extract_strided_slice %640 {offsets = [0, 0], sizes = [1, 64], strides = [1, 1]} : vector<1x192xf32> to vector<1x64xf32>
    %642 = vector.extract_strided_slice %640 {offsets = [0, 64], sizes = [1, 64], strides = [1, 1]} : vector<1x192xf32> to vector<1x64xf32>
    %643 = vector.extract_strided_slice %640 {offsets = [0, 128], sizes = [1, 64], strides = [1, 1]} : vector<1x192xf32> to vector<1x64xf32>
    %644 = vector.extract_strided_slice %634 {offsets = [0, 192], sizes = [1, 64], strides = [1, 1]} : vector<1x256xf32> to vector<1x64xf32>
    %645 = math.tanh %644 : vector<1x64xf32>
    %646 = arith.mulf %642, %628 : vector<1x64xf32>
    %647 = arith.mulf %641, %645 : vector<1x64xf32>
    %648 = arith.addf %646, %647 : vector<1x64xf32>
    %649 = math.tanh %648 : vector<1x64xf32>
    %650 = arith.mulf %643, %649 : vector<1x64xf32>
    %c19_i32 = arith.constant 19 : i32
    %651 = arith.index_cast %c19_i32 : i32 to index
    %c0_256 = arith.constant 0 : index
    %652 = vector.load %arg19[%651, %c0_256] : memref<24x256xf32, #tpu.memory_space<vmem>>, vector<1x256xf32>
    %cst_257 = arith.constant dense<0.000000e+00> : vector<1x256xf32>
    %653 = tpu.matmul %650, %268, %cst_257 {dimension_numbers = #tpu.dot_dimension_numbers<[1], [0], [0], [1], [0, 0, 1, 1], [], []>} : vector<1x64xf32>, vector<64x256xf32>, vector<1x256xf32> -> vector<1x256xf32>
    %654 = arith.addf %652, %653 : vector<1x256xf32>
    %655 = vector.extract_strided_slice %654 {offsets = [0, 0], sizes = [1, 192], strides = [1, 1]} : vector<1x256xf32> to vector<1x192xf32>
    %656 = arith.negf %655 : vector<1x192xf32>
    %657 = math.exp %656 : vector<1x192xf32>
    %cst_258 = arith.constant 1.000000e+00 : f32
    %658 = vector.broadcast %cst_258 : f32 to vector<1x192xf32>
    %659 = arith.addf %658, %657 : vector<1x192xf32>
    %660 = arith.divf %658, %659 : vector<1x192xf32>
    %661 = vector.extract_strided_slice %660 {offsets = [0, 0], sizes = [1, 64], strides = [1, 1]} : vector<1x192xf32> to vector<1x64xf32>
    %662 = vector.extract_strided_slice %660 {offsets = [0, 64], sizes = [1, 64], strides = [1, 1]} : vector<1x192xf32> to vector<1x64xf32>
    %663 = vector.extract_strided_slice %660 {offsets = [0, 128], sizes = [1, 64], strides = [1, 1]} : vector<1x192xf32> to vector<1x64xf32>
    %664 = vector.extract_strided_slice %654 {offsets = [0, 192], sizes = [1, 64], strides = [1, 1]} : vector<1x256xf32> to vector<1x64xf32>
    %665 = math.tanh %664 : vector<1x64xf32>
    %666 = arith.mulf %662, %648 : vector<1x64xf32>
    %667 = arith.mulf %661, %665 : vector<1x64xf32>
    %668 = arith.addf %666, %667 : vector<1x64xf32>
    %669 = math.tanh %668 : vector<1x64xf32>
    %670 = arith.mulf %663, %669 : vector<1x64xf32>
    %c20_i32 = arith.constant 20 : i32
    %671 = arith.index_cast %c20_i32 : i32 to index
    %c0_259 = arith.constant 0 : index
    %672 = vector.load %arg19[%671, %c0_259] : memref<24x256xf32, #tpu.memory_space<vmem>>, vector<1x256xf32>
    %cst_260 = arith.constant dense<0.000000e+00> : vector<1x256xf32>
    %673 = tpu.matmul %670, %268, %cst_260 {dimension_numbers = #tpu.dot_dimension_numbers<[1], [0], [0], [1], [0, 0, 1, 1], [], []>} : vector<1x64xf32>, vector<64x256xf32>, vector<1x256xf32> -> vector<1x256xf32>
    %674 = arith.addf %672, %673 : vector<1x256xf32>
    %675 = vector.extract_strided_slice %674 {offsets = [0, 0], sizes = [1, 192], strides = [1, 1]} : vector<1x256xf32> to vector<1x192xf32>
    %676 = arith.negf %675 : vector<1x192xf32>
    %677 = math.exp %676 : vector<1x192xf32>
    %cst_261 = arith.constant 1.000000e+00 : f32
    %678 = vector.broadcast %cst_261 : f32 to vector<1x192xf32>
    %679 = arith.addf %678, %677 : vector<1x192xf32>
    %680 = arith.divf %678, %679 : vector<1x192xf32>
    %681 = vector.extract_strided_slice %680 {offsets = [0, 0], sizes = [1, 64], strides = [1, 1]} : vector<1x192xf32> to vector<1x64xf32>
    %682 = vector.extract_strided_slice %680 {offsets = [0, 64], sizes = [1, 64], strides = [1, 1]} : vector<1x192xf32> to vector<1x64xf32>
    %683 = vector.extract_strided_slice %680 {offsets = [0, 128], sizes = [1, 64], strides = [1, 1]} : vector<1x192xf32> to vector<1x64xf32>
    %684 = vector.extract_strided_slice %674 {offsets = [0, 192], sizes = [1, 64], strides = [1, 1]} : vector<1x256xf32> to vector<1x64xf32>
    %685 = math.tanh %684 : vector<1x64xf32>
    %686 = arith.mulf %682, %668 : vector<1x64xf32>
    %687 = arith.mulf %681, %685 : vector<1x64xf32>
    %688 = arith.addf %686, %687 : vector<1x64xf32>
    %689 = math.tanh %688 : vector<1x64xf32>
    %690 = arith.mulf %683, %689 : vector<1x64xf32>
    %c21_i32 = arith.constant 21 : i32
    %691 = arith.index_cast %c21_i32 : i32 to index
    %c0_262 = arith.constant 0 : index
    %692 = vector.load %arg19[%691, %c0_262] : memref<24x256xf32, #tpu.memory_space<vmem>>, vector<1x256xf32>
    %cst_263 = arith.constant dense<0.000000e+00> : vector<1x256xf32>
    %693 = tpu.matmul %690, %268, %cst_263 {dimension_numbers = #tpu.dot_dimension_numbers<[1], [0], [0], [1], [0, 0, 1, 1], [], []>} : vector<1x64xf32>, vector<64x256xf32>, vector<1x256xf32> -> vector<1x256xf32>
    %694 = arith.addf %692, %693 : vector<1x256xf32>
    %695 = vector.extract_strided_slice %694 {offsets = [0, 0], sizes = [1, 192], strides = [1, 1]} : vector<1x256xf32> to vector<1x192xf32>
    %696 = arith.negf %695 : vector<1x192xf32>
    %697 = math.exp %696 : vector<1x192xf32>
    %cst_264 = arith.constant 1.000000e+00 : f32
    %698 = vector.broadcast %cst_264 : f32 to vector<1x192xf32>
    %699 = arith.addf %698, %697 : vector<1x192xf32>
    %700 = arith.divf %698, %699 : vector<1x192xf32>
    %701 = vector.extract_strided_slice %700 {offsets = [0, 0], sizes = [1, 64], strides = [1, 1]} : vector<1x192xf32> to vector<1x64xf32>
    %702 = vector.extract_strided_slice %700 {offsets = [0, 64], sizes = [1, 64], strides = [1, 1]} : vector<1x192xf32> to vector<1x64xf32>
    %703 = vector.extract_strided_slice %700 {offsets = [0, 128], sizes = [1, 64], strides = [1, 1]} : vector<1x192xf32> to vector<1x64xf32>
    %704 = vector.extract_strided_slice %694 {offsets = [0, 192], sizes = [1, 64], strides = [1, 1]} : vector<1x256xf32> to vector<1x64xf32>
    %705 = math.tanh %704 : vector<1x64xf32>
    %706 = arith.mulf %702, %688 : vector<1x64xf32>
    %707 = arith.mulf %701, %705 : vector<1x64xf32>
    %708 = arith.addf %706, %707 : vector<1x64xf32>
    %709 = math.tanh %708 : vector<1x64xf32>
    %710 = arith.mulf %703, %709 : vector<1x64xf32>
    %c22_i32 = arith.constant 22 : i32
    %711 = arith.index_cast %c22_i32 : i32 to index
    %c0_265 = arith.constant 0 : index
    %712 = vector.load %arg19[%711, %c0_265] : memref<24x256xf32, #tpu.memory_space<vmem>>, vector<1x256xf32>
    %cst_266 = arith.constant dense<0.000000e+00> : vector<1x256xf32>
    %713 = tpu.matmul %710, %268, %cst_266 {dimension_numbers = #tpu.dot_dimension_numbers<[1], [0], [0], [1], [0, 0, 1, 1], [], []>} : vector<1x64xf32>, vector<64x256xf32>, vector<1x256xf32> -> vector<1x256xf32>
    %714 = arith.addf %712, %713 : vector<1x256xf32>
    %715 = vector.extract_strided_slice %714 {offsets = [0, 0], sizes = [1, 192], strides = [1, 1]} : vector<1x256xf32> to vector<1x192xf32>
    %716 = arith.negf %715 : vector<1x192xf32>
    %717 = math.exp %716 : vector<1x192xf32>
    %cst_267 = arith.constant 1.000000e+00 : f32
    %718 = vector.broadcast %cst_267 : f32 to vector<1x192xf32>
    %719 = arith.addf %718, %717 : vector<1x192xf32>
    %720 = arith.divf %718, %719 : vector<1x192xf32>
    %721 = vector.extract_strided_slice %720 {offsets = [0, 0], sizes = [1, 64], strides = [1, 1]} : vector<1x192xf32> to vector<1x64xf32>
    %722 = vector.extract_strided_slice %720 {offsets = [0, 64], sizes = [1, 64], strides = [1, 1]} : vector<1x192xf32> to vector<1x64xf32>
    %723 = vector.extract_strided_slice %720 {offsets = [0, 128], sizes = [1, 64], strides = [1, 1]} : vector<1x192xf32> to vector<1x64xf32>
    %724 = vector.extract_strided_slice %714 {offsets = [0, 192], sizes = [1, 64], strides = [1, 1]} : vector<1x256xf32> to vector<1x64xf32>
    %725 = math.tanh %724 : vector<1x64xf32>
    %726 = arith.mulf %722, %708 : vector<1x64xf32>
    %727 = arith.mulf %721, %725 : vector<1x64xf32>
    %728 = arith.addf %726, %727 : vector<1x64xf32>
    %729 = math.tanh %728 : vector<1x64xf32>
    %730 = arith.mulf %723, %729 : vector<1x64xf32>
    %c23_i32 = arith.constant 23 : i32
    %731 = arith.index_cast %c23_i32 : i32 to index
    %c0_268 = arith.constant 0 : index
    %732 = vector.load %arg19[%731, %c0_268] : memref<24x256xf32, #tpu.memory_space<vmem>>, vector<1x256xf32>
    %cst_269 = arith.constant dense<0.000000e+00> : vector<1x256xf32>
    %733 = tpu.matmul %730, %268, %cst_269 {dimension_numbers = #tpu.dot_dimension_numbers<[1], [0], [0], [1], [0, 0, 1, 1], [], []>} : vector<1x64xf32>, vector<64x256xf32>, vector<1x256xf32> -> vector<1x256xf32>
    %734 = arith.addf %732, %733 : vector<1x256xf32>
    %735 = vector.extract_strided_slice %734 {offsets = [0, 0], sizes = [1, 192], strides = [1, 1]} : vector<1x256xf32> to vector<1x192xf32>
    %736 = arith.negf %735 : vector<1x192xf32>
    %737 = math.exp %736 : vector<1x192xf32>
    %cst_270 = arith.constant 1.000000e+00 : f32
    %738 = vector.broadcast %cst_270 : f32 to vector<1x192xf32>
    %739 = arith.addf %738, %737 : vector<1x192xf32>
    %740 = arith.divf %738, %739 : vector<1x192xf32>
    %741 = vector.extract_strided_slice %740 {offsets = [0, 0], sizes = [1, 64], strides = [1, 1]} : vector<1x192xf32> to vector<1x64xf32>
    %742 = vector.extract_strided_slice %740 {offsets = [0, 64], sizes = [1, 64], strides = [1, 1]} : vector<1x192xf32> to vector<1x64xf32>
    %743 = vector.extract_strided_slice %740 {offsets = [0, 128], sizes = [1, 64], strides = [1, 1]} : vector<1x192xf32> to vector<1x64xf32>
    %744 = vector.extract_strided_slice %734 {offsets = [0, 192], sizes = [1, 64], strides = [1, 1]} : vector<1x256xf32> to vector<1x64xf32>
    %745 = math.tanh %744 : vector<1x64xf32>
    %746 = arith.mulf %742, %728 : vector<1x64xf32>
    %747 = arith.mulf %741, %745 : vector<1x64xf32>
    %748 = arith.addf %746, %747 : vector<1x64xf32>
    %749 = math.tanh %748 : vector<1x64xf32>
    %750 = arith.mulf %743, %749 : vector<1x64xf32>
    %c24_i32 = arith.constant 24 : i32
    %c0_271 = arith.constant 0 : index
    %c0_272 = arith.constant 0 : index
    %751 = vector.load %arg12[%c0_271, %c0_272] : memref<64x1xf32, #tpu.memory_space<vmem>>, vector<64x1xf32>
    %cst_273 = arith.constant dense<0.000000e+00> : vector<1x1xf32>
    %752 = tpu.matmul %750, %751, %cst_273 {dimension_numbers = #tpu.dot_dimension_numbers<[1], [0], [0], [1], [0, 0, 1, 1], [], []>} : vector<1x64xf32>, vector<64x1xf32>, vector<1x1xf32> -> vector<1x1xf32>
    %c0_274 = arith.constant 0 : index
    %c0_275 = arith.constant 0 : index
    %753 = vector.load %arg13[%c0_274, %c0_275] : memref<1x1xf32, #tpu.memory_space<vmem>>, vector<1x1xf32>
    %754 = arith.addf %752, %753 : vector<1x1xf32>
    %c0_276 = arith.constant 0 : index
    %c0_277 = arith.constant 0 : index
    %755 = vector.load %arg14[%c0_276, %c0_277] : memref<1x1xf32, #tpu.memory_space<vmem>>, vector<1x1xf32>
    tpu.vector_store %arg14[%c0_276, %c0_277], %754 {strides = array<i32>} : memref<1x1xf32, #tpu.memory_space<vmem>>, vector<1x1xf32>,
    return
  }
  func.func @transform_0(%arg0: i32) -> (i32, i32) {
    %c0_i32 = arith.constant 0 : i32
    %c0_i32_0 = arith.constant 0 : i32
    %c0_i32_1 = arith.constant 0 : i32
    return %c0_i32, %c0_i32_0 : i32, i32
  }
  func.func @transform_1(%arg0: i32) -> (i32, i32) {
    %c0_i32 = arith.constant 0 : i32
    %c0_i32_0 = arith.constant 0 : i32
    %c0_i32_1 = arith.constant 0 : i32
    return %c0_i32, %c0_i32_0 : i32, i32
  }
  func.func @transform_2(%arg0: i32) -> (i32, i32) {
    %c0_i32 = arith.constant 0 : i32
    %c0_i32_0 = arith.constant 0 : i32
    %c0_i32_1 = arith.constant 0 : i32
    return %c0_i32, %c0_i32_0 : i32, i32
  }
  func.func @transform_3(%arg0: i32) -> (i32, i32) {
    %c0_i32 = arith.constant 0 : i32
    %c0_i32_0 = arith.constant 0 : i32
    %c0_i32_1 = arith.constant 0 : i32
    return %c0_i32, %c0_i32_0 : i32, i32
  }
  func.func @transform_4(%arg0: i32) -> (i32, i32) {
    %c0_i32 = arith.constant 0 : i32
    %c0_i32_0 = arith.constant 0 : i32
    %c0_i32_1 = arith.constant 0 : i32
    return %c0_i32, %c0_i32_0 : i32, i32
  }
  func.func @transform_5(%arg0: i32) -> (i32, i32) {
    %c0_i32 = arith.constant 0 : i32
    %c0_i32_0 = arith.constant 0 : i32
    %c0_i32_1 = arith.constant 0 : i32
    return %c0_i32, %c0_i32_0 : i32, i32
  }
  func.func @transform_6(%arg0: i32) -> (i32, i32) {
    %c0_i32 = arith.constant 0 : i32
    %c0_i32_0 = arith.constant 0 : i32
    %c0_i32_1 = arith.constant 0 : i32
    return %c0_i32, %c0_i32_0 : i32, i32
  }
  func.func @transform_7(%arg0: i32) -> (i32, i32) {
    %c0_i32 = arith.constant 0 : i32
    %c0_i32_0 = arith.constant 0 : i32
    %c0_i32_1 = arith.constant 0 : i32
    return %c0_i32, %c0_i32_0 : i32, i32
  }
  func.func @transform_8(%arg0: i32) -> (i32, i32) {
    %c0_i32 = arith.constant 0 : i32
    %c0_i32_0 = arith.constant 0 : i32
    %c0_i32_1 = arith.constant 0 : i32
    return %c0_i32, %c0_i32_0 : i32, i32
  }
  func.func @transform_9(%arg0: i32) -> (i32, i32) {
    %c0_i32 = arith.constant 0 : i32
    %c0_i32_0 = arith.constant 0 : i32
    %c0_i32_1 = arith.constant 0 : i32
    return %c0_i32, %c0_i32_0 : i32, i32
  }
  func.func @transform_10(%arg0: i32) -> (i32, i32) {
    %c0_i32 = arith.constant 0 : i32
    %c0_i32_0 = arith.constant 0 : i32
    %c0_i32_1 = arith.constant 0 : i32
    return %c0_i32, %c0_i32_0 : i32, i32
  }
  func.func @transform_11(%arg0: i32) -> (i32, i32) {
    %c0_i32 = arith.constant 0 : i32
    %c0_i32_0 = arith.constant 0 : i32
    %c0_i32_1 = arith.constant 0 : i32
    return %c0_i32, %c0_i32_0 : i32, i32
  }
  func.func @transform_12(%arg0: i32) -> (i32, i32) {
    %c0_i32 = arith.constant 0 : i32
    %c0_i32_0 = arith.constant 0 : i32
    %c0_i32_1 = arith.constant 0 : i32
    return %c0_i32, %c0_i32_0 : i32, i32
  }
  func.func @transform_13(%arg0: i32) -> (i32, i32) {
    %c0_i32 = arith.constant 0 : i32
    %c0_i32_0 = arith.constant 0 : i32
    %c0_i32_1 = arith.constant 0 : i32
    return %c0_i32, %c0_i32_0 : i32, i32
  }
  func.func @transform_14(%arg0: i32) -> (i32, i32, i32) {
    %c0_i32 = arith.constant 0 : i32
    %c0_i32_0 = arith.constant 0 : i32
    %c0_i32_1 = arith.constant 0 : i32
    %c0_i32_2 = arith.constant 0 : i32
    return %c0_i32, %c0_i32_0, %c0_i32_1 : i32, i32, i32
  }
}

</mosaic_0001>

<llo_original>
// kernel: gcn_informer_forward.1
$region0: #{gcn_informer_forward.1}
  #allocation0 [shape = 'u32[]', space=smem, size = 0x4, offset = 0x4, fixed_abs, tag = 'smem constant byte address 0x4 - core index']
  #allocation1 [shape = 'u32[144,128]{1,0:T(1,128)}', space=vmem, size = 0x12000, scoped, tag = 'internal scratch']
  #allocation2 [shape = 'f32[240,64]{1,0:T(8,128)}', space=vmem, size = 0x1e000, scoped, tag = 'scratch operand']
  #allocation3 [shape = 'f32[240,64]{1,0:T(8,128)}', space=vmem, size = 0x1e000, scoped, tag = 'scratch operand']
  #allocation4 [shape = 'f32[240,64]{1,0:T(8,128)}', space=vmem, size = 0x1e000, scoped, tag = 'scratch operand']
  #allocation5 [shape = 'f32[24,256]{1,0:T(8,128)}', space=vmem, size = 0x6000, scoped, tag = 'scratch operand']
  #allocation6 [shape = 'f32[1,1]{1,0:T(1,128)S(1)}', space=vmem, size = 0x200, scoped, tag = 'scoped memory for gcn_informer_forward.1']
  %s0 = inlined_call_operand.vmem [shape: f32[240,64], index: 0, kind: input, shape index: {}]
  %s1 = inlined_call_operand.vmem [shape: f32[240,240], index: 1, kind: input, shape index: {}]
  %s2 = inlined_call_operand.vmem [shape: f32[64,64], index: 2, kind: input, shape index: {}]
  %s3 = inlined_call_operand.vmem [shape: f32[1,64], index: 3, kind: input, shape index: {}]
  %s4 = inlined_call_operand.vmem [shape: f32[64,64], index: 4, kind: input, shape index: {}]
  %s5 = inlined_call_operand.vmem [shape: f32[1,64], index: 5, kind: input, shape index: {}]
  %s6 = inlined_call_operand.vmem [shape: f32[64,32], index: 6, kind: input, shape index: {}]
  %s7 = inlined_call_operand.vmem [shape: f32[1,32], index: 7, kind: input, shape index: {}]
  %s8 = inlined_call_operand.vmem [shape: f32[320,256], index: 8, kind: input, shape index: {}]
  %s9 = inlined_call_operand.vmem [shape: f32[64,256], index: 9, kind: input, shape index: {}]
  %s10 = inlined_call_operand.vmem [shape: f32[1,256], index: 10, kind: input, shape index: {}]
  %s11 = inlined_call_operand.vmem [shape: f32[64,1], index: 11, kind: input, shape index: {}]
  %s12 = inlined_call_operand.<no memory space> [shape: f32[1,1], index: 12, kind: input, shape index: {}]
  %s13 = inlined_call_operand.hbm [shape: f32[1,1], index: 13, kind: output, shape index: {0}]
  %s14 = inlined_call_operand.hbm [shape: f32[10,24,24], index: 14, kind: output, shape index: {1}]
  %15 = xla_tuple %s13, %s14
  %s16 = sld [smem:[#allocation0]]
  $region70: #{gcn_informer_forward.1} parent=0
    _
  %s18 = ssub.s32 1, %s16
  %s19 = scalar_select 0, %s18, %s16
  %v20 = vstv %s12
  %21 = vst [vmem:[#allocation6] sm:$0x1] %v20
  $region1: #{gcn_informer_forward.1} parent=0
    #allocation7 [shape = 'u8[512]{0}', space=vmem, size = 0x400, scoped, tag = 'output window, operand 0, single buffered']
    #allocation8 [shape = 's32[1]{0}', space=sflag, size = 0x4, scoped, tag = 'scoped memory for gcn_informer_forward.1']
    #allocation9 [shape = 'u8[122880]{0}', space=vmem, size = 0x1e000, scoped, tag = 'output window, operand 1, single buffered']
    #allocation10 [shape = 's32[1]{0}', space=sflag, size = 0x4, scoped, tag = 'scoped memory for gcn_informer_forward.1']
    %22 = vsyncpa [#allocation8], 0
    %23 = vsyncpa [#allocation10], 0
    // Predicated region
    $region2: #{gcn_informer_forward.1} parent=1 // pred_check
      _
    $region3: #{gcn_informer_forward.1} parent=1 // pred_check_branch
      %25 = sbr.rel (0) target = $region5
    $region4: #{gcn_informer_forward.1} parent=1 // pred_region
      _
    $region5: #{gcn_informer_forward.1} parent=1 // pred_fallthru
      _
    // Predicated region
    $region6: #{gcn_informer_forward.1} parent=1 // pred_check
      _
    $region7: #{gcn_informer_forward.1} parent=1 // pred_check_branch
      %27 = sbr.rel (0) target = $region9
    $region8: #{gcn_informer_forward.1} parent=1 // pred_region
      _
    $region9: #{gcn_informer_forward.1} parent=1 // pred_fallthru
      _
    // Predicated region
    $region10: #{gcn_informer_forward.1} parent=1 // pred_check
      _
    $region11: #{gcn_informer_forward.1} parent=1 // pred_check_branch
      %29 = sbr.rel (0) target = $region13
    $region12: #{gcn_informer_forward.1} parent=1 // pred_region
      _
    $region13: #{gcn_informer_forward.1} parent=1 // pred_fallthru
      _
    // Predicated region
    $region14: #{gcn_informer_forward.1} parent=1 // pred_check
      _
    $region15: #{gcn_informer_forward.1} parent=1 // pred_check_branch
      %31 = sbr.rel (0) target = $region17
    $region16: #{gcn_informer_forward.1} parent=1 // pred_region
      _
    $region17: #{gcn_informer_forward.1} parent=1 // pred_fallthru
      _
    // Predicated region
    $region18: #{gcn_informer_forward.1} parent=1 // pred_check
      _
    $region19: #{gcn_informer_forward.1} parent=1 // pred_check_branch
      %33 = sbr.rel (0) target = $region21
    $region20: #{gcn_informer_forward.1} parent=1 // pred_region
      _
    $region21: #{gcn_informer_forward.1} parent=1 // pred_fallthru
      _
    // Predicated region
    $region22: #{gcn_informer_forward.1} parent=1 // pred_check
      _
    $region23: #{gcn_informer_forward.1} parent=1 // pred_check_branch
      %35 = sbr.rel (0) target = $region25
    $region24: #{gcn_informer_forward.1} parent=1 // pred_region
      _
    $region25: #{gcn_informer_forward.1} parent=1 // pred_fallthru
      _
    // Predicated region
    $region26: #{gcn_informer_forward.1} parent=1 // pred_check
      _
    $region27: #{gcn_informer_forward.1} parent=1 // pred_check_branch
      %37 = sbr.rel (0) target = $region29
    $region28: #{gcn_informer_forward.1} parent=1 // pred_region
      _
    $region29: #{gcn_informer_forward.1} parent=1 // pred_fallthru
      _
    // Predicated region
    $region30: #{gcn_informer_forward.1} parent=1 // pred_check
      _
    $region31: #{gcn_informer_forward.1} parent=1 // pred_check_branch
      %39 = sbr.rel (0) target = $region33
    $region32: #{gcn_informer_forward.1} parent=1 // pred_region
      _
    $region33: #{gcn_informer_forward.1} parent=1 // pred_fallthru
      _
    // Predicated region
    $region34: #{gcn_informer_forward.1} parent=1 // pred_check
      _
    $region35: #{gcn_informer_forward.1} parent=1 // pred_check_branch
      %41 = sbr.rel (0) target = $region37
    $region36: #{gcn_informer_forward.1} parent=1 // pred_region
      _
    $region37: #{gcn_informer_forward.1} parent=1 // pred_fallthru
      _
    // Predicated region
    $region38: #{gcn_informer_forward.1} parent=1 // pred_check
      _
    $region39: #{gcn_informer_forward.1} parent=1 // pred_check_branch
      %43 = sbr.rel (0) target = $region41
    $region40: #{gcn_informer_forward.1} parent=1 // pred_region
      _
    $region41: #{gcn_informer_forward.1} parent=1 // pred_fallthru
      _
    // Predicated region
    $region42: #{gcn_informer_forward.1} parent=1 // pred_check
      _
    $region43: #{gcn_informer_forward.1} parent=1 // pred_check_branch
      %45 = sbr.rel (0) target = $region45
    $region44: #{gcn_informer_forward.1} parent=1 // pred_region
      _
    $region45: #{gcn_informer_forward.1} parent=1 // pred_fallthru
      _
    // Predicated region
    $region46: #{gcn_informer_forward.1} parent=1 // pred_check
      _
    $region47: #{gcn_informer_forward.1} parent=1 // pred_check_branch
      %47 = sbr.rel (0) target = $region49
    $region48: #{gcn_informer_forward.1} parent=1 // pred_region
      _
    $region49: #{gcn_informer_forward.1} parent=1 // pred_fallthru
      _
    // Predicated region
    $region50: #{gcn_informer_forward.1} parent=1 // pred_check
      _
    $region51: #{gcn_informer_forward.1} parent=1 // pred_check_branch
      %49 = sbr.rel (0) target = $region53
    $region52: #{gcn_informer_forward.1} parent=1 // pred_region
      _
    $region53: #{gcn_informer_forward.1} parent=1 // pred_fallthru
      _
    %v50 = vld [vmem:[%s0] sm:$0xff]
    %v51 = vld [vmem:[%s0 + $0x8] sm:$0xff]
    %v52 = vld [vmem:[%s0 + $0x10] sm:$0xff]
    %v53 = vld [vmem:[%s0 + $0x18] sm:$0xff]
    %v54 = vld [vmem:[%s0 + $0x20] sm:$0xff]
    %v55 = vld [vmem:[%s0 + $0x28] sm:$0xff]
    %v56 = vld [vmem:[%s0 + $0x30] sm:$0xff]
    %v57 = vld [vmem:[%s0 + $0x38] sm:$0xff]
    %v58 = vld [vmem:[%s0 + $0x40] sm:$0xff]
    %v59 = vld [vmem:[%s0 + $0x48] sm:$0xff]
    %v60 = vld [vmem:[%s0 + $0x50] sm:$0xff]
    %v61 = vld [vmem:[%s0 + $0x58] sm:$0xff]
    %v62 = vld [vmem:[%s0 + $0x60] sm:$0xff]
    %v63 = vld [vmem:[%s0 + $0x68] sm:$0xff]
    %v64 = vld [vmem:[%s0 + $0x70] sm:$0xff]
    %v65 = vld [vmem:[%s0 + $0x78] sm:$0xff]
    %v66 = vld [vmem:[%s0 + $0x80] sm:$0xff]
    %v67 = vld [vmem:[%s0 + $0x88] sm:$0xff]
    %v68 = vld [vmem:[%s0 + $0x90] sm:$0xff]
    %v69 = vld [vmem:[%s0 + $0x98] sm:$0xff]
    %v70 = vld [vmem:[%s0 + $0xa0] sm:$0xff]
    %v71 = vld [vmem:[%s0 + $0xa8] sm:$0xff]
    %v72 = vld [vmem:[%s0 + $0xb0] sm:$0xff]
    %v73 = vld [vmem:[%s0 + $0xb8] sm:$0xff]
    %v74 = vld [vmem:[%s0 + $0xc0] sm:$0xff]
    %v75 = vld [vmem:[%s0 + $0xc8] sm:$0xff]
    %v76 = vld [vmem:[%s0 + $0xd0] sm:$0xff]
    %v77 = vld [vmem:[%s0 + $0xd8] sm:$0xff]
    %v78 = vld [vmem:[%s0 + $0xe0] sm:$0xff]
    %v79 = vld [vmem:[%s0 + $0xe8] sm:$0xff]
    %v80 = vld [vmem:[%s2] sm:$0xff]
    %v81 = vld [vmem:[%s2 + $0x8] sm:$0xff]
    %v82 = vld [vmem:[%s2 + $0x10] sm:$0xff]
    %v83 = vld [vmem:[%s2 + $0x18] sm:$0xff]
    %v84 = vld [vmem:[%s2 + $0x20] sm:$0xff]
    %v85 = vld [vmem:[%s2 + $0x28] sm:$0xff]
    %v86 = vld [vmem:[%s2 + $0x30] sm:$0xff]
    %v87 = vld [vmem:[%s2 + $0x38] sm:$0xff]
    %v88 = vld [vmem:[%s3] sm:$0x1]
    %v90 = vlaneseq
    %v91 = vshrl.u32 %v90, 7
    %v92 = vsub.s32 0, %v91
    %v93 = vrot.slane %v88, %v92
    %vm95 = vcmask 523264
    %v97 = vsel %vm95, %v50, 0
    %v100 = vsel %vm95, %v51, 0
    %v103 = vsel %vm95, %v52, 0
    %v106 = vsel %vm95, %v53, 0
    %v109 = vsel %vm95, %v54, 0
    %v112 = vsel %vm95, %v55, 0
    %v115 = vsel %vm95, %v56, 0
    %v118 = vsel %vm95, %v57, 0
    %v121 = vsel %vm95, %v58, 0
    %v124 = vsel %vm95, %v59, 0
    %v127 = vsel %vm95, %v60, 0
    %v130 = vsel %vm95, %v61, 0
    %v133 = vsel %vm95, %v62, 0
    %v136 = vsel %vm95, %v63, 0
    %v139 = vsel %vm95, %v64, 0
    %v142 = vsel %vm95, %v65, 0
    %v145 = vsel %vm95, %v66, 0
    %v148 = vsel %vm95, %v67, 0
    %v151 = vsel %vm95, %v68, 0
    %v154 = vsel %vm95, %v69, 0
    %v157 = vsel %vm95, %v70, 0
    %v160 = vsel %vm95, %v71, 0
    %v163 = vsel %vm95, %v72, 0
    %v166 = vsel %vm95, %v73, 0
    %v169 = vsel %vm95, %v74, 0
    %v172 = vsel %vm95, %v75, 0
    %v175 = vsel %vm95, %v76, 0
    %v178 = vsel %vm95, %v77, 0
    %v181 = vsel %vm95, %v78, 0
    %v184 = vsel %vm95, %v79, 0
    %186 = vmatprep.subr.mxu0 0.0
    %187 = vmatpush1.msra.mxu0 %v80
    %188 = vmatprep.subr.mxu0 0.0
    %189 = vmatpush1.msra.mxu0 %v81
    %190 = vmatprep.subr.mxu0 0.0
    %191 = vmatpush1.msra.mxu0 %v82
    %192 = vmatprep.subr.mxu0 0.0
    %193 = vmatpush1.msra.mxu0 %v83
    %194 = vmatprep.subr.mxu0 0.0
    %195 = vmatpush1.msra.mxu0 %v84
    %196 = vmatprep.subr.mxu0 0.0
    %197 = vmatpush1.msra.mxu0 %v85
    %198 = vmatprep.subr.mxu0 0.0
    %199 = vmatpush1.msra.mxu0 %v86
    %200 = vmatprep.subr.mxu0 0.0
    %201 = vmatpush1.msra.mxu0 %v87
    %202 = vmatprep.subr.mxu0 0.0
    %203 = vmatpush1.msra.mxu0 0.0
    %204 = vmatprep.subr.mxu0 0.0
    %205 = vmatpush1.msra.mxu0 0.0
    %206 = vmatprep.subr.mxu0 0.0
    %207 = vmatpush1.msra.mxu0 0.0
    %208 = vmatprep.subr.mxu0 0.0
    %209 = vmatpush1.msra.mxu0 0.0
    %210 = vmatprep.subr.mxu0 0.0
    %211 = vmatpush1.msra.mxu0 0.0
    %212 = vmatprep.subr.mxu0 0.0
    %213 = vmatpush1.msra.mxu0 0.0
    %214 = vmatprep.subr.mxu0 0.0
    %215 = vmatpush1.msra.mxu0 0.0
    %216 = vmatprep.subr.mxu0 0.0
    %217 = vmatpush1.msra.mxu0 0.0
    %218 = vmatprep.subr.mxu0 0.0
    %219 = vmatpush1.msra.mxu0 0.0
    %220 = vmatprep.subr.mxu0 0.0
    %221 = vmatpush1.msra.mxu0 0.0
    %222 = vmatprep.subr.mxu0 0.0
    %223 = vmatpush1.msra.mxu0 0.0
    %224 = vmatprep.subr.mxu0 0.0
    %225 = vmatpush1.msra.mxu0 0.0
    %226 = vmatprep.subr.mxu0 0.0
    %227 = vmatpush1.msra.mxu0 0.0
    %228 = vmatprep.subr.mxu0 0.0
    %229 = vmatpush1.msra.mxu0 0.0
    %230 = vmatprep.subr.mxu0 0.0
    %231 = vmatpush1.msra.mxu0 0.0
    %232 = vmatprep.subr.mxu0 0.0
    %233 = vmatpush1.msra.mxu0 0.0
    %234 = vmatprep.subr.mxu0 0.0
    %235 = vmatpush1.msra.mxu0 0.0
    %236 = vmatprep.subr.mxu0 0.0
    %237 = vmatpush1.msra.mxu0 0.0
    %238 = vmatprep.subr.mxu0 0.0
    %239 = vmatpush1.msra.mxu0 0.0
    %240 = vmatprep.subr.mxu0 0.0
    %241 = vmatpush1.msra.mxu0 0.0
    %242 = vmatprep.subr.mxu0 0.0
    %243 = vmatpush1.msra.mxu0 0.0
    %244 = vmatprep.subr.mxu0 0.0
    %245 = vmatpush1.msra.mxu0 0.0
    %246 = vmatprep.subr.mxu0 0.0
    %247 = vmatpush1.msra.mxu0 0.0
    %248 = vmatprep.subr.mxu0 0.0
    %249 = vmatpush1.msra.mxu0 0.0
    %250 = vmatprep.mubr.f32.mxu0 0.0
    %251 = vmatmul.mubr.f32.gmra.mrb[0].mxu0 %v97
    %v252 = vpop.f32.mrb[0].mxu0
    %v253 = vadd.f32 %v93, %v252
    %v254 = vpop.f32.mrb[0].mxu0
    %255 = vmatprep.mubr.f32.mxu0 0.0
    %256 = vmatmul.mubr.f32.gmra.mrb[0].mxu0 %v100
    %v257 = vpop.f32.mrb[0].mxu0
    %v258 = vadd.f32 %v93, %v257
    %v259 = vpop.f32.mrb[0].mxu0
    %260 = vmatprep.mubr.f32.mxu0 0.0
    %261 = vmatmul.mubr.f32.gmra.mrb[0].mxu0 %v103
    %v262 = vpop.f32.mrb[0].mxu0
    %v263 = vadd.f32 %v93, %v262
    %v264 = vpop.f32.mrb[0].mxu0
    %265 = vmatprep.mubr.f32.mxu0 0.0
    %266 = vmatmul.mubr.f32.gmra.mrb[0].mxu0 %v106
    %v267 = vpop.f32.mrb[0].mxu0
    %v268 = vadd.f32 %v93, %v267
    %v269 = vpop.f32.mrb[0].mxu0
    %270 = vmatprep.mubr.f32.mxu0 0.0
    %271 = vmatmul.mubr.f32.gmra.mrb[0].mxu0 %v109
    %v272 = vpop.f32.mrb[0].mxu0
    %v273 = vadd.f32 %v93, %v272
    %v274 = vpop.f32.mrb[0].mxu0
    %275 = vmatprep.mubr.f32.mxu0 0.0
    %276 = vmatmul.mubr.f32.gmra.mrb[0].mxu0 %v112
    %v277 = vpop.f32.mrb[0].mxu0
    %v278 = vadd.f32 %v93, %v277
    %v279 = vpop.f32.mrb[0].mxu0
    %280 = vmatprep.mubr.f32.mxu0 0.0
    %281 = vmatmul.mubr.f32.gmra.mrb[0].mxu0 %v115
    %v282 = vpop.f32.mrb[0].mxu0
    %v283 = vadd.f32 %v93, %v282
    %v284 = vpop.f32.mrb[0].mxu0
    %285 = vmatprep.mubr.f32.mxu0 0.0
    %286 = vmatmul.mubr.f32.gmra.mrb[0].mxu0 %v118
    %v287 = vpop.f32.mrb[0].mxu0
    %v288 = vadd.f32 %v93, %v287
    %v289 = vpop.f32.mrb[0].mxu0
    %290 = vmatprep.mubr.f32.mxu0 0.0
    %291 = vmatmul.mubr.f32.gmra.mrb[0].mxu0 %v121
    %v292 = vpop.f32.mrb[0].mxu0
    %v293 = vadd.f32 %v93, %v292
    %v294 = vpop.f32.mrb[0].mxu0
    %295 = vmatprep.mubr.f32.mxu0 0.0
    %296 = vmatmul.mubr.f32.gmra.mrb[0].mxu0 %v124
    %v297 = vpop.f32.mrb[0].mxu0
    %v298 = vadd.f32 %v93, %v297
    %v299 = vpop.f32.mrb[0].mxu0
    %300 = vmatprep.mubr.f32.mxu0 0.0
    %301 = vmatmul.mubr.f32.gmra.mrb[0].mxu0 %v127
    %v302 = vpop.f32.mrb[0].mxu0
    %v303 = vadd.f32 %v93, %v302
    %v304 = vpop.f32.mrb[0].mxu0
    %305 = vmatprep.mubr.f32.mxu0 0.0
    %306 = vmatmul.mubr.f32.gmra.mrb[0].mxu0 %v130
    %v307 = vpop.f32.mrb[0].mxu0
    %v308 = vadd.f32 %v93, %v307
    %v309 = vpop.f32.mrb[0].mxu0
    %310 = vmatprep.mubr.f32.mxu0 0.0
    %311 = vmatmul.mubr.f32.gmra.mrb[0].mxu0 %v133
    %v312 = vpop.f32.mrb[0].mxu0
    %v313 = vadd.f32 %v93, %v312
    %v314 = vpop.f32.mrb[0].mxu0
    %315 = vmatprep.mubr.f32.mxu0 0.0
    %316 = vmatmul.mubr.f32.gmra.mrb[0].mxu0 %v136
    %v317 = vpop.f32.mrb[0].mxu0
    %v318 = vadd.f32 %v93, %v317
    %v319 = vpop.f32.mrb[0].mxu0
    %320 = vmatprep.mubr.f32.mxu0 0.0
    %321 = vmatmul.mubr.f32.gmra.mrb[0].mxu0 %v139
    %v322 = vpop.f32.mrb[0].mxu0
    %v323 = vadd.f32 %v93, %v322
    %v324 = vpop.f32.mrb[0].mxu0
    %325 = vmatprep.mubr.f32.mxu0 0.0
    %326 = vmatmul.mubr.f32.gmra.mrb[0].mxu0 %v142
    %v327 = vpop.f32.mrb[0].mxu0
    %v328 = vadd.f32 %v93, %v327
    %v329 = vpop.f32.mrb[0].mxu0
    %330 = vmatprep.mubr.f32.mxu0 0.0
    %331 = vmatmul.mubr.f32.gmra.mrb[0].mxu0 %v145
    %v332 = vpop.f32.mrb[0].mxu0
    %v333 = vadd.f32 %v93, %v332
    %v334 = vpop.f32.mrb[0].mxu0
    %335 = vmatprep.mubr.f32.mxu0 0.0
    %336 = vmatmul.mubr.f32.gmra.mrb[0].mxu0 %v148
    %v337 = vpop.f32.mrb[0].mxu0
    %v338 = vadd.f32 %v93, %v337
    %v339 = vpop.f32.mrb[0].mxu0
    %340 = vmatprep.mubr.f32.mxu0 0.0
    %341 = vmatmul.mubr.f32.gmra.mrb[0].mxu0 %v151
    %v342 = vpop.f32.mrb[0].mxu0
    %v343 = vadd.f32 %v93, %v342
    %v344 = vpop.f32.mrb[0].mxu0
    %345 = vmatprep.mubr.f32.mxu0 0.0
    %346 = vmatmul.mubr.f32.gmra.mrb[0].mxu0 %v154
    %v347 = vpop.f32.mrb[0].mxu0
    %v348 = vadd.f32 %v93, %v347
    %v349 = vpop.f32.mrb[0].mxu0
    %350 = vmatprep.mubr.f32.mxu0 0.0
    %351 = vmatmul.mubr.f32.gmra.mrb[0].mxu0 %v157
    %v352 = vpop.f32.mrb[0].mxu0
    %v353 = vadd.f32 %v93, %v352
    %v354 = vpop.f32.mrb[0].mxu0
    %355 = vmatprep.mubr.f32.mxu0 0.0
    %356 = vmatmul.mubr.f32.gmra.mrb[0].mxu0 %v160
    %v357 = vpop.f32.mrb[0].mxu0
    %v358 = vadd.f32 %v93, %v357
    %v359 = vpop.f32.mrb[0].mxu0
    %360 = vmatprep.mubr.f32.mxu0 0.0
    %361 = vmatmul.mubr.f32.gmra.mrb[0].mxu0 %v163
    %v362 = vpop.f32.mrb[0].mxu0
    %v363 = vadd.f32 %v93, %v362
    %v364 = vpop.f32.mrb[0].mxu0
    %365 = vmatprep.mubr.f32.mxu0 0.0
    %366 = vmatmul.mubr.f32.gmra.mrb[0].mxu0 %v166
    %v367 = vpop.f32.mrb[0].mxu0
    %v368 = vadd.f32 %v93, %v367
    %v369 = vpop.f32.mrb[0].mxu0
    %370 = vmatprep.mubr.f32.mxu0 0.0
    %371 = vmatmul.mubr.f32.gmra.mrb[0].mxu0 %v169
    %v372 = vpop.f32.mrb[0].mxu0
    %v373 = vadd.f32 %v93, %v372
    %v374 = vpop.f32.mrb[0].mxu0
    %375 = vmatprep.mubr.f32.mxu0 0.0
    %376 = vmatmul.mubr.f32.gmra.mrb[0].mxu0 %v172
    %v377 = vpop.f32.mrb[0].mxu0
    %v378 = vadd.f32 %v93, %v377
    %v379 = vpop.f32.mrb[0].mxu0
    %380 = vmatprep.mubr.f32.mxu0 0.0
    %381 = vmatmul.mubr.f32.gmra.mrb[0].mxu0 %v175
    %v382 = vpop.f32.mrb[0].mxu0
    %v383 = vadd.f32 %v93, %v382
    %v384 = vpop.f32.mrb[0].mxu0
    %385 = vmatprep.mubr.f32.mxu0 0.0
    %386 = vmatmul.mubr.f32.gmra.mrb[0].mxu0 %v178
    %v387 = vpop.f32.mrb[0].mxu0
    %v388 = vadd.f32 %v93, %v387
    %v389 = vpop.f32.mrb[0].mxu0
    %390 = vmatprep.mubr.f32.mxu0 0.0
    %391 = vmatmul.mubr.f32.gmra.mrb[0].mxu0 %v181
    %v392 = vpop.f32.mrb[0].mxu0
    %v393 = vadd.f32 %v93, %v392
    %v394 = vpop.f32.mrb[0].mxu0
    %395 = vmatprep.mubr.f32.mxu0 0.0
    %396 = vmatmul.mubr.f32.gmra.mrb[0].mxu0 %v184
    %v397 = vpop.f32.mrb[0].mxu0
    %v398 = vadd.f32 %v93, %v397
    %v399 = vpop.f32.mrb[0].mxu0
    %400 = vdwg.mxu0
    %401 = vst.msk [vmem:[#allocation2] sm:$0xff] %vm95, %v253
    %402 = vst.msk [vmem:[#allocation2 + $0x8] sm:$0xff] %vm95, %v258
    %403 = vst.msk [vmem:[#allocation2 + $0x10] sm:$0xff] %vm95, %v263
    %404 = vst.msk [vmem:[#allocation2 + $0x18] sm:$0xff] %vm95, %v268
    %405 = vst.msk [vmem:[#allocation2 + $0x20] sm:$0xff] %vm95, %v273
    %406 = vst.msk [vmem:[#allocation2 + $0x28] sm:$0xff] %vm95, %v278
    %407 = vst.msk [vmem:[#allocation2 + $0x30] sm:$0xff] %vm95, %v283
    %408 = vst.msk [vmem:[#allocation2 + $0x38] sm:$0xff] %vm95, %v288
    %409 = vst.msk [vmem:[#allocation2 + $0x40] sm:$0xff] %vm95, %v293
    %410 = vst.msk [vmem:[#allocation2 + $0x48] sm:$0xff] %vm95, %v298
    %411 = vst.msk [vmem:[#allocation2 + $0x50] sm:$0xff] %vm95, %v303
    %412 = vst.msk [vmem:[#allocation2 + $0x58] sm:$0xff] %vm95, %v308
    %413 = vst.msk [vmem:[#allocation2 + $0x60] sm:$0xff] %vm95, %v313
    %414 = vst.msk [vmem:[#allocation2 + $0x68] sm:$0xff] %vm95, %v318
    %415 = vst.msk [vmem:[#allocation2 + $0x70] sm:$0xff] %vm95, %v323
    %416 = vst.msk [vmem:[#allocation2 + $0x78] sm:$0xff] %vm95, %v328
    %417 = vst.msk [vmem:[#allocation2 + $0x80] sm:$0xff] %vm95, %v333
    %418 = vst.msk [vmem:[#allocation2 + $0x88] sm:$0xff] %vm95, %v338
    %419 = vst.msk [vmem:[#allocation2 + $0x90] sm:$0xff] %vm95, %v343
    %420 = vst.msk [vmem:[#allocation2 + $0x98] sm:$0xff] %vm95, %v348
    %421 = vst.msk [vmem:[#allocation2 + $0xa0] sm:$0xff] %vm95, %v353
    %422 = vst.msk [vmem:[#allocation2 + $0xa8] sm:$0xff] %vm95, %v358
    %423 = vst.msk [vmem:[#allocation2 + $0xb0] sm:$0xff] %vm95, %v363
    %424 = vst.msk [vmem:[#allocation2 + $0xb8] sm:$0xff] %vm95, %v368
    %425 = vst.msk [vmem:[#allocation2 + $0xc0] sm:$0xff] %vm95, %v373
    %426 = vst.msk [vmem:[#allocation2 + $0xc8] sm:$0xff] %vm95, %v378
    %427 = vst.msk [vmem:[#allocation2 + $0xd0] sm:$0xff] %vm95, %v383
    %428 = vst.msk [vmem:[#allocation2 + $0xd8] sm:$0xff] %vm95, %v388
    %429 = vst.msk [vmem:[#allocation2 + $0xe0] sm:$0xff] %vm95, %v393
    %430 = vst.msk [vmem:[#allocation2 + $0xe8] sm:$0xff] %vm95, %v398
    %v431 = vld [vmem:[%s4] sm:$0xff]
    %v432 = vld [vmem:[%s4 + $0x8] sm:$0xff]
    %v433 = vld [vmem:[%s4 + $0x10] sm:$0xff]
    %v434 = vld [vmem:[%s4 + $0x18] sm:$0xff]
    %v435 = vld [vmem:[%s4 + $0x20] sm:$0xff]
    %v436 = vld [vmem:[%s4 + $0x28] sm:$0xff]
    %v437 = vld [vmem:[%s4 + $0x30] sm:$0xff]
    %v438 = vld [vmem:[%s4 + $0x38] sm:$0xff]
    %v439 = vld [vmem:[%s5] sm:$0x1]
    %v441 = vlaneseq
    %v442 = vshrl.u32 %v441, 7
    %v443 = vsub.s32 0, %v442
    %v444 = vrot.slane %v439, %v443
    %446 = vmatprep.subr.mxu0 0.0
    %447 = vmatpush1.msra.mxu0 %v431
    %448 = vmatprep.subr.mxu0 0.0
    %449 = vmatpush1.msra.mxu0 %v432
    %450 = vmatprep.subr.mxu0 0.0
    %451 = vmatpush1.msra.mxu0 %v433
    %452 = vmatprep.subr.mxu0 0.0
    %453 = vmatpush1.msra.mxu0 %v434
    %454 = vmatprep.subr.mxu0 0.0
    %455 = vmatpush1.msra.mxu0 %v435
    %456 = vmatprep.subr.mxu0 0.0
    %457 = vmatpush1.msra.mxu0 %v436
    %458 = vmatprep.subr.mxu0 0.0
    %459 = vmatpush1.msra.mxu0 %v437
    %460 = vmatprep.subr.mxu0 0.0
    %461 = vmatpush1.msra.mxu0 %v438
    %462 = vmatprep.subr.mxu0 0.0
    %463 = vmatpush1.msra.mxu0 0.0
    %464 = vmatprep.subr.mxu0 0.0
    %465 = vmatpush1.msra.mxu0 0.0
    %466 = vmatprep.subr.mxu0 0.0
    %467 = vmatpush1.msra.mxu0 0.0
    %468 = vmatprep.subr.mxu0 0.0
    %469 = vmatpush1.msra.mxu0 0.0
    %470 = vmatprep.subr.mxu0 0.0
    %471 = vmatpush1.msra.mxu0 0.0
    %472 = vmatprep.subr.mxu0 0.0
    %473 = vmatpush1.msra.mxu0 0.0
    %474 = vmatprep.subr.mxu0 0.0
    %475 = vmatpush1.msra.mxu0 0.0
    %476 = vmatprep.subr.mxu0 0.0
    %477 = vmatpush1.msra.mxu0 0.0
    %478 = vmatprep.subr.mxu0 0.0
    %479 = vmatpush1.msra.mxu0 0.0
    %480 = vmatprep.subr.mxu0 0.0
    %481 = vmatpush1.msra.mxu0 0.0
    %482 = vmatprep.subr.mxu0 0.0
    %483 = vmatpush1.msra.mxu0 0.0
    %484 = vmatprep.subr.mxu0 0.0
    %485 = vmatpush1.msra.mxu0 0.0
    %486 = vmatprep.subr.mxu0 0.0
    %487 = vmatpush1.msra.mxu0 0.0
    %488 = vmatprep.subr.mxu0 0.0
    %489 = vmatpush1.msra.mxu0 0.0
    %490 = vmatprep.subr.mxu0 0.0
    %491 = vmatpush1.msra.mxu0 0.0
    %492 = vmatprep.subr.mxu0 0.0
    %493 = vmatpush1.msra.mxu0 0.0
    %494 = vmatprep.subr.mxu0 0.0
    %495 = vmatpush1.msra.mxu0 0.0
    %496 = vmatprep.subr.mxu0 0.0
    %497 = vmatpush1.msra.mxu0 0.0
    %498 = vmatprep.subr.mxu0 0.0
    %499 = vmatpush1.msra.mxu0 0.0
    %500 = vmatprep.subr.mxu0 0.0
    %501 = vmatpush1.msra.mxu0 0.0
    %502 = vmatprep.subr.mxu0 0.0
    %503 = vmatpush1.msra.mxu0 0.0
    %504 = vmatprep.subr.mxu0 0.0
    %505 = vmatpush1.msra.mxu0 0.0
    %506 = vmatprep.subr.mxu0 0.0
    %507 = vmatpush1.msra.mxu0 0.0
    %508 = vmatprep.subr.mxu0 0.0
    %509 = vmatpush1.msra.mxu0 0.0
    %510 = vmatprep.mubr.f32.mxu0 0.0
    %511 = vmatmul.mubr.f32.gmra.mrb[0].mxu0 %v97
    %v512 = vpop.f32.mrb[0].mxu0
    %v513 = vadd.f32 %v444, %v512
    %v514 = vpop.f32.mrb[0].mxu0
    %515 = vmatprep.mubr.f32.mxu0 0.0
    %516 = vmatmul.mubr.f32.gmra.mrb[0].mxu0 %v100
    %v517 = vpop.f32.mrb[0].mxu0
    %v518 = vadd.f32 %v444, %v517
    %v519 = vpop.f32.mrb[0].mxu0
    %520 = vmatprep.mubr.f32.mxu0 0.0
    %521 = vmatmul.mubr.f32.gmra.mrb[0].mxu0 %v103
    %v522 = vpop.f32.mrb[0].mxu0
    %v523 = vadd.f32 %v444, %v522
    %v524 = vpop.f32.mrb[0].mxu0
    %525 = vmatprep.mubr.f32.mxu0 0.0
    %526 = vmatmul.mubr.f32.gmra.mrb[0].mxu0 %v106
    %v527 = vpop.f32.mrb[0].mxu0
    %v528 = vadd.f32 %v444, %v527
    %v529 = vpop.f32.mrb[0].mxu0
    %530 = vmatprep.mubr.f32.mxu0 0.0
    %531 = vmatmul.mubr.f32.gmra.mrb[0].mxu0 %v109
    %v532 = vpop.f32.mrb[0].mxu0
    %v533 = vadd.f32 %v444, %v532
    %v534 = vpop.f32.mrb[0].mxu0
    %535 = vmatprep.mubr.f32.mxu0 0.0
    %536 = vmatmul.mubr.f32.gmra.mrb[0].mxu0 %v112
    %v537 = vpop.f32.mrb[0].mxu0
    %v538 = vadd.f32 %v444, %v537
    %v539 = vpop.f32.mrb[0].mxu0
    %540 = vmatprep.mubr.f32.mxu0 0.0
    %541 = vmatmul.mubr.f32.gmra.mrb[0].mxu0 %v115
    %v542 = vpop.f32.mrb[0].mxu0
    %v543 = vadd.f32 %v444, %v542
    %v544 = vpop.f32.mrb[0].mxu0
    %545 = vmatprep.mubr.f32.mxu0 0.0
    %546 = vmatmul.mubr.f32.gmra.mrb[0].mxu0 %v118
    %v547 = vpop.f32.mrb[0].mxu0
    %v548 = vadd.f32 %v444, %v547
    %v549 = vpop.f32.mrb[0].mxu0
    %550 = vmatprep.mubr.f32.mxu0 0.0
    %551 = vmatmul.mubr.f32.gmra.mrb[0].mxu0 %v121
    %v552 = vpop.f32.mrb[0].mxu0
    %v553 = vadd.f32 %v444, %v552
    %v554 = vpop.f32.mrb[0].mxu0
    %555 = vmatprep.mubr.f32.mxu0 0.0
    %556 = vmatmul.mubr.f32.gmra.mrb[0].mxu0 %v124
    %v557 = vpop.f32.mrb[0].mxu0
    %v558 = vadd.f32 %v444, %v557
    %v559 = vpop.f32.mrb[0].mxu0
    %560 = vmatprep.mubr.f32.mxu0 0.0
    %561 = vmatmul.mubr.f32.gmra.mrb[0].mxu0 %v127
    %v562 = vpop.f32.mrb[0].mxu0
    %v563 = vadd.f32 %v444, %v562
    %v564 = vpop.f32.mrb[0].mxu0
    %565 = vmatprep.mubr.f32.mxu0 0.0
    %566 = vmatmul.mubr.f32.gmra.mrb[0].mxu0 %v130
    %v567 = vpop.f32.mrb[0].mxu0
    %v568 = vadd.f32 %v444, %v567
    %v569 = vpop.f32.mrb[0].mxu0
    %570 = vmatprep.mubr.f32.mxu0 0.0
    %571 = vmatmul.mubr.f32.gmra.mrb[0].mxu0 %v133
    %v572 = vpop.f32.mrb[0].mxu0
    %v573 = vadd.f32 %v444, %v572
    %v574 = vpop.f32.mrb[0].mxu0
    %575 = vmatprep.mubr.f32.mxu0 0.0
    %576 = vmatmul.mubr.f32.gmra.mrb[0].mxu0 %v136
    %v577 = vpop.f32.mrb[0].mxu0
    %v578 = vadd.f32 %v444, %v577
    %v579 = vpop.f32.mrb[0].mxu0
    %580 = vmatprep.mubr.f32.mxu0 0.0
    %581 = vmatmul.mubr.f32.gmra.mrb[0].mxu0 %v139
    %v582 = vpop.f32.mrb[0].mxu0
    %v583 = vadd.f32 %v444, %v582
    %v584 = vpop.f32.mrb[0].mxu0
    %585 = vmatprep.mubr.f32.mxu0 0.0
    %586 = vmatmul.mubr.f32.gmra.mrb[0].mxu0 %v142
    %v587 = vpop.f32.mrb[0].mxu0
    %v588 = vadd.f32 %v444, %v587
    %v589 = vpop.f32.mrb[0].mxu0
    %590 = vmatprep.mubr.f32.mxu0 0.0
    %591 = vmatmul.mubr.f32.gmra.mrb[0].mxu0 %v145
    %v592 = vpop.f32.mrb[0].mxu0
    %v593 = vadd.f32 %v444, %v592
    %v594 = vpop.f32.mrb[0].mxu0
    %595 = vmatprep.mubr.f32.mxu0 0.0
    %596 = vmatmul.mubr.f32.gmra.mrb[0].mxu0 %v148
    %v597 = vpop.f32.mrb[0].mxu0
    %v598 = vadd.f32 %v444, %v597
    %v599 = vpop.f32.mrb[0].mxu0
    %600 = vmatprep.mubr.f32.mxu0 0.0
    %601 = vmatmul.mubr.f32.gmra.mrb[0].mxu0 %v151
    %v602 = vpop.f32.mrb[0].mxu0
    %v603 = vadd.f32 %v444, %v602
    %v604 = vpop.f32.mrb[0].mxu0
    %605 = vmatprep.mubr.f32.mxu0 0.0
    %606 = vmatmul.mubr.f32.gmra.mrb[0].mxu0 %v154
    %v607 = vpop.f32.mrb[0].mxu0
    %v608 = vadd.f32 %v444, %v607
    %v609 = vpop.f32.mrb[0].mxu0
    %610 = vmatprep.mubr.f32.mxu0 0.0
    %611 = vmatmul.mubr.f32.gmra.mrb[0].mxu0 %v157
    %v612 = vpop.f32.mrb[0].mxu0
    %v613 = vadd.f32 %v444, %v612
    %v614 = vpop.f32.mrb[0].mxu0
    %615 = vmatprep.mubr.f32.mxu0 0.0
    %616 = vmatmul.mubr.f32.gmra.mrb[0].mxu0 %v160
    %v617 = vpop.f32.mrb[0].mxu0
    %v618 = vadd.f32 %v444, %v617
    %v619 = vpop.f32.mrb[0].mxu0
    %620 = vmatprep.mubr.f32.mxu0 0.0
    %621 = vmatmul.mubr.f32.gmra.mrb[0].mxu0 %v163
    %v622 = vpop.f32.mrb[0].mxu0
    %v623 = vadd.f32 %v444, %v622
    %v624 = vpop.f32.mrb[0].mxu0
    %625 = vmatprep.mubr.f32.mxu0 0.0
    %626 = vmatmul.mubr.f32.gmra.mrb[0].mxu0 %v166
    %v627 = vpop.f32.mrb[0].mxu0
    %v628 = vadd.f32 %v444, %v627
    %v629 = vpop.f32.mrb[0].mxu0
    %630 = vmatprep.mubr.f32.mxu0 0.0
    %631 = vmatmul.mubr.f32.gmra.mrb[0].mxu0 %v169
    %v632 = vpop.f32.mrb[0].mxu0
    %v633 = vadd.f32 %v444, %v632
    %v634 = vpop.f32.mrb[0].mxu0
    %635 = vmatprep.mubr.f32.mxu0 0.0
    %636 = vmatmul.mubr.f32.gmra.mrb[0].mxu0 %v172
    %v637 = vpop.f32.mrb[0].mxu0
    %v638 = vadd.f32 %v444, %v637
    %v639 = vpop.f32.mrb[0].mxu0
    %640 = vmatprep.mubr.f32.mxu0 0.0
    %641 = vmatmul.mubr.f32.gmra.mrb[0].mxu0 %v175
    %v642 = vpop.f32.mrb[0].mxu0
    %v643 = vadd.f32 %v444, %v642
    %v644 = vpop.f32.mrb[0].mxu0
    %645 = vmatprep.mubr.f32.mxu0 0.0
    %646 = vmatmul.mubr.f32.gmra.mrb[0].mxu0 %v178
    %v647 = vpop.f32.mrb[0].mxu0
    %v648 = vadd.f32 %v444, %v647
    %v649 = vpop.f32.mrb[0].mxu0
    %650 = vmatprep.mubr.f32.mxu0 0.0
    %651 = vmatmul.mubr.f32.gmra.mrb[0].mxu0 %v181
    %v652 = vpop.f32.mrb[0].mxu0
    %v653 = vadd.f32 %v444, %v652
    %v654 = vpop.f32.mrb[0].mxu0
    %655 = vmatprep.mubr.f32.mxu0 0.0
    %656 = vmatmul.mubr.f32.gmra.mrb[0].mxu0 %v184
    %v657 = vpop.f32.mrb[0].mxu0
    %v658 = vadd.f32 %v444, %v657
    %v659 = vpop.f32.mrb[0].mxu0
    %660 = vdwg.mxu0
    %661 = vst.msk [vmem:[#allocation3] sm:$0xff] %vm95, %v513
    %662 = vst.msk [vmem:[#allocation3 + $0x8] sm:$0xff] %vm95, %v518
    %663 = vst.msk [vmem:[#allocation3 + $0x10] sm:$0xff] %vm95, %v523
    %664 = vst.msk [vmem:[#allocation3 + $0x18] sm:$0xff] %vm95, %v528
    %665 = vst.msk [vmem:[#allocation3 + $0x20] sm:$0xff] %vm95, %v533
    %666 = vst.msk [vmem:[#allocation3 + $0x28] sm:$0xff] %vm95, %v538
    %667 = vst.msk [vmem:[#allocation3 + $0x30] sm:$0xff] %vm95, %v543
    %668 = vst.msk [vmem:[#allocation3 + $0x38] sm:$0xff] %vm95, %v548
    %669 = vst.msk [vmem:[#allocation3 + $0x40] sm:$0xff] %vm95, %v553
    %670 = vst.msk [vmem:[#allocation3 + $0x48] sm:$0xff] %vm95, %v558
    %671 = vst.msk [vmem:[#allocation3 + $0x50] sm:$0xff] %vm95, %v563
    %672 = vst.msk [vmem:[#allocation3 + $0x58] sm:$0xff] %vm95, %v568
    %673 = vst.msk [vmem:[#allocation3 + $0x60] sm:$0xff] %vm95, %v573
    %674 = vst.msk [vmem:[#allocation3 + $0x68] sm:$0xff] %vm95, %v578
    %675 = vst.msk [vmem:[#allocation3 + $0x70] sm:$0xff] %vm95, %v583
    %676 = vst.msk [vmem:[#allocation3 + $0x78] sm:$0xff] %vm95, %v588
    %677 = vst.msk [vmem:[#allocation3 + $0x80] sm:$0xff] %vm95, %v593
    %678 = vst.msk [vmem:[#allocation3 + $0x88] sm:$0xff] %vm95, %v598
    %679 = vst.msk [vmem:[#allocation3 + $0x90] sm:$0xff] %vm95, %v603
    %680 = vst.msk [vmem:[#allocation3 + $0x98] sm:$0xff] %vm95, %v608
    %681 = vst.msk [vmem:[#allocation3 + $0xa0] sm:$0xff] %vm95, %v613
    %682 = vst.msk [vmem:[#allocation3 + $0xa8] sm:$0xff] %vm95, %v618
    %683 = vst.msk [vmem:[#allocation3 + $0xb0] sm:$0xff] %vm95, %v623
    %684 = vst.msk [vmem:[#allocation3 + $0xb8] sm:$0xff] %vm95, %v628
    %685 = vst.msk [vmem:[#allocation3 + $0xc0] sm:$0xff] %vm95, %v633
    %686 = vst.msk [vmem:[#allocation3 + $0xc8] sm:$0xff] %vm95, %v638
    %687 = vst.msk [vmem:[#allocation3 + $0xd0] sm:$0xff] %vm95, %v643
    %688 = vst.msk [vmem:[#allocation3 + $0xd8] sm:$0xff] %vm95, %v648
    %689 = vst.msk [vmem:[#allocation3 + $0xe0] sm:$0xff] %vm95, %v653
    %690 = vst.msk [vmem:[#allocation3 + $0xe8] sm:$0xff] %vm95, %v658
    %v691 = vld [vmem:[#allocation2] sm:$0xff]
    %v692 = vld [vmem:[#allocation2 + $0x8] sm:$0xff]
    %v693 = vld [vmem:[#allocation2 + $0x10] sm:$0xff]
    %v694 = vld [vmem:[#allocation3] sm:$0xff]
    %v695 = vld [vmem:[#allocation3 + $0x8] sm:$0xff]
    %v696 = vld [vmem:[#allocation3 + $0x10] sm:$0xff]
    %v698 = vsel %vm95, %v691, 0
    %v701 = vsel %vm95, %v692, 0
    %v704 = vsel %vm95, %v693, 0
    %v707 = vsel %vm95, %v694, 0
    %v710 = vsel %vm95, %v695, 0
    %v713 = vsel %vm95, %v696, 0
    %715 = vmatprep.subr.mxu0 0.0
    %716 = vmatpush1.xpose.msra.mxu0 %v707
    %717 = vmatprep.subr.mxu0 0.0
    %718 = vmatpush1.xpose.msra.mxu0 %v710
    %719 = vmatprep.subr.mxu0 0.0
    %720 = vmatpush1.xpose.msra.mxu0 %v713
    %721 = vmatprep.subr.mxu0 0.0
    %722 = vmatpush1.xpose.msra.mxu0 0.0
    %723 = vmatprep.subr.mxu0 0.0
    %724 = vmatpush1.xpose.msra.mxu0 0.0
    %725 = vmatprep.subr.mxu0 0.0
    %726 = vmatpush1.xpose.msra.mxu0 0.0
    %727 = vmatprep.subr.mxu0 0.0
    %728 = vmatpush1.xpose.msra.mxu0 0.0
    %729 = vmatprep.subr.mxu0 0.0
    %730 = vmatpush1.xpose.msra.mxu0 0.0
    %731 = vmatprep.subr.mxu0 0.0
    %732 = vmatpush1.xpose.msra.mxu0 0.0
    %733 = vmatprep.subr.mxu0 0.0
    %734 = vmatpush1.xpose.msra.mxu0 0.0
    %735 = vmatprep.subr.mxu0 0.0
    %736 = vmatpush1.xpose.msra.mxu0 0.0
    %737 = vmatprep.subr.mxu0 0.0
    %738 = vmatpush1.xpose.msra.mxu0 0.0
    %739 = vmatprep.subr.mxu0 0.0
    %740 = vmatpush1.xpose.msra.mxu0 0.0
    %741 = vmatprep.subr.mxu0 0.0
    %742 = vmatpush1.xpose.msra.mxu0 0.0
    %743 = vmatprep.subr.mxu0 0.0
    %744 = vmatpush1.xpose.msra.mxu0 0.0
    %745 = vmatprep.subr.mxu0 0.0
    %746 = vmatpush1.xpose.msra.mxu0 0.0
    %747 = vmatprep.subr.mxu0 0.0
    %748 = vmatpush1.xpose.msra.mxu0 0.0
    %749 = vmatprep.subr.mxu0 0.0
    %750 = vmatpush1.xpose.msra.mxu0 0.0
    %751 = vmatprep.subr.mxu0 0.0
    %752 = vmatpush1.xpose.msra.mxu0 0.0
    %753 = vmatprep.subr.mxu0 0.0
    %754 = vmatpush1.xpose.msra.mxu0 0.0
    %755 = vmatprep.subr.mxu0 0.0
    %756 = vmatpush1.xpose.msra.mxu0 0.0
    %757 = vmatprep.subr.mxu0 0.0
    %758 = vmatpush1.xpose.msra.mxu0 0.0
    %759 = vmatprep.subr.mxu0 0.0
    %760 = vmatpush1.xpose.msra.mxu0 0.0
    %761 = vmatprep.subr.mxu0 0.0
    %762 = vmatpush1.xpose.msra.mxu0 0.0
    %763 = vmatprep.subr.mxu0 0.0
    %764 = vmatpush1.xpose.msra.mxu0 0.0
    %765 = vmatprep.subr.mxu0 0.0
    %766 = vmatpush1.xpose.msra.mxu0 0.0
    %767 = vmatprep.subr.mxu0 0.0
    %768 = vmatpush1.xpose.msra.mxu0 0.0
    %769 = vmatprep.subr.mxu0 0.0
    %770 = vmatpush1.xpose.msra.mxu0 0.0
    %771 = vmatprep.subr.mxu0 0.0
    %772 = vmatpush1.xpose.msra.mxu0 0.0
    %773 = vmatprep.subr.mxu0 0.0
    %774 = vmatpush1.xpose.msra.mxu0 0.0
    %775 = vmatprep.subr.mxu0 0.0
    %776 = vmatpush1.xpose.msra.mxu0 0.0
    %777 = vmatprep.subr.mxu0 0.0
    %778 = vmatpush1.xpose.msra.mxu0 0.0
    %779 = vmatprep.mubr.f32.mxu0 0.0
    %780 = vmatmul.mubr.f32.gmra.mrb[0].mxu0 %v698
    %v781 = vpop.f32.mrb[0].mxu0
    %v782 = vadd.f32 0.0, %v781
    %v783 = vpop.f32.mrb[0].mxu0
    %784 = vmatprep.mubr.f32.mxu0 0.0
    %785 = vmatmul.mubr.f32.gmra.mrb[0].mxu0 %v701
    %v786 = vpop.f32.mrb[0].mxu0
    %v787 = vadd.f32 0.0, %v786
    %v788 = vpop.f32.mrb[0].mxu0
    %789 = vmatprep.mubr.f32.mxu0 0.0
    %790 = vmatmul.mubr.f32.gmra.mrb[0].mxu0 %v704
    %v791 = vpop.f32.mrb[0].mxu0
    %v792 = vadd.f32 0.0, %v791
    %v793 = vpop.f32.mrb[0].mxu0
    %794 = vdwg.mxu0
    %v795 = vmul.f32 %v782, 0.125
    %v796 = vmul.f32 %v787, 0.125
    %v797 = vmul.f32 %v792, 0.125
    %vm798 = vcmask 195584
    %v799 = vsel %vm798, %v795, -inf
    %800 = vmax.xlane.f32.xlu0 %v799
    %v801 = vpop.xlane.xlu0 %800
    %v802 = vsel %vm798, %v796, -inf
    %803 = vmax.xlane.f32.xlu0 %v802
    %v804 = vpop.xlane.xlu0 %803
    %v805 = vsel %vm798, %v797, -inf
    %806 = vmax.xlane.f32.xlu0 %v805
    %v807 = vpop.xlane.xlu0 %806
    %v808 = vsub.f32 %v795, %v801
    %v809 = vsub.f32 %v796, %v804
    %v810 = vsub.f32 %v797, %v807
    %v811 = vmul.f32 %v808, 1.442695
    %v812 = vpow.pop %v811
    %v813 = vmul.f32 %v809, 1.442695
    %v814 = vpow.pop %v813
    %v815 = vmul.f32 %v810, 1.442695
    %v816 = vpow.pop %v815
    %v817 = vsel %vm798, %v812, 0.0
    %818 = vadd.xlane.f32.xlu0 %v817
    %v819 = vpop.xlane.xlu0 %818
    %v820 = vsel %vm798, %v814, 0.0
    %821 = vadd.xlane.f32.xlu0 %v820
    %v822 = vpop.xlane.xlu0 %821
    %v823 = vsel %vm798, %v816, 0.0
    %824 = vadd.xlane.f32.xlu0 %v823
    %v825 = vpop.xlane.xlu0 %824
    %v826 = vrcp.pop %v819
    %v827 = vmul.f32 %v812, %v826
    %v828 = vrcp.pop %v822
    %v829 = vmul.f32 %v814, %v828
    %v830 = vrcp.pop %v825
    %v831 = vmul.f32 %v816, %v830
    %832 = vst.msk [vmem:[#allocation9] sm:$0xff] %vm798, %v827
    %833 = vst.msk [vmem:[#allocation9 + $0x8] sm:$0xff] %vm798, %v829
    %834 = vst.msk [vmem:[#allocation9 + $0x10] sm:$0xff] %vm798, %v831
    %v835 = vld [vmem:[%s0] sm:$0xff]
    %v836 = vld [vmem:[%s0 + $0x8] sm:$0xff]
    %v837 = vld [vmem:[%s0 + $0x10] sm:$0xff]
    %v839 = vsel %vm798, %v827, 0
    %v842 = vsel %vm798, %v829, 0
    %v845 = vsel %vm798, %v831, 0
    %847 = vmatprep.subr.mxu0 0.0
    %848 = vmatpush1.msra.mxu0 %v835
    %849 = vmatprep.subr.mxu0 0.0
    %850 = vmatpush1.msra.mxu0 %v836
    %851 = vmatprep.subr.mxu0 0.0
    %852 = vmatpush1.msra.mxu0 %v837
    %853 = vmatprep.subr.mxu0 0.0
    %854 = vmatpush1.msra.mxu0 0.0
    %855 = vmatprep.subr.mxu0 0.0
    %856 = vmatpush1.msra.mxu0 0.0
    %857 = vmatprep.subr.mxu0 0.0
    %858 = vmatpush1.msra.mxu0 0.0
    %859 = vmatprep.subr.mxu0 0.0
    %860 = vmatpush1.msra.mxu0 0.0
    %861 = vmatprep.subr.mxu0 0.0
    %862 = vmatpush1.msra.mxu0 0.0
    %863 = vmatprep.subr.mxu0 0.0
    %864 = vmatpush1.msra.mxu0 0.0
    %865 = vmatprep.subr.mxu0 0.0
    %866 = vmatpush1.msra.mxu0 0.0
    %867 = vmatprep.subr.mxu0 0.0
    %868 = vmatpush1.msra.mxu0 0.0
    %869 = vmatprep.subr.mxu0 0.0
    %870 = vmatpush1.msra.mxu0 0.0
    %871 = vmatprep.subr.mxu0 0.0
    %872 = vmatpush1.msra.mxu0 0.0
    %873 = vmatprep.subr.mxu0 0.0
    %874 = vmatpush1.msra.mxu0 0.0
    %875 = vmatprep.subr.mxu0 0.0
    %876 = vmatpush1.msra.mxu0 0.0
    %877 = vmatprep.subr.mxu0 0.0
    %878 = vmatpush1.msra.mxu0 0.0
    %879 = vmatprep.subr.mxu0 0.0
    %880 = vmatpush1.msra.mxu0 0.0
    %881 = vmatprep.subr.mxu0 0.0
    %882 = vmatpush1.msra.mxu0 0.0
    %883 = vmatprep.subr.mxu0 0.0
    %884 = vmatpush1.msra.mxu0 0.0
    %885 = vmatprep.subr.mxu0 0.0
    %886 = vmatpush1.msra.mxu0 0.0
    %887 = vmatprep.subr.mxu0 0.0
    %888 = vmatpush1.msra.mxu0 0.0
    %889 = vmatprep.subr.mxu0 0.0
    %890 = vmatpush1.msra.mxu0 0.0
    %891 = vmatprep.subr.mxu0 0.0
    %892 = vmatpush1.msra.mxu0 0.0
    %893 = vmatprep.subr.mxu0 0.0
    %894 = vmatpush1.msra.mxu0 0.0
    %895 = vmatprep.subr.mxu0 0.0
    %896 = vmatpush1.msra.mxu0 0.0
    %897 = vmatprep.subr.mxu0 0.0
    %898 = vmatpush1.msra.mxu0 0.0
    %899 = vmatprep.subr.mxu0 0.0
    %900 = vmatpush1.msra.mxu0 0.0
    %901 = vmatprep.subr.mxu0 0.0
    %902 = vmatpush1.msra.mxu0 0.0
    %903 = vmatprep.subr.mxu0 0.0
    %904 = vmatpush1.msra.mxu0 0.0
    %905 = vmatprep.subr.mxu0 0.0
    %906 = vmatpush1.msra.mxu0 0.0
    %907 = vmatprep.subr.mxu0 0.0
    %908 = vmatpush1.msra.mxu0 0.0
    %909 = vmatprep.subr.mxu0 0.0
    %910 = vmatpush1.msra.mxu0 0.0
    %911 = vmatprep.mubr.f32.mxu0 0.0
    %912 = vmatmul.mubr.f32.gmra.mrb[0].mxu0 %v839
    %v913 = vpop.f32.mrb[0].mxu0
    %v914 = vadd.f32 0.0, %v913
    %v915 = vpop.f32.mrb[0].mxu0
    %916 = vmatprep.mubr.f32.mxu0 0.0
    %917 = vmatmul.mubr.f32.gmra.mrb[0].mxu0 %v842
    %v918 = vpop.f32.mrb[0].mxu0
    %v919 = vadd.f32 0.0, %v918
    %v920 = vpop.f32.mrb[0].mxu0
    %921 = vmatprep.mubr.f32.mxu0 0.0
    %922 = vmatmul.mubr.f32.gmra.mrb[0].mxu0 %v845
    %v923 = vpop.f32.mrb[0].mxu0
    %v924 = vadd.f32 0.0, %v923
    %v925 = vpop.f32.mrb[0].mxu0
    %926 = vdwg.mxu0
    %927 = vst.msk [vmem:[#allocation4] sm:$0xff] %vm95, %v914
    %928 = vst.msk [vmem:[#allocation4 + $0x8] sm:$0xff] %vm95, %v919
    %929 = vst.msk [vmem:[#allocation4 + $0x10] sm:$0xff] %vm95, %v924
    %v930 = vld [vmem:[#allocation2 + $0x18] sm:$0xff]
    %v931 = vld [vmem:[#allocation2 + $0x20] sm:$0xff]
    %v932 = vld [vmem:[#allocation2 + $0x28] sm:$0xff]
    %v933 = vld [vmem:[#allocation3 + $0x18] sm:$0xff]
    %v934 = vld [vmem:[#allocation3 + $0x20] sm:$0xff]
    %v935 = vld [vmem:[#allocation3 + $0x28] sm:$0xff]
    %v937 = vsel %vm95, %v930, 0
    %v940 = vsel %vm95, %v931, 0
    %v943 = vsel %vm95, %v932, 0
    %v946 = vsel %vm95, %v933, 0
    %v949 = vsel %vm95, %v934, 0
    %v952 = vsel %vm95, %v935, 0
    %954 = vmatprep.subr.mxu0 0.0
    %955 = vmatpush1.xpose.msra.mxu0 %v946
    %956 = vmatprep.subr.mxu0 0.0
    %957 = vmatpush1.xpose.msra.mxu0 %v949
    %958 = vmatprep.subr.mxu0 0.0
    %959 = vmatpush1.xpose.msra.mxu0 %v952
    %960 = vmatprep.subr.mxu0 0.0
    %961 = vmatpush1.xpose.msra.mxu0 0.0
    %962 = vmatprep.subr.mxu0 0.0
    %963 = vmatpush1.xpose.msra.mxu0 0.0
    %964 = vmatprep.subr.mxu0 0.0
    %965 = vmatpush1.xpose.msra.mxu0 0.0
    %966 = vmatprep.subr.mxu0 0.0
    %967 = vmatpush1.xpose.msra.mxu0 0.0
    %968 = vmatprep.subr.mxu0 0.0
    %969 = vmatpush1.xpose.msra.mxu0 0.0
    %970 = vmatprep.subr.mxu0 0.0
    %971 = vmatpush1.xpose.msra.mxu0 0.0
    %972 = vmatprep.subr.mxu0 0.0
    %973 = vmatpush1.xpose.msra.mxu0 0.0
    %974 = vmatprep.subr.mxu0 0.0
    %975 = vmatpush1.xpose.msra.mxu0 0.0
    %976 = vmatprep.subr.mxu0 0.0
    %977 = vmatpush1.xpose.msra.mxu0 0.0
    %978 = vmatprep.subr.mxu0 0.0
    %979 = vmatpush1.xpose.msra.mxu0 0.0
    %980 = vmatprep.subr.mxu0 0.0
    %981 = vmatpush1.xpose.msra.mxu0 0.0
    %982 = vmatprep.subr.mxu0 0.0
    %983 = vmatpush1.xpose.msra.mxu0 0.0
    %984 = vmatprep.subr.mxu0 0.0
    %985 = vmatpush1.xpose.msra.mxu0 0.0
    %986 = vmatprep.subr.mxu0 0.0
    %987 = vmatpush1.xpose.msra.mxu0 0.0
    %988 = vmatprep.subr.mxu0 0.0
    %989 = vmatpush1.xpose.msra.mxu0 0.0
    %990 = vmatprep.subr.mxu0 0.0
    %991 = vmatpush1.xpose.msra.mxu0 0.0
    %992 = vmatprep.subr.mxu0 0.0
    %993 = vmatpush1.xpose.msra.mxu0 0.0
    %994 = vmatprep.subr.mxu0 0.0
    %995 = vmatpush1.xpose.msra.mxu0 0.0
    %996 = vmatprep.subr.mxu0 0.0
    %997 = vmatpush1.xpose.msra.mxu0 0.0
    %998 = vmatprep.subr.mxu0 0.0
    %999 = vmatpush1.xpose.msra.mxu0 0.0
    %1000 = vmatprep.subr.mxu0 0.0
    %1001 = vmatpush1.xpose.msra.mxu0 0.0
    %1002 = vmatprep.subr.mxu0 0.0
    %1003 = vmatpush1.xpose.msra.mxu0 0.0
    %1004 = vmatprep.subr.mxu0 0.0
    %1005 = vmatpush1.xpose.msra.mxu0 0.0
    %1006 = vmatprep.subr.mxu0 0.0
    %1007 = vmatpush1.xpose.msra.mxu0 0.0
    %1008 = vmatprep.subr.mxu0 0.0
    %1009 = vmatpush1.xpose.msra.mxu0 0.0
    %1010 = vmatprep.subr.mxu0 0.0
    %1011 = vmatpush1.xpose.msra.mxu0 0.0
    %1012 = vmatprep.subr.mxu0 0.0
    %1013 = vmatpush1.xpose.msra.mxu0 0.0
    %1014 = vmatprep.subr.mxu0 0.0
    %1015 = vmatpush1.xpose.msra.mxu0 0.0
    %1016 = vmatprep.subr.mxu0 0.0
    %1017 = vmatpush1.xpose.msra.mxu0 0.0
    %1018 = vmatprep.mubr.f32.mxu0 0.0
    %1019 = vmatmul.mubr.f32.gmra.mrb[0].mxu0 %v937
    %v1020 = vpop.f32.mrb[0].mxu0
    %v1021 = vadd.f32 0.0, %v1020
    %v1022 = vpop.f32.mrb[0].mxu0
    %1023 = vmatprep.mubr.f32.mxu0 0.0
    %1024 = vmatmul.mubr.f32.gmra.mrb[0].mxu0 %v940
    %v1025 = vpop.f32.mrb[0].mxu0
    %v1026 = vadd.f32 0.0, %v1025
    %v1027 = vpop.f32.mrb[0].mxu0
    %1028 = vmatprep.mubr.f32.mxu0 0.0
    %1029 = vmatmul.mubr.f32.gmra.mrb[0].mxu0 %v943
    %v1030 = vpop.f32.mrb[0].mxu0
    %v1031 = vadd.f32 0.0, %v1030
    %v1032 = vpop.f32.mrb[0].mxu0
    %1033 = vdwg.mxu0
    %v1034 = vmul.f32 %v1021, 0.125
    %v1035 = vmul.f32 %v1026, 0.125
    %v1036 = vmul.f32 %v1031, 0.125
    %v1037 = vsel %vm798, %v1034, -inf
    %1038 = vmax.xlane.f32.xlu0 %v1037
    %v1039 = vpop.xlane.xlu0 %1038
    %v1040 = vsel %vm798, %v1035, -inf
    %1041 = vmax.xlane.f32.xlu0 %v1040
    %v1042 = vpop.xlane.xlu0 %1041
    %v1043 = vsel %vm798, %v1036, -inf
    %1044 = vmax.xlane.f32.xlu0 %v1043
    %v1045 = vpop.xlane.xlu0 %1044
    %v1046 = vsub.f32 %v1034, %v1039
    %v1047 = vsub.f32 %v1035, %v1042
    %v1048 = vsub.f32 %v1036, %v1045
    %v1049 = vmul.f32 %v1046, 1.442695
    %v1050 = vpow.pop %v1049
    %v1051 = vmul.f32 %v1047, 1.442695
    %v1052 = vpow.pop %v1051
    %v1053 = vmul.f32 %v1048, 1.442695
    %v1054 = vpow.pop %v1053
    %v1055 = vsel %vm798, %v1050, 0.0
    %1056 = vadd.xlane.f32.xlu0 %v1055
    %v1057 = vpop.xlane.xlu0 %1056
    %v1058 = vsel %vm798, %v1052, 0.0
    %1059 = vadd.xlane.f32.xlu0 %v1058
    %v1060 = vpop.xlane.xlu0 %1059
    %v1061 = vsel %vm798, %v1054, 0.0
    %1062 = vadd.xlane.f32.xlu0 %v1061
    %v1063 = vpop.xlane.xlu0 %1062
    %v1064 = vrcp.pop %v1057
    %v1065 = vmul.f32 %v1050, %v1064
    %v1066 = vrcp.pop %v1060
    %v1067 = vmul.f32 %v1052, %v1066
    %v1068 = vrcp.pop %v1063
    %v1069 = vmul.f32 %v1054, %v1068
    %s1070 = scalar_lea.vmem [#allocation9], 24
    %1071 = vst.msk [vmem:[%s1070] sm:$0xff] %vm798, %v1065
    %1072 = vst.msk [vmem:[%s1070 + $0x8] sm:$0xff] %vm798, %v1067
    %1073 = vst.msk [vmem:[%s1070 + $0x10] sm:$0xff] %vm798, %v1069
    %v1074 = vld [vmem:[%s0 + $0x18] sm:$0xff]
    %v1075 = vld [vmem:[%s0 + $0x20] sm:$0xff]
    %v1076 = vld [vmem:[%s0 + $0x28] sm:$0xff]
    %v1078 = vsel %vm798, %v1065, 0
    %v1081 = vsel %vm798, %v1067, 0
    %v1084 = vsel %vm798, %v1069, 0
    %1086 = vmatprep.subr.mxu0 0.0
    %1087 = vmatpush1.msra.mxu0 %v1074
    %1088 = vmatprep.subr.mxu0 0.0
    %1089 = vmatpush1.msra.mxu0 %v1075
    %1090 = vmatprep.subr.mxu0 0.0
    %1091 = vmatpush1.msra.mxu0 %v1076
    %1092 = vmatprep.subr.mxu0 0.0
    %1093 = vmatpush1.msra.mxu0 0.0
    %1094 = vmatprep.subr.mxu0 0.0
    %1095 = vmatpush1.msra.mxu0 0.0
    %1096 = vmatprep.subr.mxu0 0.0
    %1097 = vmatpush1.msra.mxu0 0.0
    %1098 = vmatprep.subr.mxu0 0.0
    %1099 = vmatpush1.msra.mxu0 0.0
    %1100 = vmatprep.subr.mxu0 0.0
    %1101 = vmatpush1.msra.mxu0 0.0
    %1102 = vmatprep.subr.mxu0 0.0
    %1103 = vmatpush1.msra.mxu0 0.0
    %1104 = vmatprep.subr.mxu0 0.0
    %1105 = vmatpush1.msra.mxu0 0.0
    %1106 = vmatprep.subr.mxu0 0.0
    %1107 = vmatpush1.msra.mxu0 0.0
    %1108 = vmatprep.subr.mxu0 0.0
    %1109 = vmatpush1.msra.mxu0 0.0
    %1110 = vmatprep.subr.mxu0 0.0
    %1111 = vmatpush1.msra.mxu0 0.0
    %1112 = vmatprep.subr.mxu0 0.0
    %1113 = vmatpush1.msra.mxu0 0.0
    %1114 = vmatprep.subr.mxu0 0.0
    %1115 = vmatpush1.msra.mxu0 0.0
    %1116 = vmatprep.subr.mxu0 0.0
    %1117 = vmatpush1.msra.mxu0 0.0
    %1118 = vmatprep.subr.mxu0 0.0
    %1119 = vmatpush1.msra.mxu0 0.0
    %1120 = vmatprep.subr.mxu0 0.0
    %1121 = vmatpush1.msra.mxu0 0.0
    %1122 = vmatprep.subr.mxu0 0.0
    %1123 = vmatpush1.msra.mxu0 0.0
    %1124 = vmatprep.subr.mxu0 0.0
    %1125 = vmatpush1.msra.mxu0 0.0
    %1126 = vmatprep.subr.mxu0 0.0
    %1127 = vmatpush1.msra.mxu0 0.0
    %1128 = vmatprep.subr.mxu0 0.0
    %1129 = vmatpush1.msra.mxu0 0.0
    %1130 = vmatprep.subr.mxu0 0.0
    %1131 = vmatpush1.msra.mxu0 0.0
    %1132 = vmatprep.subr.mxu0 0.0
    %1133 = vmatpush1.msra.mxu0 0.0
    %1134 = vmatprep.subr.mxu0 0.0
    %1135 = vmatpush1.msra.mxu0 0.0
    %1136 = vmatprep.subr.mxu0 0.0
    %1137 = vmatpush1.msra.mxu0 0.0
    %1138 = vmatprep.subr.mxu0 0.0
    %1139 = vmatpush1.msra.mxu0 0.0
    %1140 = vmatprep.subr.mxu0 0.0
    %1141 = vmatpush1.msra.mxu0 0.0
    %1142 = vmatprep.subr.mxu0 0.0
    %1143 = vmatpush1.msra.mxu0 0.0
    %1144 = vmatprep.subr.mxu0 0.0
    %1145 = vmatpush1.msra.mxu0 0.0
    %1146 = vmatprep.subr.mxu0 0.0
    %1147 = vmatpush1.msra.mxu0 0.0
    %1148 = vmatprep.subr.mxu0 0.0
    %1149 = vmatpush1.msra.mxu0 0.0
    %1150 = vmatprep.mubr.f32.mxu0 0.0
    %1151 = vmatmul.mubr.f32.gmra.mrb[0].mxu0 %v1078
    %v1152 = vpop.f32.mrb[0].mxu0
    %v1153 = vadd.f32 0.0, %v1152
    %v1154 = vpop.f32.mrb[0].mxu0
    %1155 = vmatprep.mubr.f32.mxu0 0.0
    %1156 = vmatmul.mubr.f32.gmra.mrb[0].mxu0 %v1081
    %v1157 = vpop.f32.mrb[0].mxu0
    %v1158 = vadd.f32 0.0, %v1157
    %v1159 = vpop.f32.mrb[0].mxu0
    %1160 = vmatprep.mubr.f32.mxu0 0.0
    %1161 = vmatmul.mubr.f32.gmra.mrb[0].mxu0 %v1084
    %v1162 = vpop.f32.mrb[0].mxu0
    %v1163 = vadd.f32 0.0, %v1162
    %v1164 = vpop.f32.mrb[0].mxu0
    %1165 = vdwg.mxu0
    %1166 = vst.msk [vmem:[#allocation4 + $0x18] sm:$0xff] %vm95, %v1153
    %1167 = vst.msk [vmem:[#allocation4 + $0x20] sm:$0xff] %vm95, %v1158
    %1168 = vst.msk [vmem:[#allocation4 + $0x28] sm:$0xff] %vm95, %v1163
    %v1169 = vld [vmem:[#allocation2 + $0x30] sm:$0xff]
    %v1170 = vld [vmem:[#allocation2 + $0x38] sm:$0xff]
    %v1171 = vld [vmem:[#allocation2 + $0x40] sm:$0xff]
    %v1172 = vld [vmem:[#allocation3 + $0x30] sm:$0xff]
    %v1173 = vld [vmem:[#allocation3 + $0x38] sm:$0xff]
    %v1174 = vld [vmem:[#allocation3 + $0x40] sm:$0xff]
    %v1176 = vsel %vm95, %v1169, 0
    %v1179 = vsel %vm95, %v1170, 0
    %v1182 = vsel %vm95, %v1171, 0
    %v1185 = vsel %vm95, %v1172, 0
    %v1188 = vsel %vm95, %v1173, 0
    %v1191 = vsel %vm95, %v1174, 0
    %1193 = vmatprep.subr.mxu0 0.0
    %1194 = vmatpush1.xpose.msra.mxu0 %v1185
    %1195 = vmatprep.subr.mxu0 0.0
    %1196 = vmatpush1.xpose.msra.mxu0 %v1188
    %1197 = vmatprep.subr.mxu0 0.0
    %1198 = vmatpush1.xpose.msra.mxu0 %v1191
    %1199 = vmatprep.subr.mxu0 0.0
    %1200 = vmatpush1.xpose.msra.mxu0 0.0
    %1201 = vmatprep.subr.mxu0 0.0
    %1202 = vmatpush1.xpose.msra.mxu0 0.0
    %1203 = vmatprep.subr.mxu0 0.0
    %1204 = vmatpush1.xpose.msra.mxu0 0.0
    %1205 = vmatprep.subr.mxu0 0.0
    %1206 = vmatpush1.xpose.msra.mxu0 0.0
    %1207 = vmatprep.subr.mxu0 0.0
    %1208 = vmatpush1.xpose.msra.mxu0 0.0
    %1209 = vmatprep.subr.mxu0 0.0
    %1210 = vmatpush1.xpose.msra.mxu0 0.0
    %1211 = vmatprep.subr.mxu0 0.0
    %1212 = vmatpush1.xpose.msra.mxu0 0.0
    %1213 = vmatprep.subr.mxu0 0.0
    %1214 = vmatpush1.xpose.msra.mxu0 0.0
    %1215 = vmatprep.subr.mxu0 0.0
    %1216 = vmatpush1.xpose.msra.mxu0 0.0
    %1217 = vmatprep.subr.mxu0 0.0
    %1218 = vmatpush1.xpose.msra.mxu0 0.0
    %1219 = vmatprep.subr.mxu0 0.0
    %1220 = vmatpush1.xpose.msra.mxu0 0.0
    %1221 = vmatprep.subr.mxu0 0.0
    %1222 = vmatpush1.xpose.msra.mxu0 0.0
    %1223 = vmatprep.subr.mxu0 0.0
    %1224 = vmatpush1.xpose.msra.mxu0 0.0
    %1225 = vmatprep.subr.mxu0 0.0
    %1226 = vmatpush1.xpose.msra.mxu0 0.0
    %1227 = vmatprep.subr.mxu0 0.0
    %1228 = vmatpush1.xpose.msra.mxu0 0.0
    %1229 = vmatprep.subr.mxu0 0.0
    %1230 = vmatpush1.xpose.msra.mxu0 0.0
    %1231 = vmatprep.subr.mxu0 0.0
    %1232 = vmatpush1.xpose.msra.mxu0 0.0
    %1233 = vmatprep.subr.mxu0 0.0
    %1234 = vmatpush1.xpose.msra.mxu0 0.0
    %1235 = vmatprep.subr.mxu0 0.0
    %1236 = vmatpush1.xpose.msra.mxu0 0.0
    %1237 = vmatprep.subr.mxu0 0.0
    %1238 = vmatpush1.xpose.msra.mxu0 0.0
    %1239 = vmatprep.subr.mxu0 0.0
    %1240 = vmatpush1.xpose.msra.mxu0 0.0
    %1241 = vmatprep.subr.mxu0 0.0
    %1242 = vmatpush1.xpose.msra.mxu0 0.0
    %1243 = vmatprep.subr.mxu0 0.0
    %1244 = vmatpush1.xpose.msra.mxu0 0.0
    %1245 = vmatprep.subr.mxu0 0.0
    %1246 = vmatpush1.xpose.msra.mxu0 0.0
    %1247 = vmatprep.subr.mxu0 0.0
    %1248 = vmatpush1.xpose.msra.mxu0 0.0
    %1249 = vmatprep.subr.mxu0 0.0
    %1250 = vmatpush1.xpose.msra.mxu0 0.0
    %1251 = vmatprep.subr.mxu0 0.0
    %1252 = vmatpush1.xpose.msra.mxu0 0.0
    %1253 = vmatprep.subr.mxu0 0.0
    %1254 = vmatpush1.xpose.msra.mxu0 0.0
    %1255 = vmatprep.subr.mxu0 0.0
    %1256 = vmatpush1.xpose.msra.mxu0 0.0
    %1257 = vmatprep.mubr.f32.mxu0 0.0
    %1258 = vmatmul.mubr.f32.gmra.mrb[0].mxu0 %v1176
    %v1259 = vpop.f32.mrb[0].mxu0
    %v1260 = vadd.f32 0.0, %v1259
    %v1261 = vpop.f32.mrb[0].mxu0
    %1262 = vmatprep.mubr.f32.mxu0 0.0
    %1263 = vmatmul.mubr.f32.gmra.mrb[0].mxu0 %v1179
    %v1264 = vpop.f32.mrb[0].mxu0
    %v1265 = vadd.f32 0.0, %v1264
    %v1266 = vpop.f32.mrb[0].mxu0
    %1267 = vmatprep.mubr.f32.mxu0 0.0
    %1268 = vmatmul.mubr.f32.gmra.mrb[0].mxu0 %v1182
    %v1269 = vpop.f32.mrb[0].mxu0
    %v1270 = vadd.f32 0.0, %v1269
    %v1271 = vpop.f32.mrb[0].mxu0
    %1272 = vdwg.mxu0
    %v1273 = vmul.f32 %v1260, 0.125
    %v1274 = vmul.f32 %v1265, 0.125
    %v1275 = vmul.f32 %v1270, 0.125
    %v1276 = vsel %vm798, %v1273, -inf
    %1277 = vmax.xlane.f32.xlu0 %v1276
    %v1278 = vpop.xlane.xlu0 %1277
    %v1279 = vsel %vm798, %v1274, -inf
    %1280 = vmax.xlane.f32.xlu0 %v1279
    %v1281 = vpop.xlane.xlu0 %1280
    %v1282 = vsel %vm798, %v1275, -inf
    %1283 = vmax.xlane.f32.xlu0 %v1282
    %v1284 = vpop.xlane.xlu0 %1283
    %v1285 = vsub.f32 %v1273, %v1278
    %v1286 = vsub.f32 %v1274, %v1281
    %v1287 = vsub.f32 %v1275, %v1284
    %v1288 = vmul.f32 %v1285, 1.442695
    %v1289 = vpow.pop %v1288
    %v1290 = vmul.f32 %v1286, 1.442695
    %v1291 = vpow.pop %v1290
    %v1292 = vmul.f32 %v1287, 1.442695
    %v1293 = vpow.pop %v1292
    %v1294 = vsel %vm798, %v1289, 0.0
    %1295 = vadd.xlane.f32.xlu0 %v1294
    %v1296 = vpop.xlane.xlu0 %1295
    %v1297 = vsel %vm798, %v1291, 0.0
    %1298 = vadd.xlane.f32.xlu0 %v1297
    %v1299 = vpop.xlane.xlu0 %1298
    %v1300 = vsel %vm798, %v1293, 0.0
    %1301 = vadd.xlane.f32.xlu0 %v1300
    %v1302 = vpop.xlane.xlu0 %1301
    %v1303 = vrcp.pop %v1296
    %v1304 = vmul.f32 %v1289, %v1303
    %v1305 = vrcp.pop %v1299
    %v1306 = vmul.f32 %v1291, %v1305
    %v1307 = vrcp.pop %v1302
    %v1308 = vmul.f32 %v1293, %v1307
    %s1309 = scalar_lea.vmem [#allocation9], 48
    %1310 = vst.msk [vmem:[%s1309] sm:$0xff] %vm798, %v1304
    %1311 = vst.msk [vmem:[%s1309 + $0x8] sm:$0xff] %vm798, %v1306
    %1312 = vst.msk [vmem:[%s1309 + $0x10] sm:$0xff] %vm798, %v1308
    %v1313 = vld [vmem:[%s0 + $0x30] sm:$0xff]
    %v1314 = vld [vmem:[%s0 + $0x38] sm:$0xff]
    %v1315 = vld [vmem:[%s0 + $0x40] sm:$0xff]
    %v1317 = vsel %vm798, %v1304, 0
    %v1320 = vsel %vm798, %v1306, 0
    %v1323 = vsel %vm798, %v1308, 0
    %1325 = vmatprep.subr.mxu0 0.0
    %1326 = vmatpush1.msra.mxu0 %v1313
    %1327 = vmatprep.subr.mxu0 0.0
    %1328 = vmatpush1.msra.mxu0 %v1314
    %1329 = vmatprep.subr.mxu0 0.0
    %1330 = vmatpush1.msra.mxu0 %v1315
    %1331 = vmatprep.subr.mxu0 0.0
    %1332 = vmatpush1.msra.mxu0 0.0
    %1333 = vmatprep.subr.mxu0 0.0
    %1334 = vmatpush1.msra.mxu0 0.0
    %1335 = vmatprep.subr.mxu0 0.0
    %1336 = vmatpush1.msra.mxu0 0.0
    %1337 = vmatprep.subr.mxu0 0.0
    %1338 = vmatpush1.msra.mxu0 0.0
    %1339 = vmatprep.subr.mxu0 0.0
    %1340 = vmatpush1.msra.mxu0 0.0
    %1341 = vmatprep.subr.mxu0 0.0
    %1342 = vmatpush1.msra.mxu0 0.0
    %1343 = vmatprep.subr.mxu0 0.0
    %1344 = vmatpush1.msra.mxu0 0.0
    %1345 = vmatprep.subr.mxu0 0.0
    %1346 = vmatpush1.msra.mxu0 0.0
    %1347 = vmatprep.subr.mxu0 0.0
    %1348 = vmatpush1.msra.mxu0 0.0
    %1349 = vmatprep.subr.mxu0 0.0
    %1350 = vmatpush1.msra.mxu0 0.0
    %1351 = vmatprep.subr.mxu0 0.0
    %1352 = vmatpush1.msra.mxu0 0.0
    %1353 = vmatprep.subr.mxu0 0.0
    %1354 = vmatpush1.msra.mxu0 0.0
    %1355 = vmatprep.subr.mxu0 0.0
    %1356 = vmatpush1.msra.mxu0 0.0
    %1357 = vmatprep.subr.mxu0 0.0
    %1358 = vmatpush1.msra.mxu0 0.0
    %1359 = vmatprep.subr.mxu0 0.0
    %1360 = vmatpush1.msra.mxu0 0.0
    %1361 = vmatprep.subr.mxu0 0.0
    %1362 = vmatpush1.msra.mxu0 0.0
    %1363 = vmatprep.subr.mxu0 0.0
    %1364 = vmatpush1.msra.mxu0 0.0
    %1365 = vmatprep.subr.mxu0 0.0
    %1366 = vmatpush1.msra.mxu0 0.0
    %1367 = vmatprep.subr.mxu0 0.0
    %1368 = vmatpush1.msra.mxu0 0.0
    %1369 = vmatprep.subr.mxu0 0.0
    %1370 = vmatpush1.msra.mxu0 0.0
    %1371 = vmatprep.subr.mxu0 0.0
    %1372 = vmatpush1.msra.mxu0 0.0
    %1373 = vmatprep.subr.mxu0 0.0
    %1374 = vmatpush1.msra.mxu0 0.0
    %1375 = vmatprep.subr.mxu0 0.0
    %1376 = vmatpush1.msra.mxu0 0.0
    %1377 = vmatprep.subr.mxu0 0.0
    %1378 = vmatpush1.msra.mxu0 0.0
    %1379 = vmatprep.subr.mxu0 0.0
    %1380 = vmatpush1.msra.mxu0 0.0
    %1381 = vmatprep.subr.mxu0 0.0
    %1382 = vmatpush1.msra.mxu0 0.0
    %1383 = vmatprep.subr.mxu0 0.0
    %1384 = vmatpush1.msra.mxu0 0.0
    %1385 = vmatprep.subr.mxu0 0.0
    %1386 = vmatpush1.msra.mxu0 0.0
    %1387 = vmatprep.subr.mxu0 0.0
    %1388 = vmatpush1.msra.mxu0 0.0
    %1389 = vmatprep.mubr.f32.mxu0 0.0
    %1390 = vmatmul.mubr.f32.gmra.mrb[0].mxu0 %v1317
    %v1391 = vpop.f32.mrb[0].mxu0
    %v1392 = vadd.f32 0.0, %v1391
    %v1393 = vpop.f32.mrb[0].mxu0
    %1394 = vmatprep.mubr.f32.mxu0 0.0
    %1395 = vmatmul.mubr.f32.gmra.mrb[0].mxu0 %v1320
    %v1396 = vpop.f32.mrb[0].mxu0
    %v1397 = vadd.f32 0.0, %v1396
    %v1398 = vpop.f32.mrb[0].mxu0
    %1399 = vmatprep.mubr.f32.mxu0 0.0
    %1400 = vmatmul.mubr.f32.gmra.mrb[0].mxu0 %v1323
    %v1401 = vpop.f32.mrb[0].mxu0
    %v1402 = vadd.f32 0.0, %v1401
    %v1403 = vpop.f32.mrb[0].mxu0
    %1404 = vdwg.mxu0
    %1405 = vst.msk [vmem:[#allocation4 + $0x30] sm:$0xff] %vm95, %v1392
    %1406 = vst.msk [vmem:[#allocation4 + $0x38] sm:$0xff] %vm95, %v1397
    %1407 = vst.msk [vmem:[#allocation4 + $0x40] sm:$0xff] %vm95, %v1402
    %v1408 = vld [vmem:[#allocation2 + $0x48] sm:$0xff]
    %v1409 = vld [vmem:[#allocation2 + $0x50] sm:$0xff]
    %v1410 = vld [vmem:[#allocation2 + $0x58] sm:$0xff]
    %v1411 = vld [vmem:[#allocation3 + $0x48] sm:$0xff]
    %v1412 = vld [vmem:[#allocation3 + $0x50] sm:$0xff]
    %v1413 = vld [vmem:[#allocation3 + $0x58] sm:$0xff]
    %v1415 = vsel %vm95, %v1408, 0
    %v1418 = vsel %vm95, %v1409, 0
    %v1421 = vsel %vm95, %v1410, 0
    %v1424 = vsel %vm95, %v1411, 0
    %v1427 = vsel %vm95, %v1412, 0
    %v1430 = vsel %vm95, %v1413, 0
    %1432 = vmatprep.subr.mxu0 0.0
    %1433 = vmatpush1.xpose.msra.mxu0 %v1424
    %1434 = vmatprep.subr.mxu0 0.0
    %1435 = vmatpush1.xpose.msra.mxu0 %v1427
    %1436 = vmatprep.subr.mxu0 0.0
    %1437 = vmatpush1.xpose.msra.mxu0 %v1430
    %1438 = vmatprep.subr.mxu0 0.0
    %1439 = vmatpush1.xpose.msra.mxu0 0.0
    %1440 = vmatprep.subr.mxu0 0.0
    %1441 = vmatpush1.xpose.msra.mxu0 0.0
    %1442 = vmatprep.subr.mxu0 0.0
    %1443 = vmatpush1.xpose.msra.mxu0 0.0
    %1444 = vmatprep.subr.mxu0 0.0
    %1445 = vmatpush1.xpose.msra.mxu0 0.0
    %1446 = vmatprep.subr.mxu0 0.0
    %1447 = vmatpush1.xpose.msra.mxu0 0.0
    %1448 = vmatprep.subr.mxu0 0.0
    %1449 = vmatpush1.xpose.msra.mxu0 0.0
    %1450 = vmatprep.subr.mxu0 0.0
    %1451 = vmatpush1.xpose.msra.mxu0 0.0
    %1452 = vmatprep.subr.mxu0 0.0
    %1453 = vmatpush1.xpose.msra.mxu0 0.0
    %1454 = vmatprep.subr.mxu0 0.0
    %1455 = vmatpush1.xpose.msra.mxu0 0.0
    %1456 = vmatprep.subr.mxu0 0.0
    %1457 = vmatpush1.xpose.msra.mxu0 0.0
    %1458 = vmatprep.subr.mxu0 0.0
    %1459 = vmatpush1.xpose.msra.mxu0 0.0
    %1460 = vmatprep.subr.mxu0 0.0
    %1461 = vmatpush1.xpose.msra.mxu0 0.0
    %1462 = vmatprep.subr.mxu0 0.0
    %1463 = vmatpush1.xpose.msra.mxu0 0.0
    %1464 = vmatprep.subr.mxu0 0.0
    %1465 = vmatpush1.xpose.msra.mxu0 0.0
    %1466 = vmatprep.subr.mxu0 0.0
    %1467 = vmatpush1.xpose.msra.mxu0 0.0
    %1468 = vmatprep.subr.mxu0 0.0
    %1469 = vmatpush1.xpose.msra.mxu0 0.0
    %1470 = vmatprep.subr.mxu0 0.0
    %1471 = vmatpush1.xpose.msra.mxu0 0.0
    %1472 = vmatprep.subr.mxu0 0.0
    %1473 = vmatpush1.xpose.msra.mxu0 0.0
    %1474 = vmatprep.subr.mxu0 0.0
    %1475 = vmatpush1.xpose.msra.mxu0 0.0
    %1476 = vmatprep.subr.mxu0 0.0
    %1477 = vmatpush1.xpose.msra.mxu0 0.0
    %1478 = vmatprep.subr.mxu0 0.0
    %1479 = vmatpush1.xpose.msra.mxu0 0.0
    %1480 = vmatprep.subr.mxu0 0.0
    %1481 = vmatpush1.xpose.msra.mxu0 0.0
    %1482 = vmatprep.subr.mxu0 0.0
    %1483 = vmatpush1.xpose.msra.mxu0 0.0
    %1484 = vmatprep.subr.mxu0 0.0
    %1485 = vmatpush1.xpose.msra.mxu0 0.0
    %1486 = vmatprep.subr.mxu0 0.0
    %1487 = vmatpush1.xpose.msra.mxu0 0.0
    %1488 = vmatprep.subr.mxu0 0.0
    %1489 = vmatpush1.xpose.msra.mxu0 0.0
    %1490 = vmatprep.subr.mxu0 0.0
    %1491 = vmatpush1.xpose.msra.mxu0 0.0
    %1492 = vmatprep.subr.mxu0 0.0
    %1493 = vmatpush1.xpose.msra.mxu0 0.0
    %1494 = vmatprep.subr.mxu0 0.0
    %1495 = vmatpush1.xpose.msra.mxu0 0.0
    %1496 = vmatprep.mubr.f32.mxu0 0.0
    %1497 = vmatmul.mubr.f32.gmra.mrb[0].mxu0 %v1415
    %v1498 = vpop.f32.mrb[0].mxu0
    %v1499 = vadd.f32 0.0, %v1498
    %v1500 = vpop.f32.mrb[0].mxu0
    %1501 = vmatprep.mubr.f32.mxu0 0.0
    %1502 = vmatmul.mubr.f32.gmra.mrb[0].mxu0 %v1418
    %v1503 = vpop.f32.mrb[0].mxu0
    %v1504 = vadd.f32 0.0, %v1503
    %v1505 = vpop.f32.mrb[0].mxu0
    %1506 = vmatprep.mubr.f32.mxu0 0.0
    %1507 = vmatmul.mubr.f32.gmra.mrb[0].mxu0 %v1421
    %v1508 = vpop.f32.mrb[0].mxu0
    %v1509 = vadd.f32 0.0, %v1508
    %v1510 = vpop.f32.mrb[0].mxu0
    %1511 = vdwg.mxu0
    %v1512 = vmul.f32 %v1499, 0.125
    %v1513 = vmul.f32 %v1504, 0.125
    %v1514 = vmul.f32 %v1509, 0.125
    %v1515 = vsel %vm798, %v1512, -inf
    %1516 = vmax.xlane.f32.xlu0 %v1515
    %v1517 = vpop.xlane.xlu0 %1516
    %v1518 = vsel %vm798, %v1513, -inf
    %1519 = vmax.xlane.f32.xlu0 %v1518
    %v1520 = vpop.xlane.xlu0 %1519
    %v1521 = vsel %vm798, %v1514, -inf
    %1522 = vmax.xlane.f32.xlu0 %v1521
    %v1523 = vpop.xlane.xlu0 %1522
    %v1524 = vsub.f32 %v1512, %v1517
    %v1525 = vsub.f32 %v1513, %v1520
    %v1526 = vsub.f32 %v1514, %v1523
    %v1527 = vmul.f32 %v1524, 1.442695
    %v1528 = vpow.pop %v1527
    %v1529 = vmul.f32 %v1525, 1.442695
    %v1530 = vpow.pop %v1529
    %v1531 = vmul.f32 %v1526, 1.442695
    %v1532 = vpow.pop %v1531
    %v1533 = vsel %vm798, %v1528, 0.0
    %1534 = vadd.xlane.f32.xlu0 %v1533
    %v1535 = vpop.xlane.xlu0 %1534
    %v1536 = vsel %vm798, %v1530, 0.0
    %1537 = vadd.xlane.f32.xlu0 %v1536
    %v1538 = vpop.xlane.xlu0 %1537
    %v1539 = vsel %vm798, %v1532, 0.0
    %1540 = vadd.xlane.f32.xlu0 %v1539
    %v1541 = vpop.xlane.xlu0 %1540
    %v1542 = vrcp.pop %v1535
    %v1543 = vmul.f32 %v1528, %v1542
    %v1544 = vrcp.pop %v1538
    %v1545 = vmul.f32 %v1530, %v1544
    %v1546 = vrcp.pop %v1541
    %v1547 = vmul.f32 %v1532, %v1546
    %s1548 = scalar_lea.vmem [#allocation9], 72
    %1549 = vst.msk [vmem:[%s1548] sm:$0xff] %vm798, %v1543
    %1550 = vst.msk [vmem:[%s1548 + $0x8] sm:$0xff] %vm798, %v1545
    %1551 = vst.msk [vmem:[%s1548 + $0x10] sm:$0xff] %vm798, %v1547
    %v1552 = vld [vmem:[%s0 + $0x48] sm:$0xff]
    %v1553 = vld [vmem:[%s0 + $0x50] sm:$0xff]
    %v1554 = vld [vmem:[%s0 + $0x58] sm:$0xff]
    %v1556 = vsel %vm798, %v1543, 0
    %v1559 = vsel %vm798, %v1545, 0
    %v1562 = vsel %vm798, %v1547, 0
    %1564 = vmatprep.subr.mxu0 0.0
    %1565 = vmatpush1.msra.mxu0 %v1552
    %1566 = vmatprep.subr.mxu0 0.0
    %1567 = vmatpush1.msra.mxu0 %v1553
    %1568 = vmatprep.subr.mxu0 0.0
    %1569 = vmatpush1.msra.mxu0 %v1554
    %1570 = vmatprep.subr.mxu0 0.0
    %1571 = vmatpush1.msra.mxu0 0.0
    %1572 = vmatprep.subr.mxu0 0.0
    %1573 = vmatpush1.msra.mxu0 0.0
    %1574 = vmatprep.subr.mxu0 0.0
    %1575 = vmatpush1.msra.mxu0 0.0
    %1576 = vmatprep.subr.mxu0 0.0
    %1577 = vmatpush1.msra.mxu0 0.0
    %1578 = vmatprep.subr.mxu0 0.0
    %1579 = vmatpush1.msra.mxu0 0.0
    %1580 = vmatprep.subr.mxu0 0.0
    %1581 = vmatpush1.msra.mxu0 0.0
    %1582 = vmatprep.subr.mxu0 0.0
    %1583 = vmatpush1.msra.mxu0 0.0
    %1584 = vmatprep.subr.mxu0 0.0
    %1585 = vmatpush1.msra.mxu0 0.0
    %1586 = vmatprep.subr.mxu0 0.0
    %1587 = vmatpush1.msra.mxu0 0.0
    %1588 = vmatprep.subr.mxu0 0.0
    %1589 = vmatpush1.msra.mxu0 0.0
    %1590 = vmatprep.subr.mxu0 0.0
    %1591 = vmatpush1.msra.mxu0 0.0
    %1592 = vmatprep.subr.mxu0 0.0
    %1593 = vmatpush1.msra.mxu0 0.0
    %1594 = vmatprep.subr.mxu0 0.0
    %1595 = vmatpush1.msra.mxu0 0.0
    %1596 = vmatprep.subr.mxu0 0.0
    %1597 = vmatpush1.msra.mxu0 0.0
    %1598 = vmatprep.subr.mxu0 0.0
    %1599 = vmatpush1.msra.mxu0 0.0
    %1600 = vmatprep.subr.mxu0 0.0
    %1601 = vmatpush1.msra.mxu0 0.0
    %1602 = vmatprep.subr.mxu0 0.0
    %1603 = vmatpush1.msra.mxu0 0.0
    %1604 = vmatprep.subr.mxu0 0.0
    %1605 = vmatpush1.msra.mxu0 0.0
    %1606 = vmatprep.subr.mxu0 0.0
    %1607 = vmatpush1.msra.mxu0 0.0
    %1608 = vmatprep.subr.mxu0 0.0
    %1609 = vmatpush1.msra.mxu0 0.0
    %1610 = vmatprep.subr.mxu0 0.0
    %1611 = vmatpush1.msra.mxu0 0.0
    %1612 = vmatprep.subr.mxu0 0.0
    %1613 = vmatpush1.msra.mxu0 0.0
    %1614 = vmatprep.subr.mxu0 0.0
    %1615 = vmatpush1.msra.mxu0 0.0
    %1616 = vmatprep.subr.mxu0 0.0
    %1617 = vmatpush1.msra.mxu0 0.0
    %1618 = vmatprep.subr.mxu0 0.0
    %1619 = vmatpush1.msra.mxu0 0.0
    %1620 = vmatprep.subr.mxu0 0.0
    %1621 = vmatpush1.msra.mxu0 0.0
    %1622 = vmatprep.subr.mxu0 0.0
    %1623 = vmatpush1.msra.mxu0 0.0
    %1624 = vmatprep.subr.mxu0 0.0
    %1625 = vmatpush1.msra.mxu0 0.0
    %1626 = vmatprep.subr.mxu0 0.0
    %1627 = vmatpush1.msra.mxu0 0.0
    %1628 = vmatprep.mubr.f32.mxu0 0.0
    %1629 = vmatmul.mubr.f32.gmra.mrb[0].mxu0 %v1556
    %v1630 = vpop.f32.mrb[0].mxu0
    %v1631 = vadd.f32 0.0, %v1630
    %v1632 = vpop.f32.mrb[0].mxu0
    %1633 = vmatprep.mubr.f32.mxu0 0.0
    %1634 = vmatmul.mubr.f32.gmra.mrb[0].mxu0 %v1559
    %v1635 = vpop.f32.mrb[0].mxu0
    %v1636 = vadd.f32 0.0, %v1635
    %v1637 = vpop.f32.mrb[0].mxu0
    %1638 = vmatprep.mubr.f32.mxu0 0.0
    %1639 = vmatmul.mubr.f32.gmra.mrb[0].mxu0 %v1562
    %v1640 = vpop.f32.mrb[0].mxu0
    %v1641 = vadd.f32 0.0, %v1640
    %v1642 = vpop.f32.mrb[0].mxu0
    %1643 = vdwg.mxu0
    %1644 = vst.msk [vmem:[#allocation4 + $0x48] sm:$0xff] %vm95, %v1631
    %1645 = vst.msk [vmem:[#allocation4 + $0x50] sm:$0xff] %vm95, %v1636
    %1646 = vst.msk [vmem:[#allocation4 + $0x58] sm:$0xff] %vm95, %v1641
    %v1647 = vld [vmem:[#allocation2 + $0x60] sm:$0xff]
    %v1648 = vld [vmem:[#allocation2 + $0x68] sm:$0xff]
    %v1649 = vld [vmem:[#allocation2 + $0x70] sm:$0xff]
    %v1650 = vld [vmem:[#allocation3 + $0x60] sm:$0xff]
    %v1651 = vld [vmem:[#allocation3 + $0x68] sm:$0xff]
    %v1652 = vld [vmem:[#allocation3 + $0x70] sm:$0xff]
    %v1654 = vsel %vm95, %v1647, 0
    %v1657 = vsel %vm95, %v1648, 0
    %v1660 = vsel %vm95, %v1649, 0
    %v1663 = vsel %vm95, %v1650, 0
    %v1666 = vsel %vm95, %v1651, 0
    %v1669 = vsel %vm95, %v1652, 0
    %1671 = vmatprep.subr.mxu0 0.0
    %1672 = vmatpush1.xpose.msra.mxu0 %v1663
    %1673 = vmatprep.subr.mxu0 0.0
    %1674 = vmatpush1.xpose.msra.mxu0 %v1666
    %1675 = vmatprep.subr.mxu0 0.0
    %1676 = vmatpush1.xpose.msra.mxu0 %v1669
    %1677 = vmatprep.subr.mxu0 0.0
    %1678 = vmatpush1.xpose.msra.mxu0 0.0
    %1679 = vmatprep.subr.mxu0 0.0
    %1680 = vmatpush1.xpose.msra.mxu0 0.0
    %1681 = vmatprep.subr.mxu0 0.0
    %1682 = vmatpush1.xpose.msra.mxu0 0.0
    %1683 = vmatprep.subr.mxu0 0.0
    %1684 = vmatpush1.xpose.msra.mxu0 0.0
    %1685 = vmatprep.subr.mxu0 0.0
    %1686 = vmatpush1.xpose.msra.mxu0 0.0
    %1687 = vmatprep.subr.mxu0 0.0
    %1688 = vmatpush1.xpose.msra.mxu0 0.0
    %1689 = vmatprep.subr.mxu0 0.0
    %1690 = vmatpush1.xpose.msra.mxu0 0.0
    %1691 = vmatprep.subr.mxu0 0.0
    %1692 = vmatpush1.xpose.msra.mxu0 0.0
    %1693 = vmatprep.subr.mxu0 0.0
    %1694 = vmatpush1.xpose.msra.mxu0 0.0
    %1695 = vmatprep.subr.mxu0 0.0
    %1696 = vmatpush1.xpose.msra.mxu0 0.0
    %1697 = vmatprep.subr.mxu0 0.0
    %1698 = vmatpush1.xpose.msra.mxu0 0.0
    %1699 = vmatprep.subr.mxu0 0.0
    %1700 = vmatpush1.xpose.msra.mxu0 0.0
    %1701 = vmatprep.subr.mxu0 0.0
    %1702 = vmatpush1.xpose.msra.mxu0 0.0
    %1703 = vmatprep.subr.mxu0 0.0
    %1704 = vmatpush1.xpose.msra.mxu0 0.0
    %1705 = vmatprep.subr.mxu0 0.0
    %1706 = vmatpush1.xpose.msra.mxu0 0.0
    %1707 = vmatprep.subr.mxu0 0.0
    %1708 = vmatpush1.xpose.msra.mxu0 0.0
    %1709 = vmatprep.subr.mxu0 0.0
    %1710 = vmatpush1.xpose.msra.mxu0 0.0
    %1711 = vmatprep.subr.mxu0 0.0
    %1712 = vmatpush1.xpose.msra.mxu0 0.0
    %1713 = vmatprep.subr.mxu0 0.0
    %1714 = vmatpush1.xpose.msra.mxu0 0.0
    %1715 = vmatprep.subr.mxu0 0.0
    %1716 = vmatpush1.xpose.msra.mxu0 0.0
    %1717 = vmatprep.subr.mxu0 0.0
    %1718 = vmatpush1.xpose.msra.mxu0 0.0
    %1719 = vmatprep.subr.mxu0 0.0
    %1720 = vmatpush1.xpose.msra.mxu0 0.0
    %1721 = vmatprep.subr.mxu0 0.0
    %1722 = vmatpush1.xpose.msra.mxu0 0.0
    %1723 = vmatprep.subr.mxu0 0.0
    %1724 = vmatpush1.xpose.msra.mxu0 0.0
    %1725 = vmatprep.subr.mxu0 0.0
    %1726 = vmatpush1.xpose.msra.mxu0 0.0
    %1727 = vmatprep.subr.mxu0 0.0
    %1728 = vmatpush1.xpose.msra.mxu0 0.0
    %1729 = vmatprep.subr.mxu0 0.0
    %1730 = vmatpush1.xpose.msra.mxu0 0.0
    %1731 = vmatprep.subr.mxu0 0.0
    %1732 = vmatpush1.xpose.msra.mxu0 0.0
    %1733 = vmatprep.subr.mxu0 0.0
    %1734 = vmatpush1.xpose.msra.mxu0 0.0
    %1735 = vmatprep.mubr.f32.mxu0 0.0
    %1736 = vmatmul.mubr.f32.gmra.mrb[0].mxu0 %v1654
    %v1737 = vpop.f32.mrb[0].mxu0
    %v1738 = vadd.f32 0.0, %v1737
    %v1739 = vpop.f32.mrb[0].mxu0
    %1740 = vmatprep.mubr.f32.mxu0 0.0
    %1741 = vmatmul.mubr.f32.gmra.mrb[0].mxu0 %v1657
    %v1742 = vpop.f32.mrb[0].mxu0
    %v1743 = vadd.f32 0.0, %v1742
    %v1744 = vpop.f32.mrb[0].mxu0
    %1745 = vmatprep.mubr.f32.mxu0 0.0
    %1746 = vmatmul.mubr.f32.gmra.mrb[0].mxu0 %v1660
    %v1747 = vpop.f32.mrb[0].mxu0
    %v1748 = vadd.f32 0.0, %v1747
    %v1749 = vpop.f32.mrb[0].mxu0
    %1750 = vdwg.mxu0
    %v1751 = vmul.f32 %v1738, 0.125
    %v1752 = vmul.f32 %v1743, 0.125
    %v1753 = vmul.f32 %v1748, 0.125
    %v1754 = vsel %vm798, %v1751, -inf
    %1755 = vmax.xlane.f32.xlu0 %v1754
    %v1756 = vpop.xlane.xlu0 %1755
    %v1757 = vsel %vm798, %v1752, -inf
    %1758 = vmax.xlane.f32.xlu0 %v1757
    %v1759 = vpop.xlane.xlu0 %1758
    %v1760 = vsel %vm798, %v1753, -inf
    %1761 = vmax.xlane.f32.xlu0 %v1760
    %v1762 = vpop.xlane.xlu0 %1761
    %v1763 = vsub.f32 %v1751, %v1756
    %v1764 = vsub.f32 %v1752, %v1759
    %v1765 = vsub.f32 %v1753, %v1762
    %v1766 = vmul.f32 %v1763, 1.442695
    %v1767 = vpow.pop %v1766
    %v1768 = vmul.f32 %v1764, 1.442695
    %v1769 = vpow.pop %v1768
    %v1770 = vmul.f32 %v1765, 1.442695
    %v1771 = vpow.pop %v1770
    %v1772 = vsel %vm798, %v1767, 0.0
    %1773 = vadd.xlane.f32.xlu0 %v1772
    %v1774 = vpop.xlane.xlu0 %1773
    %v1775 = vsel %vm798, %v1769, 0.0
    %1776 = vadd.xlane.f32.xlu0 %v1775
    %v1777 = vpop.xlane.xlu0 %1776
    %v1778 = vsel %vm798, %v1771, 0.0
    %1779 = vadd.xlane.f32.xlu0 %v1778
    %v1780 = vpop.xlane.xlu0 %1779
    %v1781 = vrcp.pop %v1774
    %v1782 = vmul.f32 %v1767, %v1781
    %v1783 = vrcp.pop %v1777
    %v1784 = vmul.f32 %v1769, %v1783
    %v1785 = vrcp.pop %v1780
    %v1786 = vmul.f32 %v1771, %v1785
    %s1787 = scalar_lea.vmem [#allocation9], 96
    %1788 = vst.msk [vmem:[%s1787] sm:$0xff] %vm798, %v1782
    %1789 = vst.msk [vmem:[%s1787 + $0x8] sm:$0xff] %vm798, %v1784
    %1790 = vst.msk [vmem:[%s1787 + $0x10] sm:$0xff] %vm798, %v1786
    %v1791 = vld [vmem:[%s0 + $0x60] sm:$0xff]
    %v1792 = vld [vmem:[%s0 + $0x68] sm:$0xff]
    %v1793 = vld [vmem:[%s0 + $0x70] sm:$0xff]
    %v1795 = vsel %vm798, %v1782, 0
    %v1798 = vsel %vm798, %v1784, 0
    %v1801 = vsel %vm798, %v1786, 0
    %1803 = vmatprep.subr.mxu0 0.0
    %1804 = vmatpush1.msra.mxu0 %v1791
    %1805 = vmatprep.subr.mxu0 0.0
    %1806 = vmatpush1.msra.mxu0 %v1792
    %1807 = vmatprep.subr.mxu0 0.0
    %1808 = vmatpush1.msra.mxu0 %v1793
    %1809 = vmatprep.subr.mxu0 0.0
    %1810 = vmatpush1.msra.mxu0 0.0
    %1811 = vmatprep.subr.mxu0 0.0
    %1812 = vmatpush1.msra.mxu0 0.0
    %1813 = vmatprep.subr.mxu0 0.0
    %1814 = vmatpush1.msra.mxu0 0.0
    %1815 = vmatprep.subr.mxu0 0.0
    %1816 = vmatpush1.msra.mxu0 0.0
    %1817 = vmatprep.subr.mxu0 0.0
    %1818 = vmatpush1.msra.mxu0 0.0
    %1819 = vmatprep.subr.mxu0 0.0
    %1820 = vmatpush1.msra.mxu0 0.0
    %1821 = vmatprep.subr.mxu0 0.0
    %1822 = vmatpush1.msra.mxu0 0.0
    %1823 = vmatprep.subr.mxu0 0.0
    %1824 = vmatpush1.msra.mxu0 0.0
    %1825 = vmatprep.subr.mxu0 0.0
    %1826 = vmatpush1.msra.mxu0 0.0
    %1827 = vmatprep.subr.mxu0 0.0
    %1828 = vmatpush1.msra.mxu0 0.0
    %1829 = vmatprep.subr.mxu0 0.0
    %1830 = vmatpush1.msra.mxu0 0.0
    %1831 = vmatprep.subr.mxu0 0.0
    %1832 = vmatpush1.msra.mxu0 0.0
    %1833 = vmatprep.subr.mxu0 0.0
    %1834 = vmatpush1.msra.mxu0 0.0
    %1835 = vmatprep.subr.mxu0 0.0
    %1836 = vmatpush1.msra.mxu0 0.0
    %1837 = vmatprep.subr.mxu0 0.0
    %1838 = vmatpush1.msra.mxu0 0.0
    %1839 = vmatprep.subr.mxu0 0.0
    %1840 = vmatpush1.msra.mxu0 0.0
    %1841 = vmatprep.subr.mxu0 0.0
    %1842 = vmatpush1.msra.mxu0 0.0
    %1843 = vmatprep.subr.mxu0 0.0
    %1844 = vmatpush1.msra.mxu0 0.0
    %1845 = vmatprep.subr.mxu0 0.0
    %1846 = vmatpush1.msra.mxu0 0.0
    %1847 = vmatprep.subr.mxu0 0.0
    %1848 = vmatpush1.msra.mxu0 0.0
    %1849 = vmatprep.subr.mxu0 0.0
    %1850 = vmatpush1.msra.mxu0 0.0
    %1851 = vmatprep.subr.mxu0 0.0
    %1852 = vmatpush1.msra.mxu0 0.0
    %1853 = vmatprep.subr.mxu0 0.0
    %1854 = vmatpush1.msra.mxu0 0.0
    %1855 = vmatprep.subr.mxu0 0.0
    %1856 = vmatpush1.msra.mxu0 0.0
    %1857 = vmatprep.subr.mxu0 0.0
    %1858 = vmatpush1.msra.mxu0 0.0
    %1859 = vmatprep.subr.mxu0 0.0
    %1860 = vmatpush1.msra.mxu0 0.0
    %1861 = vmatprep.subr.mxu0 0.0
    %1862 = vmatpush1.msra.mxu0 0.0
    %1863 = vmatprep.subr.mxu0 0.0
    %1864 = vmatpush1.msra.mxu0 0.0
    %1865 = vmatprep.subr.mxu0 0.0
    %1866 = vmatpush1.msra.mxu0 0.0
    %1867 = vmatprep.mubr.f32.mxu0 0.0
    %1868 = vmatmul.mubr.f32.gmra.mrb[0].mxu0 %v1795
    %v1869 = vpop.f32.mrb[0].mxu0
    %v1870 = vadd.f32 0.0, %v1869
    %v1871 = vpop.f32.mrb[0].mxu0
    %1872 = vmatprep.mubr.f32.mxu0 0.0
    %1873 = vmatmul.mubr.f32.gmra.mrb[0].mxu0 %v1798
    %v1874 = vpop.f32.mrb[0].mxu0
    %v1875 = vadd.f32 0.0, %v1874
    %v1876 = vpop.f32.mrb[0].mxu0
    %1877 = vmatprep.mubr.f32.mxu0 0.0
    %1878 = vmatmul.mubr.f32.gmra.mrb[0].mxu0 %v1801
    %v1879 = vpop.f32.mrb[0].mxu0
    %v1880 = vadd.f32 0.0, %v1879
    %v1881 = vpop.f32.mrb[0].mxu0
    %1882 = vdwg.mxu0
    %1883 = vst.msk [vmem:[#allocation4 + $0x60] sm:$0xff] %vm95, %v1870
    %1884 = vst.msk [vmem:[#allocation4 + $0x68] sm:$0xff] %vm95, %v1875
    %1885 = vst.msk [vmem:[#allocation4 + $0x70] sm:$0xff] %vm95, %v1880
    %v1886 = vld [vmem:[#allocation2 + $0x78] sm:$0xff]
    %v1887 = vld [vmem:[#allocation2 + $0x80] sm:$0xff]
    %v1888 = vld [vmem:[#allocation2 + $0x88] sm:$0xff]
    %v1889 = vld [vmem:[#allocation3 + $0x78] sm:$0xff]
    %v1890 = vld [vmem:[#allocation3 + $0x80] sm:$0xff]
    %v1891 = vld [vmem:[#allocation3 + $0x88] sm:$0xff]
    %v1893 = vsel %vm95, %v1886, 0
    %v1896 = vsel %vm95, %v1887, 0
    %v1899 = vsel %vm95, %v1888, 0
    %v1902 = vsel %vm95, %v1889, 0
    %v1905 = vsel %vm95, %v1890, 0
    %v1908 = vsel %vm95, %v1891, 0
    %1910 = vmatprep.subr.mxu0 0.0
    %1911 = vmatpush1.xpose.msra.mxu0 %v1902
    %1912 = vmatprep.subr.mxu0 0.0
    %1913 = vmatpush1.xpose.msra.mxu0 %v1905
    %1914 = vmatprep.subr.mxu0 0.0
    %1915 = vmatpush1.xpose.msra.mxu0 %v1908
    %1916 = vmatprep.subr.mxu0 0.0
    %1917 = vmatpush1.xpose.msra.mxu0 0.0
    %1918 = vmatprep.subr.mxu0 0.0
    %1919 = vmatpush1.xpose.msra.mxu0 0.0
    %1920 = vmatprep.subr.mxu0 0.0
    %1921 = vmatpush1.xpose.msra.mxu0 0.0
    %1922 = vmatprep.subr.mxu0 0.0
    %1923 = vmatpush1.xpose.msra.mxu0 0.0
    %1924 = vmatprep.subr.mxu0 0.0
    %1925 = vmatpush1.xpose.msra.mxu0 0.0
    %1926 = vmatprep.subr.mxu0 0.0
    %1927 = vmatpush1.xpose.msra.mxu0 0.0
    %1928 = vmatprep.subr.mxu0 0.0
    %1929 = vmatpush1.xpose.msra.mxu0 0.0
    %1930 = vmatprep.subr.mxu0 0.0
    %1931 = vmatpush1.xpose.msra.mxu0 0.0
    %1932 = vmatprep.subr.mxu0 0.0
    %1933 = vmatpush1.xpose.msra.mxu0 0.0
    %1934 = vmatprep.subr.mxu0 0.0
    %1935 = vmatpush1.xpose.msra.mxu0 0.0
    %1936 = vmatprep.subr.mxu0 0.0
    %1937 = vmatpush1.xpose.msra.mxu0 0.0
    %1938 = vmatprep.subr.mxu0 0.0
    %1939 = vmatpush1.xpose.msra.mxu0 0.0
    %1940 = vmatprep.subr.mxu0 0.0
    %1941 = vmatpush1.xpose.msra.mxu0 0.0
    %1942 = vmatprep.subr.mxu0 0.0
    %1943 = vmatpush1.xpose.msra.mxu0 0.0
    %1944 = vmatprep.subr.mxu0 0.0
    %1945 = vmatpush1.xpose.msra.mxu0 0.0
    %1946 = vmatprep.subr.mxu0 0.0
    %1947 = vmatpush1.xpose.msra.mxu0 0.0
    %1948 = vmatprep.subr.mxu0 0.0
    %1949 = vmatpush1.xpose.msra.mxu0 0.0
    %1950 = vmatprep.subr.mxu0 0.0
    %1951 = vmatpush1.xpose.msra.mxu0 0.0
    %1952 = vmatprep.subr.mxu0 0.0
    %1953 = vmatpush1.xpose.msra.mxu0 0.0
    %1954 = vmatprep.subr.mxu0 0.0
    %1955 = vmatpush1.xpose.msra.mxu0 0.0
    %1956 = vmatprep.subr.mxu0 0.0
    %1957 = vmatpush1.xpose.msra.mxu0 0.0
    %1958 = vmatprep.subr.mxu0 0.0
    %1959 = vmatpush1.xpose.msra.mxu0 0.0
    %1960 = vmatprep.subr.mxu0 0.0
    %1961 = vmatpush1.xpose.msra.mxu0 0.0
    %1962 = vmatprep.subr.mxu0 0.0
    %1963 = vmatpush1.xpose.msra.mxu0 0.0
    %1964 = vmatprep.subr.mxu0 0.0
    %1965 = vmatpush1.xpose.msra.mxu0 0.0
    %1966 = vmatprep.subr.mxu0 0.0
    %1967 = vmatpush1.xpose.msra.mxu0 0.0
    %1968 = vmatprep.subr.mxu0 0.0
    %1969 = vmatpush1.xpose.msra.mxu0 0.0
    %1970 = vmatprep.subr.mxu0 0.0
    %1971 = vmatpush1.xpose.msra.mxu0 0.0
    %1972 = vmatprep.subr.mxu0 0.0
    %1973 = vmatpush1.xpose.msra.mxu0 0.0
    %1974 = vmatprep.mubr.f32.mxu0 0.0
    %1975 = vmatmul.mubr.f32.gmra.mrb[0].mxu0 %v1893
    %v1976 = vpop.f32.mrb[0].mxu0
    %v1977 = vadd.f32 0.0, %v1976
    %v1978 = vpop.f32.mrb[0].mxu0
    %1979 = vmatprep.mubr.f32.mxu0 0.0
    %1980 = vmatmul.mubr.f32.gmra.mrb[0].mxu0 %v1896
    %v1981 = vpop.f32.mrb[0].mxu0
    %v1982 = vadd.f32 0.0, %v1981
    %v1983 = vpop.f32.mrb[0].mxu0
    %1984 = vmatprep.mubr.f32.mxu0 0.0
    %1985 = vmatmul.mubr.f32.gmra.mrb[0].mxu0 %v1899
    %v1986 = vpop.f32.mrb[0].mxu0
    %v1987 = vadd.f32 0.0, %v1986
    %v1988 = vpop.f32.mrb[0].mxu0
    %1989 = vdwg.mxu0
    %v1990 = vmul.f32 %v1977, 0.125
    %v1991 = vmul.f32 %v1982, 0.125
    %v1992 = vmul.f32 %v1987, 0.125
    %v1993 = vsel %vm798, %v1990, -inf
    %1994 = vmax.xlane.f32.xlu0 %v1993
    %v1995 = vpop.xlane.xlu0 %1994
    %v1996 = vsel %vm798, %v1991, -inf
    %1997 = vmax.xlane.f32.xlu0 %v1996
    %v1998 = vpop.xlane.xlu0 %1997
    %v1999 = vsel %vm798, %v1992, -inf
    %2000 = vmax.xlane.f32.xlu0 %v1999
    %v2001 = vpop.xlane.xlu0 %2000
    %v2002 = vsub.f32 %v1990, %v1995
    %v2003 = vsub.f32 %v1991, %v1998
    %v2004 = vsub.f32 %v1992, %v2001
    %v2005 = vmul.f32 %v2002, 1.442695
    %v2006 = vpow.pop %v2005
    %v2007 = vmul.f32 %v2003, 1.442695
    %v2008 = vpow.pop %v2007
    %v2009 = vmul.f32 %v2004, 1.442695
    %v2010 = vpow.pop %v2009
    %v2011 = vsel %vm798, %v2006, 0.0
    %2012 = vadd.xlane.f32.xlu0 %v2011
    %v2013 = vpop.xlane.xlu0 %2012
    %v2014 = vsel %vm798, %v2008, 0.0
    %2015 = vadd.xlane.f32.xlu0 %v2014
    %v2016 = vpop.xlane.xlu0 %2015
    %v2017 = vsel %vm798, %v2010, 0.0
    %2018 = vadd.xlane.f32.xlu0 %v2017
    %v2019 = vpop.xlane.xlu0 %2018
    %v2020 = vrcp.pop %v2013
    %v2021 = vmul.f32 %v2006, %v2020
    %v2022 = vrcp.pop %v2016
    %v2023 = vmul.f32 %v2008, %v2022
    %v2024 = vrcp.pop %v2019
    %v2025 = vmul.f32 %v2010, %v2024
    %s2026 = scalar_lea.vmem [#allocation9], 120
    %2027 = vst.msk [vmem:[%s2026] sm:$0xff] %vm798, %v2021
    %2028 = vst.msk [vmem:[%s2026 + $0x8] sm:$0xff] %vm798, %v2023
    %2029 = vst.msk [vmem:[%s2026 + $0x10] sm:$0xff] %vm798, %v2025
    %v2030 = vld [vmem:[%s0 + $0x78] sm:$0xff]
    %v2031 = vld [vmem:[%s0 + $0x80] sm:$0xff]
    %v2032 = vld [vmem:[%s0 + $0x88] sm:$0xff]
    %v2034 = vsel %vm798, %v2021, 0
    %v2037 = vsel %vm798, %v2023, 0
    %v2040 = vsel %vm798, %v2025, 0
    %2042 = vmatprep.subr.mxu0 0.0
    %2043 = vmatpush1.msra.mxu0 %v2030
    %2044 = vmatprep.subr.mxu0 0.0
    %2045 = vmatpush1.msra.mxu0 %v2031
    %2046 = vmatprep.subr.mxu0 0.0
    %2047 = vmatpush1.msra.mxu0 %v2032
    %2048 = vmatprep.subr.mxu0 0.0
    %2049 = vmatpush1.msra.mxu0 0.0
    %2050 = vmatprep.subr.mxu0 0.0
    %2051 = vmatpush1.msra.mxu0 0.0
    %2052 = vmatprep.subr.mxu0 0.0
    %2053 = vmatpush1.msra.mxu0 0.0
    %2054 = vmatprep.subr.mxu0 0.0
    %2055 = vmatpush1.msra.mxu0 0.0
    %2056 = vmatprep.subr.mxu0 0.0
    %2057 = vmatpush1.msra.mxu0 0.0
    %2058 = vmatprep.subr.mxu0 0.0
    %2059 = vmatpush1.msra.mxu0 0.0
    %2060 = vmatprep.subr.mxu0 0.0
    %2061 = vmatpush1.msra.mxu0 0.0
    %2062 = vmatprep.subr.mxu0 0.0
    %2063 = vmatpush1.msra.mxu0 0.0
    %2064 = vmatprep.subr.mxu0 0.0
    %2065 = vmatpush1.msra.mxu0 0.0
    %2066 = vmatprep.subr.mxu0 0.0
    %2067 = vmatpush1.msra.mxu0 0.0
    %2068 = vmatprep.subr.mxu0 0.0
    %2069 = vmatpush1.msra.mxu0 0.0
    %2070 = vmatprep.subr.mxu0 0.0
    %2071 = vmatpush1.msra.mxu0 0.0
    %2072 = vmatprep.subr.mxu0 0.0
    %2073 = vmatpush1.msra.mxu0 0.0
    %2074 = vmatprep.subr.mxu0 0.0
    %2075 = vmatpush1.msra.mxu0 0.0
    %2076 = vmatprep.subr.mxu0 0.0
    %2077 = vmatpush1.msra.mxu0 0.0
    %2078 = vmatprep.subr.mxu0 0.0
    %2079 = vmatpush1.msra.mxu0 0.0
    %2080 = vmatprep.subr.mxu0 0.0
    %2081 = vmatpush1.msra.mxu0 0.0
    %2082 = vmatprep.subr.mxu0 0.0
    %2083 = vmatpush1.msra.mxu0 0.0
    %2084 = vmatprep.subr.mxu0 0.0
    %2085 = vmatpush1.msra.mxu0 0.0
    %2086 = vmatprep.subr.mxu0 0.0
    %2087 = vmatpush1.msra.mxu0 0.0
    %2088 = vmatprep.subr.mxu0 0.0
    %2089 = vmatpush1.msra.mxu0 0.0
    %2090 = vmatprep.subr.mxu0 0.0
    %2091 = vmatpush1.msra.mxu0 0.0
    %2092 = vmatprep.subr.mxu0 0.0
    %2093 = vmatpush1.msra.mxu0 0.0
    %2094 = vmatprep.subr.mxu0 0.0
    %2095 = vmatpush1.msra.mxu0 0.0
    %2096 = vmatprep.subr.mxu0 0.0
    %2097 = vmatpush1.msra.mxu0 0.0
    %2098 = vmatprep.subr.mxu0 0.0
    %2099 = vmatpush1.msra.mxu0 0.0
    %2100 = vmatprep.subr.mxu0 0.0
    %2101 = vmatpush1.msra.mxu0 0.0
    %2102 = vmatprep.subr.mxu0 0.0
    %2103 = vmatpush1.msra.mxu0 0.0
    %2104 = vmatprep.subr.mxu0 0.0
    %2105 = vmatpush1.msra.mxu0 0.0
    %2106 = vmatprep.mubr.f32.mxu0 0.0
    %2107 = vmatmul.mubr.f32.gmra.mrb[0].mxu0 %v2034
    %v2108 = vpop.f32.mrb[0].mxu0
    %v2109 = vadd.f32 0.0, %v2108
    %v2110 = vpop.f32.mrb[0].mxu0
    %2111 = vmatprep.mubr.f32.mxu0 0.0
    %2112 = vmatmul.mubr.f32.gmra.mrb[0].mxu0 %v2037
    %v2113 = vpop.f32.mrb[0].mxu0
    %v2114 = vadd.f32 0.0, %v2113
    %v2115 = vpop.f32.mrb[0].mxu0
    %2116 = vmatprep.mubr.f32.mxu0 0.0
    %2117 = vmatmul.mubr.f32.gmra.mrb[0].mxu0 %v2040
    %v2118 = vpop.f32.mrb[0].mxu0
    %v2119 = vadd.f32 0.0, %v2118
    %v2120 = vpop.f32.mrb[0].mxu0
    %2121 = vdwg.mxu0
    %2122 = vst.msk [vmem:[#allocation4 + $0x78] sm:$0xff] %vm95, %v2109
    %2123 = vst.msk [vmem:[#allocation4 + $0x80] sm:$0xff] %vm95, %v2114
    %2124 = vst.msk [vmem:[#allocation4 + $0x88] sm:$0xff] %vm95, %v2119
    %v2125 = vld [vmem:[#allocation2 + $0x90] sm:$0xff]
    %v2126 = vld [vmem:[#allocation2 + $0x98] sm:$0xff]
    %v2127 = vld [vmem:[#allocation2 + $0xa0] sm:$0xff]
    %v2128 = vld [vmem:[#allocation3 + $0x90] sm:$0xff]
    %v2129 = vld [vmem:[#allocation3 + $0x98] sm:$0xff]
    %v2130 = vld [vmem:[#allocation3 + $0xa0] sm:$0xff]
    %v2132 = vsel %vm95, %v2125, 0
    %v2135 = vsel %vm95, %v2126, 0
    %v2138 = vsel %vm95, %v2127, 0
    %v2141 = vsel %vm95, %v2128, 0
    %v2144 = vsel %vm95, %v2129, 0
    %v2147 = vsel %vm95, %v2130, 0
    %2149 = vmatprep.subr.mxu0 0.0
    %2150 = vmatpush1.xpose.msra.mxu0 %v2141
    %2151 = vmatprep.subr.mxu0 0.0
    %2152 = vmatpush1.xpose.msra.mxu0 %v2144
    %2153 = vmatprep.subr.mxu0 0.0
    %2154 = vmatpush1.xpose.msra.mxu0 %v2147
    %2155 = vmatprep.subr.mxu0 0.0
    %2156 = vmatpush1.xpose.msra.mxu0 0.0
    %2157 = vmatprep.subr.mxu0 0.0
    %2158 = vmatpush1.xpose.msra.mxu0 0.0
    %2159 = vmatprep.subr.mxu0 0.0
    %2160 = vmatpush1.xpose.msra.mxu0 0.0
    %2161 = vmatprep.subr.mxu0 0.0
    %2162 = vmatpush1.xpose.msra.mxu0 0.0
    %2163 = vmatprep.subr.mxu0 0.0
    %2164 = vmatpush1.xpose.msra.mxu0 0.0
    %2165 = vmatprep.subr.mxu0 0.0
    %2166 = vmatpush1.xpose.msra.mxu0 0.0
    %2167 = vmatprep.subr.mxu0 0.0
    %2168 = vmatpush1.xpose.msra.mxu0 0.0
    %2169 = vmatprep.subr.mxu0 0.0
    %2170 = vmatpush1.xpose.msra.mxu0 0.0
    %2171 = vmatprep.subr.mxu0 0.0
    %2172 = vmatpush1.xpose.msra.mxu0 0.0
    %2173 = vmatprep.subr.mxu0 0.0
    %2174 = vmatpush1.xpose.msra.mxu0 0.0
    %2175 = vmatprep.subr.mxu0 0.0
    %2176 = vmatpush1.xpose.msra.mxu0 0.0
    %2177 = vmatprep.subr.mxu0 0.0
    %2178 = vmatpush1.xpose.msra.mxu0 0.0
    %2179 = vmatprep.subr.mxu0 0.0
    %2180 = vmatpush1.xpose.msra.mxu0 0.0
    %2181 = vmatprep.subr.mxu0 0.0
    %2182 = vmatpush1.xpose.msra.mxu0 0.0
    %2183 = vmatprep.subr.mxu0 0.0
    %2184 = vmatpush1.xpose.msra.mxu0 0.0
    %2185 = vmatprep.subr.mxu0 0.0
    %2186 = vmatpush1.xpose.msra.mxu0 0.0
    %2187 = vmatprep.subr.mxu0 0.0
    %2188 = vmatpush1.xpose.msra.mxu0 0.0
    %2189 = vmatprep.subr.mxu0 0.0
    %2190 = vmatpush1.xpose.msra.mxu0 0.0
    %2191 = vmatprep.subr.mxu0 0.0
    %2192 = vmatpush1.xpose.msra.mxu0 0.0
    %2193 = vmatprep.subr.mxu0 0.0
    %2194 = vmatpush1.xpose.msra.mxu0 0.0
    %2195 = vmatprep.subr.mxu0 0.0
    %2196 = vmatpush1.xpose.msra.mxu0 0.0
    %2197 = vmatprep.subr.mxu0 0.0
    %2198 = vmatpush1.xpose.msra.mxu0 0.0
    %2199 = vmatprep.subr.mxu0 0.0
    %2200 = vmatpush1.xpose.msra.mxu0 0.0
    %2201 = vmatprep.subr.mxu0 0.0
    %2202 = vmatpush1.xpose.msra.mxu0 0.0
    %2203 = vmatprep.subr.mxu0 0.0
    %2204 = vmatpush1.xpose.msra.mxu0 0.0
    %2205 = vmatprep.subr.mxu0 0.0
    %2206 = vmatpush1.xpose.msra.mxu0 0.0
    %2207 = vmatprep.subr.mxu0 0.0
    %2208 = vmatpush1.xpose.msra.mxu0 0.0
    %2209 = vmatprep.subr.mxu0 0.0
    %2210 = vmatpush1.xpose.msra.mxu0 0.0
    %2211 = vmatprep.subr.mxu0 0.0
    %2212 = vmatpush1.xpose.msra.mxu0 0.0
    %2213 = vmatprep.mubr.f32.mxu0 0.0
    %2214 = vmatmul.mubr.f32.gmra.mrb[0].mxu0 %v2132
    %v2215 = vpop.f32.mrb[0].mxu0
    %v2216 = vadd.f32 0.0, %v2215
    %v2217 = vpop.f32.mrb[0].mxu0
    %2218 = vmatprep.mubr.f32.mxu0 0.0
    %2219 = vmatmul.mubr.f32.gmra.mrb[0].mxu0 %v2135
    %v2220 = vpop.f32.mrb[0].mxu0
    %v2221 = vadd.f32 0.0, %v2220
    %v2222 = vpop.f32.mrb[0].mxu0
    %2223 = vmatprep.mubr.f32.mxu0 0.0
    %2224 = vmatmul.mubr.f32.gmra.mrb[0].mxu0 %v2138
    %v2225 = vpop.f32.mrb[0].mxu0
    %v2226 = vadd.f32 0.0, %v2225
    %v2227 = vpop.f32.mrb[0].mxu0
    %2228 = vdwg.mxu0
    %v2229 = vmul.f32 %v2216, 0.125
    %v2230 = vmul.f32 %v2221, 0.125
    %v2231 = vmul.f32 %v2226, 0.125
    %v2232 = vsel %vm798, %v2229, -inf
    %2233 = vmax.xlane.f32.xlu0 %v2232
    %v2234 = vpop.xlane.xlu0 %2233
    %v2235 = vsel %vm798, %v2230, -inf
    %2236 = vmax.xlane.f32.xlu0 %v2235
    %v2237 = vpop.xlane.xlu0 %2236
    %v2238 = vsel %vm798, %v2231, -inf
    %2239 = vmax.xlane.f32.xlu0 %v2238
    %v2240 = vpop.xlane.xlu0 %2239
    %v2241 = vsub.f32 %v2229, %v2234
    %v2242 = vsub.f32 %v2230, %v2237
    %v2243 = vsub.f32 %v2231, %v2240
    %v2244 = vmul.f32 %v2241, 1.442695
    %v2245 = vpow.pop %v2244
    %v2246 = vmul.f32 %v2242, 1.442695
    %v2247 = vpow.pop %v2246
    %v2248 = vmul.f32 %v2243, 1.442695
    %v2249 = vpow.pop %v2248
    %v2250 = vsel %vm798, %v2245, 0.0
    %2251 = vadd.xlane.f32.xlu0 %v2250
    %v2252 = vpop.xlane.xlu0 %2251
    %v2253 = vsel %vm798, %v2247, 0.0
    %2254 = vadd.xlane.f32.xlu0 %v2253
    %v2255 = vpop.xlane.xlu0 %2254
    %v2256 = vsel %vm798, %v2249, 0.0
    %2257 = vadd.xlane.f32.xlu0 %v2256
    %v2258 = vpop.xlane.xlu0 %2257
    %v2259 = vrcp.pop %v2252
    %v2260 = vmul.f32 %v2245, %v2259
    %v2261 = vrcp.pop %v2255
    %v2262 = vmul.f32 %v2247, %v2261
    %v2263 = vrcp.pop %v2258
    %v2264 = vmul.f32 %v2249, %v2263
    %s2265 = scalar_lea.vmem [#allocation9], 144
    %2266 = vst.msk [vmem:[%s2265] sm:$0xff] %vm798, %v2260
    %2267 = vst.msk [vmem:[%s2265 + $0x8] sm:$0xff] %vm798, %v2262
    %2268 = vst.msk [vmem:[%s2265 + $0x10] sm:$0xff] %vm798, %v2264
    %v2269 = vld [vmem:[%s0 + $0x90] sm:$0xff]
    %v2270 = vld [vmem:[%s0 + $0x98] sm:$0xff]
    %v2271 = vld [vmem:[%s0 + $0xa0] sm:$0xff]
    %v2273 = vsel %vm798, %v2260, 0
    %v2276 = vsel %vm798, %v2262, 0
    %v2279 = vsel %vm798, %v2264, 0
    %2281 = vmatprep.subr.mxu0 0.0
    %2282 = vmatpush1.msra.mxu0 %v2269
    %2283 = vmatprep.subr.mxu0 0.0
    %2284 = vmatpush1.msra.mxu0 %v2270
    %2285 = vmatprep.subr.mxu0 0.0
    %2286 = vmatpush1.msra.mxu0 %v2271
    %2287 = vmatprep.subr.mxu0 0.0
    %2288 = vmatpush1.msra.mxu0 0.0
    %2289 = vmatprep.subr.mxu0 0.0
    %2290 = vmatpush1.msra.mxu0 0.0
    %2291 = vmatprep.subr.mxu0 0.0
    %2292 = vmatpush1.msra.mxu0 0.0
    %2293 = vmatprep.subr.mxu0 0.0
    %2294 = vmatpush1.msra.mxu0 0.0
    %2295 = vmatprep.subr.mxu0 0.0
    %2296 = vmatpush1.msra.mxu0 0.0
    %2297 = vmatprep.subr.mxu0 0.0
    %2298 = vmatpush1.msra.mxu0 0.0
    %2299 = vmatprep.subr.mxu0 0.0
    %2300 = vmatpush1.msra.mxu0 0.0
    %2301 = vmatprep.subr.mxu0 0.0
    %2302 = vmatpush1.msra.mxu0 0.0
    %2303 = vmatprep.subr.mxu0 0.0
    %2304 = vmatpush1.msra.mxu0 0.0
    %2305 = vmatprep.subr.mxu0 0.0
    %2306 = vmatpush1.msra.mxu0 0.0
    %2307 = vmatprep.subr.mxu0 0.0
    %2308 = vmatpush1.msra.mxu0 0.0
    %2309 = vmatprep.subr.mxu0 0.0
    %2310 = vmatpush1.msra.mxu0 0.0
    %2311 = vmatprep.subr.mxu0 0.0
    %2312 = vmatpush1.msra.mxu0 0.0
    %2313 = vmatprep.subr.mxu0 0.0
    %2314 = vmatpush1.msra.mxu0 0.0
    %2315 = vmatprep.subr.mxu0 0.0
    %2316 = vmatpush1.msra.mxu0 0.0
    %2317 = vmatprep.subr.mxu0 0.0
    %2318 = vmatpush1.msra.mxu0 0.0
    %2319 = vmatprep.subr.mxu0 0.0
    %2320 = vmatpush1.msra.mxu0 0.0
    %2321 = vmatprep.subr.mxu0 0.0
    %2322 = vmatpush1.msra.mxu0 0.0
    %2323 = vmatprep.subr.mxu0 0.0
    %2324 = vmatpush1.msra.mxu0 0.0
    %2325 = vmatprep.subr.mxu0 0.0
    %2326 = vmatpush1.msra.mxu0 0.0
    %2327 = vmatprep.subr.mxu0 0.0
    %2328 = vmatpush1.msra.mxu0 0.0
    %2329 = vmatprep.subr.mxu0 0.0
    %2330 = vmatpush1.msra.mxu0 0.0
    %2331 = vmatprep.subr.mxu0 0.0
    %2332 = vmatpush1.msra.mxu0 0.0
    %2333 = vmatprep.subr.mxu0 0.0
    %2334 = vmatpush1.msra.mxu0 0.0
    %2335 = vmatprep.subr.mxu0 0.0
    %2336 = vmatpush1.msra.mxu0 0.0
    %2337 = vmatprep.subr.mxu0 0.0
    %2338 = vmatpush1.msra.mxu0 0.0
    %2339 = vmatprep.subr.mxu0 0.0
    %2340 = vmatpush1.msra.mxu0 0.0
    %2341 = vmatprep.subr.mxu0 0.0
    %2342 = vmatpush1.msra.mxu0 0.0
    %2343 = vmatprep.subr.mxu0 0.0
    %2344 = vmatpush1.msra.mxu0 0.0
    %2345 = vmatprep.mubr.f32.mxu0 0.0
    %2346 = vmatmul.mubr.f32.gmra.mrb[0].mxu0 %v2273
    %v2347 = vpop.f32.mrb[0].mxu0
    %v2348 = vadd.f32 0.0, %v2347
    %v2349 = vpop.f32.mrb[0].mxu0
    %2350 = vmatprep.mubr.f32.mxu0 0.0
    %2351 = vmatmul.mubr.f32.gmra.mrb[0].mxu0 %v2276
    %v2352 = vpop.f32.mrb[0].mxu0
    %v2353 = vadd.f32 0.0, %v2352
    %v2354 = vpop.f32.mrb[0].mxu0
    %2355 = vmatprep.mubr.f32.mxu0 0.0
    %2356 = vmatmul.mubr.f32.gmra.mrb[0].mxu0 %v2279
    %v2357 = vpop.f32.mrb[0].mxu0
    %v2358 = vadd.f32 0.0, %v2357
    %v2359 = vpop.f32.mrb[0].mxu0
    %2360 = vdwg.mxu0
    %2361 = vst.msk [vmem:[#allocation4 + $0x90] sm:$0xff] %vm95, %v2348
    %2362 = vst.msk [vmem:[#allocation4 + $0x98] sm:$0xff] %vm95, %v2353
    %2363 = vst.msk [vmem:[#allocation4 + $0xa0] sm:$0xff] %vm95, %v2358
    %v2364 = vld [vmem:[#allocation2 + $0xa8] sm:$0xff]
    %v2365 = vld [vmem:[#allocation2 + $0xb0] sm:$0xff]
    %v2366 = vld [vmem:[#allocation2 + $0xb8] sm:$0xff]
    %v2367 = vld [vmem:[#allocation3 + $0xa8] sm:$0xff]
    %v2368 = vld [vmem:[#allocation3 + $0xb0] sm:$0xff]
    %v2369 = vld [vmem:[#allocation3 + $0xb8] sm:$0xff]
    %v2371 = vsel %vm95, %v2364, 0
    %v2374 = vsel %vm95, %v2365, 0
    %v2377 = vsel %vm95, %v2366, 0
    %v2380 = vsel %vm95, %v2367, 0
    %v2383 = vsel %vm95, %v2368, 0
    %v2386 = vsel %vm95, %v2369, 0
    %2388 = vmatprep.subr.mxu0 0.0
    %2389 = vmatpush1.xpose.msra.mxu0 %v2380
    %2390 = vmatprep.subr.mxu0 0.0
    %2391 = vmatpush1.xpose.msra.mxu0 %v2383
    %2392 = vmatprep.subr.mxu0 0.0
    %2393 = vmatpush1.xpose.msra.mxu0 %v2386
    %2394 = vmatprep.subr.mxu0 0.0
    %2395 = vmatpush1.xpose.msra.mxu0 0.0
    %2396 = vmatprep.subr.mxu0 0.0
    %2397 = vmatpush1.xpose.msra.mxu0 0.0
    %2398 = vmatprep.subr.mxu0 0.0
    %2399 = vmatpush1.xpose.msra.mxu0 0.0
    %2400 = vmatprep.subr.mxu0 0.0
    %2401 = vmatpush1.xpose.msra.mxu0 0.0
    %2402 = vmatprep.subr.mxu0 0.0
    %2403 = vmatpush1.xpose.msra.mxu0 0.0
    %2404 = vmatprep.subr.mxu0 0.0
    %2405 = vmatpush1.xpose.msra.mxu0 0.0
    %2406 = vmatprep.subr.mxu0 0.0
    %2407 = vmatpush1.xpose.msra.mxu0 0.0
    %2408 = vmatprep.subr.mxu0 0.0
    %2409 = vmatpush1.xpose.msra.mxu0 0.0
    %2410 = vmatprep.subr.mxu0 0.0
    %2411 = vmatpush1.xpose.msra.mxu0 0.0
    %2412 = vmatprep.subr.mxu0 0.0
    %2413 = vmatpush1.xpose.msra.mxu0 0.0
    %2414 = vmatprep.subr.mxu0 0.0
    %2415 = vmatpush1.xpose.msra.mxu0 0.0
    %2416 = vmatprep.subr.mxu0 0.0
    %2417 = vmatpush1.xpose.msra.mxu0 0.0
    %2418 = vmatprep.subr.mxu0 0.0
    %2419 = vmatpush1.xpose.msra.mxu0 0.0
    %2420 = vmatprep.subr.mxu0 0.0
    %2421 = vmatpush1.xpose.msra.mxu0 0.0
    %2422 = vmatprep.subr.mxu0 0.0
    %2423 = vmatpush1.xpose.msra.mxu0 0.0
    %2424 = vmatprep.subr.mxu0 0.0
    %2425 = vmatpush1.xpose.msra.mxu0 0.0
    %2426 = vmatprep.subr.mxu0 0.0
    %2427 = vmatpush1.xpose.msra.mxu0 0.0
    %2428 = vmatprep.subr.mxu0 0.0
    %2429 = vmatpush1.xpose.msra.mxu0 0.0
    %2430 = vmatprep.subr.mxu0 0.0
    %2431 = vmatpush1.xpose.msra.mxu0 0.0
    %2432 = vmatprep.subr.mxu0 0.0
    %2433 = vmatpush1.xpose.msra.mxu0 0.0
    %2434 = vmatprep.subr.mxu0 0.0
    %2435 = vmatpush1.xpose.msra.mxu0 0.0
    %2436 = vmatprep.subr.mxu0 0.0
    %2437 = vmatpush1.xpose.msra.mxu0 0.0
    %2438 = vmatprep.subr.mxu0 0.0
    %2439 = vmatpush1.xpose.msra.mxu0 0.0
    %2440 = vmatprep.subr.mxu0 0.0
    %2441 = vmatpush1.xpose.msra.mxu0 0.0
    %2442 = vmatprep.subr.mxu0 0.0
    %2443 = vmatpush1.xpose.msra.mxu0 0.0
    %2444 = vmatprep.subr.mxu0 0.0
    %2445 = vmatpush1.xpose.msra.mxu0 0.0
    %2446 = vmatprep.subr.mxu0 0.0
    %2447 = vmatpush1.xpose.msra.mxu0 0.0
    %2448 = vmatprep.subr.mxu0 0.0
    %2449 = vmatpush1.xpose.msra.mxu0 0.0
    %2450 = vmatprep.subr.mxu0 0.0
    %2451 = vmatpush1.xpose.msra.mxu0 0.0
    %2452 = vmatprep.mubr.f32.mxu0 0.0
    %2453 = vmatmul.mubr.f32.gmra.mrb[0].mxu0 %v2371
    %v2454 = vpop.f32.mrb[0].mxu0
    %v2455 = vadd.f32 0.0, %v2454
    %v2456 = vpop.f32.mrb[0].mxu0
    %2457 = vmatprep.mubr.f32.mxu0 0.0
    %2458 = vmatmul.mubr.f32.gmra.mrb[0].mxu0 %v2374
    %v2459 = vpop.f32.mrb[0].mxu0
    %v2460 = vadd.f32 0.0, %v2459
    %v2461 = vpop.f32.mrb[0].mxu0
    %2462 = vmatprep.mubr.f32.mxu0 0.0
    %2463 = vmatmul.mubr.f32.gmra.mrb[0].mxu0 %v2377
    %v2464 = vpop.f32.mrb[0].mxu0
    %v2465 = vadd.f32 0.0, %v2464
    %v2466 = vpop.f32.mrb[0].mxu0
    %2467 = vdwg.mxu0
    %v2468 = vmul.f32 %v2455, 0.125
    %v2469 = vmul.f32 %v2460, 0.125
    %v2470 = vmul.f32 %v2465, 0.125
    %v2471 = vsel %vm798, %v2468, -inf
    %2472 = vmax.xlane.f32.xlu0 %v2471
    %v2473 = vpop.xlane.xlu0 %2472
    %v2474 = vsel %vm798, %v2469, -inf
    %2475 = vmax.xlane.f32.xlu0 %v2474
    %v2476 = vpop.xlane.xlu0 %2475
    %v2477 = vsel %vm798, %v2470, -inf
    %2478 = vmax.xlane.f32.xlu0 %v2477
    %v2479 = vpop.xlane.xlu0 %2478
    %v2480 = vsub.f32 %v2468, %v2473
    %v2481 = vsub.f32 %v2469, %v2476
    %v2482 = vsub.f32 %v2470, %v2479
    %v2483 = vmul.f32 %v2480, 1.442695
    %v2484 = vpow.pop %v2483
    %v2485 = vmul.f32 %v2481, 1.442695
    %v2486 = vpow.pop %v2485
    %v2487 = vmul.f32 %v2482, 1.442695
    %v2488 = vpow.pop %v2487
    %v2489 = vsel %vm798, %v2484, 0.0
    %2490 = vadd.xlane.f32.xlu0 %v2489
    %v2491 = vpop.xlane.xlu0 %2490
    %v2492 = vsel %vm798, %v2486, 0.0
    %2493 = vadd.xlane.f32.xlu0 %v2492
    %v2494 = vpop.xlane.xlu0 %2493
    %v2495 = vsel %vm798, %v2488, 0.0
    %2496 = vadd.xlane.f32.xlu0 %v2495
    %v2497 = vpop.xlane.xlu0 %2496
    %v2498 = vrcp.pop %v2491
    %v2499 = vmul.f32 %v2484, %v2498
    %v2500 = vrcp.pop %v2494
    %v2501 = vmul.f32 %v2486, %v2500
    %v2502 = vrcp.pop %v2497
    %v2503 = vmul.f32 %v2488, %v2502
    %s2504 = scalar_lea.vmem [#allocation9], 168
    %2505 = vst.msk [vmem:[%s2504] sm:$0xff] %vm798, %v2499
    %2506 = vst.msk [vmem:[%s2504 + $0x8] sm:$0xff] %vm798, %v2501
    %2507 = vst.msk [vmem:[%s2504 + $0x10] sm:$0xff] %vm798, %v2503
    %v2508 = vld [vmem:[%s0 + $0xa8] sm:$0xff]
    %v2509 = vld [vmem:[%s0 + $0xb0] sm:$0xff]
    %v2510 = vld [vmem:[%s0 + $0xb8] sm:$0xff]
    %v2512 = vsel %vm798, %v2499, 0
    %v2515 = vsel %vm798, %v2501, 0
    %v2518 = vsel %vm798, %v2503, 0
    %2520 = vmatprep.subr.mxu0 0.0
    %2521 = vmatpush1.msra.mxu0 %v2508
    %2522 = vmatprep.subr.mxu0 0.0
    %2523 = vmatpush1.msra.mxu0 %v2509
    %2524 = vmatprep.subr.mxu0 0.0
    %2525 = vmatpush1.msra.mxu0 %v2510
    %2526 = vmatprep.subr.mxu0 0.0
    %2527 = vmatpush1.msra.mxu0 0.0
    %2528 = vmatprep.subr.mxu0 0.0
    %2529 = vmatpush1.msra.mxu0 0.0
    %2530 = vmatprep.subr.mxu0 0.0
    %2531 = vmatpush1.msra.mxu0 0.0
    %2532 = vmatprep.subr.mxu0 0.0
    %2533 = vmatpush1.msra.mxu0 0.0
    %2534 = vmatprep.subr.mxu0 0.0
    %2535 = vmatpush1.msra.mxu0 0.0
    %2536 = vmatprep.subr.mxu0 0.0
    %2537 = vmatpush1.msra.mxu0 0.0
    %2538 = vmatprep.subr.mxu0 0.0
    %2539 = vmatpush1.msra.mxu0 0.0
    %2540 = vmatprep.subr.mxu0 0.0
    %2541 = vmatpush1.msra.mxu0 0.0
    %2542 = vmatprep.subr.mxu0 0.0
    %2543 = vmatpush1.msra.mxu0 0.0
    %2544 = vmatprep.subr.mxu0 0.0
    %2545 = vmatpush1.msra.mxu0 0.0
    %2546 = vmatprep.subr.mxu0 0.0
    %2547 = vmatpush1.msra.mxu0 0.0
    %2548 = vmatprep.subr.mxu0 0.0
    %2549 = vmatpush1.msra.mxu0 0.0
    %2550 = vmatprep.subr.mxu0 0.0
    %2551 = vmatpush1.msra.mxu0 0.0
    %2552 = vmatprep.subr.mxu0 0.0
    %2553 = vmatpush1.msra.mxu0 0.0
    %2554 = vmatprep.subr.mxu0 0.0
    %2555 = vmatpush1.msra.mxu0 0.0
    %2556 = vmatprep.subr.mxu0 0.0
    %2557 = vmatpush1.msra.mxu0 0.0
    %2558 = vmatprep.subr.mxu0 0.0
    %2559 = vmatpush1.msra.mxu0 0.0
    %2560 = vmatprep.subr.mxu0 0.0
    %2561 = vmatpush1.msra.mxu0 0.0
    %2562 = vmatprep.subr.mxu0 0.0
    %2563 = vmatpush1.msra.mxu0 0.0
    %2564 = vmatprep.subr.mxu0 0.0
    %2565 = vmatpush1.msra.mxu0 0.0
    %2566 = vmatprep.subr.mxu0 0.0
    %2567 = vmatpush1.msra.mxu0 0.0
    %2568 = vmatprep.subr.mxu0 0.0
    %2569 = vmatpush1.msra.mxu0 0.0
    %2570 = vmatprep.subr.mxu0 0.0
    %2571 = vmatpush1.msra.mxu0 0.0
    %2572 = vmatprep.subr.mxu0 0.0
    %2573 = vmatpush1.msra.mxu0 0.0
    %2574 = vmatprep.subr.mxu0 0.0
    %2575 = vmatpush1.msra.mxu0 0.0
    %2576 = vmatprep.subr.mxu0 0.0
    %2577 = vmatpush1.msra.mxu0 0.0
    %2578 = vmatprep.subr.mxu0 0.0
    %2579 = vmatpush1.msra.mxu0 0.0
    %2580 = vmatprep.subr.mxu0 0.0
    %2581 = vmatpush1.msra.mxu0 0.0
    %2582 = vmatprep.subr.mxu0 0.0
    %2583 = vmatpush1.msra.mxu0 0.0
    %2584 = vmatprep.mubr.f32.mxu0 0.0
    %2585 = vmatmul.mubr.f32.gmra.mrb[0].mxu0 %v2512
    %v2586 = vpop.f32.mrb[0].mxu0
    %v2587 = vadd.f32 0.0, %v2586
    %v2588 = vpop.f32.mrb[0].mxu0
    %2589 = vmatprep.mubr.f32.mxu0 0.0
    %2590 = vmatmul.mubr.f32.gmra.mrb[0].mxu0 %v2515
    %v2591 = vpop.f32.mrb[0].mxu0
    %v2592 = vadd.f32 0.0, %v2591
    %v2593 = vpop.f32.mrb[0].mxu0
    %2594 = vmatprep.mubr.f32.mxu0 0.0
    %2595 = vmatmul.mubr.f32.gmra.mrb[0].mxu0 %v2518
    %v2596 = vpop.f32.mrb[0].mxu0
    %v2597 = vadd.f32 0.0, %v2596
    %v2598 = vpop.f32.mrb[0].mxu0
    %2599 = vdwg.mxu0
    %2600 = vst.msk [vmem:[#allocation4 + $0xa8] sm:$0xff] %vm95, %v2587
    %2601 = vst.msk [vmem:[#allocation4 + $0xb0] sm:$0xff] %vm95, %v2592
    %2602 = vst.msk [vmem:[#allocation4 + $0xb8] sm:$0xff] %vm95, %v2597
    %v2603 = vld [vmem:[#allocation2 + $0xc0] sm:$0xff]
    %v2604 = vld [vmem:[#allocation2 + $0xc8] sm:$0xff]
    %v2605 = vld [vmem:[#allocation2 + $0xd0] sm:$0xff]
    %v2606 = vld [vmem:[#allocation3 + $0xc0] sm:$0xff]
    %v2607 = vld [vmem:[#allocation3 + $0xc8] sm:$0xff]
    %v2608 = vld [vmem:[#allocation3 + $0xd0] sm:$0xff]
    %v2610 = vsel %vm95, %v2603, 0
    %v2613 = vsel %vm95, %v2604, 0
    %v2616 = vsel %vm95, %v2605, 0
    %v2619 = vsel %vm95, %v2606, 0
    %v2622 = vsel %vm95, %v2607, 0
    %v2625 = vsel %vm95, %v2608, 0
    %2627 = vmatprep.subr.mxu0 0.0
    %2628 = vmatpush1.xpose.msra.mxu0 %v2619
    %2629 = vmatprep.subr.mxu0 0.0
    %2630 = vmatpush1.xpose.msra.mxu0 %v2622
    %2631 = vmatprep.subr.mxu0 0.0
    %2632 = vmatpush1.xpose.msra.mxu0 %v2625
    %2633 = vmatprep.subr.mxu0 0.0
    %2634 = vmatpush1.xpose.msra.mxu0 0.0
    %2635 = vmatprep.subr.mxu0 0.0
    %2636 = vmatpush1.xpose.msra.mxu0 0.0
    %2637 = vmatprep.subr.mxu0 0.0
    %2638 = vmatpush1.xpose.msra.mxu0 0.0
    %2639 = vmatprep.subr.mxu0 0.0
    %2640 = vmatpush1.xpose.msra.mxu0 0.0
    %2641 = vmatprep.subr.mxu0 0.0
    %2642 = vmatpush1.xpose.msra.mxu0 0.0
    %2643 = vmatprep.subr.mxu0 0.0
    %2644 = vmatpush1.xpose.msra.mxu0 0.0
    %2645 = vmatprep.subr.mxu0 0.0
    %2646 = vmatpush1.xpose.msra.mxu0 0.0
    %2647 = vmatprep.subr.mxu0 0.0
    %2648 = vmatpush1.xpose.msra.mxu0 0.0
    %2649 = vmatprep.subr.mxu0 0.0
    %2650 = vmatpush1.xpose.msra.mxu0 0.0
    %2651 = vmatprep.subr.mxu0 0.0
    %2652 = vmatpush1.xpose.msra.mxu0 0.0
    %2653 = vmatprep.subr.mxu0 0.0
    %2654 = vmatpush1.xpose.msra.mxu0 0.0
    %2655 = vmatprep.subr.mxu0 0.0
    %2656 = vmatpush1.xpose.msra.mxu0 0.0
    %2657 = vmatprep.subr.mxu0 0.0
    %2658 = vmatpush1.xpose.msra.mxu0 0.0
    %2659 = vmatprep.subr.mxu0 0.0
    %2660 = vmatpush1.xpose.msra.mxu0 0.0
    %2661 = vmatprep.subr.mxu0 0.0
    %2662 = vmatpush1.xpose.msra.mxu0 0.0
    %2663 = vmatprep.subr.mxu0 0.0
    %2664 = vmatpush1.xpose.msra.mxu0 0.0
    %2665 = vmatprep.subr.mxu0 0.0
    %2666 = vmatpush1.xpose.msra.mxu0 0.0
    %2667 = vmatprep.subr.mxu0 0.0
    %2668 = vmatpush1.xpose.msra.mxu0 0.0
    %2669 = vmatprep.subr.mxu0 0.0
    %2670 = vmatpush1.xpose.msra.mxu0 0.0
    %2671 = vmatprep.subr.mxu0 0.0
    %2672 = vmatpush1.xpose.msra.mxu0 0.0
    %2673 = vmatprep.subr.mxu0 0.0
    %2674 = vmatpush1.xpose.msra.mxu0 0.0
    %2675 = vmatprep.subr.mxu0 0.0
    %2676 = vmatpush1.xpose.msra.mxu0 0.0
    %2677 = vmatprep.subr.mxu0 0.0
    %2678 = vmatpush1.xpose.msra.mxu0 0.0
    %2679 = vmatprep.subr.mxu0 0.0
    %2680 = vmatpush1.xpose.msra.mxu0 0.0
    %2681 = vmatprep.subr.mxu0 0.0
    %2682 = vmatpush1.xpose.msra.mxu0 0.0
    %2683 = vmatprep.subr.mxu0 0.0
    %2684 = vmatpush1.xpose.msra.mxu0 0.0
    %2685 = vmatprep.subr.mxu0 0.0
    %2686 = vmatpush1.xpose.msra.mxu0 0.0
    %2687 = vmatprep.subr.mxu0 0.0
    %2688 = vmatpush1.xpose.msra.mxu0 0.0
    %2689 = vmatprep.subr.mxu0 0.0
    %2690 = vmatpush1.xpose.msra.mxu0 0.0
    %2691 = vmatprep.mubr.f32.mxu0 0.0
    %2692 = vmatmul.mubr.f32.gmra.mrb[0].mxu0 %v2610
    %v2693 = vpop.f32.mrb[0].mxu0
    %v2694 = vadd.f32 0.0, %v2693
    %v2695 = vpop.f32.mrb[0].mxu0
    %2696 = vmatprep.mubr.f32.mxu0 0.0
    %2697 = vmatmul.mubr.f32.gmra.mrb[0].mxu0 %v2613
    %v2698 = vpop.f32.mrb[0].mxu0
    %v2699 = vadd.f32 0.0, %v2698
    %v2700 = vpop.f32.mrb[0].mxu0
    %2701 = vmatprep.mubr.f32.mxu0 0.0
    %2702 = vmatmul.mubr.f32.gmra.mrb[0].mxu0 %v2616
    %v2703 = vpop.f32.mrb[0].mxu0
    %v2704 = vadd.f32 0.0, %v2703
    %v2705 = vpop.f32.mrb[0].mxu0
    %2706 = vdwg.mxu0
    %v2707 = vmul.f32 %v2694, 0.125
    %v2708 = vmul.f32 %v2699, 0.125
    %v2709 = vmul.f32 %v2704, 0.125
    %v2710 = vsel %vm798, %v2707, -inf
    %2711 = vmax.xlane.f32.xlu0 %v2710
    %v2712 = vpop.xlane.xlu0 %2711
    %v2713 = vsel %vm798, %v2708, -inf
    %2714 = vmax.xlane.f32.xlu0 %v2713
    %v2715 = vpop.xlane.xlu0 %2714
    %v2716 = vsel %vm798, %v2709, -inf
    %2717 = vmax.xlane.f32.xlu0 %v2716
    %v2718 = vpop.xlane.xlu0 %2717
    %v2719 = vsub.f32 %v2707, %v2712
    %v2720 = vsub.f32 %v2708, %v2715
    %v2721 = vsub.f32 %v2709, %v2718
    %v2722 = vmul.f32 %v2719, 1.442695
    %v2723 = vpow.pop %v2722
    %v2724 = vmul.f32 %v2720, 1.442695
    %v2725 = vpow.pop %v2724
    %v2726 = vmul.f32 %v2721, 1.442695
    %v2727 = vpow.pop %v2726
    %v2728 = vsel %vm798, %v2723, 0.0
    %2729 = vadd.xlane.f32.xlu0 %v2728
    %v2730 = vpop.xlane.xlu0 %2729
    %v2731 = vsel %vm798, %v2725, 0.0
    %2732 = vadd.xlane.f32.xlu0 %v2731
    %v2733 = vpop.xlane.xlu0 %2732
    %v2734 = vsel %vm798, %v2727, 0.0
    %2735 = vadd.xlane.f32.xlu0 %v2734
    %v2736 = vpop.xlane.xlu0 %2735
    %v2737 = vrcp.pop %v2730
    %v2738 = vmul.f32 %v2723, %v2737
    %v2739 = vrcp.pop %v2733
    %v2740 = vmul.f32 %v2725, %v2739
    %v2741 = vrcp.pop %v2736
    %v2742 = vmul.f32 %v2727, %v2741
    %s2743 = scalar_lea.vmem [#allocation9], 192
    %2744 = vst.msk [vmem:[%s2743] sm:$0xff] %vm798, %v2738
    %2745 = vst.msk [vmem:[%s2743 + $0x8] sm:$0xff] %vm798, %v2740
    %2746 = vst.msk [vmem:[%s2743 + $0x10] sm:$0xff] %vm798, %v2742
    %v2747 = vld [vmem:[%s0 + $0xc0] sm:$0xff]
    %v2748 = vld [vmem:[%s0 + $0xc8] sm:$0xff]
    %v2749 = vld [vmem:[%s0 + $0xd0] sm:$0xff]
    %v2751 = vsel %vm798, %v2738, 0
    %v2754 = vsel %vm798, %v2740, 0
    %v2757 = vsel %vm798, %v2742, 0
    %2759 = vmatprep.subr.mxu0 0.0
    %2760 = vmatpush1.msra.mxu0 %v2747
    %2761 = vmatprep.subr.mxu0 0.0
    %2762 = vmatpush1.msra.mxu0 %v2748
    %2763 = vmatprep.subr.mxu0 0.0
    %2764 = vmatpush1.msra.mxu0 %v2749
    %2765 = vmatprep.subr.mxu0 0.0
    %2766 = vmatpush1.msra.mxu0 0.0
    %2767 = vmatprep.subr.mxu0 0.0
    %2768 = vmatpush1.msra.mxu0 0.0
    %2769 = vmatprep.subr.mxu0 0.0
    %2770 = vmatpush1.msra.mxu0 0.0
    %2771 = vmatprep.subr.mxu0 0.0
    %2772 = vmatpush1.msra.mxu0 0.0
    %2773 = vmatprep.subr.mxu0 0.0
    %2774 = vmatpush1.msra.mxu0 0.0
    %2775 = vmatprep.subr.mxu0 0.0
    %2776 = vmatpush1.msra.mxu0 0.0
    %2777 = vmatprep.subr.mxu0 0.0
    %2778 = vmatpush1.msra.mxu0 0.0
    %2779 = vmatprep.subr.mxu0 0.0
    %2780 = vmatpush1.msra.mxu0 0.0
    %2781 = vmatprep.subr.mxu0 0.0
    %2782 = vmatpush1.msra.mxu0 0.0
    %2783 = vmatprep.subr.mxu0 0.0
    %2784 = vmatpush1.msra.mxu0 0.0
    %2785 = vmatprep.subr.mxu0 0.0
    %2786 = vmatpush1.msra.mxu0 0.0
    %2787 = vmatprep.subr.mxu0 0.0
    %2788 = vmatpush1.msra.mxu0 0.0
    %2789 = vmatprep.subr.mxu0 0.0
    %2790 = vmatpush1.msra.mxu0 0.0
    %2791 = vmatprep.subr.mxu0 0.0
    %2792 = vmatpush1.msra.mxu0 0.0
    %2793 = vmatprep.subr.mxu0 0.0
    %2794 = vmatpush1.msra.mxu0 0.0
    %2795 = vmatprep.subr.mxu0 0.0
    %2796 = vmatpush1.msra.mxu0 0.0
    %2797 = vmatprep.subr.mxu0 0.0
    %2798 = vmatpush1.msra.mxu0 0.0
    %2799 = vmatprep.subr.mxu0 0.0
    %2800 = vmatpush1.msra.mxu0 0.0
    %2801 = vmatprep.subr.mxu0 0.0
    %2802 = vmatpush1.msra.mxu0 0.0
    %2803 = vmatprep.subr.mxu0 0.0
    %2804 = vmatpush1.msra.mxu0 0.0
    %2805 = vmatprep.subr.mxu0 0.0
    %2806 = vmatpush1.msra.mxu0 0.0
    %2807 = vmatprep.subr.mxu0 0.0
    %2808 = vmatpush1.msra.mxu0 0.0
    %2809 = vmatprep.subr.mxu0 0.0
    %2810 = vmatpush1.msra.mxu0 0.0
    %2811 = vmatprep.subr.mxu0 0.0
    %2812 = vmatpush1.msra.mxu0 0.0
    %2813 = vmatprep.subr.mxu0 0.0
    %2814 = vmatpush1.msra.mxu0 0.0
    %2815 = vmatprep.subr.mxu0 0.0
    %2816 = vmatpush1.msra.mxu0 0.0
    %2817 = vmatprep.subr.mxu0 0.0
    %2818 = vmatpush1.msra.mxu0 0.0
    %2819 = vmatprep.subr.mxu0 0.0
    %2820 = vmatpush1.msra.mxu0 0.0
    %2821 = vmatprep.subr.mxu0 0.0
    %2822 = vmatpush1.msra.mxu0 0.0
    %2823 = vmatprep.mubr.f32.mxu0 0.0
    %2824 = vmatmul.mubr.f32.gmra.mrb[0].mxu0 %v2751
    %v2825 = vpop.f32.mrb[0].mxu0
    %v2826 = vadd.f32 0.0, %v2825
    %v2827 = vpop.f32.mrb[0].mxu0
    %2828 = vmatprep.mubr.f32.mxu0 0.0
    %2829 = vmatmul.mubr.f32.gmra.mrb[0].mxu0 %v2754
    %v2830 = vpop.f32.mrb[0].mxu0
    %v2831 = vadd.f32 0.0, %v2830
    %v2832 = vpop.f32.mrb[0].mxu0
    %2833 = vmatprep.mubr.f32.mxu0 0.0
    %2834 = vmatmul.mubr.f32.gmra.mrb[0].mxu0 %v2757
    %v2835 = vpop.f32.mrb[0].mxu0
    %v2836 = vadd.f32 0.0, %v2835
    %v2837 = vpop.f32.mrb[0].mxu0
    %2838 = vdwg.mxu0
    %2839 = vst.msk [vmem:[#allocation4 + $0xc0] sm:$0xff] %vm95, %v2826
    %2840 = vst.msk [vmem:[#allocation4 + $0xc8] sm:$0xff] %vm95, %v2831
    %2841 = vst.msk [vmem:[#allocation4 + $0xd0] sm:$0xff] %vm95, %v2836
    %v2842 = vld [vmem:[#allocation2 + $0xd8] sm:$0xff]
    %v2843 = vld [vmem:[#allocation2 + $0xe0] sm:$0xff]
    %v2844 = vld [vmem:[#allocation2 + $0xe8] sm:$0xff]
    %v2845 = vld [vmem:[#allocation3 + $0xd8] sm:$0xff]
    %v2846 = vld [vmem:[#allocation3 + $0xe0] sm:$0xff]
    %v2847 = vld [vmem:[#allocation3 + $0xe8] sm:$0xff]
    %v2849 = vsel %vm95, %v2842, 0
    %v2852 = vsel %vm95, %v2843, 0
    %v2855 = vsel %vm95, %v2844, 0
    %v2858 = vsel %vm95, %v2845, 0
    %v2861 = vsel %vm95, %v2846, 0
    %v2864 = vsel %vm95, %v2847, 0
    %2866 = vmatprep.subr.mxu0 0.0
    %2867 = vmatpush1.xpose.msra.mxu0 %v2858
    %2868 = vmatprep.subr.mxu0 0.0
    %2869 = vmatpush1.xpose.msra.mxu0 %v2861
    %2870 = vmatprep.subr.mxu0 0.0
    %2871 = vmatpush1.xpose.msra.mxu0 %v2864
    %2872 = vmatprep.subr.mxu0 0.0
    %2873 = vmatpush1.xpose.msra.mxu0 0.0
    %2874 = vmatprep.subr.mxu0 0.0
    %2875 = vmatpush1.xpose.msra.mxu0 0.0
    %2876 = vmatprep.subr.mxu0 0.0
    %2877 = vmatpush1.xpose.msra.mxu0 0.0
    %2878 = vmatprep.subr.mxu0 0.0
    %2879 = vmatpush1.xpose.msra.mxu0 0.0
    %2880 = vmatprep.subr.mxu0 0.0
    %2881 = vmatpush1.xpose.msra.mxu0 0.0
    %2882 = vmatprep.subr.mxu0 0.0
    %2883 = vmatpush1.xpose.msra.mxu0 0.0
    %2884 = vmatprep.subr.mxu0 0.0
    %2885 = vmatpush1.xpose.msra.mxu0 0.0
    %2886 = vmatprep.subr.mxu0 0.0
    %2887 = vmatpush1.xpose.msra.mxu0 0.0
    %2888 = vmatprep.subr.mxu0 0.0
    %2889 = vmatpush1.xpose.msra.mxu0 0.0
    %2890 = vmatprep.subr.mxu0 0.0
    %2891 = vmatpush1.xpose.msra.mxu0 0.0
    %2892 = vmatprep.subr.mxu0 0.0
    %2893 = vmatpush1.xpose.msra.mxu0 0.0
    %2894 = vmatprep.subr.mxu0 0.0
    %2895 = vmatpush1.xpose.msra.mxu0 0.0
    %2896 = vmatprep.subr.mxu0 0.0
    %2897 = vmatpush1.xpose.msra.mxu0 0.0
    %2898 = vmatprep.subr.mxu0 0.0
    %2899 = vmatpush1.xpose.msra.mxu0 0.0
    %2900 = vmatprep.subr.mxu0 0.0
    %2901 = vmatpush1.xpose.msra.mxu0 0.0
    %2902 = vmatprep.subr.mxu0 0.0
    %2903 = vmatpush1.xpose.msra.mxu0 0.0
    %2904 = vmatprep.subr.mxu0 0.0
    %2905 = vmatpush1.xpose.msra.mxu0 0.0
    %2906 = vmatprep.subr.mxu0 0.0
    %2907 = vmatpush1.xpose.msra.mxu0 0.0
    %2908 = vmatprep.subr.mxu0 0.0
    %2909 = vmatpush1.xpose.msra.mxu0 0.0
    %2910 = vmatprep.subr.mxu0 0.0
    %2911 = vmatpush1.xpose.msra.mxu0 0.0
    %2912 = vmatprep.subr.mxu0 0.0
    %2913 = vmatpush1.xpose.msra.mxu0 0.0
    %2914 = vmatprep.subr.mxu0 0.0
    %2915 = vmatpush1.xpose.msra.mxu0 0.0
    %2916 = vmatprep.subr.mxu0 0.0
    %2917 = vmatpush1.xpose.msra.mxu0 0.0
    %2918 = vmatprep.subr.mxu0 0.0
    %2919 = vmatpush1.xpose.msra.mxu0 0.0
    %2920 = vmatprep.subr.mxu0 0.0
    %2921 = vmatpush1.xpose.msra.mxu0 0.0
    %2922 = vmatprep.subr.mxu0 0.0
    %2923 = vmatpush1.xpose.msra.mxu0 0.0
    %2924 = vmatprep.subr.mxu0 0.0
    %2925 = vmatpush1.xpose.msra.mxu0 0.0
    %2926 = vmatprep.subr.mxu0 0.0
    %2927 = vmatpush1.xpose.msra.mxu0 0.0
    %2928 = vmatprep.subr.mxu0 0.0
    %2929 = vmatpush1.xpose.msra.mxu0 0.0
    %2930 = vmatprep.mubr.f32.mxu0 0.0
    %2931 = vmatmul.mubr.f32.gmra.mrb[0].mxu0 %v2849
    %v2932 = vpop.f32.mrb[0].mxu0
    %v2933 = vadd.f32 0.0, %v2932
    %v2934 = vpop.f32.mrb[0].mxu0
    %2935 = vmatprep.mubr.f32.mxu0 0.0
    %2936 = vmatmul.mubr.f32.gmra.mrb[0].mxu0 %v2852
    %v2937 = vpop.f32.mrb[0].mxu0
    %v2938 = vadd.f32 0.0, %v2937
    %v2939 = vpop.f32.mrb[0].mxu0
    %2940 = vmatprep.mubr.f32.mxu0 0.0
    %2941 = vmatmul.mubr.f32.gmra.mrb[0].mxu0 %v2855
    %v2942 = vpop.f32.mrb[0].mxu0
    %v2943 = vadd.f32 0.0, %v2942
    %v2944 = vpop.f32.mrb[0].mxu0
    %2945 = vdwg.mxu0
    %v2946 = vmul.f32 %v2933, 0.125
    %v2947 = vmul.f32 %v2938, 0.125
    %v2948 = vmul.f32 %v2943, 0.125
    %v2949 = vsel %vm798, %v2946, -inf
    %2950 = vmax.xlane.f32.xlu0 %v2949
    %v2951 = vpop.xlane.xlu0 %2950
    %v2952 = vsel %vm798, %v2947, -inf
    %2953 = vmax.xlane.f32.xlu0 %v2952
    %v2954 = vpop.xlane.xlu0 %2953
    %v2955 = vsel %vm798, %v2948, -inf
    %2956 = vmax.xlane.f32.xlu0 %v2955
    %v2957 = vpop.xlane.xlu0 %2956
    %v2958 = vsub.f32 %v2946, %v2951
    %v2959 = vsub.f32 %v2947, %v2954
    %v2960 = vsub.f32 %v2948, %v2957
    %v2961 = vmul.f32 %v2958, 1.442695
    %v2962 = vpow.pop %v2961
    %v2963 = vmul.f32 %v2959, 1.442695
    %v2964 = vpow.pop %v2963
    %v2965 = vmul.f32 %v2960, 1.442695
    %v2966 = vpow.pop %v2965
    %v2967 = vsel %vm798, %v2962, 0.0
    %2968 = vadd.xlane.f32.xlu0 %v2967
    %v2969 = vpop.xlane.xlu0 %2968
    %v2970 = vsel %vm798, %v2964, 0.0
    %2971 = vadd.xlane.f32.xlu0 %v2970
    %v2972 = vpop.xlane.xlu0 %2971
    %v2973 = vsel %vm798, %v2966, 0.0
    %2974 = vadd.xlane.f32.xlu0 %v2973
    %v2975 = vpop.xlane.xlu0 %2974
    %v2976 = vrcp.pop %v2969
    %v2977 = vmul.f32 %v2962, %v2976
    %v2978 = vrcp.pop %v2972
    %v2979 = vmul.f32 %v2964, %v2978
    %v2980 = vrcp.pop %v2975
    %v2981 = vmul.f32 %v2966, %v2980
    %s2982 = scalar_lea.vmem [#allocation9], 216
    %2983 = vst.msk [vmem:[%s2982] sm:$0xff] %vm798, %v2977
    %2984 = vst.msk [vmem:[%s2982 + $0x8] sm:$0xff] %vm798, %v2979
    %2985 = vst.msk [vmem:[%s2982 + $0x10] sm:$0xff] %vm798, %v2981
    %v2986 = vld [vmem:[%s0 + $0xd8] sm:$0xff]
    %v2987 = vld [vmem:[%s0 + $0xe0] sm:$0xff]
    %v2988 = vld [vmem:[%s0 + $0xe8] sm:$0xff]
    %v2990 = vsel %vm798, %v2977, 0
    %v2993 = vsel %vm798, %v2979, 0
    %v2996 = vsel %vm798, %v2981, 0
    %2998 = vmatprep.subr.mxu0 0.0
    %2999 = vmatpush1.msra.mxu0 %v2986
    %3000 = vmatprep.subr.mxu0 0.0
    %3001 = vmatpush1.msra.mxu0 %v2987
    %3002 = vmatprep.subr.mxu0 0.0
    %3003 = vmatpush1.msra.mxu0 %v2988
    %3004 = vmatprep.subr.mxu0 0.0
    %3005 = vmatpush1.msra.mxu0 0.0
    %3006 = vmatprep.subr.mxu0 0.0
    %3007 = vmatpush1.msra.mxu0 0.0
    %3008 = vmatprep.subr.mxu0 0.0
    %3009 = vmatpush1.msra.mxu0 0.0
    %3010 = vmatprep.subr.mxu0 0.0
    %3011 = vmatpush1.msra.mxu0 0.0
    %3012 = vmatprep.subr.mxu0 0.0
    %3013 = vmatpush1.msra.mxu0 0.0
    %3014 = vmatprep.subr.mxu0 0.0
    %3015 = vmatpush1.msra.mxu0 0.0
    %3016 = vmatprep.subr.mxu0 0.0
    %3017 = vmatpush1.msra.mxu0 0.0
    %3018 = vmatprep.subr.mxu0 0.0
    %3019 = vmatpush1.msra.mxu0 0.0
    %3020 = vmatprep.subr.mxu0 0.0
    %3021 = vmatpush1.msra.mxu0 0.0
    %3022 = vmatprep.subr.mxu0 0.0
    %3023 = vmatpush1.msra.mxu0 0.0
    %3024 = vmatprep.subr.mxu0 0.0
    %3025 = vmatpush1.msra.mxu0 0.0
    %3026 = vmatprep.subr.mxu0 0.0
    %3027 = vmatpush1.msra.mxu0 0.0
    %3028 = vmatprep.subr.mxu0 0.0
    %3029 = vmatpush1.msra.mxu0 0.0
    %3030 = vmatprep.subr.mxu0 0.0
    %3031 = vmatpush1.msra.mxu0 0.0
    %3032 = vmatprep.subr.mxu0 0.0
    %3033 = vmatpush1.msra.mxu0 0.0
    %3034 = vmatprep.subr.mxu0 0.0
    %3035 = vmatpush1.msra.mxu0 0.0
    %3036 = vmatprep.subr.mxu0 0.0
    %3037 = vmatpush1.msra.mxu0 0.0
    %3038 = vmatprep.subr.mxu0 0.0
    %3039 = vmatpush1.msra.mxu0 0.0
    %3040 = vmatprep.subr.mxu0 0.0
    %3041 = vmatpush1.msra.mxu0 0.0
    %3042 = vmatprep.subr.mxu0 0.0
    %3043 = vmatpush1.msra.mxu0 0.0
    %3044 = vmatprep.subr.mxu0 0.0
    %3045 = vmatpush1.msra.mxu0 0.0
    %3046 = vmatprep.subr.mxu0 0.0
    %3047 = vmatpush1.msra.mxu0 0.0
    %3048 = vmatprep.subr.mxu0 0.0
    %3049 = vmatpush1.msra.mxu0 0.0
    %3050 = vmatprep.subr.mxu0 0.0
    %3051 = vmatpush1.msra.mxu0 0.0
    %3052 = vmatprep.subr.mxu0 0.0
    %3053 = vmatpush1.msra.mxu0 0.0
    %3054 = vmatprep.subr.mxu0 0.0
    %3055 = vmatpush1.msra.mxu0 0.0
    %3056 = vmatprep.subr.mxu0 0.0
    %3057 = vmatpush1.msra.mxu0 0.0
    %3058 = vmatprep.subr.mxu0 0.0
    %3059 = vmatpush1.msra.mxu0 0.0
    %3060 = vmatprep.subr.mxu0 0.0
    %3061 = vmatpush1.msra.mxu0 0.0
    %3062 = vmatprep.mubr.f32.mxu0 0.0
    %3063 = vmatmul.mubr.f32.gmra.mrb[0].mxu0 %v2990
    %v3064 = vpop.f32.mrb[0].mxu0
    %v3065 = vadd.f32 0.0, %v3064
    %v3066 = vpop.f32.mrb[0].mxu0
    %3067 = vmatprep.mubr.f32.mxu0 0.0
    %3068 = vmatmul.mubr.f32.gmra.mrb[0].mxu0 %v2993
    %v3069 = vpop.f32.mrb[0].mxu0
    %v3070 = vadd.f32 0.0, %v3069
    %v3071 = vpop.f32.mrb[0].mxu0
    %3072 = vmatprep.mubr.f32.mxu0 0.0
    %3073 = vmatmul.mubr.f32.gmra.mrb[0].mxu0 %v2996
    %v3074 = vpop.f32.mrb[0].mxu0
    %v3075 = vadd.f32 0.0, %v3074
    %v3076 = vpop.f32.mrb[0].mxu0
    %3077 = vdwg.mxu0
    %3078 = vst.msk [vmem:[#allocation4 + $0xd8] sm:$0xff] %vm95, %v3065
    %3079 = vst.msk [vmem:[#allocation4 + $0xe0] sm:$0xff] %vm95, %v3070
    %3080 = vst.msk [vmem:[#allocation4 + $0xe8] sm:$0xff] %vm95, %v3075
    %v3081 = vld [vmem:[#allocation4] sm:$0xff]
    %v3082 = vld [vmem:[#allocation4 + $0x8] sm:$0xff]
    %v3083 = vld [vmem:[#allocation4 + $0x10] sm:$0xff]
    %v3084 = vld [vmem:[#allocation4 + $0x18] sm:$0xff]
    %v3085 = vld [vmem:[#allocation4 + $0x20] sm:$0xff]
    %v3086 = vld [vmem:[#allocation4 + $0x28] sm:$0xff]
    %v3087 = vld [vmem:[#allocation4 + $0x30] sm:$0xff]
    %v3088 = vld [vmem:[#allocation4 + $0x38] sm:$0xff]
    %v3089 = vld [vmem:[#allocation4 + $0x40] sm:$0xff]
    %v3090 = vld [vmem:[#allocation4 + $0x48] sm:$0xff]
    %v3091 = vld [vmem:[#allocation4 + $0x50] sm:$0xff]
    %v3092 = vld [vmem:[#allocation4 + $0x58] sm:$0xff]
    %v3093 = vld [vmem:[#allocation4 + $0x60] sm:$0xff]
    %v3094 = vld [vmem:[#allocation4 + $0x68] sm:$0xff]
    %v3095 = vld [vmem:[#allocation4 + $0x70] sm:$0xff]
    %v3096 = vld [vmem:[#allocation4 + $0x78] sm:$0xff]
    %v3097 = vld [vmem:[#allocation4 + $0x80] sm:$0xff]
    %v3098 = vld [vmem:[#allocation4 + $0x88] sm:$0xff]
    %v3099 = vld [vmem:[#allocation4 + $0x90] sm:$0xff]
    %v3100 = vld [vmem:[#allocation4 + $0x98] sm:$0xff]
    %v3101 = vld [vmem:[#allocation4 + $0xa0] sm:$0xff]
    %v3102 = vld [vmem:[#allocation4 + $0xa8] sm:$0xff]
    %v3103 = vld [vmem:[#allocation4 + $0xb0] sm:$0xff]
    %v3104 = vld [vmem:[#allocation4 + $0xb8] sm:$0xff]
    %v3105 = vld [vmem:[#allocation4 + $0xc0] sm:$0xff]
    %v3106 = vld [vmem:[#allocation4 + $0xc8] sm:$0xff]
    %v3107 = vld [vmem:[#allocation4 + $0xd0] sm:$0xff]
    %v3108 = vld [vmem:[#allocation4 + $0xd8] sm:$0xff]
    %v3109 = vld [vmem:[#allocation4 + $0xe0] sm:$0xff]
    %v3110 = vld [vmem:[#allocation4 + $0xe8] sm:$0xff]
    %v3111 = vld [vmem:[%s1] sm:$0xff]
    %v3112 = vld [vmem:[%s1 + $0x8] sm:$0xff]
    %v3113 = vld [vmem:[%s1 + $0x10] sm:$0xff]
    %v3114 = vld [vmem:[%s1 + $0x18] sm:$0xff]
    %v3115 = vld [vmem:[%s1 + $0x20] sm:$0xff]
    %v3116 = vld [vmem:[%s1 + $0x28] sm:$0xff]
    %v3117 = vld [vmem:[%s1 + $0x30] sm:$0xff]
    %v3118 = vld [vmem:[%s1 + $0x38] sm:$0xff]
    %v3119 = vld [vmem:[%s1 + $0x40] sm:$0xff]
    %v3120 = vld [vmem:[%s1 + $0x48] sm:$0xff]
    %v3121 = vld [vmem:[%s1 + $0x50] sm:$0xff]
    %v3122 = vld [vmem:[%s1 + $0x58] sm:$0xff]
    %v3123 = vld [vmem:[%s1 + $0x60] sm:$0xff]
    %v3124 = vld [vmem:[%s1 + $0x68] sm:$0xff]
    %v3125 = vld [vmem:[%s1 + $0x70] sm:$0xff]
    %v3126 = vld [vmem:[%s1 + $0x78] sm:$0xff]
    %v3127 = vld [vmem:[%s1 + $0x80] sm:$0xff]
    %v3128 = vld [vmem:[%s1 + $0x88] sm:$0xff]
    %v3129 = vld [vmem:[%s1 + $0x90] sm:$0xff]
    %v3130 = vld [vmem:[%s1 + $0x98] sm:$0xff]
    %v3131 = vld [vmem:[%s1 + $0xa0] sm:$0xff]
    %v3132 = vld [vmem:[%s1 + $0xa8] sm:$0xff]
    %v3133 = vld [vmem:[%s1 + $0xb0] sm:$0xff]
    %v3134 = vld [vmem:[%s1 + $0xb8] sm:$0xff]
    %v3135 = vld [vmem:[%s1 + $0xc0] sm:$0xff]
    %v3136 = vld [vmem:[%s1 + $0xc8] sm:$0xff]
    %v3137 = vld [vmem:[%s1 + $0xd0] sm:$0xff]
    %v3138 = vld [vmem:[%s1 + $0xd8] sm:$0xff]
    %v3139 = vld [vmem:[%s1 + $0xe0] sm:$0xff]
    %v3140 = vld [vmem:[%s1 + $0xe8] sm:$0xff]
    %v3141 = vld [vmem:[%s1 + $0xf0] sm:$0xff]
    %v3142 = vld [vmem:[%s1 + $0xf8] sm:$0xff]
    %v3143 = vld [vmem:[%s1 + $0x100] sm:$0xff]
    %v3144 = vld [vmem:[%s1 + $0x108] sm:$0xff]
    %v3145 = vld [vmem:[%s1 + $0x110] sm:$0xff]
    %v3146 = vld [vmem:[%s1 + $0x118] sm:$0xff]
    %v3147 = vld [vmem:[%s1 + $0x120] sm:$0xff]
    %v3148 = vld [vmem:[%s1 + $0x128] sm:$0xff]
    %v3149 = vld [vmem:[%s1 + $0x130] sm:$0xff]
    %v3150 = vld [vmem:[%s1 + $0x138] sm:$0xff]
    %v3151 = vld [vmem:[%s1 + $0x140] sm:$0xff]
    %v3152 = vld [vmem:[%s1 + $0x148] sm:$0xff]
    %v3153 = vld [vmem:[%s1 + $0x150] sm:$0xff]
    %v3154 = vld [vmem:[%s1 + $0x158] sm:$0xff]
    %v3155 = vld [vmem:[%s1 + $0x160] sm:$0xff]
    %v3156 = vld [vmem:[%s1 + $0x168] sm:$0xff]
    %v3157 = vld [vmem:[%s1 + $0x170] sm:$0xff]
    %v3158 = vld [vmem:[%s1 + $0x178] sm:$0xff]
    %v3159 = vld [vmem:[%s1 + $0x180] sm:$0xff]
    %v3160 = vld [vmem:[%s1 + $0x188] sm:$0xff]
    %v3161 = vld [vmem:[%s1 + $0x190] sm:$0xff]
    %v3162 = vld [vmem:[%s1 + $0x198] sm:$0xff]
    %v3163 = vld [vmem:[%s1 + $0x1a0] sm:$0xff]
    %v3164 = vld [vmem:[%s1 + $0x1a8] sm:$0xff]
    %v3165 = vld [vmem:[%s1 + $0x1b0] sm:$0xff]
    %v3166 = vld [vmem:[%s1 + $0x1b8] sm:$0xff]
    %v3167 = vld [vmem:[%s1 + $0x1c0] sm:$0xff]
    %v3168 = vld [vmem:[%s1 + $0x1c8] sm:$0xff]
    %v3169 = vld [vmem:[%s1 + $0x1d0] sm:$0xff]
    %v3170 = vld [vmem:[%s1 + $0x1d8] sm:$0xff]
    %vm3171 = vcmask 916480
    %v3173 = vsel %vm3171, %v3112, 0
    %v3176 = vsel %vm3171, %v3114, 0
    %v3179 = vsel %vm3171, %v3116, 0
    %v3182 = vsel %vm3171, %v3118, 0
    %v3185 = vsel %vm3171, %v3120, 0
    %v3188 = vsel %vm3171, %v3122, 0
    %v3191 = vsel %vm3171, %v3124, 0
    %v3194 = vsel %vm3171, %v3126, 0
    %v3197 = vsel %vm3171, %v3128, 0
    %v3200 = vsel %vm3171, %v3130, 0
    %v3203 = vsel %vm3171, %v3132, 0
    %v3206 = vsel %vm3171, %v3134, 0
    %v3209 = vsel %vm3171, %v3136, 0
    %v3212 = vsel %vm3171, %v3138, 0
    %v3215 = vsel %vm3171, %v3140, 0
    %v3218 = vsel %vm3171, %v3142, 0
    %v3221 = vsel %vm3171, %v3144, 0
    %v3224 = vsel %vm3171, %v3146, 0
    %v3227 = vsel %vm3171, %v3148, 0
    %v3230 = vsel %vm3171, %v3150, 0
    %v3233 = vsel %vm3171, %v3152, 0
    %v3236 = vsel %vm3171, %v3154, 0
    %v3239 = vsel %vm3171, %v3156, 0
    %v3242 = vsel %vm3171, %v3158, 0
    %v3245 = vsel %vm3171, %v3160, 0
    %v3248 = vsel %vm3171, %v3162, 0
    %v3251 = vsel %vm3171, %v3164, 0
    %v3254 = vsel %vm3171, %v3166, 0
    %v3257 = vsel %vm3171, %v3168, 0
    %v3260 = vsel %vm3171, %v3170, 0
    %3262 = vmatprep.subr.mxu0 0.0
    %3263 = vmatpush1.msra.mxu0 %v3081
    %3264 = vmatprep.subr.mxu0 0.0
    %3265 = vmatpush1.msra.mxu0 %v3082
    %3266 = vmatprep.subr.mxu0 0.0
    %3267 = vmatpush1.msra.mxu0 %v3083
    %3268 = vmatprep.subr.mxu0 0.0
    %3269 = vmatpush1.msra.mxu0 %v3084
    %3270 = vmatprep.subr.mxu0 0.0
    %3271 = vmatpush1.msra.mxu0 %v3085
    %3272 = vmatprep.subr.mxu0 0.0
    %3273 = vmatpush1.msra.mxu0 %v3086
    %3274 = vmatprep.subr.mxu0 0.0
    %3275 = vmatpush1.msra.mxu0 %v3087
    %3276 = vmatprep.subr.mxu0 0.0
    %3277 = vmatpush1.msra.mxu0 %v3088
    %3278 = vmatprep.subr.mxu0 0.0
    %3279 = vmatpush1.msra.mxu0 %v3089
    %3280 = vmatprep.subr.mxu0 0.0
    %3281 = vmatpush1.msra.mxu0 %v3090
    %3282 = vmatprep.subr.mxu0 0.0
    %3283 = vmatpush1.msra.mxu0 %v3091
    %3284 = vmatprep.subr.mxu0 0.0
    %3285 = vmatpush1.msra.mxu0 %v3092
    %3286 = vmatprep.subr.mxu0 0.0
    %3287 = vmatpush1.msra.mxu0 %v3093
    %3288 = vmatprep.subr.mxu0 0.0
    %3289 = vmatpush1.msra.mxu0 %v3094
    %3290 = vmatprep.subr.mxu0 0.0
    %3291 = vmatpush1.msra.mxu0 %v3095
    %3292 = vmatprep.subr.mxu0 0.0
    %3293 = vmatpush1.msra.mxu0 %v3096
    %3294 = vmatprep.subr.mxu0 0.0
    %3295 = vmatpush1.msra.mxu0 %v3097
    %3296 = vmatprep.subr.mxu0 0.0
    %3297 = vmatpush1.msra.mxu0 %v3098
    %3298 = vmatprep.subr.mxu0 0.0
    %3299 = vmatpush1.msra.mxu0 %v3099
    %3300 = vmatprep.subr.mxu0 0.0
    %3301 = vmatpush1.msra.mxu0 %v3100
    %3302 = vmatprep.subr.mxu0 0.0
    %3303 = vmatpush1.msra.mxu0 %v3101
    %3304 = vmatprep.subr.mxu0 0.0
    %3305 = vmatpush1.msra.mxu0 %v3102
    %3306 = vmatprep.subr.mxu0 0.0
    %3307 = vmatpush1.msra.mxu0 %v3103
    %3308 = vmatprep.subr.mxu0 0.0
    %3309 = vmatpush1.msra.mxu0 %v3104
    %3310 = vmatprep.subr.mxu0 0.0
    %3311 = vmatpush1.msra.mxu0 %v3105
    %3312 = vmatprep.subr.mxu0 0.0
    %3313 = vmatpush1.msra.mxu0 %v3106
    %3314 = vmatprep.subr.mxu0 0.0
    %3315 = vmatpush1.msra.mxu0 %v3107
    %3316 = vmatprep.subr.mxu0 0.0
    %3317 = vmatpush1.msra.mxu0 %v3108
    %3318 = vmatprep.subr.mxu0 0.0
    %3319 = vmatpush1.msra.mxu0 %v3109
    %3320 = vmatprep.subr.mxu0 0.0
    %3321 = vmatpush1.msra.mxu0 %v3110
    %3322 = vmatprep.subr.mxu0 0.0
    %3323 = vmatpush1.msra.mxu0 0.0
    %3324 = vmatprep.subr.mxu0 0.0
    %3325 = vmatpush1.msra.mxu0 0.0
    %3326 = vmatprep.mubr.f32.mxu0 %v3173
    %3327 = vmatmul.mubr.f32.gmra.mrb[0].mxu0 %v3111
    %v3328 = vpop.f32.mrb[0].mxu0
    %v3329 = vadd.f32 0.0, %v3328
    %v3330 = vpop.f32.mrb[0].mxu0
    %3331 = vmatprep.mubr.f32.mxu0 %v3176
    %3332 = vmatmul.mubr.f32.gmra.mrb[0].mxu0 %v3113
    %v3333 = vpop.f32.mrb[0].mxu0
    %v3334 = vadd.f32 0.0, %v3333
    %v3335 = vpop.f32.mrb[0].mxu0
    %3336 = vmatprep.mubr.f32.mxu0 %v3179
    %3337 = vmatmul.mubr.f32.gmra.mrb[0].mxu0 %v3115
    %v3338 = vpop.f32.mrb[0].mxu0
    %v3339 = vadd.f32 0.0, %v3338
    %v3340 = vpop.f32.mrb[0].mxu0
    %3341 = vmatprep.mubr.f32.mxu0 %v3182
    %3342 = vmatmul.mubr.f32.gmra.mrb[0].mxu0 %v3117
    %v3343 = vpop.f32.mrb[0].mxu0
    %v3344 = vadd.f32 0.0, %v3343
    %v3345 = vpop.f32.mrb[0].mxu0
    %3346 = vmatprep.mubr.f32.mxu0 %v3185
    %3347 = vmatmul.mubr.f32.gmra.mrb[0].mxu0 %v3119
    %v3348 = vpop.f32.mrb[0].mxu0
    %v3349 = vadd.f32 0.0, %v3348
    %v3350 = vpop.f32.mrb[0].mxu0
    %3351 = vmatprep.mubr.f32.mxu0 %v3188
    %3352 = vmatmul.mubr.f32.gmra.mrb[0].mxu0 %v3121
    %v3353 = vpop.f32.mrb[0].mxu0
    %v3354 = vadd.f32 0.0, %v3353
    %v3355 = vpop.f32.mrb[0].mxu0
    %3356 = vmatprep.mubr.f32.mxu0 %v3191
    %3357 = vmatmul.mubr.f32.gmra.mrb[0].mxu0 %v3123
    %v3358 = vpop.f32.mrb[0].mxu0
    %v3359 = vadd.f32 0.0, %v3358
    %v3360 = vpop.f32.mrb[0].mxu0
    %3361 = vmatprep.mubr.f32.mxu0 %v3194
    %3362 = vmatmul.mubr.f32.gmra.mrb[0].mxu0 %v3125
    %v3363 = vpop.f32.mrb[0].mxu0
    %v3364 = vadd.f32 0.0, %v3363
    %v3365 = vpop.f32.mrb[0].mxu0
    %3366 = vmatprep.mubr.f32.mxu0 %v3197
    %3367 = vmatmul.mubr.f32.gmra.mrb[0].mxu0 %v3127
    %v3368 = vpop.f32.mrb[0].mxu0
    %v3369 = vadd.f32 0.0, %v3368
    %v3370 = vpop.f32.mrb[0].mxu0
    %3371 = vmatprep.mubr.f32.mxu0 %v3200
    %3372 = vmatmul.mubr.f32.gmra.mrb[0].mxu0 %v3129
    %v3373 = vpop.f32.mrb[0].mxu0
    %v3374 = vadd.f32 0.0, %v3373
    %v3375 = vpop.f32.mrb[0].mxu0
    %3376 = vmatprep.mubr.f32.mxu0 %v3203
    %3377 = vmatmul.mubr.f32.gmra.mrb[0].mxu0 %v3131
    %v3378 = vpop.f32.mrb[0].mxu0
    %v3379 = vadd.f32 0.0, %v3378
    %v3380 = vpop.f32.mrb[0].mxu0
    %3381 = vmatprep.mubr.f32.mxu0 %v3206
    %3382 = vmatmul.mubr.f32.gmra.mrb[0].mxu0 %v3133
    %v3383 = vpop.f32.mrb[0].mxu0
    %v3384 = vadd.f32 0.0, %v3383
    %v3385 = vpop.f32.mrb[0].mxu0
    %3386 = vmatprep.mubr.f32.mxu0 %v3209
    %3387 = vmatmul.mubr.f32.gmra.mrb[0].mxu0 %v3135
    %v3388 = vpop.f32.mrb[0].mxu0
    %v3389 = vadd.f32 0.0, %v3388
    %v3390 = vpop.f32.mrb[0].mxu0
    %3391 = vmatprep.mubr.f32.mxu0 %v3212
    %3392 = vmatmul.mubr.f32.gmra.mrb[0].mxu0 %v3137
    %v3393 = vpop.f32.mrb[0].mxu0
    %v3394 = vadd.f32 0.0, %v3393
    %v3395 = vpop.f32.mrb[0].mxu0
    %3396 = vmatprep.mubr.f32.mxu0 %v3215
    %3397 = vmatmul.mubr.f32.gmra.mrb[0].mxu0 %v3139
    %v3398 = vpop.f32.mrb[0].mxu0
    %v3399 = vadd.f32 0.0, %v3398
    %v3400 = vpop.f32.mrb[0].mxu0
    %3401 = vmatprep.mubr.f32.mxu0 %v3218
    %3402 = vmatmul.mubr.f32.gmra.mrb[0].mxu0 %v3141
    %v3403 = vpop.f32.mrb[0].mxu0
    %v3404 = vadd.f32 0.0, %v3403
    %v3405 = vpop.f32.mrb[0].mxu0
    %3406 = vmatprep.mubr.f32.mxu0 %v3221
    %3407 = vmatmul.mubr.f32.gmra.mrb[0].mxu0 %v3143
    %v3408 = vpop.f32.mrb[0].mxu0
    %v3409 = vadd.f32 0.0, %v3408
    %v3410 = vpop.f32.mrb[0].mxu0
    %3411 = vmatprep.mubr.f32.mxu0 %v3224
    %3412 = vmatmul.mubr.f32.gmra.mrb[0].mxu0 %v3145
    %v3413 = vpop.f32.mrb[0].mxu0
    %v3414 = vadd.f32 0.0, %v3413
    %v3415 = vpop.f32.mrb[0].mxu0
    %3416 = vmatprep.mubr.f32.mxu0 %v3227
    %3417 = vmatmul.mubr.f32.gmra.mrb[0].mxu0 %v3147
    %v3418 = vpop.f32.mrb[0].mxu0
    %v3419 = vadd.f32 0.0, %v3418
    %v3420 = vpop.f32.mrb[0].mxu0
    %3421 = vmatprep.mubr.f32.mxu0 %v3230
    %3422 = vmatmul.mubr.f32.gmra.mrb[0].mxu0 %v3149
    %v3423 = vpop.f32.mrb[0].mxu0
    %v3424 = vadd.f32 0.0, %v3423
    %v3425 = vpop.f32.mrb[0].mxu0
    %3426 = vmatprep.mubr.f32.mxu0 %v3233
    %3427 = vmatmul.mubr.f32.gmra.mrb[0].mxu0 %v3151
    %v3428 = vpop.f32.mrb[0].mxu0
    %v3429 = vadd.f32 0.0, %v3428
    %v3430 = vpop.f32.mrb[0].mxu0
    %3431 = vmatprep.mubr.f32.mxu0 %v3236
    %3432 = vmatmul.mubr.f32.gmra.mrb[0].mxu0 %v3153
    %v3433 = vpop.f32.mrb[0].mxu0
    %v3434 = vadd.f32 0.0, %v3433
    %v3435 = vpop.f32.mrb[0].mxu0
    %3436 = vmatprep.mubr.f32.mxu0 %v3239
    %3437 = vmatmul.mubr.f32.gmra.mrb[0].mxu0 %v3155
    %v3438 = vpop.f32.mrb[0].mxu0
    %v3439 = vadd.f32 0.0, %v3438
    %v3440 = vpop.f32.mrb[0].mxu0
    %3441 = vmatprep.mubr.f32.mxu0 %v3242
    %3442 = vmatmul.mubr.f32.gmra.mrb[0].mxu0 %v3157
    %v3443 = vpop.f32.mrb[0].mxu0
    %v3444 = vadd.f32 0.0, %v3443
    %v3445 = vpop.f32.mrb[0].mxu0
    %3446 = vmatprep.mubr.f32.mxu0 %v3245
    %3447 = vmatmul.mubr.f32.gmra.mrb[0].mxu0 %v3159
    %v3448 = vpop.f32.mrb[0].mxu0
    %v3449 = vadd.f32 0.0, %v3448
    %v3450 = vpop.f32.mrb[0].mxu0
    %3451 = vmatprep.mubr.f32.mxu0 %v3248
    %3452 = vmatmul.mubr.f32.gmra.mrb[0].mxu0 %v3161
    %v3453 = vpop.f32.mrb[0].mxu0
    %v3454 = vadd.f32 0.0, %v3453
    %v3455 = vpop.f32.mrb[0].mxu0
    %3456 = vmatprep.mubr.f32.mxu0 %v3251
    %3457 = vmatmul.mubr.f32.gmra.mrb[0].mxu0 %v3163
    %v3458 = vpop.f32.mrb[0].mxu0
    %v3459 = vadd.f32 0.0, %v3458
    %v3460 = vpop.f32.mrb[0].mxu0
    %3461 = vmatprep.mubr.f32.mxu0 %v3254
    %3462 = vmatmul.mubr.f32.gmra.mrb[0].mxu0 %v3165
    %v3463 = vpop.f32.mrb[0].mxu0
    %v3464 = vadd.f32 0.0, %v3463
    %v3465 = vpop.f32.mrb[0].mxu0
    %3466 = vmatprep.mubr.f32.mxu0 %v3257
    %3467 = vmatmul.mubr.f32.gmra.mrb[0].mxu0 %v3167
    %v3468 = vpop.f32.mrb[0].mxu0
    %v3469 = vadd.f32 0.0, %v3468
    %v3470 = vpop.f32.mrb[0].mxu0
    %3471 = vmatprep.mubr.f32.mxu0 %v3260
    %3472 = vmatmul.mubr.f32.gmra.mrb[0].mxu0 %v3169
    %v3473 = vpop.f32.mrb[0].mxu0
    %v3474 = vadd.f32 0.0, %v3473
    %v3475 = vpop.f32.mrb[0].mxu0
    %3476 = vdwg.mxu0
    %v3477 = vld [vmem:[%s6] sm:$0xff]
    %v3478 = vld [vmem:[%s6 + $0x8] sm:$0xff]
    %v3479 = vld [vmem:[%s6 + $0x10] sm:$0xff]
    %v3480 = vld [vmem:[%s6 + $0x18] sm:$0xff]
    %v3481 = vld [vmem:[%s6 + $0x20] sm:$0xff]
    %v3482 = vld [vmem:[%s6 + $0x28] sm:$0xff]
    %v3483 = vld [vmem:[%s6 + $0x30] sm:$0xff]
    %v3484 = vld [vmem:[%s6 + $0x38] sm:$0xff]
    %v3485 = vld [vmem:[%s7] sm:$0x1]
    %v3487 = vlaneseq
    %v3488 = vshrl.u32 %v3487, 7
    %v3489 = vsub.s32 0, %v3488
    %v3490 = vrot.slane %v3485, %v3489
    %v3493 = vsel %vm95, %v3329, 0
    %v3496 = vsel %vm95, %v3334, 0
    %v3499 = vsel %vm95, %v3339, 0
    %v3502 = vsel %vm95, %v3344, 0
    %v3505 = vsel %vm95, %v3349, 0
    %v3508 = vsel %vm95, %v3354, 0
    %v3511 = vsel %vm95, %v3359, 0
    %v3514 = vsel %vm95, %v3364, 0
    %v3517 = vsel %vm95, %v3369, 0
    %v3520 = vsel %vm95, %v3374, 0
    %v3523 = vsel %vm95, %v3379, 0
    %v3526 = vsel %vm95, %v3384, 0
    %v3529 = vsel %vm95, %v3389, 0
    %v3532 = vsel %vm95, %v3394, 0
    %v3535 = vsel %vm95, %v3399, 0
    %v3538 = vsel %vm95, %v3404, 0
    %v3541 = vsel %vm95, %v3409, 0
    %v3544 = vsel %vm95, %v3414, 0
    %v3547 = vsel %vm95, %v3419, 0
    %v3550 = vsel %vm95, %v3424, 0
    %v3553 = vsel %vm95, %v3429, 0
    %v3556 = vsel %vm95, %v3434, 0
    %v3559 = vsel %vm95, %v3439, 0
    %v3562 = vsel %vm95, %v3444, 0
    %v3565 = vsel %vm95, %v3449, 0
    %v3568 = vsel %vm95, %v3454, 0
    %v3571 = vsel %vm95, %v3459, 0
    %v3574 = vsel %vm95, %v3464, 0
    %v3577 = vsel %vm95, %v3469, 0
    %v3580 = vsel %vm95, %v3474, 0
    %3582 = vmatprep.subr.mxu0 0.0
    %3583 = vmatpush1.msra.mxu0 %v3477
    %3584 = vmatprep.subr.mxu0 0.0
    %3585 = vmatpush1.msra.mxu0 %v3478
    %3586 = vmatprep.subr.mxu0 0.0
    %3587 = vmatpush1.msra.mxu0 %v3479
    %3588 = vmatprep.subr.mxu0 0.0
    %3589 = vmatpush1.msra.mxu0 %v3480
    %3590 = vmatprep.subr.mxu0 0.0
    %3591 = vmatpush1.msra.mxu0 %v3481
    %3592 = vmatprep.subr.mxu0 0.0
    %3593 = vmatpush1.msra.mxu0 %v3482
    %3594 = vmatprep.subr.mxu0 0.0
    %3595 = vmatpush1.msra.mxu0 %v3483
    %3596 = vmatprep.subr.mxu0 0.0
    %3597 = vmatpush1.msra.mxu0 %v3484
    %3598 = vmatprep.subr.mxu0 0.0
    %3599 = vmatpush1.msra.mxu0 0.0
    %3600 = vmatprep.subr.mxu0 0.0
    %3601 = vmatpush1.msra.mxu0 0.0
    %3602 = vmatprep.subr.mxu0 0.0
    %3603 = vmatpush1.msra.mxu0 0.0
    %3604 = vmatprep.subr.mxu0 0.0
    %3605 = vmatpush1.msra.mxu0 0.0
    %3606 = vmatprep.subr.mxu0 0.0
    %3607 = vmatpush1.msra.mxu0 0.0
    %3608 = vmatprep.subr.mxu0 0.0
    %3609 = vmatpush1.msra.mxu0 0.0
    %3610 = vmatprep.subr.mxu0 0.0
    %3611 = vmatpush1.msra.mxu0 0.0
    %3612 = vmatprep.subr.mxu0 0.0
    %3613 = vmatpush1.msra.mxu0 0.0
    %3614 = vmatprep.subr.mxu0 0.0
    %3615 = vmatpush1.msra.mxu0 0.0
    %3616 = vmatprep.subr.mxu0 0.0
    %3617 = vmatpush1.msra.mxu0 0.0
    %3618 = vmatprep.subr.mxu0 0.0
    %3619 = vmatpush1.msra.mxu0 0.0
    %3620 = vmatprep.subr.mxu0 0.0
    %3621 = vmatpush1.msra.mxu0 0.0
    %3622 = vmatprep.subr.mxu0 0.0
    %3623 = vmatpush1.msra.mxu0 0.0
    %3624 = vmatprep.subr.mxu0 0.0
    %3625 = vmatpush1.msra.mxu0 0.0
    %3626 = vmatprep.subr.mxu0 0.0
    %3627 = vmatpush1.msra.mxu0 0.0
    %3628 = vmatprep.subr.mxu0 0.0
    %3629 = vmatpush1.msra.mxu0 0.0
    %3630 = vmatprep.subr.mxu0 0.0
    %3631 = vmatpush1.msra.mxu0 0.0
    %3632 = vmatprep.subr.mxu0 0.0
    %3633 = vmatpush1.msra.mxu0 0.0
    %3634 = vmatprep.subr.mxu0 0.0
    %3635 = vmatpush1.msra.mxu0 0.0
    %3636 = vmatprep.subr.mxu0 0.0
    %3637 = vmatpush1.msra.mxu0 0.0
    %3638 = vmatprep.subr.mxu0 0.0
    %3639 = vmatpush1.msra.mxu0 0.0
    %3640 = vmatprep.subr.mxu0 0.0
    %3641 = vmatpush1.msra.mxu0 0.0
    %3642 = vmatprep.subr.mxu0 0.0
    %3643 = vmatpush1.msra.mxu0 0.0
    %3644 = vmatprep.subr.mxu0 0.0
    %3645 = vmatpush1.msra.mxu0 0.0
    %3646 = vmatprep.mubr.f32.mxu0 0.0
    %3647 = vmatmul.mubr.f32.gmra.mrb[0].mxu0 %v3493
    %v3648 = vpop.f32.mrb[0].mxu0
    %v3649 = vadd.f32 %v3490, %v3648
    %v3650 = vpop.f32.mrb[0].mxu0
    %3651 = vmatprep.mubr.f32.mxu0 0.0
    %3652 = vmatmul.mubr.f32.gmra.mrb[0].mxu0 %v3496
    %v3653 = vpop.f32.mrb[0].mxu0
    %v3654 = vadd.f32 %v3490, %v3653
    %v3655 = vpop.f32.mrb[0].mxu0
    %3656 = vmatprep.mubr.f32.mxu0 0.0
    %3657 = vmatmul.mubr.f32.gmra.mrb[0].mxu0 %v3499
    %v3658 = vpop.f32.mrb[0].mxu0
    %v3659 = vadd.f32 %v3490, %v3658
    %v3660 = vpop.f32.mrb[0].mxu0
    %3661 = vmatprep.mubr.f32.mxu0 0.0
    %3662 = vmatmul.mubr.f32.gmra.mrb[0].mxu0 %v3502
    %v3663 = vpop.f32.mrb[0].mxu0
    %v3664 = vadd.f32 %v3490, %v3663
    %v3665 = vpop.f32.mrb[0].mxu0
    %3666 = vmatprep.mubr.f32.mxu0 0.0
    %3667 = vmatmul.mubr.f32.gmra.mrb[0].mxu0 %v3505
    %v3668 = vpop.f32.mrb[0].mxu0
    %v3669 = vadd.f32 %v3490, %v3668
    %v3670 = vpop.f32.mrb[0].mxu0
    %3671 = vmatprep.mubr.f32.mxu0 0.0
    %3672 = vmatmul.mubr.f32.gmra.mrb[0].mxu0 %v3508
    %v3673 = vpop.f32.mrb[0].mxu0
    %v3674 = vadd.f32 %v3490, %v3673
    %v3675 = vpop.f32.mrb[0].mxu0
    %3676 = vmatprep.mubr.f32.mxu0 0.0
    %3677 = vmatmul.mubr.f32.gmra.mrb[0].mxu0 %v3511
    %v3678 = vpop.f32.mrb[0].mxu0
    %v3679 = vadd.f32 %v3490, %v3678
    %v3680 = vpop.f32.mrb[0].mxu0
    %3681 = vmatprep.mubr.f32.mxu0 0.0
    %3682 = vmatmul.mubr.f32.gmra.mrb[0].mxu0 %v3514
    %v3683 = vpop.f32.mrb[0].mxu0
    %v3684 = vadd.f32 %v3490, %v3683
    %v3685 = vpop.f32.mrb[0].mxu0
    %3686 = vmatprep.mubr.f32.mxu0 0.0
    %3687 = vmatmul.mubr.f32.gmra.mrb[0].mxu0 %v3517
    %v3688 = vpop.f32.mrb[0].mxu0
    %v3689 = vadd.f32 %v3490, %v3688
    %v3690 = vpop.f32.mrb[0].mxu0
    %3691 = vmatprep.mubr.f32.mxu0 0.0
    %3692 = vmatmul.mubr.f32.gmra.mrb[0].mxu0 %v3520
    %v3693 = vpop.f32.mrb[0].mxu0
    %v3694 = vadd.f32 %v3490, %v3693
    %v3695 = vpop.f32.mrb[0].mxu0
    %3696 = vmatprep.mubr.f32.mxu0 0.0
    %3697 = vmatmul.mubr.f32.gmra.mrb[0].mxu0 %v3523
    %v3698 = vpop.f32.mrb[0].mxu0
    %v3699 = vadd.f32 %v3490, %v3698
    %v3700 = vpop.f32.mrb[0].mxu0
    %3701 = vmatprep.mubr.f32.mxu0 0.0
    %3702 = vmatmul.mubr.f32.gmra.mrb[0].mxu0 %v3526
    %v3703 = vpop.f32.mrb[0].mxu0
    %v3704 = vadd.f32 %v3490, %v3703
    %v3705 = vpop.f32.mrb[0].mxu0
    %3706 = vmatprep.mubr.f32.mxu0 0.0
    %3707 = vmatmul.mubr.f32.gmra.mrb[0].mxu0 %v3529
    %v3708 = vpop.f32.mrb[0].mxu0
    %v3709 = vadd.f32 %v3490, %v3708
    %v3710 = vpop.f32.mrb[0].mxu0
    %3711 = vmatprep.mubr.f32.mxu0 0.0
    %3712 = vmatmul.mubr.f32.gmra.mrb[0].mxu0 %v3532
    %v3713 = vpop.f32.mrb[0].mxu0
    %v3714 = vadd.f32 %v3490, %v3713
    %v3715 = vpop.f32.mrb[0].mxu0
    %3716 = vmatprep.mubr.f32.mxu0 0.0
    %3717 = vmatmul.mubr.f32.gmra.mrb[0].mxu0 %v3535
    %v3718 = vpop.f32.mrb[0].mxu0
    %v3719 = vadd.f32 %v3490, %v3718
    %v3720 = vpop.f32.mrb[0].mxu0
    %3721 = vmatprep.mubr.f32.mxu0 0.0
    %3722 = vmatmul.mubr.f32.gmra.mrb[0].mxu0 %v3538
    %v3723 = vpop.f32.mrb[0].mxu0
    %v3724 = vadd.f32 %v3490, %v3723
    %v3725 = vpop.f32.mrb[0].mxu0
    %3726 = vmatprep.mubr.f32.mxu0 0.0
    %3727 = vmatmul.mubr.f32.gmra.mrb[0].mxu0 %v3541
    %v3728 = vpop.f32.mrb[0].mxu0
    %v3729 = vadd.f32 %v3490, %v3728
    %v3730 = vpop.f32.mrb[0].mxu0
    %3731 = vmatprep.mubr.f32.mxu0 0.0
    %3732 = vmatmul.mubr.f32.gmra.mrb[0].mxu0 %v3544
    %v3733 = vpop.f32.mrb[0].mxu0
    %v3734 = vadd.f32 %v3490, %v3733
    %v3735 = vpop.f32.mrb[0].mxu0
    %3736 = vmatprep.mubr.f32.mxu0 0.0
    %3737 = vmatmul.mubr.f32.gmra.mrb[0].mxu0 %v3547
    %v3738 = vpop.f32.mrb[0].mxu0
    %v3739 = vadd.f32 %v3490, %v3738
    %v3740 = vpop.f32.mrb[0].mxu0
    %3741 = vmatprep.mubr.f32.mxu0 0.0
    %3742 = vmatmul.mubr.f32.gmra.mrb[0].mxu0 %v3550
    %v3743 = vpop.f32.mrb[0].mxu0
    %v3744 = vadd.f32 %v3490, %v3743
    %v3745 = vpop.f32.mrb[0].mxu0
    %3746 = vmatprep.mubr.f32.mxu0 0.0
    %3747 = vmatmul.mubr.f32.gmra.mrb[0].mxu0 %v3553
    %v3748 = vpop.f32.mrb[0].mxu0
    %v3749 = vadd.f32 %v3490, %v3748
    %v3750 = vpop.f32.mrb[0].mxu0
    %3751 = vmatprep.mubr.f32.mxu0 0.0
    %3752 = vmatmul.mubr.f32.gmra.mrb[0].mxu0 %v3556
    %v3753 = vpop.f32.mrb[0].mxu0
    %v3754 = vadd.f32 %v3490, %v3753
    %v3755 = vpop.f32.mrb[0].mxu0
    %3756 = vmatprep.mubr.f32.mxu0 0.0
    %3757 = vmatmul.mubr.f32.gmra.mrb[0].mxu0 %v3559
    %v3758 = vpop.f32.mrb[0].mxu0
    %v3759 = vadd.f32 %v3490, %v3758
    %v3760 = vpop.f32.mrb[0].mxu0
    %3761 = vmatprep.mubr.f32.mxu0 0.0
    %3762 = vmatmul.mubr.f32.gmra.mrb[0].mxu0 %v3562
    %v3763 = vpop.f32.mrb[0].mxu0
    %v3764 = vadd.f32 %v3490, %v3763
    %v3765 = vpop.f32.mrb[0].mxu0
    %3766 = vmatprep.mubr.f32.mxu0 0.0
    %3767 = vmatmul.mubr.f32.gmra.mrb[0].mxu0 %v3565
    %v3768 = vpop.f32.mrb[0].mxu0
    %v3769 = vadd.f32 %v3490, %v3768
    %v3770 = vpop.f32.mrb[0].mxu0
    %3771 = vmatprep.mubr.f32.mxu0 0.0
    %3772 = vmatmul.mubr.f32.gmra.mrb[0].mxu0 %v3568
    %v3773 = vpop.f32.mrb[0].mxu0
    %v3774 = vadd.f32 %v3490, %v3773
    %v3775 = vpop.f32.mrb[0].mxu0
    %3776 = vmatprep.mubr.f32.mxu0 0.0
    %3777 = vmatmul.mubr.f32.gmra.mrb[0].mxu0 %v3571
    %v3778 = vpop.f32.mrb[0].mxu0
    %v3779 = vadd.f32 %v3490, %v3778
    %v3780 = vpop.f32.mrb[0].mxu0
    %3781 = vmatprep.mubr.f32.mxu0 0.0
    %3782 = vmatmul.mubr.f32.gmra.mrb[0].mxu0 %v3574
    %v3783 = vpop.f32.mrb[0].mxu0
    %v3784 = vadd.f32 %v3490, %v3783
    %v3785 = vpop.f32.mrb[0].mxu0
    %3786 = vmatprep.mubr.f32.mxu0 0.0
    %3787 = vmatmul.mubr.f32.gmra.mrb[0].mxu0 %v3577
    %v3788 = vpop.f32.mrb[0].mxu0
    %v3789 = vadd.f32 %v3490, %v3788
    %v3790 = vpop.f32.mrb[0].mxu0
    %3791 = vmatprep.mubr.f32.mxu0 0.0
    %3792 = vmatmul.mubr.f32.gmra.mrb[0].mxu0 %v3580
    %v3793 = vpop.f32.mrb[0].mxu0
    %v3794 = vadd.f32 %v3490, %v3793
    %v3795 = vpop.f32.mrb[0].mxu0
    %3796 = vdwg.mxu0
    %v3797 = vmax.f32 %v3649, 0.0
    %v3798 = vmax.f32 %v3654, 0.0
    %v3799 = vmax.f32 %v3659, 0.0
    %v3800 = vmax.f32 %v3664, 0.0
    %v3801 = vmax.f32 %v3669, 0.0
    %v3802 = vmax.f32 %v3674, 0.0
    %v3803 = vmax.f32 %v3679, 0.0
    %v3804 = vmax.f32 %v3684, 0.0
    %v3805 = vmax.f32 %v3689, 0.0
    %v3806 = vmax.f32 %v3694, 0.0
    %v3807 = vmax.f32 %v3699, 0.0
    %v3808 = vmax.f32 %v3704, 0.0
    %v3809 = vmax.f32 %v3709, 0.0
    %v3810 = vmax.f32 %v3714, 0.0
    %v3811 = vmax.f32 %v3719, 0.0
    %v3812 = vmax.f32 %v3724, 0.0
    %v3813 = vmax.f32 %v3729, 0.0
    %v3814 = vmax.f32 %v3734, 0.0
    %v3815 = vmax.f32 %v3739, 0.0
    %v3816 = vmax.f32 %v3744, 0.0
    %v3817 = vmax.f32 %v3749, 0.0
    %v3818 = vmax.f32 %v3754, 0.0
    %v3819 = vmax.f32 %v3759, 0.0
    %v3820 = vmax.f32 %v3764, 0.0
    %v3821 = vmax.f32 %v3769, 0.0
    %v3822 = vmax.f32 %v3774, 0.0
    %v3823 = vmax.f32 %v3779, 0.0
    %v3824 = vmax.f32 %v3784, 0.0
    %v3825 = vmax.f32 %v3789, 0.0
    %v3826 = vmax.f32 %v3794, 0.0
    %v3827 = vld [vmem:[%s8] sm:$0xff]
    %v3828 = vld [vmem:[%s8 + $0x8] sm:$0xff]
    %v3829 = vld [vmem:[%s8 + $0x10] sm:$0xff]
    %v3830 = vld [vmem:[%s8 + $0x18] sm:$0xff]
    %v3831 = vld [vmem:[%s8 + $0x20] sm:$0xff]
    %v3832 = vld [vmem:[%s8 + $0x28] sm:$0xff]
    %v3833 = vld [vmem:[%s8 + $0x30] sm:$0xff]
    %v3834 = vld [vmem:[%s8 + $0x38] sm:$0xff]
    %v3835 = vld [vmem:[%s8 + $0x40] sm:$0xff]
    %v3836 = vld [vmem:[%s8 + $0x48] sm:$0xff]
    %v3837 = vld [vmem:[%s8 + $0x50] sm:$0xff]
    %v3838 = vld [vmem:[%s8 + $0x58] sm:$0xff]
    %v3839 = vld [vmem:[%s8 + $0x60] sm:$0xff]
    %v3840 = vld [vmem:[%s8 + $0x68] sm:$0xff]
    %v3841 = vld [vmem:[%s8 + $0x70] sm:$0xff]
    %v3842 = vld [vmem:[%s8 + $0x78] sm:$0xff]
    %vm3843 = vcmask 261120
    %v3845 = vsel %vm3843, %v3800, 0
    %v3848 = vsel %vm3843, %v3801, 0
    %v3851 = vsel %vm3843, %v3802, 0
    %3853 = vmatprep.subr.mxu0 %v3836
    %3854 = vmatpush1.msra.mxu0 %v3835
    %3855 = vmatprep.subr.mxu0 %v3838
    %3856 = vmatpush1.msra.mxu0 %v3837
    %3857 = vmatprep.subr.mxu0 %v3840
    %3858 = vmatpush1.msra.mxu0 %v3839
    %3859 = vmatprep.subr.mxu0 %v3842
    %3860 = vmatpush1.msra.mxu0 %v3841
    %3861 = vmatprep.subr.mxu0 0.0
    %3862 = vmatpush1.msra.mxu0 0.0
    %3863 = vmatprep.subr.mxu0 0.0
    %3864 = vmatpush1.msra.mxu0 0.0
    %3865 = vmatprep.subr.mxu0 0.0
    %3866 = vmatpush1.msra.mxu0 0.0
    %3867 = vmatprep.subr.mxu0 0.0
    %3868 = vmatpush1.msra.mxu0 0.0
    %3869 = vmatprep.subr.mxu0 0.0
    %3870 = vmatpush1.msra.mxu0 0.0
    %3871 = vmatprep.subr.mxu0 0.0
    %3872 = vmatpush1.msra.mxu0 0.0
    %3873 = vmatprep.subr.mxu0 0.0
    %3874 = vmatpush1.msra.mxu0 0.0
    %3875 = vmatprep.subr.mxu0 0.0
    %3876 = vmatpush1.msra.mxu0 0.0
    %3877 = vmatprep.subr.mxu0 0.0
    %3878 = vmatpush1.msra.mxu0 0.0
    %3879 = vmatprep.subr.mxu0 0.0
    %3880 = vmatpush1.msra.mxu0 0.0
    %3881 = vmatprep.subr.mxu0 0.0
    %3882 = vmatpush1.msra.mxu0 0.0
    %3883 = vmatprep.subr.mxu0 0.0
    %3884 = vmatpush1.msra.mxu0 0.0
    %3885 = vmatprep.subr.mxu0 0.0
    %3886 = vmatpush1.msra.mxu0 0.0
    %3887 = vmatprep.subr.mxu0 0.0
    %3888 = vmatpush1.msra.mxu0 0.0
    %3889 = vmatprep.subr.mxu0 0.0
    %3890 = vmatpush1.msra.mxu0 0.0
    %3891 = vmatprep.subr.mxu0 0.0
    %3892 = vmatpush1.msra.mxu0 0.0
    %3893 = vmatprep.subr.mxu0 0.0
    %3894 = vmatpush1.msra.mxu0 0.0
    %3895 = vmatprep.subr.mxu0 0.0
    %3896 = vmatpush1.msra.mxu0 0.0
    %3897 = vmatprep.subr.mxu0 0.0
    %3898 = vmatpush1.msra.mxu0 0.0
    %3899 = vmatprep.subr.mxu0 0.0
    %3900 = vmatpush1.msra.mxu0 0.0
    %3901 = vmatprep.subr.mxu0 0.0
    %3902 = vmatpush1.msra.mxu0 0.0
    %3903 = vmatprep.subr.mxu0 0.0
    %3904 = vmatpush1.msra.mxu0 0.0
    %3905 = vmatprep.subr.mxu0 0.0
    %3906 = vmatpush1.msra.mxu0 0.0
    %3907 = vmatprep.subr.mxu0 0.0
    %3908 = vmatpush1.msra.mxu0 0.0
    %3909 = vmatprep.subr.mxu0 0.0
    %3910 = vmatpush1.msra.mxu0 0.0
    %3911 = vmatprep.subr.mxu0 0.0
    %3912 = vmatpush1.msra.mxu0 0.0
    %3913 = vmatprep.subr.mxu0 0.0
    %3914 = vmatpush1.msra.mxu0 0.0
    %3915 = vmatprep.subr.mxu0 0.0
    %3916 = vmatpush1.msra.mxu0 0.0
    %3917 = vmatprep.mubr.f32.mxu0 0.0
    %3918 = vmatmul.mubr.f32.gmra.mrb[0].mxu0 %v3845
    %v3919 = vpop.f32.mrb[0].mxu0
    %v3920 = vadd.f32 0.0, %v3919
    %v3921 = vpop.f32.mrb[0].mxu0
    %v3922 = vadd.f32 0.0, %v3921
    %3923 = vmatprep.mubr.f32.mxu0 0.0
    %3924 = vmatmul.mubr.f32.gmra.mrb[0].mxu0 %v3848
    %v3925 = vpop.f32.mrb[0].mxu0
    %v3926 = vadd.f32 0.0, %v3925
    %v3927 = vpop.f32.mrb[0].mxu0
    %v3928 = vadd.f32 0.0, %v3927
    %3929 = vmatprep.mubr.f32.mxu0 0.0
    %3930 = vmatmul.mubr.f32.gmra.mrb[0].mxu0 %v3851
    %v3931 = vpop.f32.mrb[0].mxu0
    %v3932 = vadd.f32 0.0, %v3931
    %v3933 = vpop.f32.mrb[0].mxu0
    %v3934 = vadd.f32 0.0, %v3933
    %3935 = vdwg.mxu0
    %v3937 = vsel %vm3843, %v3797, 0
    %v3940 = vsel %vm3843, %v3798, 0
    %v3943 = vsel %vm3843, %v3799, 0
    %3945 = vmatprep.subr.mxu0 %v3828
    %3946 = vmatpush1.msra.mxu0 %v3827
    %3947 = vmatprep.subr.mxu0 %v3830
    %3948 = vmatpush1.msra.mxu0 %v3829
    %3949 = vmatprep.subr.mxu0 %v3832
    %3950 = vmatpush1.msra.mxu0 %v3831
    %3951 = vmatprep.subr.mxu0 %v3834
    %3952 = vmatpush1.msra.mxu0 %v3833
    %3953 = vmatprep.subr.mxu0 0.0
    %3954 = vmatpush1.msra.mxu0 0.0
    %3955 = vmatprep.subr.mxu0 0.0
    %3956 = vmatpush1.msra.mxu0 0.0
    %3957 = vmatprep.subr.mxu0 0.0
    %3958 = vmatpush1.msra.mxu0 0.0
    %3959 = vmatprep.subr.mxu0 0.0
    %3960 = vmatpush1.msra.mxu0 0.0
    %3961 = vmatprep.subr.mxu0 0.0
    %3962 = vmatpush1.msra.mxu0 0.0
    %3963 = vmatprep.subr.mxu0 0.0
    %3964 = vmatpush1.msra.mxu0 0.0
    %3965 = vmatprep.subr.mxu0 0.0
    %3966 = vmatpush1.msra.mxu0 0.0
    %3967 = vmatprep.subr.mxu0 0.0
    %3968 = vmatpush1.msra.mxu0 0.0
    %3969 = vmatprep.subr.mxu0 0.0
    %3970 = vmatpush1.msra.mxu0 0.0
    %3971 = vmatprep.subr.mxu0 0.0
    %3972 = vmatpush1.msra.mxu0 0.0
    %3973 = vmatprep.subr.mxu0 0.0
    %3974 = vmatpush1.msra.mxu0 0.0
    %3975 = vmatprep.subr.mxu0 0.0
    %3976 = vmatpush1.msra.mxu0 0.0
    %3977 = vmatprep.subr.mxu0 0.0
    %3978 = vmatpush1.msra.mxu0 0.0
    %3979 = vmatprep.subr.mxu0 0.0
    %3980 = vmatpush1.msra.mxu0 0.0
    %3981 = vmatprep.subr.mxu0 0.0
    %3982 = vmatpush1.msra.mxu0 0.0
    %3983 = vmatprep.subr.mxu0 0.0
    %3984 = vmatpush1.msra.mxu0 0.0
    %3985 = vmatprep.subr.mxu0 0.0
    %3986 = vmatpush1.msra.mxu0 0.0
    %3987 = vmatprep.subr.mxu0 0.0
    %3988 = vmatpush1.msra.mxu0 0.0
    %3989 = vmatprep.subr.mxu0 0.0
    %3990 = vmatpush1.msra.mxu0 0.0
    %3991 = vmatprep.subr.mxu0 0.0
    %3992 = vmatpush1.msra.mxu0 0.0
    %3993 = vmatprep.subr.mxu0 0.0
    %3994 = vmatpush1.msra.mxu0 0.0
    %3995 = vmatprep.subr.mxu0 0.0
    %3996 = vmatpush1.msra.mxu0 0.0
    %3997 = vmatprep.subr.mxu0 0.0
    %3998 = vmatpush1.msra.mxu0 0.0
    %3999 = vmatprep.subr.mxu0 0.0
    %4000 = vmatpush1.msra.mxu0 0.0
    %4001 = vmatprep.subr.mxu0 0.0
    %4002 = vmatpush1.msra.mxu0 0.0
    %4003 = vmatprep.subr.mxu0 0.0
    %4004 = vmatpush1.msra.mxu0 0.0
    %4005 = vmatprep.subr.mxu0 0.0
    %4006 = vmatpush1.msra.mxu0 0.0
    %4007 = vmatprep.subr.mxu0 0.0
    %4008 = vmatpush1.msra.mxu0 0.0
    %4009 = vmatprep.mubr.f32.mxu0 0.0
    %4010 = vmatmul.mubr.f32.gmra.mrb[0].mxu0 %v3937
    %v4011 = vpop.f32.mrb[0].mxu0
    %v4012 = vadd.f32 %v3920, %v4011
    %v4013 = vpop.f32.mrb[0].mxu0
    %v4014 = vadd.f32 %v3922, %v4013
    %4015 = vmatprep.mubr.f32.mxu0 0.0
    %4016 = vmatmul.mubr.f32.gmra.mrb[0].mxu0 %v3940
    %v4017 = vpop.f32.mrb[0].mxu0
    %v4018 = vadd.f32 %v3926, %v4017
    %v4019 = vpop.f32.mrb[0].mxu0
    %v4020 = vadd.f32 %v3928, %v4019
    %4021 = vmatprep.mubr.f32.mxu0 0.0
    %4022 = vmatmul.mubr.f32.gmra.mrb[0].mxu0 %v3943
    %v4023 = vpop.f32.mrb[0].mxu0
    %v4024 = vadd.f32 %v3932, %v4023
    %v4025 = vpop.f32.mrb[0].mxu0
    %v4026 = vadd.f32 %v3934, %v4025
    %4027 = vdwg.mxu0
    %v4028 = vld [vmem:[%s8 + $0x80] sm:$0xff]
    %v4029 = vld [vmem:[%s8 + $0x88] sm:$0xff]
    %v4030 = vld [vmem:[%s8 + $0x90] sm:$0xff]
    %v4031 = vld [vmem:[%s8 + $0x98] sm:$0xff]
    %v4032 = vld [vmem:[%s8 + $0xa0] sm:$0xff]
    %v4033 = vld [vmem:[%s8 + $0xa8] sm:$0xff]
    %v4034 = vld [vmem:[%s8 + $0xb0] sm:$0xff]
    %v4035 = vld [vmem:[%s8 + $0xb8] sm:$0xff]
    %v4037 = vsel %vm3843, %v3803, 0
    %v4040 = vsel %vm3843, %v3804, 0
    %v4043 = vsel %vm3843, %v3805, 0
    %4045 = vmatprep.subr.mxu0 %v4029
    %4046 = vmatpush1.msra.mxu0 %v4028
    %4047 = vmatprep.subr.mxu0 %v4031
    %4048 = vmatpush1.msra.mxu0 %v4030
    %4049 = vmatprep.subr.mxu0 %v4033
    %4050 = vmatpush1.msra.mxu0 %v4032
    %4051 = vmatprep.subr.mxu0 %v4035
    %4052 = vmatpush1.msra.mxu0 %v4034
    %4053 = vmatprep.subr.mxu0 0.0
    %4054 = vmatpush1.msra.mxu0 0.0
    %4055 = vmatprep.subr.mxu0 0.0
    %4056 = vmatpush1.msra.mxu0 0.0
    %4057 = vmatprep.subr.mxu0 0.0
    %4058 = vmatpush1.msra.mxu0 0.0
    %4059 = vmatprep.subr.mxu0 0.0
    %4060 = vmatpush1.msra.mxu0 0.0
    %4061 = vmatprep.subr.mxu0 0.0
    %4062 = vmatpush1.msra.mxu0 0.0
    %4063 = vmatprep.subr.mxu0 0.0
    %4064 = vmatpush1.msra.mxu0 0.0
    %4065 = vmatprep.subr.mxu0 0.0
    %4066 = vmatpush1.msra.mxu0 0.0
    %4067 = vmatprep.subr.mxu0 0.0
    %4068 = vmatpush1.msra.mxu0 0.0
    %4069 = vmatprep.subr.mxu0 0.0
    %4070 = vmatpush1.msra.mxu0 0.0
    %4071 = vmatprep.subr.mxu0 0.0
    %4072 = vmatpush1.msra.mxu0 0.0
    %4073 = vmatprep.subr.mxu0 0.0
    %4074 = vmatpush1.msra.mxu0 0.0
    %4075 = vmatprep.subr.mxu0 0.0
    %4076 = vmatpush1.msra.mxu0 0.0
    %4077 = vmatprep.subr.mxu0 0.0
    %4078 = vmatpush1.msra.mxu0 0.0
    %4079 = vmatprep.subr.mxu0 0.0
    %4080 = vmatpush1.msra.mxu0 0.0
    %4081 = vmatprep.subr.mxu0 0.0
    %4082 = vmatpush1.msra.mxu0 0.0
    %4083 = vmatprep.subr.mxu0 0.0
    %4084 = vmatpush1.msra.mxu0 0.0
    %4085 = vmatprep.subr.mxu0 0.0
    %4086 = vmatpush1.msra.mxu0 0.0
    %4087 = vmatprep.subr.mxu0 0.0
    %4088 = vmatpush1.msra.mxu0 0.0
    %4089 = vmatprep.subr.mxu0 0.0
    %4090 = vmatpush1.msra.mxu0 0.0
    %4091 = vmatprep.subr.mxu0 0.0
    %4092 = vmatpush1.msra.mxu0 0.0
    %4093 = vmatprep.subr.mxu0 0.0
    %4094 = vmatpush1.msra.mxu0 0.0
    %4095 = vmatprep.subr.mxu0 0.0
    %4096 = vmatpush1.msra.mxu0 0.0
    %4097 = vmatprep.subr.mxu0 0.0
    %4098 = vmatpush1.msra.mxu0 0.0
    %4099 = vmatprep.subr.mxu0 0.0
    %4100 = vmatpush1.msra.mxu0 0.0
    %4101 = vmatprep.subr.mxu0 0.0
    %4102 = vmatpush1.msra.mxu0 0.0
    %4103 = vmatprep.subr.mxu0 0.0
    %4104 = vmatpush1.msra.mxu0 0.0
    %4105 = vmatprep.subr.mxu0 0.0
    %4106 = vmatpush1.msra.mxu0 0.0
    %4107 = vmatprep.subr.mxu0 0.0
    %4108 = vmatpush1.msra.mxu0 0.0
    %4109 = vmatprep.mubr.f32.mxu0 0.0
    %4110 = vmatmul.mubr.f32.gmra.mrb[0].mxu0 %v4037
    %v4111 = vpop.f32.mrb[0].mxu0
    %v4112 = vadd.f32 0.0, %v4111
    %v4113 = vpop.f32.mrb[0].mxu0
    %v4114 = vadd.f32 0.0, %v4113
    %4115 = vmatprep.mubr.f32.mxu0 0.0
    %4116 = vmatmul.mubr.f32.gmra.mrb[0].mxu0 %v4040
    %v4117 = vpop.f32.mrb[0].mxu0
    %v4118 = vadd.f32 0.0, %v4117
    %v4119 = vpop.f32.mrb[0].mxu0
    %v4120 = vadd.f32 0.0, %v4119
    %4121 = vmatprep.mubr.f32.mxu0 0.0
    %4122 = vmatmul.mubr.f32.gmra.mrb[0].mxu0 %v4043
    %v4123 = vpop.f32.mrb[0].mxu0
    %v4124 = vadd.f32 0.0, %v4123
    %v4125 = vpop.f32.mrb[0].mxu0
    %v4126 = vadd.f32 0.0, %v4125
    %4127 = vdwg.mxu0
    %v4128 = vadd.f32 %v4012, %v4112
    %v4129 = vadd.f32 %v4014, %v4114
    %v4130 = vadd.f32 %v4018, %v4118
    %v4131 = vadd.f32 %v4020, %v4120
    %v4132 = vadd.f32 %v4024, %v4124
    %v4133 = vadd.f32 %v4026, %v4126
    %v4134 = vld [vmem:[%s8 + $0xc0] sm:$0xff]
    %v4135 = vld [vmem:[%s8 + $0xc8] sm:$0xff]
    %v4136 = vld [vmem:[%s8 + $0xd0] sm:$0xff]
    %v4137 = vld [vmem:[%s8 + $0xd8] sm:$0xff]
    %v4138 = vld [vmem:[%s8 + $0xe0] sm:$0xff]
    %v4139 = vld [vmem:[%s8 + $0xe8] sm:$0xff]
    %v4140 = vld [vmem:[%s8 + $0xf0] sm:$0xff]
    %v4141 = vld [vmem:[%s8 + $0xf8] sm:$0xff]
    %v4143 = vsel %vm3843, %v3806, 0
    %v4146 = vsel %vm3843, %v3807, 0
    %v4149 = vsel %vm3843, %v3808, 0
    %4151 = vmatprep.subr.mxu0 %v4135
    %4152 = vmatpush1.msra.mxu0 %v4134
    %4153 = vmatprep.subr.mxu0 %v4137
    %4154 = vmatpush1.msra.mxu0 %v4136
    %4155 = vmatprep.subr.mxu0 %v4139
    %4156 = vmatpush1.msra.mxu0 %v4138
    %4157 = vmatprep.subr.mxu0 %v4141
    %4158 = vmatpush1.msra.mxu0 %v4140
    %4159 = vmatprep.subr.mxu0 0.0
    %4160 = vmatpush1.msra.mxu0 0.0
    %4161 = vmatprep.subr.mxu0 0.0
    %4162 = vmatpush1.msra.mxu0 0.0
    %4163 = vmatprep.subr.mxu0 0.0
    %4164 = vmatpush1.msra.mxu0 0.0
    %4165 = vmatprep.subr.mxu0 0.0
    %4166 = vmatpush1.msra.mxu0 0.0
    %4167 = vmatprep.subr.mxu0 0.0
    %4168 = vmatpush1.msra.mxu0 0.0
    %4169 = vmatprep.subr.mxu0 0.0
    %4170 = vmatpush1.msra.mxu0 0.0
    %4171 = vmatprep.subr.mxu0 0.0
    %4172 = vmatpush1.msra.mxu0 0.0
    %4173 = vmatprep.subr.mxu0 0.0
    %4174 = vmatpush1.msra.mxu0 0.0
    %4175 = vmatprep.subr.mxu0 0.0
    %4176 = vmatpush1.msra.mxu0 0.0
    %4177 = vmatprep.subr.mxu0 0.0
    %4178 = vmatpush1.msra.mxu0 0.0
    %4179 = vmatprep.subr.mxu0 0.0
    %4180 = vmatpush1.msra.mxu0 0.0
    %4181 = vmatprep.subr.mxu0 0.0
    %4182 = vmatpush1.msra.mxu0 0.0
    %4183 = vmatprep.subr.mxu0 0.0
    %4184 = vmatpush1.msra.mxu0 0.0
    %4185 = vmatprep.subr.mxu0 0.0
    %4186 = vmatpush1.msra.mxu0 0.0
    %4187 = vmatprep.subr.mxu0 0.0
    %4188 = vmatpush1.msra.mxu0 0.0
    %4189 = vmatprep.subr.mxu0 0.0
    %4190 = vmatpush1.msra.mxu0 0.0
    %4191 = vmatprep.subr.mxu0 0.0
    %4192 = vmatpush1.msra.mxu0 0.0
    %4193 = vmatprep.subr.mxu0 0.0
    %4194 = vmatpush1.msra.mxu0 0.0
    %4195 = vmatprep.subr.mxu0 0.0
    %4196 = vmatpush1.msra.mxu0 0.0
    %4197 = vmatprep.subr.mxu0 0.0
    %4198 = vmatpush1.msra.mxu0 0.0
    %4199 = vmatprep.subr.mxu0 0.0
    %4200 = vmatpush1.msra.mxu0 0.0
    %4201 = vmatprep.subr.mxu0 0.0
    %4202 = vmatpush1.msra.mxu0 0.0
    %4203 = vmatprep.subr.mxu0 0.0
    %4204 = vmatpush1.msra.mxu0 0.0
    %4205 = vmatprep.subr.mxu0 0.0
    %4206 = vmatpush1.msra.mxu0 0.0
    %4207 = vmatprep.subr.mxu0 0.0
    %4208 = vmatpush1.msra.mxu0 0.0
    %4209 = vmatprep.subr.mxu0 0.0
    %4210 = vmatpush1.msra.mxu0 0.0
    %4211 = vmatprep.subr.mxu0 0.0
    %4212 = vmatpush1.msra.mxu0 0.0
    %4213 = vmatprep.subr.mxu0 0.0
    %4214 = vmatpush1.msra.mxu0 0.0
    %4215 = vmatprep.mubr.f32.mxu0 0.0
    %4216 = vmatmul.mubr.f32.gmra.mrb[0].mxu0 %v4143
    %v4217 = vpop.f32.mrb[0].mxu0
    %v4218 = vadd.f32 0.0, %v4217
    %v4219 = vpop.f32.mrb[0].mxu0
    %v4220 = vadd.f32 0.0, %v4219
    %4221 = vmatprep.mubr.f32.mxu0 0.0
    %4222 = vmatmul.mubr.f32.gmra.mrb[0].mxu0 %v4146
    %v4223 = vpop.f32.mrb[0].mxu0
    %v4224 = vadd.f32 0.0, %v4223
    %v4225 = vpop.f32.mrb[0].mxu0
    %v4226 = vadd.f32 0.0, %v4225
    %4227 = vmatprep.mubr.f32.mxu0 0.0
    %4228 = vmatmul.mubr.f32.gmra.mrb[0].mxu0 %v4149
    %v4229 = vpop.f32.mrb[0].mxu0
    %v4230 = vadd.f32 0.0, %v4229
    %v4231 = vpop.f32.mrb[0].mxu0
    %v4232 = vadd.f32 0.0, %v4231
    %4233 = vdwg.mxu0
    %v4234 = vadd.f32 %v4128, %v4218
    %v4235 = vadd.f32 %v4129, %v4220
    %v4236 = vadd.f32 %v4130, %v4224
    %v4237 = vadd.f32 %v4131, %v4226
    %v4238 = vadd.f32 %v4132, %v4230
    %v4239 = vadd.f32 %v4133, %v4232
    %v4240 = vld [vmem:[%s8 + $0x100] sm:$0xff]
    %v4241 = vld [vmem:[%s8 + $0x108] sm:$0xff]
    %v4242 = vld [vmem:[%s8 + $0x110] sm:$0xff]
    %v4243 = vld [vmem:[%s8 + $0x118] sm:$0xff]
    %v4244 = vld [vmem:[%s8 + $0x120] sm:$0xff]
    %v4245 = vld [vmem:[%s8 + $0x128] sm:$0xff]
    %v4246 = vld [vmem:[%s8 + $0x130] sm:$0xff]
    %v4247 = vld [vmem:[%s8 + $0x138] sm:$0xff]
    %v4249 = vsel %vm3843, %v3809, 0
    %v4252 = vsel %vm3843, %v3810, 0
    %v4255 = vsel %vm3843, %v3811, 0
    %4257 = vmatprep.subr.mxu0 %v4241
    %4258 = vmatpush1.msra.mxu0 %v4240
    %4259 = vmatprep.subr.mxu0 %v4243
    %4260 = vmatpush1.msra.mxu0 %v4242
    %4261 = vmatprep.subr.mxu0 %v4245
    %4262 = vmatpush1.msra.mxu0 %v4244
    %4263 = vmatprep.subr.mxu0 %v4247
    %4264 = vmatpush1.msra.mxu0 %v4246
    %4265 = vmatprep.subr.mxu0 0.0
    %4266 = vmatpush1.msra.mxu0 0.0
    %4267 = vmatprep.subr.mxu0 0.0
    %4268 = vmatpush1.msra.mxu0 0.0
    %4269 = vmatprep.subr.mxu0 0.0
    %4270 = vmatpush1.msra.mxu0 0.0
    %4271 = vmatprep.subr.mxu0 0.0
    %4272 = vmatpush1.msra.mxu0 0.0
    %4273 = vmatprep.subr.mxu0 0.0
    %4274 = vmatpush1.msra.mxu0 0.0
    %4275 = vmatprep.subr.mxu0 0.0
    %4276 = vmatpush1.msra.mxu0 0.0
    %4277 = vmatprep.subr.mxu0 0.0
    %4278 = vmatpush1.msra.mxu0 0.0
    %4279 = vmatprep.subr.mxu0 0.0
    %4280 = vmatpush1.msra.mxu0 0.0
    %4281 = vmatprep.subr.mxu0 0.0
    %4282 = vmatpush1.msra.mxu0 0.0
    %4283 = vmatprep.subr.mxu0 0.0
    %4284 = vmatpush1.msra.mxu0 0.0
    %4285 = vmatprep.subr.mxu0 0.0
    %4286 = vmatpush1.msra.mxu0 0.0
    %4287 = vmatprep.subr.mxu0 0.0
    %4288 = vmatpush1.msra.mxu0 0.0
    %4289 = vmatprep.subr.mxu0 0.0
    %4290 = vmatpush1.msra.mxu0 0.0
    %4291 = vmatprep.subr.mxu0 0.0
    %4292 = vmatpush1.msra.mxu0 0.0
    %4293 = vmatprep.subr.mxu0 0.0
    %4294 = vmatpush1.msra.mxu0 0.0
    %4295 = vmatprep.subr.mxu0 0.0
    %4296 = vmatpush1.msra.mxu0 0.0
    %4297 = vmatprep.subr.mxu0 0.0
    %4298 = vmatpush1.msra.mxu0 0.0
    %4299 = vmatprep.subr.mxu0 0.0
    %4300 = vmatpush1.msra.mxu0 0.0
    %4301 = vmatprep.subr.mxu0 0.0
    %4302 = vmatpush1.msra.mxu0 0.0
    %4303 = vmatprep.subr.mxu0 0.0
    %4304 = vmatpush1.msra.mxu0 0.0
    %4305 = vmatprep.subr.mxu0 0.0
    %4306 = vmatpush1.msra.mxu0 0.0
    %4307 = vmatprep.subr.mxu0 0.0
    %4308 = vmatpush1.msra.mxu0 0.0
    %4309 = vmatprep.subr.mxu0 0.0
    %4310 = vmatpush1.msra.mxu0 0.0
    %4311 = vmatprep.subr.mxu0 0.0
    %4312 = vmatpush1.msra.mxu0 0.0
    %4313 = vmatprep.subr.mxu0 0.0
    %4314 = vmatpush1.msra.mxu0 0.0
    %4315 = vmatprep.subr.mxu0 0.0
    %4316 = vmatpush1.msra.mxu0 0.0
    %4317 = vmatprep.subr.mxu0 0.0
    %4318 = vmatpush1.msra.mxu0 0.0
    %4319 = vmatprep.subr.mxu0 0.0
    %4320 = vmatpush1.msra.mxu0 0.0
    %4321 = vmatprep.mubr.f32.mxu0 0.0
    %4322 = vmatmul.mubr.f32.gmra.mrb[0].mxu0 %v4249
    %v4323 = vpop.f32.mrb[0].mxu0
    %v4324 = vadd.f32 0.0, %v4323
    %v4325 = vpop.f32.mrb[0].mxu0
    %v4326 = vadd.f32 0.0, %v4325
    %4327 = vmatprep.mubr.f32.mxu0 0.0
    %4328 = vmatmul.mubr.f32.gmra.mrb[0].mxu0 %v4252
    %v4329 = vpop.f32.mrb[0].mxu0
    %v4330 = vadd.f32 0.0, %v4329
    %v4331 = vpop.f32.mrb[0].mxu0
    %v4332 = vadd.f32 0.0, %v4331
    %4333 = vmatprep.mubr.f32.mxu0 0.0
    %4334 = vmatmul.mubr.f32.gmra.mrb[0].mxu0 %v4255
    %v4335 = vpop.f32.mrb[0].mxu0
    %v4336 = vadd.f32 0.0, %v4335
    %v4337 = vpop.f32.mrb[0].mxu0
    %v4338 = vadd.f32 0.0, %v4337
    %4339 = vdwg.mxu0
    %v4340 = vadd.f32 %v4234, %v4324
    %v4341 = vadd.f32 %v4235, %v4326
    %v4342 = vadd.f32 %v4236, %v4330
    %v4343 = vadd.f32 %v4237, %v4332
    %v4344 = vadd.f32 %v4238, %v4336
    %v4345 = vadd.f32 %v4239, %v4338
    %v4346 = vld [vmem:[%s8 + $0x140] sm:$0xff]
    %v4347 = vld [vmem:[%s8 + $0x148] sm:$0xff]
    %v4348 = vld [vmem:[%s8 + $0x150] sm:$0xff]
    %v4349 = vld [vmem:[%s8 + $0x158] sm:$0xff]
    %v4350 = vld [vmem:[%s8 + $0x160] sm:$0xff]
    %v4351 = vld [vmem:[%s8 + $0x168] sm:$0xff]
    %v4352 = vld [vmem:[%s8 + $0x170] sm:$0xff]
    %v4353 = vld [vmem:[%s8 + $0x178] sm:$0xff]
    %v4355 = vsel %vm3843, %v3812, 0
    %v4358 = vsel %vm3843, %v3813, 0
    %v4361 = vsel %vm3843, %v3814, 0
    %4363 = vmatprep.subr.mxu0 %v4347
    %4364 = vmatpush1.msra.mxu0 %v4346
    %4365 = vmatprep.subr.mxu0 %v4349
    %4366 = vmatpush1.msra.mxu0 %v4348
    %4367 = vmatprep.subr.mxu0 %v4351
    %4368 = vmatpush1.msra.mxu0 %v4350
    %4369 = vmatprep.subr.mxu0 %v4353
    %4370 = vmatpush1.msra.mxu0 %v4352
    %4371 = vmatprep.subr.mxu0 0.0
    %4372 = vmatpush1.msra.mxu0 0.0
    %4373 = vmatprep.subr.mxu0 0.0
    %4374 = vmatpush1.msra.mxu0 0.0
    %4375 = vmatprep.subr.mxu0 0.0
    %4376 = vmatpush1.msra.mxu0 0.0
    %4377 = vmatprep.subr.mxu0 0.0
    %4378 = vmatpush1.msra.mxu0 0.0
    %4379 = vmatprep.subr.mxu0 0.0
    %4380 = vmatpush1.msra.mxu0 0.0
    %4381 = vmatprep.subr.mxu0 0.0
    %4382 = vmatpush1.msra.mxu0 0.0
    %4383 = vmatprep.subr.mxu0 0.0
    %4384 = vmatpush1.msra.mxu0 0.0
    %4385 = vmatprep.subr.mxu0 0.0
    %4386 = vmatpush1.msra.mxu0 0.0
    %4387 = vmatprep.subr.mxu0 0.0
    %4388 = vmatpush1.msra.mxu0 0.0
    %4389 = vmatprep.subr.mxu0 0.0
    %4390 = vmatpush1.msra.mxu0 0.0
    %4391 = vmatprep.subr.mxu0 0.0
    %4392 = vmatpush1.msra.mxu0 0.0
    %4393 = vmatprep.subr.mxu0 0.0
    %4394 = vmatpush1.msra.mxu0 0.0
    %4395 = vmatprep.subr.mxu0 0.0
    %4396 = vmatpush1.msra.mxu0 0.0
    %4397 = vmatprep.subr.mxu0 0.0
    %4398 = vmatpush1.msra.mxu0 0.0
    %4399 = vmatprep.subr.mxu0 0.0
    %4400 = vmatpush1.msra.mxu0 0.0
    %4401 = vmatprep.subr.mxu0 0.0
    %4402 = vmatpush1.msra.mxu0 0.0
    %4403 = vmatprep.subr.mxu0 0.0
    %4404 = vmatpush1.msra.mxu0 0.0
    %4405 = vmatprep.subr.mxu0 0.0
    %4406 = vmatpush1.msra.mxu0 0.0
    %4407 = vmatprep.subr.mxu0 0.0
    %4408 = vmatpush1.msra.mxu0 0.0
    %4409 = vmatprep.subr.mxu0 0.0
    %4410 = vmatpush1.msra.mxu0 0.0
    %4411 = vmatprep.subr.mxu0 0.0
    %4412 = vmatpush1.msra.mxu0 0.0
    %4413 = vmatprep.subr.mxu0 0.0
    %4414 = vmatpush1.msra.mxu0 0.0
    %4415 = vmatprep.subr.mxu0 0.0
    %4416 = vmatpush1.msra.mxu0 0.0
    %4417 = vmatprep.subr.mxu0 0.0
    %4418 = vmatpush1.msra.mxu0 0.0
    %4419 = vmatprep.subr.mxu0 0.0
    %4420 = vmatpush1.msra.mxu0 0.0
    %4421 = vmatprep.subr.mxu0 0.0
    %4422 = vmatpush1.msra.mxu0 0.0
    %4423 = vmatprep.subr.mxu0 0.0
    %4424 = vmatpush1.msra.mxu0 0.0
    %4425 = vmatprep.subr.mxu0 0.0
    %4426 = vmatpush1.msra.mxu0 0.0
    %4427 = vmatprep.mubr.f32.mxu0 0.0
    %4428 = vmatmul.mubr.f32.gmra.mrb[0].mxu0 %v4355
    %v4429 = vpop.f32.mrb[0].mxu0
    %v4430 = vadd.f32 0.0, %v4429
    %v4431 = vpop.f32.mrb[0].mxu0
    %v4432 = vadd.f32 0.0, %v4431
    %4433 = vmatprep.mubr.f32.mxu0 0.0
    %4434 = vmatmul.mubr.f32.gmra.mrb[0].mxu0 %v4358
    %v4435 = vpop.f32.mrb[0].mxu0
    %v4436 = vadd.f32 0.0, %v4435
    %v4437 = vpop.f32.mrb[0].mxu0
    %v4438 = vadd.f32 0.0, %v4437
    %4439 = vmatprep.mubr.f32.mxu0 0.0
    %4440 = vmatmul.mubr.f32.gmra.mrb[0].mxu0 %v4361
    %v4441 = vpop.f32.mrb[0].mxu0
    %v4442 = vadd.f32 0.0, %v4441
    %v4443 = vpop.f32.mrb[0].mxu0
    %v4444 = vadd.f32 0.0, %v4443
    %4445 = vdwg.mxu0
    %v4446 = vadd.f32 %v4340, %v4430
    %v4447 = vadd.f32 %v4341, %v4432
    %v4448 = vadd.f32 %v4342, %v4436
    %v4449 = vadd.f32 %v4343, %v4438
    %v4450 = vadd.f32 %v4344, %v4442
    %v4451 = vadd.f32 %v4345, %v4444
    %v4452 = vld [vmem:[%s8 + $0x180] sm:$0xff]
    %v4453 = vld [vmem:[%s8 + $0x188] sm:$0xff]
    %v4454 = vld [vmem:[%s8 + $0x190] sm:$0xff]
    %v4455 = vld [vmem:[%s8 + $0x198] sm:$0xff]
    %v4456 = vld [vmem:[%s8 + $0x1a0] sm:$0xff]
    %v4457 = vld [vmem:[%s8 + $0x1a8] sm:$0xff]
    %v4458 = vld [vmem:[%s8 + $0x1b0] sm:$0xff]
    %v4459 = vld [vmem:[%s8 + $0x1b8] sm:$0xff]
    %v4461 = vsel %vm3843, %v3815, 0
    %v4464 = vsel %vm3843, %v3816, 0
    %v4467 = vsel %vm3843, %v3817, 0
    %4469 = vmatprep.subr.mxu0 %v4453
    %4470 = vmatpush1.msra.mxu0 %v4452
    %4471 = vmatprep.subr.mxu0 %v4455
    %4472 = vmatpush1.msra.mxu0 %v4454
    %4473 = vmatprep.subr.mxu0 %v4457
    %4474 = vmatpush1.msra.mxu0 %v4456
    %4475 = vmatprep.subr.mxu0 %v4459
    %4476 = vmatpush1.msra.mxu0 %v4458
    %4477 = vmatprep.subr.mxu0 0.0
    %4478 = vmatpush1.msra.mxu0 0.0
    %4479 = vmatprep.subr.mxu0 0.0
    %4480 = vmatpush1.msra.mxu0 0.0
    %4481 = vmatprep.subr.mxu0 0.0
    %4482 = vmatpush1.msra.mxu0 0.0
    %4483 = vmatprep.subr.mxu0 0.0
    %4484 = vmatpush1.msra.mxu0 0.0
    %4485 = vmatprep.subr.mxu0 0.0
    %4486 = vmatpush1.msra.mxu0 0.0
    %4487 = vmatprep.subr.mxu0 0.0
    %4488 = vmatpush1.msra.mxu0 0.0
    %4489 = vmatprep.subr.mxu0 0.0
    %4490 = vmatpush1.msra.mxu0 0.0
    %4491 = vmatprep.subr.mxu0 0.0
    %4492 = vmatpush1.msra.mxu0 0.0
    %4493 = vmatprep.subr.mxu0 0.0
    %4494 = vmatpush1.msra.mxu0 0.0
    %4495 = vmatprep.subr.mxu0 0.0
    %4496 = vmatpush1.msra.mxu0 0.0
    %4497 = vmatprep.subr.mxu0 0.0
    %4498 = vmatpush1.msra.mxu0 0.0
    %4499 = vmatprep.subr.mxu0 0.0
    %4500 = vmatpush1.msra.mxu0 0.0
    %4501 = vmatprep.subr.mxu0 0.0
    %4502 = vmatpush1.msra.mxu0 0.0
    %4503 = vmatprep.subr.mxu0 0.0
    %4504 = vmatpush1.msra.mxu0 0.0
    %4505 = vmatprep.subr.mxu0 0.0
    %4506 = vmatpush1.msra.mxu0 0.0
    %4507 = vmatprep.subr.mxu0 0.0
    %4508 = vmatpush1.msra.mxu0 0.0
    %4509 = vmatprep.subr.mxu0 0.0
    %4510 = vmatpush1.msra.mxu0 0.0
    %4511 = vmatprep.subr.mxu0 0.0
    %4512 = vmatpush1.msra.mxu0 0.0
    %4513 = vmatprep.subr.mxu0 0.0
    %4514 = vmatpush1.msra.mxu0 0.0
    %4515 = vmatprep.subr.mxu0 0.0
    %4516 = vmatpush1.msra.mxu0 0.0
    %4517 = vmatprep.subr.mxu0 0.0
    %4518 = vmatpush1.msra.mxu0 0.0
    %4519 = vmatprep.subr.mxu0 0.0
    %4520 = vmatpush1.msra.mxu0 0.0
    %4521 = vmatprep.subr.mxu0 0.0
    %4522 = vmatpush1.msra.mxu0 0.0
    %4523 = vmatprep.subr.mxu0 0.0
    %4524 = vmatpush1.msra.mxu0 0.0
    %4525 = vmatprep.subr.mxu0 0.0
    %4526 = vmatpush1.msra.mxu0 0.0
    %4527 = vmatprep.subr.mxu0 0.0
    %4528 = vmatpush1.msra.mxu0 0.0
    %4529 = vmatprep.subr.mxu0 0.0
    %4530 = vmatpush1.msra.mxu0 0.0
    %4531 = vmatprep.subr.mxu0 0.0
    %4532 = vmatpush1.msra.mxu0 0.0
    %4533 = vmatprep.mubr.f32.mxu0 0.0
    %4534 = vmatmul.mubr.f32.gmra.mrb[0].mxu0 %v4461
    %v4535 = vpop.f32.mrb[0].mxu0
    %v4536 = vadd.f32 0.0, %v4535
    %v4537 = vpop.f32.mrb[0].mxu0
    %v4538 = vadd.f32 0.0, %v4537
    %4539 = vmatprep.mubr.f32.mxu0 0.0
    %4540 = vmatmul.mubr.f32.gmra.mrb[0].mxu0 %v4464
    %v4541 = vpop.f32.mrb[0].mxu0
    %v4542 = vadd.f32 0.0, %v4541
    %v4543 = vpop.f32.mrb[0].mxu0
    %v4544 = vadd.f32 0.0, %v4543
    %4545 = vmatprep.mubr.f32.mxu0 0.0
    %4546 = vmatmul.mubr.f32.gmra.mrb[0].mxu0 %v4467
    %v4547 = vpop.f32.mrb[0].mxu0
    %v4548 = vadd.f32 0.0, %v4547
    %v4549 = vpop.f32.mrb[0].mxu0
    %v4550 = vadd.f32 0.0, %v4549
    %4551 = vdwg.mxu0
    %v4552 = vadd.f32 %v4446, %v4536
    %v4553 = vadd.f32 %v4447, %v4538
    %v4554 = vadd.f32 %v4448, %v4542
    %v4555 = vadd.f32 %v4449, %v4544
    %v4556 = vadd.f32 %v4450, %v4548
    %v4557 = vadd.f32 %v4451, %v4550
    %v4558 = vld [vmem:[%s8 + $0x1c0] sm:$0xff]
    %v4559 = vld [vmem:[%s8 + $0x1c8] sm:$0xff]
    %v4560 = vld [vmem:[%s8 + $0x1d0] sm:$0xff]
    %v4561 = vld [vmem:[%s8 + $0x1d8] sm:$0xff]
    %v4562 = vld [vmem:[%s8 + $0x1e0] sm:$0xff]
    %v4563 = vld [vmem:[%s8 + $0x1e8] sm:$0xff]
    %v4564 = vld [vmem:[%s8 + $0x1f0] sm:$0xff]
    %v4565 = vld [vmem:[%s8 + $0x1f8] sm:$0xff]
    %v4567 = vsel %vm3843, %v3818, 0
    %v4570 = vsel %vm3843, %v3819, 0
    %v4573 = vsel %vm3843, %v3820, 0
    %4575 = vmatprep.subr.mxu0 %v4559
    %4576 = vmatpush1.msra.mxu0 %v4558
    %4577 = vmatprep.subr.mxu0 %v4561
    %4578 = vmatpush1.msra.mxu0 %v4560
    %4579 = vmatprep.subr.mxu0 %v4563
    %4580 = vmatpush1.msra.mxu0 %v4562
    %4581 = vmatprep.subr.mxu0 %v4565
    %4582 = vmatpush1.msra.mxu0 %v4564
    %4583 = vmatprep.subr.mxu0 0.0
    %4584 = vmatpush1.msra.mxu0 0.0
    %4585 = vmatprep.subr.mxu0 0.0
    %4586 = vmatpush1.msra.mxu0 0.0
    %4587 = vmatprep.subr.mxu0 0.0
    %4588 = vmatpush1.msra.mxu0 0.0
    %4589 = vmatprep.subr.mxu0 0.0
    %4590 = vmatpush1.msra.mxu0 0.0
    %4591 = vmatprep.subr.mxu0 0.0
    %4592 = vmatpush1.msra.mxu0 0.0
    %4593 = vmatprep.subr.mxu0 0.0
    %4594 = vmatpush1.msra.mxu0 0.0
    %4595 = vmatprep.subr.mxu0 0.0
    %4596 = vmatpush1.msra.mxu0 0.0
    %4597 = vmatprep.subr.mxu0 0.0
    %4598 = vmatpush1.msra.mxu0 0.0
    %4599 = vmatprep.subr.mxu0 0.0
    %4600 = vmatpush1.msra.mxu0 0.0
    %4601 = vmatprep.subr.mxu0 0.0
    %4602 = vmatpush1.msra.mxu0 0.0
    %4603 = vmatprep.subr.mxu0 0.0
    %4604 = vmatpush1.msra.mxu0 0.0
    %4605 = vmatprep.subr.mxu0 0.0
    %4606 = vmatpush1.msra.mxu0 0.0
    %4607 = vmatprep.subr.mxu0 0.0
    %4608 = vmatpush1.msra.mxu0 0.0
    %4609 = vmatprep.subr.mxu0 0.0
    %4610 = vmatpush1.msra.mxu0 0.0
    %4611 = vmatprep.subr.mxu0 0.0
    %4612 = vmatpush1.msra.mxu0 0.0
    %4613 = vmatprep.subr.mxu0 0.0
    %4614 = vmatpush1.msra.mxu0 0.0
    %4615 = vmatprep.subr.mxu0 0.0
    %4616 = vmatpush1.msra.mxu0 0.0
    %4617 = vmatprep.subr.mxu0 0.0
    %4618 = vmatpush1.msra.mxu0 0.0
    %4619 = vmatprep.subr.mxu0 0.0
    %4620 = vmatpush1.msra.mxu0 0.0
    %4621 = vmatprep.subr.mxu0 0.0
    %4622 = vmatpush1.msra.mxu0 0.0
    %4623 = vmatprep.subr.mxu0 0.0
    %4624 = vmatpush1.msra.mxu0 0.0
    %4625 = vmatprep.subr.mxu0 0.0
    %4626 = vmatpush1.msra.mxu0 0.0
    %4627 = vmatprep.subr.mxu0 0.0
    %4628 = vmatpush1.msra.mxu0 0.0
    %4629 = vmatprep.subr.mxu0 0.0
    %4630 = vmatpush1.msra.mxu0 0.0
    %4631 = vmatprep.subr.mxu0 0.0
    %4632 = vmatpush1.msra.mxu0 0.0
    %4633 = vmatprep.subr.mxu0 0.0
    %4634 = vmatpush1.msra.mxu0 0.0
    %4635 = vmatprep.subr.mxu0 0.0
    %4636 = vmatpush1.msra.mxu0 0.0
    %4637 = vmatprep.subr.mxu0 0.0
    %4638 = vmatpush1.msra.mxu0 0.0
    %4639 = vmatprep.mubr.f32.mxu0 0.0
    %4640 = vmatmul.mubr.f32.gmra.mrb[0].mxu0 %v4567
    %v4641 = vpop.f32.mrb[0].mxu0
    %v4642 = vadd.f32 0.0, %v4641
    %v4643 = vpop.f32.mrb[0].mxu0
    %v4644 = vadd.f32 0.0, %v4643
    %4645 = vmatprep.mubr.f32.mxu0 0.0
    %4646 = vmatmul.mubr.f32.gmra.mrb[0].mxu0 %v4570
    %v4647 = vpop.f32.mrb[0].mxu0
    %v4648 = vadd.f32 0.0, %v4647
    %v4649 = vpop.f32.mrb[0].mxu0
    %v4650 = vadd.f32 0.0, %v4649
    %4651 = vmatprep.mubr.f32.mxu0 0.0
    %4652 = vmatmul.mubr.f32.gmra.mrb[0].mxu0 %v4573
    %v4653 = vpop.f32.mrb[0].mxu0
    %v4654 = vadd.f32 0.0, %v4653
    %v4655 = vpop.f32.mrb[0].mxu0
    %v4656 = vadd.f32 0.0, %v4655
    %4657 = vdwg.mxu0
    %v4658 = vadd.f32 %v4552, %v4642
    %v4659 = vadd.f32 %v4553, %v4644
    %v4660 = vadd.f32 %v4554, %v4648
    %v4661 = vadd.f32 %v4555, %v4650
    %v4662 = vadd.f32 %v4556, %v4654
    %v4663 = vadd.f32 %v4557, %v4656
    %v4664 = vld [vmem:[%s8 + $0x200] sm:$0xff]
    %v4665 = vld [vmem:[%s8 + $0x208] sm:$0xff]
    %v4666 = vld [vmem:[%s8 + $0x210] sm:$0xff]
    %v4667 = vld [vmem:[%s8 + $0x218] sm:$0xff]
    %v4668 = vld [vmem:[%s8 + $0x220] sm:$0xff]
    %v4669 = vld [vmem:[%s8 + $0x228] sm:$0xff]
    %v4670 = vld [vmem:[%s8 + $0x230] sm:$0xff]
    %v4671 = vld [vmem:[%s8 + $0x238] sm:$0xff]
    %v4673 = vsel %vm3843, %v3821, 0
    %v4676 = vsel %vm3843, %v3822, 0
    %v4679 = vsel %vm3843, %v3823, 0
    %4681 = vmatprep.subr.mxu0 %v4665
    %4682 = vmatpush1.msra.mxu0 %v4664
    %4683 = vmatprep.subr.mxu0 %v4667
    %4684 = vmatpush1.msra.mxu0 %v4666
    %4685 = vmatprep.subr.mxu0 %v4669
    %4686 = vmatpush1.msra.mxu0 %v4668
    %4687 = vmatprep.subr.mxu0 %v4671
    %4688 = vmatpush1.msra.mxu0 %v4670
    %4689 = vmatprep.subr.mxu0 0.0
    %4690 = vmatpush1.msra.mxu0 0.0
    %4691 = vmatprep.subr.mxu0 0.0
    %4692 = vmatpush1.msra.mxu0 0.0
    %4693 = vmatprep.subr.mxu0 0.0
    %4694 = vmatpush1.msra.mxu0 0.0
    %4695 = vmatprep.subr.mxu0 0.0
    %4696 = vmatpush1.msra.mxu0 0.0
    %4697 = vmatprep.subr.mxu0 0.0
    %4698 = vmatpush1.msra.mxu0 0.0
    %4699 = vmatprep.subr.mxu0 0.0
    %4700 = vmatpush1.msra.mxu0 0.0
    %4701 = vmatprep.subr.mxu0 0.0
    %4702 = vmatpush1.msra.mxu0 0.0
    %4703 = vmatprep.subr.mxu0 0.0
    %4704 = vmatpush1.msra.mxu0 0.0
    %4705 = vmatprep.subr.mxu0 0.0
    %4706 = vmatpush1.msra.mxu0 0.0
    %4707 = vmatprep.subr.mxu0 0.0
    %4708 = vmatpush1.msra.mxu0 0.0
    %4709 = vmatprep.subr.mxu0 0.0
    %4710 = vmatpush1.msra.mxu0 0.0
    %4711 = vmatprep.subr.mxu0 0.0
    %4712 = vmatpush1.msra.mxu0 0.0
    %4713 = vmatprep.subr.mxu0 0.0
    %4714 = vmatpush1.msra.mxu0 0.0
    %4715 = vmatprep.subr.mxu0 0.0
    %4716 = vmatpush1.msra.mxu0 0.0
    %4717 = vmatprep.subr.mxu0 0.0
    %4718 = vmatpush1.msra.mxu0 0.0
    %4719 = vmatprep.subr.mxu0 0.0
    %4720 = vmatpush1.msra.mxu0 0.0
    %4721 = vmatprep.subr.mxu0 0.0
    %4722 = vmatpush1.msra.mxu0 0.0
    %4723 = vmatprep.subr.mxu0 0.0
    %4724 = vmatpush1.msra.mxu0 0.0
    %4725 = vmatprep.subr.mxu0 0.0
    %4726 = vmatpush1.msra.mxu0 0.0
    %4727 = vmatprep.subr.mxu0 0.0
    %4728 = vmatpush1.msra.mxu0 0.0
    %4729 = vmatprep.subr.mxu0 0.0
    %4730 = vmatpush1.msra.mxu0 0.0
    %4731 = vmatprep.subr.mxu0 0.0
    %4732 = vmatpush1.msra.mxu0 0.0
    %4733 = vmatprep.subr.mxu0 0.0
    %4734 = vmatpush1.msra.mxu0 0.0
    %4735 = vmatprep.subr.mxu0 0.0
    %4736 = vmatpush1.msra.mxu0 0.0
    %4737 = vmatprep.subr.mxu0 0.0
    %4738 = vmatpush1.msra.mxu0 0.0
    %4739 = vmatprep.subr.mxu0 0.0
    %4740 = vmatpush1.msra.mxu0 0.0
    %4741 = vmatprep.subr.mxu0 0.0
    %4742 = vmatpush1.msra.mxu0 0.0
    %4743 = vmatprep.subr.mxu0 0.0
    %4744 = vmatpush1.msra.mxu0 0.0
    %4745 = vmatprep.mubr.f32.mxu0 0.0
    %4746 = vmatmul.mubr.f32.gmra.mrb[0].mxu0 %v4673
    %v4747 = vpop.f32.mrb[0].mxu0
    %v4748 = vadd.f32 0.0, %v4747
    %v4749 = vpop.f32.mrb[0].mxu0
    %v4750 = vadd.f32 0.0, %v4749
    %4751 = vmatprep.mubr.f32.mxu0 0.0
    %4752 = vmatmul.mubr.f32.gmra.mrb[0].mxu0 %v4676
    %v4753 = vpop.f32.mrb[0].mxu0
    %v4754 = vadd.f32 0.0, %v4753
    %v4755 = vpop.f32.mrb[0].mxu0
    %v4756 = vadd.f32 0.0, %v4755
    %4757 = vmatprep.mubr.f32.mxu0 0.0
    %4758 = vmatmul.mubr.f32.gmra.mrb[0].mxu0 %v4679
    %v4759 = vpop.f32.mrb[0].mxu0
    %v4760 = vadd.f32 0.0, %v4759
    %v4761 = vpop.f32.mrb[0].mxu0
    %v4762 = vadd.f32 0.0, %v4761
    %4763 = vdwg.mxu0
    %v4764 = vadd.f32 %v4658, %v4748
    %v4765 = vadd.f32 %v4659, %v4750
    %v4766 = vadd.f32 %v4660, %v4754
    %v4767 = vadd.f32 %v4661, %v4756
    %v4768 = vadd.f32 %v4662, %v4760
    %v4769 = vadd.f32 %v4663, %v4762
    %v4770 = vld [vmem:[%s8 + $0x240] sm:$0xff]
    %v4771 = vld [vmem:[%s8 + $0x248] sm:$0xff]
    %v4772 = vld [vmem:[%s8 + $0x250] sm:$0xff]
    %v4773 = vld [vmem:[%s8 + $0x258] sm:$0xff]
    %v4774 = vld [vmem:[%s8 + $0x260] sm:$0xff]
    %v4775 = vld [vmem:[%s8 + $0x268] sm:$0xff]
    %v4776 = vld [vmem:[%s8 + $0x270] sm:$0xff]
    %v4777 = vld [vmem:[%s8 + $0x278] sm:$0xff]
    %v4779 = vsel %vm3843, %v3824, 0
    %v4782 = vsel %vm3843, %v3825, 0
    %v4785 = vsel %vm3843, %v3826, 0
    %4787 = vmatprep.subr.mxu0 %v4771
    %4788 = vmatpush1.msra.mxu0 %v4770
    %4789 = vmatprep.subr.mxu0 %v4773
    %4790 = vmatpush1.msra.mxu0 %v4772
    %4791 = vmatprep.subr.mxu0 %v4775
    %4792 = vmatpush1.msra.mxu0 %v4774
    %4793 = vmatprep.subr.mxu0 %v4777
    %4794 = vmatpush1.msra.mxu0 %v4776
    %4795 = vmatprep.subr.mxu0 0.0
    %4796 = vmatpush1.msra.mxu0 0.0
    %4797 = vmatprep.subr.mxu0 0.0
    %4798 = vmatpush1.msra.mxu0 0.0
    %4799 = vmatprep.subr.mxu0 0.0
    %4800 = vmatpush1.msra.mxu0 0.0
    %4801 = vmatprep.subr.mxu0 0.0
    %4802 = vmatpush1.msra.mxu0 0.0
    %4803 = vmatprep.subr.mxu0 0.0
    %4804 = vmatpush1.msra.mxu0 0.0
    %4805 = vmatprep.subr.mxu0 0.0
    %4806 = vmatpush1.msra.mxu0 0.0
    %4807 = vmatprep.subr.mxu0 0.0
    %4808 = vmatpush1.msra.mxu0 0.0
    %4809 = vmatprep.subr.mxu0 0.0
    %4810 = vmatpush1.msra.mxu0 0.0
    %4811 = vmatprep.subr.mxu0 0.0
    %4812 = vmatpush1.msra.mxu0 0.0
    %4813 = vmatprep.subr.mxu0 0.0
    %4814 = vmatpush1.msra.mxu0 0.0
    %4815 = vmatprep.subr.mxu0 0.0
    %4816 = vmatpush1.msra.mxu0 0.0
    %4817 = vmatprep.subr.mxu0 0.0
    %4818 = vmatpush1.msra.mxu0 0.0
    %4819 = vmatprep.subr.mxu0 0.0
    %4820 = vmatpush1.msra.mxu0 0.0
    %4821 = vmatprep.subr.mxu0 0.0
    %4822 = vmatpush1.msra.mxu0 0.0
    %4823 = vmatprep.subr.mxu0 0.0
    %4824 = vmatpush1.msra.mxu0 0.0
    %4825 = vmatprep.subr.mxu0 0.0
    %4826 = vmatpush1.msra.mxu0 0.0
    %4827 = vmatprep.subr.mxu0 0.0
    %4828 = vmatpush1.msra.mxu0 0.0
    %4829 = vmatprep.subr.mxu0 0.0
    %4830 = vmatpush1.msra.mxu0 0.0
    %4831 = vmatprep.subr.mxu0 0.0
    %4832 = vmatpush1.msra.mxu0 0.0
    %4833 = vmatprep.subr.mxu0 0.0
    %4834 = vmatpush1.msra.mxu0 0.0
    %4835 = vmatprep.subr.mxu0 0.0
    %4836 = vmatpush1.msra.mxu0 0.0
    %4837 = vmatprep.subr.mxu0 0.0
    %4838 = vmatpush1.msra.mxu0 0.0
    %4839 = vmatprep.subr.mxu0 0.0
    %4840 = vmatpush1.msra.mxu0 0.0
    %4841 = vmatprep.subr.mxu0 0.0
    %4842 = vmatpush1.msra.mxu0 0.0
    %4843 = vmatprep.subr.mxu0 0.0
    %4844 = vmatpush1.msra.mxu0 0.0
    %4845 = vmatprep.subr.mxu0 0.0
    %4846 = vmatpush1.msra.mxu0 0.0
    %4847 = vmatprep.subr.mxu0 0.0
    %4848 = vmatpush1.msra.mxu0 0.0
    %4849 = vmatprep.subr.mxu0 0.0
    %4850 = vmatpush1.msra.mxu0 0.0
    %4851 = vmatprep.mubr.f32.mxu0 0.0
    %4852 = vmatmul.mubr.f32.gmra.mrb[0].mxu0 %v4779
    %v4853 = vpop.f32.mrb[0].mxu0
    %v4854 = vadd.f32 0.0, %v4853
    %v4855 = vpop.f32.mrb[0].mxu0
    %v4856 = vadd.f32 0.0, %v4855
    %4857 = vmatprep.mubr.f32.mxu0 0.0
    %4858 = vmatmul.mubr.f32.gmra.mrb[0].mxu0 %v4782
    %v4859 = vpop.f32.mrb[0].mxu0
    %v4860 = vadd.f32 0.0, %v4859
    %v4861 = vpop.f32.mrb[0].mxu0
    %v4862 = vadd.f32 0.0, %v4861
    %4863 = vmatprep.mubr.f32.mxu0 0.0
    %4864 = vmatmul.mubr.f32.gmra.mrb[0].mxu0 %v4785
    %v4865 = vpop.f32.mrb[0].mxu0
    %v4866 = vadd.f32 0.0, %v4865
    %v4867 = vpop.f32.mrb[0].mxu0
    %v4868 = vadd.f32 0.0, %v4867
    %4869 = vdwg.mxu0
    %v4870 = vadd.f32 %v4764, %v4854
    %v4871 = vadd.f32 %v4765, %v4856
    %v4872 = vadd.f32 %v4766, %v4860
    %v4873 = vadd.f32 %v4767, %v4862
    %v4874 = vadd.f32 %v4768, %v4866
    %v4875 = vadd.f32 %v4769, %v4868
    %v4876 = vld [vmem:[%s10] sm:$0x3]
    %v4878 = vlaneseq
    %v4879 = vshrl.u32 %v4878, 7
    %v4880 = vsub.s32 0, %v4879
    %v4881 = vrot.slane %v4876, %v4880
    %v4882 = vlaneseq
    %v4883 = vshrl.u32 %v4882, 7
    %v4884 = vsub.s32 1, %v4883
    %v4885 = vrot.slane %v4876, %v4884
    %v4888 = vadd.f32 %v4870, %v4881
    %v4889 = vadd.f32 %v4871, %v4885
    %v4890 = vadd.f32 %v4872, %v4881
    %v4891 = vadd.f32 %v4873, %v4885
    %v4892 = vadd.f32 %v4874, %v4881
    %v4893 = vadd.f32 %v4875, %v4885
    %4894 = vst [vmem:[#allocation5] sm:$0xff] %v4888
    %4895 = vst [vmem:[#allocation5 + $0x8] sm:$0xff] %v4889
    %4896 = vst [vmem:[#allocation5 + $0x10] sm:$0xff] %v4890
    %4897 = vst [vmem:[#allocation5 + $0x18] sm:$0xff] %v4891
    %4898 = vst [vmem:[#allocation5 + $0x20] sm:$0xff] %v4892
    %4899 = vst [vmem:[#allocation5 + $0x28] sm:$0xff] %v4893
    %v4900 = vld [vmem:[%s9] sm:$0xff]
    %v4901 = vld [vmem:[%s9 + $0x8] sm:$0xff]
    %v4902 = vld [vmem:[%s9 + $0x10] sm:$0xff]
    %v4903 = vld [vmem:[%s9 + $0x18] sm:$0xff]
    %v4904 = vld [vmem:[%s9 + $0x20] sm:$0xff]
    %v4905 = vld [vmem:[%s9 + $0x28] sm:$0xff]
    %v4906 = vld [vmem:[%s9 + $0x30] sm:$0xff]
    %v4907 = vld [vmem:[%s9 + $0x38] sm:$0xff]
    %v4908 = vld [vmem:[%s9 + $0x40] sm:$0xff]
    %v4909 = vld [vmem:[%s9 + $0x48] sm:$0xff]
    %v4910 = vld [vmem:[%s9 + $0x50] sm:$0xff]
    %v4911 = vld [vmem:[%s9 + $0x58] sm:$0xff]
    %v4912 = vld [vmem:[%s9 + $0x60] sm:$0xff]
    %v4913 = vld [vmem:[%s9 + $0x68] sm:$0xff]
    %v4914 = vld [vmem:[%s9 + $0x70] sm:$0xff]
    %v4915 = vld [vmem:[%s9 + $0x78] sm:$0xff]
    %v4916 = vld [vmem:[#allocation5] ss:$8 sm:$0x3]
    %v4918 = vsel %vm95, 0.0, 0
    %4920 = vmatprep.subr.mxu0 %v4901
    %4921 = vmatpush1.msra.mxu0 %v4900
    %4922 = vmatprep.subr.mxu0 %v4903
    %4923 = vmatpush1.msra.mxu0 %v4902
    %4924 = vmatprep.subr.mxu0 %v4905
    %4925 = vmatpush1.msra.mxu0 %v4904
    %4926 = vmatprep.subr.mxu0 %v4907
    %4927 = vmatpush1.msra.mxu0 %v4906
    %4928 = vmatprep.subr.mxu0 %v4909
    %4929 = vmatpush1.msra.mxu0 %v4908
    %4930 = vmatprep.subr.mxu0 %v4911
    %4931 = vmatpush1.msra.mxu0 %v4910
    %4932 = vmatprep.subr.mxu0 %v4913
    %4933 = vmatpush1.msra.mxu0 %v4912
    %4934 = vmatprep.subr.mxu0 %v4915
    %4935 = vmatpush1.msra.mxu0 %v4914
    %4936 = vmatprep.subr.mxu0 0.0
    %4937 = vmatpush1.msra.mxu0 0.0
    %4938 = vmatprep.subr.mxu0 0.0
    %4939 = vmatpush1.msra.mxu0 0.0
    %4940 = vmatprep.subr.mxu0 0.0
    %4941 = vmatpush1.msra.mxu0 0.0
    %4942 = vmatprep.subr.mxu0 0.0
    %4943 = vmatpush1.msra.mxu0 0.0
    %4944 = vmatprep.subr.mxu0 0.0
    %4945 = vmatpush1.msra.mxu0 0.0
    %4946 = vmatprep.subr.mxu0 0.0
    %4947 = vmatpush1.msra.mxu0 0.0
    %4948 = vmatprep.subr.mxu0 0.0
    %4949 = vmatpush1.msra.mxu0 0.0
    %4950 = vmatprep.subr.mxu0 0.0
    %4951 = vmatpush1.msra.mxu0 0.0
    %4952 = vmatprep.subr.mxu0 0.0
    %4953 = vmatpush1.msra.mxu0 0.0
    %4954 = vmatprep.subr.mxu0 0.0
    %4955 = vmatpush1.msra.mxu0 0.0
    %4956 = vmatprep.subr.mxu0 0.0
    %4957 = vmatpush1.msra.mxu0 0.0
    %4958 = vmatprep.subr.mxu0 0.0
    %4959 = vmatpush1.msra.mxu0 0.0
    %4960 = vmatprep.subr.mxu0 0.0
    %4961 = vmatpush1.msra.mxu0 0.0
    %4962 = vmatprep.subr.mxu0 0.0
    %4963 = vmatpush1.msra.mxu0 0.0
    %4964 = vmatprep.subr.mxu0 0.0
    %4965 = vmatpush1.msra.mxu0 0.0
    %4966 = vmatprep.subr.mxu0 0.0
    %4967 = vmatpush1.msra.mxu0 0.0
    %4968 = vmatprep.subr.mxu0 0.0
    %4969 = vmatpush1.msra.mxu0 0.0
    %4970 = vmatprep.subr.mxu0 0.0
    %4971 = vmatpush1.msra.mxu0 0.0
    %4972 = vmatprep.subr.mxu0 0.0
    %4973 = vmatpush1.msra.mxu0 0.0
    %4974 = vmatprep.subr.mxu0 0.0
    %4975 = vmatpush1.msra.mxu0 0.0
    %4976 = vmatprep.subr.mxu0 0.0
    %4977 = vmatpush1.msra.mxu0 0.0
    %4978 = vmatprep.subr.mxu0 0.0
    %4979 = vmatpush1.msra.mxu0 0.0
    %4980 = vmatprep.subr.mxu0 0.0
    %4981 = vmatpush1.msra.mxu0 0.0
    %4982 = vmatprep.subr.mxu0 0.0
    %4983 = vmatpush1.msra.mxu0 0.0
    %4984 = vmatprep.mubr.f32.mxu0 0.0
    %4985 = vmatmul.mubr.f32.gmra.mrb[0].mxu0 %v4918
    %v4986 = vpop.f32.mrb[0].mxu0
    %v4987 = vadd.f32 0.0, %v4986
    %v4988 = vpop.f32.mrb[0].mxu0
    %v4989 = vadd.f32 0.0, %v4988
    %4990 = vdwg.mxu0
    %v4993 = vcombine.low %v4987, %v4989
    %v4995 = vunpack.c.l.s4 1966171168
    %v4996 = vunpack.c.0.s8 %v4995
    %v4997 = vlaneseq
    %v4998 = vshrl.u32 %v4997, 7
    %v4999 = vsub.s32 %v4996, %v4998
    %v5000 = vrot.slane %v4993, %v4999
    %v5002 = vunpack.c.l.s4 1966171168
    %v5003 = vunpack.c.0.s8 %v5002
    %v5004 = vlaneseq
    %v5005 = vshrl.u32 %v5004, 7
    %v5006 = vsub.s32 %v5003, %v5005
    %v5007 = vrot.slane %v5000, %v5006
    %v5009 = vadd.f32 %v4916, %v5007
    %v5010 = vxor.u32 %v5009, 2147483648
    %v5011 = vmul.f32 %v5010, 1.442695
    %v5012 = vpow.pop %v5011
    %v5013 = vadd.f32 %v5012, 1.0
    %v5014 = vrcp.pop %v5013
    %v5015 = vmul.f32 1.0, %v5014
    %5017 = vrot.lane.b32.xlu0 %v5009, 64
    %v5018 = vpop.permute.xlu0 %5017
    %v5019 = vrot.slane %v5018, 1
    %v5021 = vtanh.pop %v5019
    %v5022 = vmul.f32 %v5015, 0.0
    %v5023 = vmul.f32 %v5015, %v5021
    %5025 = vrot.lane.b32.xlu0 %v5023, 64
    %v5026 = vpop.permute.xlu0 %5025
    %v5028 = vadd.f32 %v5022, %v5026
    %v5029 = vtanh.pop %v5028
    %v5031 = vrot.slane %v5015, 1
    %5034 = vrot.lane.b32.xlu0 %v5029, 64
    %v5035 = vpop.permute.xlu0 %5034
    %v5037 = vmul.f32 %v5031, %v5035
    %s5038 = scalar_lea.vmem [#allocation5], 1
    %v5039 = vld [vmem:[%s5038] ss:$8 sm:$0x3]
    %v5041 = vsel %vm95, %v5037, 0
    %5043 = vmatprep.subr.mxu0 %v4901
    %5044 = vmatpush1.msra.mxu0 %v4900
    %5045 = vmatprep.subr.mxu0 %v4903
    %5046 = vmatpush1.msra.mxu0 %v4902
    %5047 = vmatprep.subr.mxu0 %v4905
    %5048 = vmatpush1.msra.mxu0 %v4904
    %5049 = vmatprep.subr.mxu0 %v4907
    %5050 = vmatpush1.msra.mxu0 %v4906
    %5051 = vmatprep.subr.mxu0 %v4909
    %5052 = vmatpush1.msra.mxu0 %v4908
    %5053 = vmatprep.subr.mxu0 %v4911
    %5054 = vmatpush1.msra.mxu0 %v4910
    %5055 = vmatprep.subr.mxu0 %v4913
    %5056 = vmatpush1.msra.mxu0 %v4912
    %5057 = vmatprep.subr.mxu0 %v4915
    %5058 = vmatpush1.msra.mxu0 %v4914
    %5059 = vmatprep.subr.mxu0 0.0
    %5060 = vmatpush1.msra.mxu0 0.0
    %5061 = vmatprep.subr.mxu0 0.0
    %5062 = vmatpush1.msra.mxu0 0.0
    %5063 = vmatprep.subr.mxu0 0.0
    %5064 = vmatpush1.msra.mxu0 0.0
    %5065 = vmatprep.subr.mxu0 0.0
    %5066 = vmatpush1.msra.mxu0 0.0
    %5067 = vmatprep.subr.mxu0 0.0
    %5068 = vmatpush1.msra.mxu0 0.0
    %5069 = vmatprep.subr.mxu0 0.0
    %5070 = vmatpush1.msra.mxu0 0.0
    %5071 = vmatprep.subr.mxu0 0.0
    %5072 = vmatpush1.msra.mxu0 0.0
    %5073 = vmatprep.subr.mxu0 0.0
    %5074 = vmatpush1.msra.mxu0 0.0
    %5075 = vmatprep.subr.mxu0 0.0
    %5076 = vmatpush1.msra.mxu0 0.0
    %5077 = vmatprep.subr.mxu0 0.0
    %5078 = vmatpush1.msra.mxu0 0.0
    %5079 = vmatprep.subr.mxu0 0.0
    %5080 = vmatpush1.msra.mxu0 0.0
    %5081 = vmatprep.subr.mxu0 0.0
    %5082 = vmatpush1.msra.mxu0 0.0
    %5083 = vmatprep.subr.mxu0 0.0
    %5084 = vmatpush1.msra.mxu0 0.0
    %5085 = vmatprep.subr.mxu0 0.0
    %5086 = vmatpush1.msra.mxu0 0.0
    %5087 = vmatprep.subr.mxu0 0.0
    %5088 = vmatpush1.msra.mxu0 0.0
    %5089 = vmatprep.subr.mxu0 0.0
    %5090 = vmatpush1.msra.mxu0 0.0
    %5091 = vmatprep.subr.mxu0 0.0
    %5092 = vmatpush1.msra.mxu0 0.0
    %5093 = vmatprep.subr.mxu0 0.0
    %5094 = vmatpush1.msra.mxu0 0.0
    %5095 = vmatprep.subr.mxu0 0.0
    %5096 = vmatpush1.msra.mxu0 0.0
    %5097 = vmatprep.subr.mxu0 0.0
    %5098 = vmatpush1.msra.mxu0 0.0
    %5099 = vmatprep.subr.mxu0 0.0
    %5100 = vmatpush1.msra.mxu0 0.0
    %5101 = vmatprep.subr.mxu0 0.0
    %5102 = vmatpush1.msra.mxu0 0.0
    %5103 = vmatprep.subr.mxu0 0.0
    %5104 = vmatpush1.msra.mxu0 0.0
    %5105 = vmatprep.subr.mxu0 0.0
    %5106 = vmatpush1.msra.mxu0 0.0
    %5107 = vmatprep.mubr.f32.mxu0 0.0
    %5108 = vmatmul.mubr.f32.gmra.mrb[0].mxu0 %v5041
    %v5109 = vpop.f32.mrb[0].mxu0
    %v5110 = vadd.f32 0.0, %v5109
    %v5111 = vpop.f32.mrb[0].mxu0
    %v5112 = vadd.f32 0.0, %v5111
    %5113 = vdwg.mxu0
    %v5116 = vcombine.low %v5110, %v5112
    %v5118 = vunpack.c.l.s4 1966171168
    %v5119 = vunpack.c.0.s8 %v5118
    %v5120 = vlaneseq
    %v5121 = vshrl.u32 %v5120, 7
    %v5122 = vsub.s32 %v5119, %v5121
    %v5123 = vrot.slane %v5116, %v5122
    %v5125 = vunpack.c.l.s4 1966171168
    %v5126 = vunpack.c.0.s8 %v5125
    %v5127 = vlaneseq
    %v5128 = vshrl.u32 %v5127, 7
    %v5129 = vsub.s32 %v5126, %v5128
    %v5130 = vrot.slane %v5123, %v5129
    %v5132 = vadd.f32 %v5039, %v5130
    %v5133 = vxor.u32 %v5132, 2147483648
    %v5134 = vmul.f32 %v5133, 1.442695
    %v5135 = vpow.pop %v5134
    %v5136 = vadd.f32 %v5135, 1.0
    %v5137 = vrcp.pop %v5136
    %v5138 = vmul.f32 1.0, %v5137
    %5140 = vrot.lane.b32.xlu0 %v5132, 64
    %v5141 = vpop.permute.xlu0 %5140
    %v5142 = vrot.slane %v5141, 1
    %v5144 = vtanh.pop %v5142
    %v5145 = vmul.f32 %v5138, %v5028
    %v5146 = vmul.f32 %v5138, %v5144
    %5148 = vrot.lane.b32.xlu0 %v5146, 64
    %v5149 = vpop.permute.xlu0 %5148
    %v5151 = vadd.f32 %v5145, %v5149
    %v5152 = vtanh.pop %v5151
    %v5154 = vrot.slane %v5138, 1
    %5157 = vrot.lane.b32.xlu0 %v5152, 64
    %v5158 = vpop.permute.xlu0 %5157
    %v5160 = vmul.f32 %v5154, %v5158
    %s5161 = scalar_lea.vmem [#allocation5], 2
    %v5162 = vld [vmem:[%s5161] ss:$8 sm:$0x3]
    %v5164 = vsel %vm95, %v5160, 0
    %5166 = vmatprep.subr.mxu0 %v4901
    %5167 = vmatpush1.msra.mxu0 %v4900
    %5168 = vmatprep.subr.mxu0 %v4903
    %5169 = vmatpush1.msra.mxu0 %v4902
    %5170 = vmatprep.subr.mxu0 %v4905
    %5171 = vmatpush1.msra.mxu0 %v4904
    %5172 = vmatprep.subr.mxu0 %v4907
    %5173 = vmatpush1.msra.mxu0 %v4906
    %5174 = vmatprep.subr.mxu0 %v4909
    %5175 = vmatpush1.msra.mxu0 %v4908
    %5176 = vmatprep.subr.mxu0 %v4911
    %5177 = vmatpush1.msra.mxu0 %v4910
    %5178 = vmatprep.subr.mxu0 %v4913
    %5179 = vmatpush1.msra.mxu0 %v4912
    %5180 = vmatprep.subr.mxu0 %v4915
    %5181 = vmatpush1.msra.mxu0 %v4914
    %5182 = vmatprep.subr.mxu0 0.0
    %5183 = vmatpush1.msra.mxu0 0.0
    %5184 = vmatprep.subr.mxu0 0.0
    %5185 = vmatpush1.msra.mxu0 0.0
    %5186 = vmatprep.subr.mxu0 0.0
    %5187 = vmatpush1.msra.mxu0 0.0
    %5188 = vmatprep.subr.mxu0 0.0
    %5189 = vmatpush1.msra.mxu0 0.0
    %5190 = vmatprep.subr.mxu0 0.0
    %5191 = vmatpush1.msra.mxu0 0.0
    %5192 = vmatprep.subr.mxu0 0.0
    %5193 = vmatpush1.msra.mxu0 0.0
    %5194 = vmatprep.subr.mxu0 0.0
    %5195 = vmatpush1.msra.mxu0 0.0
    %5196 = vmatprep.subr.mxu0 0.0
    %5197 = vmatpush1.msra.mxu0 0.0
    %5198 = vmatprep.subr.mxu0 0.0
    %5199 = vmatpush1.msra.mxu0 0.0
    %5200 = vmatprep.subr.mxu0 0.0
    %5201 = vmatpush1.msra.mxu0 0.0
    %5202 = vmatprep.subr.mxu0 0.0
    %5203 = vmatpush1.msra.mxu0 0.0
    %5204 = vmatprep.subr.mxu0 0.0
    %5205 = vmatpush1.msra.mxu0 0.0
    %5206 = vmatprep.subr.mxu0 0.0
    %5207 = vmatpush1.msra.mxu0 0.0
    %5208 = vmatprep.subr.mxu0 0.0
    %5209 = vmatpush1.msra.mxu0 0.0
    %5210 = vmatprep.subr.mxu0 0.0
    %5211 = vmatpush1.msra.mxu0 0.0
    %5212 = vmatprep.subr.mxu0 0.0
    %5213 = vmatpush1.msra.mxu0 0.0
    %5214 = vmatprep.subr.mxu0 0.0
    %5215 = vmatpush1.msra.mxu0 0.0
    %5216 = vmatprep.subr.mxu0 0.0
    %5217 = vmatpush1.msra.mxu0 0.0
    %5218 = vmatprep.subr.mxu0 0.0
    %5219 = vmatpush1.msra.mxu0 0.0
    %5220 = vmatprep.subr.mxu0 0.0
    %5221 = vmatpush1.msra.mxu0 0.0
    %5222 = vmatprep.subr.mxu0 0.0
    %5223 = vmatpush1.msra.mxu0 0.0
    %5224 = vmatprep.subr.mxu0 0.0
    %5225 = vmatpush1.msra.mxu0 0.0
    %5226 = vmatprep.subr.mxu0 0.0
    %5227 = vmatpush1.msra.mxu0 0.0
    %5228 = vmatprep.subr.mxu0 0.0
    %5229 = vmatpush1.msra.mxu0 0.0
    %5230 = vmatprep.mubr.f32.mxu0 0.0
    %5231 = vmatmul.mubr.f32.gmra.mrb[0].mxu0 %v5164
    %v5232 = vpop.f32.mrb[0].mxu0
    %v5233 = vadd.f32 0.0, %v5232
    %v5234 = vpop.f32.mrb[0].mxu0
    %v5235 = vadd.f32 0.0, %v5234
    %5236 = vdwg.mxu0
    %v5239 = vcombine.low %v5233, %v5235
    %v5241 = vunpack.c.l.s4 1966171168
    %v5242 = vunpack.c.0.s8 %v5241
    %v5243 = vlaneseq
    %v5244 = vshrl.u32 %v5243, 7
    %v5245 = vsub.s32 %v5242, %v5244
    %v5246 = vrot.slane %v5239, %v5245
    %v5248 = vunpack.c.l.s4 1966171168
    %v5249 = vunpack.c.0.s8 %v5248
    %v5250 = vlaneseq
    %v5251 = vshrl.u32 %v5250, 7
    %v5252 = vsub.s32 %v5249, %v5251
    %v5253 = vrot.slane %v5246, %v5252
    %v5255 = vadd.f32 %v5162, %v5253
    %v5256 = vxor.u32 %v5255, 2147483648
    %v5257 = vmul.f32 %v5256, 1.442695
    %v5258 = vpow.pop %v5257
    %v5259 = vadd.f32 %v5258, 1.0
    %v5260 = vrcp.pop %v5259
    %v5261 = vmul.f32 1.0, %v5260
    %5263 = vrot.lane.b32.xlu0 %v5255, 64
    %v5264 = vpop.permute.xlu0 %5263
    %v5265 = vrot.slane %v5264, 1
    %v5267 = vtanh.pop %v5265
    %v5268 = vmul.f32 %v5261, %v5151
    %v5269 = vmul.f32 %v5261, %v5267
    %5271 = vrot.lane.b32.xlu0 %v5269, 64
    %v5272 = vpop.permute.xlu0 %5271
    %v5274 = vadd.f32 %v5268, %v5272
    %v5275 = vtanh.pop %v5274
    %v5277 = vrot.slane %v5261, 1
    %5280 = vrot.lane.b32.xlu0 %v5275, 64
    %v5281 = vpop.permute.xlu0 %5280
    %v5283 = vmul.f32 %v5277, %v5281
    %s5284 = scalar_lea.vmem [#allocation5], 3
    %v5285 = vld [vmem:[%s5284] ss:$8 sm:$0x3]
    %v5287 = vsel %vm95, %v5283, 0
    %5289 = vmatprep.subr.mxu0 %v4901
    %5290 = vmatpush1.msra.mxu0 %v4900
    %5291 = vmatprep.subr.mxu0 %v4903
    %5292 = vmatpush1.msra.mxu0 %v4902
    %5293 = vmatprep.subr.mxu0 %v4905
    %5294 = vmatpush1.msra.mxu0 %v4904
    %5295 = vmatprep.subr.mxu0 %v4907
    %5296 = vmatpush1.msra.mxu0 %v4906
    %5297 = vmatprep.subr.mxu0 %v4909
    %5298 = vmatpush1.msra.mxu0 %v4908
    %5299 = vmatprep.subr.mxu0 %v4911
    %5300 = vmatpush1.msra.mxu0 %v4910
    %5301 = vmatprep.subr.mxu0 %v4913
    %5302 = vmatpush1.msra.mxu0 %v4912
    %5303 = vmatprep.subr.mxu0 %v4915
    %5304 = vmatpush1.msra.mxu0 %v4914
    %5305 = vmatprep.subr.mxu0 0.0
    %5306 = vmatpush1.msra.mxu0 0.0
    %5307 = vmatprep.subr.mxu0 0.0
    %5308 = vmatpush1.msra.mxu0 0.0
    %5309 = vmatprep.subr.mxu0 0.0
    %5310 = vmatpush1.msra.mxu0 0.0
    %5311 = vmatprep.subr.mxu0 0.0
    %5312 = vmatpush1.msra.mxu0 0.0
    %5313 = vmatprep.subr.mxu0 0.0
    %5314 = vmatpush1.msra.mxu0 0.0
    %5315 = vmatprep.subr.mxu0 0.0
    %5316 = vmatpush1.msra.mxu0 0.0
    %5317 = vmatprep.subr.mxu0 0.0
    %5318 = vmatpush1.msra.mxu0 0.0
    %5319 = vmatprep.subr.mxu0 0.0
    %5320 = vmatpush1.msra.mxu0 0.0
    %5321 = vmatprep.subr.mxu0 0.0
    %5322 = vmatpush1.msra.mxu0 0.0
    %5323 = vmatprep.subr.mxu0 0.0
    %5324 = vmatpush1.msra.mxu0 0.0
    %5325 = vmatprep.subr.mxu0 0.0
    %5326 = vmatpush1.msra.mxu0 0.0
    %5327 = vmatprep.subr.mxu0 0.0
    %5328 = vmatpush1.msra.mxu0 0.0
    %5329 = vmatprep.subr.mxu0 0.0
    %5330 = vmatpush1.msra.mxu0 0.0
    %5331 = vmatprep.subr.mxu0 0.0
    %5332 = vmatpush1.msra.mxu0 0.0
    %5333 = vmatprep.subr.mxu0 0.0
    %5334 = vmatpush1.msra.mxu0 0.0
    %5335 = vmatprep.subr.mxu0 0.0
    %5336 = vmatpush1.msra.mxu0 0.0
    %5337 = vmatprep.subr.mxu0 0.0
    %5338 = vmatpush1.msra.mxu0 0.0
    %5339 = vmatprep.subr.mxu0 0.0
    %5340 = vmatpush1.msra.mxu0 0.0
    %5341 = vmatprep.subr.mxu0 0.0
    %5342 = vmatpush1.msra.mxu0 0.0
    %5343 = vmatprep.subr.mxu0 0.0
    %5344 = vmatpush1.msra.mxu0 0.0
    %5345 = vmatprep.subr.mxu0 0.0
    %5346 = vmatpush1.msra.mxu0 0.0
    %5347 = vmatprep.subr.mxu0 0.0
    %5348 = vmatpush1.msra.mxu0 0.0
    %5349 = vmatprep.subr.mxu0 0.0
    %5350 = vmatpush1.msra.mxu0 0.0
    %5351 = vmatprep.subr.mxu0 0.0
    %5352 = vmatpush1.msra.mxu0 0.0
    %5353 = vmatprep.mubr.f32.mxu0 0.0
    %5354 = vmatmul.mubr.f32.gmra.mrb[0].mxu0 %v5287
    %v5355 = vpop.f32.mrb[0].mxu0
    %v5356 = vadd.f32 0.0, %v5355
    %v5357 = vpop.f32.mrb[0].mxu0
    %v5358 = vadd.f32 0.0, %v5357
    %5359 = vdwg.mxu0
    %v5362 = vcombine.low %v5356, %v5358
    %v5364 = vunpack.c.l.s4 1966171168
    %v5365 = vunpack.c.0.s8 %v5364
    %v5366 = vlaneseq
    %v5367 = vshrl.u32 %v5366, 7
    %v5368 = vsub.s32 %v5365, %v5367
    %v5369 = vrot.slane %v5362, %v5368
    %v5371 = vunpack.c.l.s4 1966171168
    %v5372 = vunpack.c.0.s8 %v5371
    %v5373 = vlaneseq
    %v5374 = vshrl.u32 %v5373, 7
    %v5375 = vsub.s32 %v5372, %v5374
    %v5376 = vrot.slane %v5369, %v5375
    %v5378 = vadd.f32 %v5285, %v5376
    %v5379 = vxor.u32 %v5378, 2147483648
    %v5380 = vmul.f32 %v5379, 1.442695
    %v5381 = vpow.pop %v5380
    %v5382 = vadd.f32 %v5381, 1.0
    %v5383 = vrcp.pop %v5382
    %v5384 = vmul.f32 1.0, %v5383
    %5386 = vrot.lane.b32.xlu0 %v5378, 64
    %v5387 = vpop.permute.xlu0 %5386
    %v5388 = vrot.slane %v5387, 1
    %v5390 = vtanh.pop %v5388
    %v5391 = vmul.f32 %v5384, %v5274
    %v5392 = vmul.f32 %v5384, %v5390
    %5394 = vrot.lane.b32.xlu0 %v5392, 64
    %v5395 = vpop.permute.xlu0 %5394
    %v5397 = vadd.f32 %v5391, %v5395
    %v5398 = vtanh.pop %v5397
    %v5400 = vrot.slane %v5384, 1
    %5403 = vrot.lane.b32.xlu0 %v5398, 64
    %v5404 = vpop.permute.xlu0 %5403
    %v5406 = vmul.f32 %v5400, %v5404
    %s5407 = scalar_lea.vmem [#allocation5], 4
    %v5408 = vld [vmem:[%s5407] ss:$8 sm:$0x3]
    %v5410 = vsel %vm95, %v5406, 0
    %5412 = vmatprep.subr.mxu0 %v4901
    %5413 = vmatpush1.msra.mxu0 %v4900
    %5414 = vmatprep.subr.mxu0 %v4903
    %5415 = vmatpush1.msra.mxu0 %v4902
    %5416 = vmatprep.subr.mxu0 %v4905
    %5417 = vmatpush1.msra.mxu0 %v4904
    %5418 = vmatprep.subr.mxu0 %v4907
    %5419 = vmatpush1.msra.mxu0 %v4906
    %5420 = vmatprep.subr.mxu0 %v4909
    %5421 = vmatpush1.msra.mxu0 %v4908
    %5422 = vmatprep.subr.mxu0 %v4911
    %5423 = vmatpush1.msra.mxu0 %v4910
    %5424 = vmatprep.subr.mxu0 %v4913
    %5425 = vmatpush1.msra.mxu0 %v4912
    %5426 = vmatprep.subr.mxu0 %v4915
    %5427 = vmatpush1.msra.mxu0 %v4914
    %5428 = vmatprep.subr.mxu0 0.0
    %5429 = vmatpush1.msra.mxu0 0.0
    %5430 = vmatprep.subr.mxu0 0.0
    %5431 = vmatpush1.msra.mxu0 0.0
    %5432 = vmatprep.subr.mxu0 0.0
    %5433 = vmatpush1.msra.mxu0 0.0
    %5434 = vmatprep.subr.mxu0 0.0
    %5435 = vmatpush1.msra.mxu0 0.0
    %5436 = vmatprep.subr.mxu0 0.0
    %5437 = vmatpush1.msra.mxu0 0.0
    %5438 = vmatprep.subr.mxu0 0.0
    %5439 = vmatpush1.msra.mxu0 0.0
    %5440 = vmatprep.subr.mxu0 0.0
    %5441 = vmatpush1.msra.mxu0 0.0
    %5442 = vmatprep.subr.mxu0 0.0
    %5443 = vmatpush1.msra.mxu0 0.0
    %5444 = vmatprep.subr.mxu0 0.0
    %5445 = vmatpush1.msra.mxu0 0.0
    %5446 = vmatprep.subr.mxu0 0.0
    %5447 = vmatpush1.msra.mxu0 0.0
    %5448 = vmatprep.subr.mxu0 0.0
    %5449 = vmatpush1.msra.mxu0 0.0
    %5450 = vmatprep.subr.mxu0 0.0
    %5451 = vmatpush1.msra.mxu0 0.0
    %5452 = vmatprep.subr.mxu0 0.0
    %5453 = vmatpush1.msra.mxu0 0.0
    %5454 = vmatprep.subr.mxu0 0.0
    %5455 = vmatpush1.msra.mxu0 0.0
    %5456 = vmatprep.subr.mxu0 0.0
    %5457 = vmatpush1.msra.mxu0 0.0
    %5458 = vmatprep.subr.mxu0 0.0
    %5459 = vmatpush1.msra.mxu0 0.0
    %5460 = vmatprep.subr.mxu0 0.0
    %5461 = vmatpush1.msra.mxu0 0.0
    %5462 = vmatprep.subr.mxu0 0.0
    %5463 = vmatpush1.msra.mxu0 0.0
    %5464 = vmatprep.subr.mxu0 0.0
    %5465 = vmatpush1.msra.mxu0 0.0
    %5466 = vmatprep.subr.mxu0 0.0
    %5467 = vmatpush1.msra.mxu0 0.0
    %5468 = vmatprep.subr.mxu0 0.0
    %5469 = vmatpush1.msra.mxu0 0.0
    %5470 = vmatprep.subr.mxu0 0.0
    %5471 = vmatpush1.msra.mxu0 0.0
    %5472 = vmatprep.subr.mxu0 0.0
    %5473 = vmatpush1.msra.mxu0 0.0
    %5474 = vmatprep.subr.mxu0 0.0
    %5475 = vmatpush1.msra.mxu0 0.0
    %5476 = vmatprep.mubr.f32.mxu0 0.0
    %5477 = vmatmul.mubr.f32.gmra.mrb[0].mxu0 %v5410
    %v5478 = vpop.f32.mrb[0].mxu0
    %v5479 = vadd.f32 0.0, %v5478
    %v5480 = vpop.f32.mrb[0].mxu0
    %v5481 = vadd.f32 0.0, %v5480
    %5482 = vdwg.mxu0
    %v5485 = vcombine.low %v5479, %v5481
    %v5487 = vunpack.c.l.s4 1966171168
    %v5488 = vunpack.c.0.s8 %v5487
    %v5489 = vlaneseq
    %v5490 = vshrl.u32 %v5489, 7
    %v5491 = vsub.s32 %v5488, %v5490
    %v5492 = vrot.slane %v5485, %v5491
    %v5494 = vunpack.c.l.s4 1966171168
    %v5495 = vunpack.c.0.s8 %v5494
    %v5496 = vlaneseq
    %v5497 = vshrl.u32 %v5496, 7
    %v5498 = vsub.s32 %v5495, %v5497
    %v5499 = vrot.slane %v5492, %v5498
    %v5501 = vadd.f32 %v5408, %v5499
    %v5502 = vxor.u32 %v5501, 2147483648
    %v5503 = vmul.f32 %v5502, 1.442695
    %v5504 = vpow.pop %v5503
    %v5505 = vadd.f32 %v5504, 1.0
    %v5506 = vrcp.pop %v5505
    %v5507 = vmul.f32 1.0, %v5506
    %5509 = vrot.lane.b32.xlu0 %v5501, 64
    %v5510 = vpop.permute.xlu0 %5509
    %v5511 = vrot.slane %v5510, 1
    %v5513 = vtanh.pop %v5511
    %v5514 = vmul.f32 %v5507, %v5397
    %v5515 = vmul.f32 %v5507, %v5513
    %5517 = vrot.lane.b32.xlu0 %v5515, 64
    %v5518 = vpop.permute.xlu0 %5517
    %v5520 = vadd.f32 %v5514, %v5518
    %v5521 = vtanh.pop %v5520
    %v5523 = vrot.slane %v5507, 1
    %5526 = vrot.lane.b32.xlu0 %v5521, 64
    %v5527 = vpop.permute.xlu0 %5526
    %v5529 = vmul.f32 %v5523, %v5527
    %s5530 = scalar_lea.vmem [#allocation5], 5
    %v5531 = vld [vmem:[%s5530] ss:$8 sm:$0x3]
    %v5533 = vsel %vm95, %v5529, 0
    %5535 = vmatprep.subr.mxu0 %v4901
    %5536 = vmatpush1.msra.mxu0 %v4900
    %5537 = vmatprep.subr.mxu0 %v4903
    %5538 = vmatpush1.msra.mxu0 %v4902
    %5539 = vmatprep.subr.mxu0 %v4905
    %5540 = vmatpush1.msra.mxu0 %v4904
    %5541 = vmatprep.subr.mxu0 %v4907
    %5542 = vmatpush1.msra.mxu0 %v4906
    %5543 = vmatprep.subr.mxu0 %v4909
    %5544 = vmatpush1.msra.mxu0 %v4908
    %5545 = vmatprep.subr.mxu0 %v4911
    %5546 = vmatpush1.msra.mxu0 %v4910
    %5547 = vmatprep.subr.mxu0 %v4913
    %5548 = vmatpush1.msra.mxu0 %v4912
    %5549 = vmatprep.subr.mxu0 %v4915
    %5550 = vmatpush1.msra.mxu0 %v4914
    %5551 = vmatprep.subr.mxu0 0.0
    %5552 = vmatpush1.msra.mxu0 0.0
    %5553 = vmatprep.subr.mxu0 0.0
    %5554 = vmatpush1.msra.mxu0 0.0
    %5555 = vmatprep.subr.mxu0 0.0
    %5556 = vmatpush1.msra.mxu0 0.0
    %5557 = vmatprep.subr.mxu0 0.0
    %5558 = vmatpush1.msra.mxu0 0.0
    %5559 = vmatprep.subr.mxu0 0.0
    %5560 = vmatpush1.msra.mxu0 0.0
    %5561 = vmatprep.subr.mxu0 0.0
    %5562 = vmatpush1.msra.mxu0 0.0
    %5563 = vmatprep.subr.mxu0 0.0
    %5564 = vmatpush1.msra.mxu0 0.0
    %5565 = vmatprep.subr.mxu0 0.0
    %5566 = vmatpush1.msra.mxu0 0.0
    %5567 = vmatprep.subr.mxu0 0.0
    %5568 = vmatpush1.msra.mxu0 0.0
    %5569 = vmatprep.subr.mxu0 0.0
    %5570 = vmatpush1.msra.mxu0 0.0
    %5571 = vmatprep.subr.mxu0 0.0
    %5572 = vmatpush1.msra.mxu0 0.0
    %5573 = vmatprep.subr.mxu0 0.0
    %5574 = vmatpush1.msra.mxu0 0.0
    %5575 = vmatprep.subr.mxu0 0.0
    %5576 = vmatpush1.msra.mxu0 0.0
    %5577 = vmatprep.subr.mxu0 0.0
    %5578 = vmatpush1.msra.mxu0 0.0
    %5579 = vmatprep.subr.mxu0 0.0
    %5580 = vmatpush1.msra.mxu0 0.0
    %5581 = vmatprep.subr.mxu0 0.0
    %5582 = vmatpush1.msra.mxu0 0.0
    %5583 = vmatprep.subr.mxu0 0.0
    %5584 = vmatpush1.msra.mxu0 0.0
    %5585 = vmatprep.subr.mxu0 0.0
    %5586 = vmatpush1.msra.mxu0 0.0
    %5587 = vmatprep.subr.mxu0 0.0
    %5588 = vmatpush1.msra.mxu0 0.0
    %5589 = vmatprep.subr.mxu0 0.0
    %5590 = vmatpush1.msra.mxu0 0.0
    %5591 = vmatprep.subr.mxu0 0.0
    %5592 = vmatpush1.msra.mxu0 0.0
    %5593 = vmatprep.subr.mxu0 0.0
    %5594 = vmatpush1.msra.mxu0 0.0
    %5595 = vmatprep.subr.mxu0 0.0
    %5596 = vmatpush1.msra.mxu0 0.0
    %5597 = vmatprep.subr.mxu0 0.0
    %5598 = vmatpush1.msra.mxu0 0.0
    %5599 = vmatprep.mubr.f32.mxu0 0.0
    %5600 = vmatmul.mubr.f32.gmra.mrb[0].mxu0 %v5533
    %v5601 = vpop.f32.mrb[0].mxu0
    %v5602 = vadd.f32 0.0, %v5601
    %v5603 = vpop.f32.mrb[0].mxu0
    %v5604 = vadd.f32 0.0, %v5603
    %5605 = vdwg.mxu0
    %v5608 = vcombine.low %v5602, %v5604
    %v5610 = vunpack.c.l.s4 1966171168
    %v5611 = vunpack.c.0.s8 %v5610
    %v5612 = vlaneseq
    %v5613 = vshrl.u32 %v5612, 7
    %v5614 = vsub.s32 %v5611, %v5613
    %v5615 = vrot.slane %v5608, %v5614
    %v5617 = vunpack.c.l.s4 1966171168
    %v5618 = vunpack.c.0.s8 %v5617
    %v5619 = vlaneseq
    %v5620 = vshrl.u32 %v5619, 7
    %v5621 = vsub.s32 %v5618, %v5620
    %v5622 = vrot.slane %v5615, %v5621
    %v5624 = vadd.f32 %v5531, %v5622
    %v5625 = vxor.u32 %v5624, 2147483648
    %v5626 = vmul.f32 %v5625, 1.442695
    %v5627 = vpow.pop %v5626
    %v5628 = vadd.f32 %v5627, 1.0
    %v5629 = vrcp.pop %v5628
    %v5630 = vmul.f32 1.0, %v5629
    %5632 = vrot.lane.b32.xlu0 %v5624, 64
    %v5633 = vpop.permute.xlu0 %5632
    %v5634 = vrot.slane %v5633, 1
    %v5636 = vtanh.pop %v5634
    %v5637 = vmul.f32 %v5630, %v5520
    %v5638 = vmul.f32 %v5630, %v5636
    %5640 = vrot.lane.b32.xlu0 %v5638, 64
    %v5641 = vpop.permute.xlu0 %5640
    %v5643 = vadd.f32 %v5637, %v5641
    %v5644 = vtanh.pop %v5643
    %v5646 = vrot.slane %v5630, 1
    %5649 = vrot.lane.b32.xlu0 %v5644, 64
    %v5650 = vpop.permute.xlu0 %5649
    %v5652 = vmul.f32 %v5646, %v5650
    %s5653 = scalar_lea.vmem [#allocation5], 6
    %v5654 = vld [vmem:[%s5653] ss:$8 sm:$0x3]
    %v5656 = vsel %vm95, %v5652, 0
    %5658 = vmatprep.subr.mxu0 %v4901
    %5659 = vmatpush1.msra.mxu0 %v4900
    %5660 = vmatprep.subr.mxu0 %v4903
    %5661 = vmatpush1.msra.mxu0 %v4902
    %5662 = vmatprep.subr.mxu0 %v4905
    %5663 = vmatpush1.msra.mxu0 %v4904
    %5664 = vmatprep.subr.mxu0 %v4907
    %5665 = vmatpush1.msra.mxu0 %v4906
    %5666 = vmatprep.subr.mxu0 %v4909
    %5667 = vmatpush1.msra.mxu0 %v4908
    %5668 = vmatprep.subr.mxu0 %v4911
    %5669 = vmatpush1.msra.mxu0 %v4910
    %5670 = vmatprep.subr.mxu0 %v4913
    %5671 = vmatpush1.msra.mxu0 %v4912
    %5672 = vmatprep.subr.mxu0 %v4915
    %5673 = vmatpush1.msra.mxu0 %v4914
    %5674 = vmatprep.subr.mxu0 0.0
    %5675 = vmatpush1.msra.mxu0 0.0
    %5676 = vmatprep.subr.mxu0 0.0
    %5677 = vmatpush1.msra.mxu0 0.0
    %5678 = vmatprep.subr.mxu0 0.0
    %5679 = vmatpush1.msra.mxu0 0.0
    %5680 = vmatprep.subr.mxu0 0.0
    %5681 = vmatpush1.msra.mxu0 0.0
    %5682 = vmatprep.subr.mxu0 0.0
    %5683 = vmatpush1.msra.mxu0 0.0
    %5684 = vmatprep.subr.mxu0 0.0
    %5685 = vmatpush1.msra.mxu0 0.0
    %5686 = vmatprep.subr.mxu0 0.0
    %5687 = vmatpush1.msra.mxu0 0.0
    %5688 = vmatprep.subr.mxu0 0.0
    %5689 = vmatpush1.msra.mxu0 0.0
    %5690 = vmatprep.subr.mxu0 0.0
    %5691 = vmatpush1.msra.mxu0 0.0
    %5692 = vmatprep.subr.mxu0 0.0
    %5693 = vmatpush1.msra.mxu0 0.0
    %5694 = vmatprep.subr.mxu0 0.0
    %5695 = vmatpush1.msra.mxu0 0.0
    %5696 = vmatprep.subr.mxu0 0.0
    %5697 = vmatpush1.msra.mxu0 0.0
    %5698 = vmatprep.subr.mxu0 0.0
    %5699 = vmatpush1.msra.mxu0 0.0
    %5700 = vmatprep.subr.mxu0 0.0
    %5701 = vmatpush1.msra.mxu0 0.0
    %5702 = vmatprep.subr.mxu0 0.0
    %5703 = vmatpush1.msra.mxu0 0.0
    %5704 = vmatprep.subr.mxu0 0.0
    %5705 = vmatpush1.msra.mxu0 0.0
    %5706 = vmatprep.subr.mxu0 0.0
    %5707 = vmatpush1.msra.mxu0 0.0
    %5708 = vmatprep.subr.mxu0 0.0
    %5709 = vmatpush1.msra.mxu0 0.0
    %5710 = vmatprep.subr.mxu0 0.0
    %5711 = vmatpush1.msra.mxu0 0.0
    %5712 = vmatprep.subr.mxu0 0.0
    %5713 = vmatpush1.msra.mxu0 0.0
    %5714 = vmatprep.subr.mxu0 0.0
    %5715 = vmatpush1.msra.mxu0 0.0
    %5716 = vmatprep.subr.mxu0 0.0
    %5717 = vmatpush1.msra.mxu0 0.0
    %5718 = vmatprep.subr.mxu0 0.0
    %5719 = vmatpush1.msra.mxu0 0.0
    %5720 = vmatprep.subr.mxu0 0.0
    %5721 = vmatpush1.msra.mxu0 0.0
    %5722 = vmatprep.mubr.f32.mxu0 0.0
    %5723 = vmatmul.mubr.f32.gmra.mrb[0].mxu0 %v5656
    %v5724 = vpop.f32.mrb[0].mxu0
    %v5725 = vadd.f32 0.0, %v5724
    %v5726 = vpop.f32.mrb[0].mxu0
    %v5727 = vadd.f32 0.0, %v5726
    %5728 = vdwg.mxu0
    %v5731 = vcombine.low %v5725, %v5727
    %v5733 = vunpack.c.l.s4 1966171168
    %v5734 = vunpack.c.0.s8 %v5733
    %v5735 = vlaneseq
    %v5736 = vshrl.u32 %v5735, 7
    %v5737 = vsub.s32 %v5734, %v5736
    %v5738 = vrot.slane %v5731, %v5737
    %v5740 = vunpack.c.l.s4 1966171168
    %v5741 = vunpack.c.0.s8 %v5740
    %v5742 = vlaneseq
    %v5743 = vshrl.u32 %v5742, 7
    %v5744 = vsub.s32 %v5741, %v5743
    %v5745 = vrot.slane %v5738, %v5744
    %v5747 = vadd.f32 %v5654, %v5745
    %v5748 = vxor.u32 %v5747, 2147483648
    %v5749 = vmul.f32 %v5748, 1.442695
    %v5750 = vpow.pop %v5749
    %v5751 = vadd.f32 %v5750, 1.0
    %v5752 = vrcp.pop %v5751
    %v5753 = vmul.f32 1.0, %v5752
    %5755 = vrot.lane.b32.xlu0 %v5747, 64
    %v5756 = vpop.permute.xlu0 %5755
    %v5757 = vrot.slane %v5756, 1
    %v5759 = vtanh.pop %v5757
    %v5760 = vmul.f32 %v5753, %v5643
    %v5761 = vmul.f32 %v5753, %v5759
    %5763 = vrot.lane.b32.xlu0 %v5761, 64
    %v5764 = vpop.permute.xlu0 %5763
    %v5766 = vadd.f32 %v5760, %v5764
    %v5767 = vtanh.pop %v5766
    %v5769 = vrot.slane %v5753, 1
    %5772 = vrot.lane.b32.xlu0 %v5767, 64
    %v5773 = vpop.permute.xlu0 %5772
    %v5775 = vmul.f32 %v5769, %v5773
    %s5776 = scalar_lea.vmem [#allocation5], 7
    %v5777 = vld [vmem:[%s5776] ss:$8 sm:$0x3]
    %v5779 = vsel %vm95, %v5775, 0
    %5781 = vmatprep.subr.mxu0 %v4901
    %5782 = vmatpush1.msra.mxu0 %v4900
    %5783 = vmatprep.subr.mxu0 %v4903
    %5784 = vmatpush1.msra.mxu0 %v4902
    %5785 = vmatprep.subr.mxu0 %v4905
    %5786 = vmatpush1.msra.mxu0 %v4904
    %5787 = vmatprep.subr.mxu0 %v4907
    %5788 = vmatpush1.msra.mxu0 %v4906
    %5789 = vmatprep.subr.mxu0 %v4909
    %5790 = vmatpush1.msra.mxu0 %v4908
    %5791 = vmatprep.subr.mxu0 %v4911
    %5792 = vmatpush1.msra.mxu0 %v4910
    %5793 = vmatprep.subr.mxu0 %v4913
    %5794 = vmatpush1.msra.mxu0 %v4912
    %5795 = vmatprep.subr.mxu0 %v4915
    %5796 = vmatpush1.msra.mxu0 %v4914
    %5797 = vmatprep.subr.mxu0 0.0
    %5798 = vmatpush1.msra.mxu0 0.0
    %5799 = vmatprep.subr.mxu0 0.0
    %5800 = vmatpush1.msra.mxu0 0.0
    %5801 = vmatprep.subr.mxu0 0.0
    %5802 = vmatpush1.msra.mxu0 0.0
    %5803 = vmatprep.subr.mxu0 0.0
    %5804 = vmatpush1.msra.mxu0 0.0
    %5805 = vmatprep.subr.mxu0 0.0
    %5806 = vmatpush1.msra.mxu0 0.0
    %5807 = vmatprep.subr.mxu0 0.0
    %5808 = vmatpush1.msra.mxu0 0.0
    %5809 = vmatprep.subr.mxu0 0.0
    %5810 = vmatpush1.msra.mxu0 0.0
    %5811 = vmatprep.subr.mxu0 0.0
    %5812 = vmatpush1.msra.mxu0 0.0
    %5813 = vmatprep.subr.mxu0 0.0
    %5814 = vmatpush1.msra.mxu0 0.0
    %5815 = vmatprep.subr.mxu0 0.0
    %5816 = vmatpush1.msra.mxu0 0.0
    %5817 = vmatprep.subr.mxu0 0.0
    %5818 = vmatpush1.msra.mxu0 0.0
    %5819 = vmatprep.subr.mxu0 0.0
    %5820 = vmatpush1.msra.mxu0 0.0
    %5821 = vmatprep.subr.mxu0 0.0
    %5822 = vmatpush1.msra.mxu0 0.0
    %5823 = vmatprep.subr.mxu0 0.0
    %5824 = vmatpush1.msra.mxu0 0.0
    %5825 = vmatprep.subr.mxu0 0.0
    %5826 = vmatpush1.msra.mxu0 0.0
    %5827 = vmatprep.subr.mxu0 0.0
    %5828 = vmatpush1.msra.mxu0 0.0
    %5829 = vmatprep.subr.mxu0 0.0
    %5830 = vmatpush1.msra.mxu0 0.0
    %5831 = vmatprep.subr.mxu0 0.0
    %5832 = vmatpush1.msra.mxu0 0.0
    %5833 = vmatprep.subr.mxu0 0.0
    %5834 = vmatpush1.msra.mxu0 0.0
    %5835 = vmatprep.subr.mxu0 0.0
    %5836 = vmatpush1.msra.mxu0 0.0
    %5837 = vmatprep.subr.mxu0 0.0
    %5838 = vmatpush1.msra.mxu0 0.0
    %5839 = vmatprep.subr.mxu0 0.0
    %5840 = vmatpush1.msra.mxu0 0.0
    %5841 = vmatprep.subr.mxu0 0.0
    %5842 = vmatpush1.msra.mxu0 0.0
    %5843 = vmatprep.subr.mxu0 0.0
    %5844 = vmatpush1.msra.mxu0 0.0
    %5845 = vmatprep.mubr.f32.mxu0 0.0
    %5846 = vmatmul.mubr.f32.gmra.mrb[0].mxu0 %v5779
    %v5847 = vpop.f32.mrb[0].mxu0
    %v5848 = vadd.f32 0.0, %v5847
    %v5849 = vpop.f32.mrb[0].mxu0
    %v5850 = vadd.f32 0.0, %v5849
    %5851 = vdwg.mxu0
    %v5854 = vcombine.low %v5848, %v5850
    %v5856 = vunpack.c.l.s4 1966171168
    %v5857 = vunpack.c.0.s8 %v5856
    %v5858 = vlaneseq
    %v5859 = vshrl.u32 %v5858, 7
    %v5860 = vsub.s32 %v5857, %v5859
    %v5861 = vrot.slane %v5854, %v5860
    %v5863 = vunpack.c.l.s4 1966171168
    %v5864 = vunpack.c.0.s8 %v5863
    %v5865 = vlaneseq
    %v5866 = vshrl.u32 %v5865, 7
    %v5867 = vsub.s32 %v5864, %v5866
    %v5868 = vrot.slane %v5861, %v5867
    %v5870 = vadd.f32 %v5777, %v5868
    %v5871 = vxor.u32 %v5870, 2147483648
    %v5872 = vmul.f32 %v5871, 1.442695
    %v5873 = vpow.pop %v5872
    %v5874 = vadd.f32 %v5873, 1.0
    %v5875 = vrcp.pop %v5874
    %v5876 = vmul.f32 1.0, %v5875
    %5878 = vrot.lane.b32.xlu0 %v5870, 64
    %v5879 = vpop.permute.xlu0 %5878
    %v5880 = vrot.slane %v5879, 1
    %v5882 = vtanh.pop %v5880
    %v5883 = vmul.f32 %v5876, %v5766
    %v5884 = vmul.f32 %v5876, %v5882
    %5886 = vrot.lane.b32.xlu0 %v5884, 64
    %v5887 = vpop.permute.xlu0 %5886
    %v5889 = vadd.f32 %v5883, %v5887
    %v5890 = vtanh.pop %v5889
    %v5892 = vrot.slane %v5876, 1
    %5895 = vrot.lane.b32.xlu0 %v5890, 64
    %v5896 = vpop.permute.xlu0 %5895
    %v5898 = vmul.f32 %v5892, %v5896
    %s5899 = scalar_lea.vmem [#allocation5], 16
    %v5900 = vld [vmem:[%s5899] ss:$8 sm:$0x3]
    %v5902 = vsel %vm95, %v5898, 0
    %5904 = vmatprep.subr.mxu0 %v4901
    %5905 = vmatpush1.msra.mxu0 %v4900
    %5906 = vmatprep.subr.mxu0 %v4903
    %5907 = vmatpush1.msra.mxu0 %v4902
    %5908 = vmatprep.subr.mxu0 %v4905
    %5909 = vmatpush1.msra.mxu0 %v4904
    %5910 = vmatprep.subr.mxu0 %v4907
    %5911 = vmatpush1.msra.mxu0 %v4906
    %5912 = vmatprep.subr.mxu0 %v4909
    %5913 = vmatpush1.msra.mxu0 %v4908
    %5914 = vmatprep.subr.mxu0 %v4911
    %5915 = vmatpush1.msra.mxu0 %v4910
    %5916 = vmatprep.subr.mxu0 %v4913
    %5917 = vmatpush1.msra.mxu0 %v4912
    %5918 = vmatprep.subr.mxu0 %v4915
    %5919 = vmatpush1.msra.mxu0 %v4914
    %5920 = vmatprep.subr.mxu0 0.0
    %5921 = vmatpush1.msra.mxu0 0.0
    %5922 = vmatprep.subr.mxu0 0.0
    %5923 = vmatpush1.msra.mxu0 0.0
    %5924 = vmatprep.subr.mxu0 0.0
    %5925 = vmatpush1.msra.mxu0 0.0
    %5926 = vmatprep.subr.mxu0 0.0
    %5927 = vmatpush1.msra.mxu0 0.0
    %5928 = vmatprep.subr.mxu0 0.0
    %5929 = vmatpush1.msra.mxu0 0.0
    %5930 = vmatprep.subr.mxu0 0.0
    %5931 = vmatpush1.msra.mxu0 0.0
    %5932 = vmatprep.subr.mxu0 0.0
    %5933 = vmatpush1.msra.mxu0 0.0
    %5934 = vmatprep.subr.mxu0 0.0
    %5935 = vmatpush1.msra.mxu0 0.0
    %5936 = vmatprep.subr.mxu0 0.0
    %5937 = vmatpush1.msra.mxu0 0.0
    %5938 = vmatprep.subr.mxu0 0.0
    %5939 = vmatpush1.msra.mxu0 0.0
    %5940 = vmatprep.subr.mxu0 0.0
    %5941 = vmatpush1.msra.mxu0 0.0
    %5942 = vmatprep.subr.mxu0 0.0
    %5943 = vmatpush1.msra.mxu0 0.0
    %5944 = vmatprep.subr.mxu0 0.0
    %5945 = vmatpush1.msra.mxu0 0.0
    %5946 = vmatprep.subr.mxu0 0.0
    %5947 = vmatpush1.msra.mxu0 0.0
    %5948 = vmatprep.subr.mxu0 0.0
    %5949 = vmatpush1.msra.mxu0 0.0
    %5950 = vmatprep.subr.mxu0 0.0
    %5951 = vmatpush1.msra.mxu0 0.0
    %5952 = vmatprep.subr.mxu0 0.0
    %5953 = vmatpush1.msra.mxu0 0.0
    %5954 = vmatprep.subr.mxu0 0.0
    %5955 = vmatpush1.msra.mxu0 0.0
    %5956 = vmatprep.subr.mxu0 0.0
    %5957 = vmatpush1.msra.mxu0 0.0
    %5958 = vmatprep.subr.mxu0 0.0
    %5959 = vmatpush1.msra.mxu0 0.0
    %5960 = vmatprep.subr.mxu0 0.0
    %5961 = vmatpush1.msra.mxu0 0.0
    %5962 = vmatprep.subr.mxu0 0.0
    %5963 = vmatpush1.msra.mxu0 0.0
    %5964 = vmatprep.subr.mxu0 0.0
    %5965 = vmatpush1.msra.mxu0 0.0
    %5966 = vmatprep.subr.mxu0 0.0
    %5967 = vmatpush1.msra.mxu0 0.0
    %5968 = vmatprep.mubr.f32.mxu0 0.0
    %5969 = vmatmul.mubr.f32.gmra.mrb[0].mxu0 %v5902
    %v5970 = vpop.f32.mrb[0].mxu0
    %v5971 = vadd.f32 0.0, %v5970
    %v5972 = vpop.f32.mrb[0].mxu0
    %v5973 = vadd.f32 0.0, %v5972
    %5974 = vdwg.mxu0
    %v5977 = vcombine.low %v5971, %v5973
    %v5979 = vunpack.c.l.s4 1966171168
    %v5980 = vunpack.c.0.s8 %v5979
    %v5981 = vlaneseq
    %v5982 = vshrl.u32 %v5981, 7
    %v5983 = vsub.s32 %v5980, %v5982
    %v5984 = vrot.slane %v5977, %v5983
    %v5986 = vunpack.c.l.s4 1966171168
    %v5987 = vunpack.c.0.s8 %v5986
    %v5988 = vlaneseq
    %v5989 = vshrl.u32 %v5988, 7
    %v5990 = vsub.s32 %v5987, %v5989
    %v5991 = vrot.slane %v5984, %v5990
    %v5993 = vadd.f32 %v5900, %v5991
    %v5994 = vxor.u32 %v5993, 2147483648
    %v5995 = vmul.f32 %v5994, 1.442695
    %v5996 = vpow.pop %v5995
    %v5997 = vadd.f32 %v5996, 1.0
    %v5998 = vrcp.pop %v5997
    %v5999 = vmul.f32 1.0, %v5998
    %6001 = vrot.lane.b32.xlu0 %v5993, 64
    %v6002 = vpop.permute.xlu0 %6001
    %v6003 = vrot.slane %v6002, 1
    %v6005 = vtanh.pop %v6003
    %v6006 = vmul.f32 %v5999, %v5889
    %v6007 = vmul.f32 %v5999, %v6005
    %6009 = vrot.lane.b32.xlu0 %v6007, 64
    %v6010 = vpop.permute.xlu0 %6009
    %v6012 = vadd.f32 %v6006, %v6010
    %v6013 = vtanh.pop %v6012
    %v6015 = vrot.slane %v5999, 1
    %6018 = vrot.lane.b32.xlu0 %v6013, 64
    %v6019 = vpop.permute.xlu0 %6018
    %v6021 = vmul.f32 %v6015, %v6019
    %s6022 = scalar_lea.vmem [#allocation5], 17
    %v6023 = vld [vmem:[%s6022] ss:$8 sm:$0x3]
    %v6025 = vsel %vm95, %v6021, 0
    %6027 = vmatprep.subr.mxu0 %v4901
    %6028 = vmatpush1.msra.mxu0 %v4900
    %6029 = vmatprep.subr.mxu0 %v4903
    %6030 = vmatpush1.msra.mxu0 %v4902
    %6031 = vmatprep.subr.mxu0 %v4905
    %6032 = vmatpush1.msra.mxu0 %v4904
    %6033 = vmatprep.subr.mxu0 %v4907
    %6034 = vmatpush1.msra.mxu0 %v4906
    %6035 = vmatprep.subr.mxu0 %v4909
    %6036 = vmatpush1.msra.mxu0 %v4908
    %6037 = vmatprep.subr.mxu0 %v4911
    %6038 = vmatpush1.msra.mxu0 %v4910
    %6039 = vmatprep.subr.mxu0 %v4913
    %6040 = vmatpush1.msra.mxu0 %v4912
    %6041 = vmatprep.subr.mxu0 %v4915
    %6042 = vmatpush1.msra.mxu0 %v4914
    %6043 = vmatprep.subr.mxu0 0.0
    %6044 = vmatpush1.msra.mxu0 0.0
    %6045 = vmatprep.subr.mxu0 0.0
    %6046 = vmatpush1.msra.mxu0 0.0
    %6047 = vmatprep.subr.mxu0 0.0
    %6048 = vmatpush1.msra.mxu0 0.0
    %6049 = vmatprep.subr.mxu0 0.0
    %6050 = vmatpush1.msra.mxu0 0.0
    %6051 = vmatprep.subr.mxu0 0.0
    %6052 = vmatpush1.msra.mxu0 0.0
    %6053 = vmatprep.subr.mxu0 0.0
    %6054 = vmatpush1.msra.mxu0 0.0
    %6055 = vmatprep.subr.mxu0 0.0
    %6056 = vmatpush1.msra.mxu0 0.0
    %6057 = vmatprep.subr.mxu0 0.0
    %6058 = vmatpush1.msra.mxu0 0.0
    %6059 = vmatprep.subr.mxu0 0.0
    %6060 = vmatpush1.msra.mxu0 0.0
    %6061 = vmatprep.subr.mxu0 0.0
    %6062 = vmatpush1.msra.mxu0 0.0
    %6063 = vmatprep.subr.mxu0 0.0
    %6064 = vmatpush1.msra.mxu0 0.0
    %6065 = vmatprep.subr.mxu0 0.0
    %6066 = vmatpush1.msra.mxu0 0.0
    %6067 = vmatprep.subr.mxu0 0.0
    %6068 = vmatpush1.msra.mxu0 0.0
    %6069 = vmatprep.subr.mxu0 0.0
    %6070 = vmatpush1.msra.mxu0 0.0
    %6071 = vmatprep.subr.mxu0 0.0
    %6072 = vmatpush1.msra.mxu0 0.0
    %6073 = vmatprep.subr.mxu0 0.0
    %6074 = vmatpush1.msra.mxu0 0.0
    %6075 = vmatprep.subr.mxu0 0.0
    %6076 = vmatpush1.msra.mxu0 0.0
    %6077 = vmatprep.subr.mxu0 0.0
    %6078 = vmatpush1.msra.mxu0 0.0
    %6079 = vmatprep.subr.mxu0 0.0
    %6080 = vmatpush1.msra.mxu0 0.0
    %6081 = vmatprep.subr.mxu0 0.0
    %6082 = vmatpush1.msra.mxu0 0.0
    %6083 = vmatprep.subr.mxu0 0.0
    %6084 = vmatpush1.msra.mxu0 0.0
    %6085 = vmatprep.subr.mxu0 0.0
    %6086 = vmatpush1.msra.mxu0 0.0
    %6087 = vmatprep.subr.mxu0 0.0
    %6088 = vmatpush1.msra.mxu0 0.0
    %6089 = vmatprep.subr.mxu0 0.0
    %6090 = vmatpush1.msra.mxu0 0.0
    %6091 = vmatprep.mubr.f32.mxu0 0.0
    %6092 = vmatmul.mubr.f32.gmra.mrb[0].mxu0 %v6025
    %v6093 = vpop.f32.mrb[0].mxu0
    %v6094 = vadd.f32 0.0, %v6093
    %v6095 = vpop.f32.mrb[0].mxu0
    %v6096 = vadd.f32 0.0, %v6095
    %6097 = vdwg.mxu0
    %v6100 = vcombine.low %v6094, %v6096
    %v6102 = vunpack.c.l.s4 1966171168
    %v6103 = vunpack.c.0.s8 %v6102
    %v6104 = vlaneseq
    %v6105 = vshrl.u32 %v6104, 7
    %v6106 = vsub.s32 %v6103, %v6105
    %v6107 = vrot.slane %v6100, %v6106
    %v6109 = vunpack.c.l.s4 1966171168
    %v6110 = vunpack.c.0.s8 %v6109
    %v6111 = vlaneseq
    %v6112 = vshrl.u32 %v6111, 7
    %v6113 = vsub.s32 %v6110, %v6112
    %v6114 = vrot.slane %v6107, %v6113
    %v6116 = vadd.f32 %v6023, %v6114
    %v6117 = vxor.u32 %v6116, 2147483648
    %v6118 = vmul.f32 %v6117, 1.442695
    %v6119 = vpow.pop %v6118
    %v6120 = vadd.f32 %v6119, 1.0
    %v6121 = vrcp.pop %v6120
    %v6122 = vmul.f32 1.0, %v6121
    %6124 = vrot.lane.b32.xlu0 %v6116, 64
    %v6125 = vpop.permute.xlu0 %6124
    %v6126 = vrot.slane %v6125, 1
    %v6128 = vtanh.pop %v6126
    %v6129 = vmul.f32 %v6122, %v6012
    %v6130 = vmul.f32 %v6122, %v6128
    %6132 = vrot.lane.b32.xlu0 %v6130, 64
    %v6133 = vpop.permute.xlu0 %6132
    %v6135 = vadd.f32 %v6129, %v6133
    %v6136 = vtanh.pop %v6135
    %v6138 = vrot.slane %v6122, 1
    %6141 = vrot.lane.b32.xlu0 %v6136, 64
    %v6142 = vpop.permute.xlu0 %6141
    %v6144 = vmul.f32 %v6138, %v6142
    %s6145 = scalar_lea.vmem [#allocation5], 18
    %v6146 = vld [vmem:[%s6145] ss:$8 sm:$0x3]
    %v6148 = vsel %vm95, %v6144, 0
    %6150 = vmatprep.subr.mxu0 %v4901
    %6151 = vmatpush1.msra.mxu0 %v4900
    %6152 = vmatprep.subr.mxu0 %v4903
    %6153 = vmatpush1.msra.mxu0 %v4902
    %6154 = vmatprep.subr.mxu0 %v4905
    %6155 = vmatpush1.msra.mxu0 %v4904
    %6156 = vmatprep.subr.mxu0 %v4907
    %6157 = vmatpush1.msra.mxu0 %v4906
    %6158 = vmatprep.subr.mxu0 %v4909
    %6159 = vmatpush1.msra.mxu0 %v4908
    %6160 = vmatprep.subr.mxu0 %v4911
    %6161 = vmatpush1.msra.mxu0 %v4910
    %6162 = vmatprep.subr.mxu0 %v4913
    %6163 = vmatpush1.msra.mxu0 %v4912
    %6164 = vmatprep.subr.mxu0 %v4915
    %6165 = vmatpush1.msra.mxu0 %v4914
    %6166 = vmatprep.subr.mxu0 0.0
    %6167 = vmatpush1.msra.mxu0 0.0
    %6168 = vmatprep.subr.mxu0 0.0
    %6169 = vmatpush1.msra.mxu0 0.0
    %6170 = vmatprep.subr.mxu0 0.0
    %6171 = vmatpush1.msra.mxu0 0.0
    %6172 = vmatprep.subr.mxu0 0.0
    %6173 = vmatpush1.msra.mxu0 0.0
    %6174 = vmatprep.subr.mxu0 0.0
    %6175 = vmatpush1.msra.mxu0 0.0
    %6176 = vmatprep.subr.mxu0 0.0
    %6177 = vmatpush1.msra.mxu0 0.0
    %6178 = vmatprep.subr.mxu0 0.0
    %6179 = vmatpush1.msra.mxu0 0.0
    %6180 = vmatprep.subr.mxu0 0.0
    %6181 = vmatpush1.msra.mxu0 0.0
    %6182 = vmatprep.subr.mxu0 0.0
    %6183 = vmatpush1.msra.mxu0 0.0
    %6184 = vmatprep.subr.mxu0 0.0
    %6185 = vmatpush1.msra.mxu0 0.0
    %6186 = vmatprep.subr.mxu0 0.0
    %6187 = vmatpush1.msra.mxu0 0.0
    %6188 = vmatprep.subr.mxu0 0.0
    %6189 = vmatpush1.msra.mxu0 0.0
    %6190 = vmatprep.subr.mxu0 0.0
    %6191 = vmatpush1.msra.mxu0 0.0
    %6192 = vmatprep.subr.mxu0 0.0
    %6193 = vmatpush1.msra.mxu0 0.0
    %6194 = vmatprep.subr.mxu0 0.0
    %6195 = vmatpush1.msra.mxu0 0.0
    %6196 = vmatprep.subr.mxu0 0.0
    %6197 = vmatpush1.msra.mxu0 0.0
    %6198 = vmatprep.subr.mxu0 0.0
    %6199 = vmatpush1.msra.mxu0 0.0
    %6200 = vmatprep.subr.mxu0 0.0
    %6201 = vmatpush1.msra.mxu0 0.0
    %6202 = vmatprep.subr.mxu0 0.0
    %6203 = vmatpush1.msra.mxu0 0.0
    %6204 = vmatprep.subr.mxu0 0.0
    %6205 = vmatpush1.msra.mxu0 0.0
    %6206 = vmatprep.subr.mxu0 0.0
    %6207 = vmatpush1.msra.mxu0 0.0
    %6208 = vmatprep.subr.mxu0 0.0
    %6209 = vmatpush1.msra.mxu0 0.0
    %6210 = vmatprep.subr.mxu0 0.0
    %6211 = vmatpush1.msra.mxu0 0.0
    %6212 = vmatprep.subr.mxu0 0.0
    %6213 = vmatpush1.msra.mxu0 0.0
    %6214 = vmatprep.mubr.f32.mxu0 0.0
    %6215 = vmatmul.mubr.f32.gmra.mrb[0].mxu0 %v6148
    %v6216 = vpop.f32.mrb[0].mxu0
    %v6217 = vadd.f32 0.0, %v6216
    %v6218 = vpop.f32.mrb[0].mxu0
    %v6219 = vadd.f32 0.0, %v6218
    %6220 = vdwg.mxu0
    %v6223 = vcombine.low %v6217, %v6219
    %v6225 = vunpack.c.l.s4 1966171168
    %v6226 = vunpack.c.0.s8 %v6225
    %v6227 = vlaneseq
    %v6228 = vshrl.u32 %v6227, 7
    %v6229 = vsub.s32 %v6226, %v6228
    %v6230 = vrot.slane %v6223, %v6229
    %v6232 = vunpack.c.l.s4 1966171168
    %v6233 = vunpack.c.0.s8 %v6232
    %v6234 = vlaneseq
    %v6235 = vshrl.u32 %v6234, 7
    %v6236 = vsub.s32 %v6233, %v6235
    %v6237 = vrot.slane %v6230, %v6236
    %v6239 = vadd.f32 %v6146, %v6237
    %v6240 = vxor.u32 %v6239, 2147483648
    %v6241 = vmul.f32 %v6240, 1.442695
    %v6242 = vpow.pop %v6241
    %v6243 = vadd.f32 %v6242, 1.0
    %v6244 = vrcp.pop %v6243
    %v6245 = vmul.f32 1.0, %v6244
    %6247 = vrot.lane.b32.xlu0 %v6239, 64
    %v6248 = vpop.permute.xlu0 %6247
    %v6249 = vrot.slane %v6248, 1
    %v6251 = vtanh.pop %v6249
    %v6252 = vmul.f32 %v6245, %v6135
    %v6253 = vmul.f32 %v6245, %v6251
    %6255 = vrot.lane.b32.xlu0 %v6253, 64
    %v6256 = vpop.permute.xlu0 %6255
    %v6258 = vadd.f32 %v6252, %v6256
    %v6259 = vtanh.pop %v6258
    %v6261 = vrot.slane %v6245, 1
    %6264 = vrot.lane.b32.xlu0 %v6259, 64
    %v6265 = vpop.permute.xlu0 %6264
    %v6267 = vmul.f32 %v6261, %v6265
    %s6268 = scalar_lea.vmem [#allocation5], 19
    %v6269 = vld [vmem:[%s6268] ss:$8 sm:$0x3]
    %v6271 = vsel %vm95, %v6267, 0
    %6273 = vmatprep.subr.mxu0 %v4901
    %6274 = vmatpush1.msra.mxu0 %v4900
    %6275 = vmatprep.subr.mxu0 %v4903
    %6276 = vmatpush1.msra.mxu0 %v4902
    %6277 = vmatprep.subr.mxu0 %v4905
    %6278 = vmatpush1.msra.mxu0 %v4904
    %6279 = vmatprep.subr.mxu0 %v4907
    %6280 = vmatpush1.msra.mxu0 %v4906
    %6281 = vmatprep.subr.mxu0 %v4909
    %6282 = vmatpush1.msra.mxu0 %v4908
    %6283 = vmatprep.subr.mxu0 %v4911
    %6284 = vmatpush1.msra.mxu0 %v4910
    %6285 = vmatprep.subr.mxu0 %v4913
    %6286 = vmatpush1.msra.mxu0 %v4912
    %6287 = vmatprep.subr.mxu0 %v4915
    %6288 = vmatpush1.msra.mxu0 %v4914
    %6289 = vmatprep.subr.mxu0 0.0
    %6290 = vmatpush1.msra.mxu0 0.0
    %6291 = vmatprep.subr.mxu0 0.0
    %6292 = vmatpush1.msra.mxu0 0.0
    %6293 = vmatprep.subr.mxu0 0.0
    %6294 = vmatpush1.msra.mxu0 0.0
    %6295 = vmatprep.subr.mxu0 0.0
    %6296 = vmatpush1.msra.mxu0 0.0
    %6297 = vmatprep.subr.mxu0 0.0
    %6298 = vmatpush1.msra.mxu0 0.0
    %6299 = vmatprep.subr.mxu0 0.0
    %6300 = vmatpush1.msra.mxu0 0.0
    %6301 = vmatprep.subr.mxu0 0.0
    %6302 = vmatpush1.msra.mxu0 0.0
    %6303 = vmatprep.subr.mxu0 0.0
    %6304 = vmatpush1.msra.mxu0 0.0
    %6305 = vmatprep.subr.mxu0 0.0
    %6306 = vmatpush1.msra.mxu0 0.0
    %6307 = vmatprep.subr.mxu0 0.0
    %6308 = vmatpush1.msra.mxu0 0.0
    %6309 = vmatprep.subr.mxu0 0.0
    %6310 = vmatpush1.msra.mxu0 0.0
    %6311 = vmatprep.subr.mxu0 0.0
    %6312 = vmatpush1.msra.mxu0 0.0
    %6313 = vmatprep.subr.mxu0 0.0
    %6314 = vmatpush1.msra.mxu0 0.0
    %6315 = vmatprep.subr.mxu0 0.0
    %6316 = vmatpush1.msra.mxu0 0.0
    %6317 = vmatprep.subr.mxu0 0.0
    %6318 = vmatpush1.msra.mxu0 0.0
    %6319 = vmatprep.subr.mxu0 0.0
    %6320 = vmatpush1.msra.mxu0 0.0
    %6321 = vmatprep.subr.mxu0 0.0
    %6322 = vmatpush1.msra.mxu0 0.0
    %6323 = vmatprep.subr.mxu0 0.0
    %6324 = vmatpush1.msra.mxu0 0.0
    %6325 = vmatprep.subr.mxu0 0.0
    %6326 = vmatpush1.msra.mxu0 0.0
    %6327 = vmatprep.subr.mxu0 0.0
    %6328 = vmatpush1.msra.mxu0 0.0
    %6329 = vmatprep.subr.mxu0 0.0
    %6330 = vmatpush1.msra.mxu0 0.0
    %6331 = vmatprep.subr.mxu0 0.0
    %6332 = vmatpush1.msra.mxu0 0.0
    %6333 = vmatprep.subr.mxu0 0.0
    %6334 = vmatpush1.msra.mxu0 0.0
    %6335 = vmatprep.subr.mxu0 0.0
    %6336 = vmatpush1.msra.mxu0 0.0
    %6337 = vmatprep.mubr.f32.mxu0 0.0
    %6338 = vmatmul.mubr.f32.gmra.mrb[0].mxu0 %v6271
    %v6339 = vpop.f32.mrb[0].mxu0
    %v6340 = vadd.f32 0.0, %v6339
    %v6341 = vpop.f32.mrb[0].mxu0
    %v6342 = vadd.f32 0.0, %v6341
    %6343 = vdwg.mxu0
    %v6346 = vcombine.low %v6340, %v6342
    %v6348 = vunpack.c.l.s4 1966171168
    %v6349 = vunpack.c.0.s8 %v6348
    %v6350 = vlaneseq
    %v6351 = vshrl.u32 %v6350, 7
    %v6352 = vsub.s32 %v6349, %v6351
    %v6353 = vrot.slane %v6346, %v6352
    %v6355 = vunpack.c.l.s4 1966171168
    %v6356 = vunpack.c.0.s8 %v6355
    %v6357 = vlaneseq
    %v6358 = vshrl.u32 %v6357, 7
    %v6359 = vsub.s32 %v6356, %v6358
    %v6360 = vrot.slane %v6353, %v6359
    %v6362 = vadd.f32 %v6269, %v6360
    %v6363 = vxor.u32 %v6362, 2147483648
    %v6364 = vmul.f32 %v6363, 1.442695
    %v6365 = vpow.pop %v6364
    %v6366 = vadd.f32 %v6365, 1.0
    %v6367 = vrcp.pop %v6366
    %v6368 = vmul.f32 1.0, %v6367
    %6370 = vrot.lane.b32.xlu0 %v6362, 64
    %v6371 = vpop.permute.xlu0 %6370
    %v6372 = vrot.slane %v6371, 1
    %v6374 = vtanh.pop %v6372
    %v6375 = vmul.f32 %v6368, %v6258
    %v6376 = vmul.f32 %v6368, %v6374
    %6378 = vrot.lane.b32.xlu0 %v6376, 64
    %v6379 = vpop.permute.xlu0 %6378
    %v6381 = vadd.f32 %v6375, %v6379
    %v6382 = vtanh.pop %v6381
    %v6384 = vrot.slane %v6368, 1
    %6387 = vrot.lane.b32.xlu0 %v6382, 64
    %v6388 = vpop.permute.xlu0 %6387
    %v6390 = vmul.f32 %v6384, %v6388
    %s6391 = scalar_lea.vmem [#allocation5], 20
    %v6392 = vld [vmem:[%s6391] ss:$8 sm:$0x3]
    %v6394 = vsel %vm95, %v6390, 0
    %6396 = vmatprep.subr.mxu0 %v4901
    %6397 = vmatpush1.msra.mxu0 %v4900
    %6398 = vmatprep.subr.mxu0 %v4903
    %6399 = vmatpush1.msra.mxu0 %v4902
    %6400 = vmatprep.subr.mxu0 %v4905
    %6401 = vmatpush1.msra.mxu0 %v4904
    %6402 = vmatprep.subr.mxu0 %v4907
    %6403 = vmatpush1.msra.mxu0 %v4906
    %6404 = vmatprep.subr.mxu0 %v4909
    %6405 = vmatpush1.msra.mxu0 %v4908
    %6406 = vmatprep.subr.mxu0 %v4911
    %6407 = vmatpush1.msra.mxu0 %v4910
    %6408 = vmatprep.subr.mxu0 %v4913
    %6409 = vmatpush1.msra.mxu0 %v4912
    %6410 = vmatprep.subr.mxu0 %v4915
    %6411 = vmatpush1.msra.mxu0 %v4914
    %6412 = vmatprep.subr.mxu0 0.0
    %6413 = vmatpush1.msra.mxu0 0.0
    %6414 = vmatprep.subr.mxu0 0.0
    %6415 = vmatpush1.msra.mxu0 0.0
    %6416 = vmatprep.subr.mxu0 0.0
    %6417 = vmatpush1.msra.mxu0 0.0
    %6418 = vmatprep.subr.mxu0 0.0
    %6419 = vmatpush1.msra.mxu0 0.0
    %6420 = vmatprep.subr.mxu0 0.0
    %6421 = vmatpush1.msra.mxu0 0.0
    %6422 = vmatprep.subr.mxu0 0.0
    %6423 = vmatpush1.msra.mxu0 0.0
    %6424 = vmatprep.subr.mxu0 0.0
    %6425 = vmatpush1.msra.mxu0 0.0
    %6426 = vmatprep.subr.mxu0 0.0
    %6427 = vmatpush1.msra.mxu0 0.0
    %6428 = vmatprep.subr.mxu0 0.0
    %6429 = vmatpush1.msra.mxu0 0.0
    %6430 = vmatprep.subr.mxu0 0.0
    %6431 = vmatpush1.msra.mxu0 0.0
    %6432 = vmatprep.subr.mxu0 0.0
    %6433 = vmatpush1.msra.mxu0 0.0
    %6434 = vmatprep.subr.mxu0 0.0
    %6435 = vmatpush1.msra.mxu0 0.0
    %6436 = vmatprep.subr.mxu0 0.0
    %6437 = vmatpush1.msra.mxu0 0.0
    %6438 = vmatprep.subr.mxu0 0.0
    %6439 = vmatpush1.msra.mxu0 0.0
    %6440 = vmatprep.subr.mxu0 0.0
    %6441 = vmatpush1.msra.mxu0 0.0
    %6442 = vmatprep.subr.mxu0 0.0
    %6443 = vmatpush1.msra.mxu0 0.0
    %6444 = vmatprep.subr.mxu0 0.0
    %6445 = vmatpush1.msra.mxu0 0.0
    %6446 = vmatprep.subr.mxu0 0.0
    %6447 = vmatpush1.msra.mxu0 0.0
    %6448 = vmatprep.subr.mxu0 0.0
    %6449 = vmatpush1.msra.mxu0 0.0
    %6450 = vmatprep.subr.mxu0 0.0
    %6451 = vmatpush1.msra.mxu0 0.0
    %6452 = vmatprep.subr.mxu0 0.0
    %6453 = vmatpush1.msra.mxu0 0.0
    %6454 = vmatprep.subr.mxu0 0.0
    %6455 = vmatpush1.msra.mxu0 0.0
    %6456 = vmatprep.subr.mxu0 0.0
    %6457 = vmatpush1.msra.mxu0 0.0
    %6458 = vmatprep.subr.mxu0 0.0
    %6459 = vmatpush1.msra.mxu0 0.0
    %6460 = vmatprep.mubr.f32.mxu0 0.0
    %6461 = vmatmul.mubr.f32.gmra.mrb[0].mxu0 %v6394
    %v6462 = vpop.f32.mrb[0].mxu0
    %v6463 = vadd.f32 0.0, %v6462
    %v6464 = vpop.f32.mrb[0].mxu0
    %v6465 = vadd.f32 0.0, %v6464
    %6466 = vdwg.mxu0
    %v6469 = vcombine.low %v6463, %v6465
    %v6471 = vunpack.c.l.s4 1966171168
    %v6472 = vunpack.c.0.s8 %v6471
    %v6473 = vlaneseq
    %v6474 = vshrl.u32 %v6473, 7
    %v6475 = vsub.s32 %v6472, %v6474
    %v6476 = vrot.slane %v6469, %v6475
    %v6478 = vunpack.c.l.s4 1966171168
    %v6479 = vunpack.c.0.s8 %v6478
    %v6480 = vlaneseq
    %v6481 = vshrl.u32 %v6480, 7
    %v6482 = vsub.s32 %v6479, %v6481
    %v6483 = vrot.slane %v6476, %v6482
    %v6485 = vadd.f32 %v6392, %v6483
    %v6486 = vxor.u32 %v6485, 2147483648
    %v6487 = vmul.f32 %v6486, 1.442695
    %v6488 = vpow.pop %v6487
    %v6489 = vadd.f32 %v6488, 1.0
    %v6490 = vrcp.pop %v6489
    %v6491 = vmul.f32 1.0, %v6490
    %6493 = vrot.lane.b32.xlu0 %v6485, 64
    %v6494 = vpop.permute.xlu0 %6493
    %v6495 = vrot.slane %v6494, 1
    %v6497 = vtanh.pop %v6495
    %v6498 = vmul.f32 %v6491, %v6381
    %v6499 = vmul.f32 %v6491, %v6497
    %6501 = vrot.lane.b32.xlu0 %v6499, 64
    %v6502 = vpop.permute.xlu0 %6501
    %v6504 = vadd.f32 %v6498, %v6502
    %v6505 = vtanh.pop %v6504
    %v6507 = vrot.slane %v6491, 1
    %6510 = vrot.lane.b32.xlu0 %v6505, 64
    %v6511 = vpop.permute.xlu0 %6510
    %v6513 = vmul.f32 %v6507, %v6511
    %s6514 = scalar_lea.vmem [#allocation5], 21
    %v6515 = vld [vmem:[%s6514] ss:$8 sm:$0x3]
    %v6517 = vsel %vm95, %v6513, 0
    %6519 = vmatprep.subr.mxu0 %v4901
    %6520 = vmatpush1.msra.mxu0 %v4900
    %6521 = vmatprep.subr.mxu0 %v4903
    %6522 = vmatpush1.msra.mxu0 %v4902
    %6523 = vmatprep.subr.mxu0 %v4905
    %6524 = vmatpush1.msra.mxu0 %v4904
    %6525 = vmatprep.subr.mxu0 %v4907
    %6526 = vmatpush1.msra.mxu0 %v4906
    %6527 = vmatprep.subr.mxu0 %v4909
    %6528 = vmatpush1.msra.mxu0 %v4908
    %6529 = vmatprep.subr.mxu0 %v4911
    %6530 = vmatpush1.msra.mxu0 %v4910
    %6531 = vmatprep.subr.mxu0 %v4913
    %6532 = vmatpush1.msra.mxu0 %v4912
    %6533 = vmatprep.subr.mxu0 %v4915
    %6534 = vmatpush1.msra.mxu0 %v4914
    %6535 = vmatprep.subr.mxu0 0.0
    %6536 = vmatpush1.msra.mxu0 0.0
    %6537 = vmatprep.subr.mxu0 0.0
    %6538 = vmatpush1.msra.mxu0 0.0
    %6539 = vmatprep.subr.mxu0 0.0
    %6540 = vmatpush1.msra.mxu0 0.0
    %6541 = vmatprep.subr.mxu0 0.0
    %6542 = vmatpush1.msra.mxu0 0.0
    %6543 = vmatprep.subr.mxu0 0.0
    %6544 = vmatpush1.msra.mxu0 0.0
    %6545 = vmatprep.subr.mxu0 0.0
    %6546 = vmatpush1.msra.mxu0 0.0
    %6547 = vmatprep.subr.mxu0 0.0
    %6548 = vmatpush1.msra.mxu0 0.0
    %6549 = vmatprep.subr.mxu0 0.0
    %6550 = vmatpush1.msra.mxu0 0.0
    %6551 = vmatprep.subr.mxu0 0.0
    %6552 = vmatpush1.msra.mxu0 0.0
    %6553 = vmatprep.subr.mxu0 0.0
    %6554 = vmatpush1.msra.mxu0 0.0
    %6555 = vmatprep.subr.mxu0 0.0
    %6556 = vmatpush1.msra.mxu0 0.0
    %6557 = vmatprep.subr.mxu0 0.0
    %6558 = vmatpush1.msra.mxu0 0.0
    %6559 = vmatprep.subr.mxu0 0.0
    %6560 = vmatpush1.msra.mxu0 0.0
    %6561 = vmatprep.subr.mxu0 0.0
    %6562 = vmatpush1.msra.mxu0 0.0
    %6563 = vmatprep.subr.mxu0 0.0
    %6564 = vmatpush1.msra.mxu0 0.0
    %6565 = vmatprep.subr.mxu0 0.0
    %6566 = vmatpush1.msra.mxu0 0.0
    %6567 = vmatprep.subr.mxu0 0.0
    %6568 = vmatpush1.msra.mxu0 0.0
    %6569 = vmatprep.subr.mxu0 0.0
    %6570 = vmatpush1.msra.mxu0 0.0
    %6571 = vmatprep.subr.mxu0 0.0
    %6572 = vmatpush1.msra.mxu0 0.0
    %6573 = vmatprep.subr.mxu0 0.0
    %6574 = vmatpush1.msra.mxu0 0.0
    %6575 = vmatprep.subr.mxu0 0.0
    %6576 = vmatpush1.msra.mxu0 0.0
    %6577 = vmatprep.subr.mxu0 0.0
    %6578 = vmatpush1.msra.mxu0 0.0
    %6579 = vmatprep.subr.mxu0 0.0
    %6580 = vmatpush1.msra.mxu0 0.0
    %6581 = vmatprep.subr.mxu0 0.0
    %6582 = vmatpush1.msra.mxu0 0.0
    %6583 = vmatprep.mubr.f32.mxu0 0.0
    %6584 = vmatmul.mubr.f32.gmra.mrb[0].mxu0 %v6517
    %v6585 = vpop.f32.mrb[0].mxu0
    %v6586 = vadd.f32 0.0, %v6585
    %v6587 = vpop.f32.mrb[0].mxu0
    %v6588 = vadd.f32 0.0, %v6587
    %6589 = vdwg.mxu0
    %v6592 = vcombine.low %v6586, %v6588
    %v6594 = vunpack.c.l.s4 1966171168
    %v6595 = vunpack.c.0.s8 %v6594
    %v6596 = vlaneseq
    %v6597 = vshrl.u32 %v6596, 7
    %v6598 = vsub.s32 %v6595, %v6597
    %v6599 = vrot.slane %v6592, %v6598
    %v6601 = vunpack.c.l.s4 1966171168
    %v6602 = vunpack.c.0.s8 %v6601
    %v6603 = vlaneseq
    %v6604 = vshrl.u32 %v6603, 7
    %v6605 = vsub.s32 %v6602, %v6604
    %v6606 = vrot.slane %v6599, %v6605
    %v6608 = vadd.f32 %v6515, %v6606
    %v6609 = vxor.u32 %v6608, 2147483648
    %v6610 = vmul.f32 %v6609, 1.442695
    %v6611 = vpow.pop %v6610
    %v6612 = vadd.f32 %v6611, 1.0
    %v6613 = vrcp.pop %v6612
    %v6614 = vmul.f32 1.0, %v6613
    %6616 = vrot.lane.b32.xlu0 %v6608, 64
    %v6617 = vpop.permute.xlu0 %6616
    %v6618 = vrot.slane %v6617, 1
    %v6620 = vtanh.pop %v6618
    %v6621 = vmul.f32 %v6614, %v6504
    %v6622 = vmul.f32 %v6614, %v6620
    %6624 = vrot.lane.b32.xlu0 %v6622, 64
    %v6625 = vpop.permute.xlu0 %6624
    %v6627 = vadd.f32 %v6621, %v6625
    %v6628 = vtanh.pop %v6627
    %v6630 = vrot.slane %v6614, 1
    %6633 = vrot.lane.b32.xlu0 %v6628, 64
    %v6634 = vpop.permute.xlu0 %6633
    %v6636 = vmul.f32 %v6630, %v6634
    %s6637 = scalar_lea.vmem [#allocation5], 22
    %v6638 = vld [vmem:[%s6637] ss:$8 sm:$0x3]
    %v6640 = vsel %vm95, %v6636, 0
    %6642 = vmatprep.subr.mxu0 %v4901
    %6643 = vmatpush1.msra.mxu0 %v4900
    %6644 = vmatprep.subr.mxu0 %v4903
    %6645 = vmatpush1.msra.mxu0 %v4902
    %6646 = vmatprep.subr.mxu0 %v4905
    %6647 = vmatpush1.msra.mxu0 %v4904
    %6648 = vmatprep.subr.mxu0 %v4907
    %6649 = vmatpush1.msra.mxu0 %v4906
    %6650 = vmatprep.subr.mxu0 %v4909
    %6651 = vmatpush1.msra.mxu0 %v4908
    %6652 = vmatprep.subr.mxu0 %v4911
    %6653 = vmatpush1.msra.mxu0 %v4910
    %6654 = vmatprep.subr.mxu0 %v4913
    %6655 = vmatpush1.msra.mxu0 %v4912
    %6656 = vmatprep.subr.mxu0 %v4915
    %6657 = vmatpush1.msra.mxu0 %v4914
    %6658 = vmatprep.subr.mxu0 0.0
    %6659 = vmatpush1.msra.mxu0 0.0
    %6660 = vmatprep.subr.mxu0 0.0
    %6661 = vmatpush1.msra.mxu0 0.0
    %6662 = vmatprep.subr.mxu0 0.0
    %6663 = vmatpush1.msra.mxu0 0.0
    %6664 = vmatprep.subr.mxu0 0.0
    %6665 = vmatpush1.msra.mxu0 0.0
    %6666 = vmatprep.subr.mxu0 0.0
    %6667 = vmatpush1.msra.mxu0 0.0
    %6668 = vmatprep.subr.mxu0 0.0
    %6669 = vmatpush1.msra.mxu0 0.0
    %6670 = vmatprep.subr.mxu0 0.0
    %6671 = vmatpush1.msra.mxu0 0.0
    %6672 = vmatprep.subr.mxu0 0.0
    %6673 = vmatpush1.msra.mxu0 0.0
    %6674 = vmatprep.subr.mxu0 0.0
    %6675 = vmatpush1.msra.mxu0 0.0
    %6676 = vmatprep.subr.mxu0 0.0
    %6677 = vmatpush1.msra.mxu0 0.0
    %6678 = vmatprep.subr.mxu0 0.0
    %6679 = vmatpush1.msra.mxu0 0.0
    %6680 = vmatprep.subr.mxu0 0.0
    %6681 = vmatpush1.msra.mxu0 0.0
    %6682 = vmatprep.subr.mxu0 0.0
    %6683 = vmatpush1.msra.mxu0 0.0
    %6684 = vmatprep.subr.mxu0 0.0
    %6685 = vmatpush1.msra.mxu0 0.0
    %6686 = vmatprep.subr.mxu0 0.0
    %6687 = vmatpush1.msra.mxu0 0.0
    %6688 = vmatprep.subr.mxu0 0.0
    %6689 = vmatpush1.msra.mxu0 0.0
    %6690 = vmatprep.subr.mxu0 0.0
    %6691 = vmatpush1.msra.mxu0 0.0
    %6692 = vmatprep.subr.mxu0 0.0
    %6693 = vmatpush1.msra.mxu0 0.0
    %6694 = vmatprep.subr.mxu0 0.0
    %6695 = vmatpush1.msra.mxu0 0.0
    %6696 = vmatprep.subr.mxu0 0.0
    %6697 = vmatpush1.msra.mxu0 0.0
    %6698 = vmatprep.subr.mxu0 0.0
    %6699 = vmatpush1.msra.mxu0 0.0
    %6700 = vmatprep.subr.mxu0 0.0
    %6701 = vmatpush1.msra.mxu0 0.0
    %6702 = vmatprep.subr.mxu0 0.0
    %6703 = vmatpush1.msra.mxu0 0.0
    %6704 = vmatprep.subr.mxu0 0.0
    %6705 = vmatpush1.msra.mxu0 0.0
    %6706 = vmatprep.mubr.f32.mxu0 0.0
    %6707 = vmatmul.mubr.f32.gmra.mrb[0].mxu0 %v6640
    %v6708 = vpop.f32.mrb[0].mxu0
    %v6709 = vadd.f32 0.0, %v6708
    %v6710 = vpop.f32.mrb[0].mxu0
    %v6711 = vadd.f32 0.0, %v6710
    %6712 = vdwg.mxu0
    %v6715 = vcombine.low %v6709, %v6711
    %v6717 = vunpack.c.l.s4 1966171168
    %v6718 = vunpack.c.0.s8 %v6717
    %v6719 = vlaneseq
    %v6720 = vshrl.u32 %v6719, 7
    %v6721 = vsub.s32 %v6718, %v6720
    %v6722 = vrot.slane %v6715, %v6721
    %v6724 = vunpack.c.l.s4 1966171168
    %v6725 = vunpack.c.0.s8 %v6724
    %v6726 = vlaneseq
    %v6727 = vshrl.u32 %v6726, 7
    %v6728 = vsub.s32 %v6725, %v6727
    %v6729 = vrot.slane %v6722, %v6728
    %v6731 = vadd.f32 %v6638, %v6729
    %v6732 = vxor.u32 %v6731, 2147483648
    %v6733 = vmul.f32 %v6732, 1.442695
    %v6734 = vpow.pop %v6733
    %v6735 = vadd.f32 %v6734, 1.0
    %v6736 = vrcp.pop %v6735
    %v6737 = vmul.f32 1.0, %v6736
    %6739 = vrot.lane.b32.xlu0 %v6731, 64
    %v6740 = vpop.permute.xlu0 %6739
    %v6741 = vrot.slane %v6740, 1
    %v6743 = vtanh.pop %v6741
    %v6744 = vmul.f32 %v6737, %v6627
    %v6745 = vmul.f32 %v6737, %v6743
    %6747 = vrot.lane.b32.xlu0 %v6745, 64
    %v6748 = vpop.permute.xlu0 %6747
    %v6750 = vadd.f32 %v6744, %v6748
    %v6751 = vtanh.pop %v6750
    %v6753 = vrot.slane %v6737, 1
    %6756 = vrot.lane.b32.xlu0 %v6751, 64
    %v6757 = vpop.permute.xlu0 %6756
    %v6759 = vmul.f32 %v6753, %v6757
    %s6760 = scalar_lea.vmem [#allocation5], 23
    %v6761 = vld [vmem:[%s6760] ss:$8 sm:$0x3]
    %v6763 = vsel %vm95, %v6759, 0
    %6765 = vmatprep.subr.mxu0 %v4901
    %6766 = vmatpush1.msra.mxu0 %v4900
    %6767 = vmatprep.subr.mxu0 %v4903
    %6768 = vmatpush1.msra.mxu0 %v4902
    %6769 = vmatprep.subr.mxu0 %v4905
    %6770 = vmatpush1.msra.mxu0 %v4904
    %6771 = vmatprep.subr.mxu0 %v4907
    %6772 = vmatpush1.msra.mxu0 %v4906
    %6773 = vmatprep.subr.mxu0 %v4909
    %6774 = vmatpush1.msra.mxu0 %v4908
    %6775 = vmatprep.subr.mxu0 %v4911
    %6776 = vmatpush1.msra.mxu0 %v4910
    %6777 = vmatprep.subr.mxu0 %v4913
    %6778 = vmatpush1.msra.mxu0 %v4912
    %6779 = vmatprep.subr.mxu0 %v4915
    %6780 = vmatpush1.msra.mxu0 %v4914
    %6781 = vmatprep.subr.mxu0 0.0
    %6782 = vmatpush1.msra.mxu0 0.0
    %6783 = vmatprep.subr.mxu0 0.0
    %6784 = vmatpush1.msra.mxu0 0.0
    %6785 = vmatprep.subr.mxu0 0.0
    %6786 = vmatpush1.msra.mxu0 0.0
    %6787 = vmatprep.subr.mxu0 0.0
    %6788 = vmatpush1.msra.mxu0 0.0
    %6789 = vmatprep.subr.mxu0 0.0
    %6790 = vmatpush1.msra.mxu0 0.0
    %6791 = vmatprep.subr.mxu0 0.0
    %6792 = vmatpush1.msra.mxu0 0.0
    %6793 = vmatprep.subr.mxu0 0.0
    %6794 = vmatpush1.msra.mxu0 0.0
    %6795 = vmatprep.subr.mxu0 0.0
    %6796 = vmatpush1.msra.mxu0 0.0
    %6797 = vmatprep.subr.mxu0 0.0
    %6798 = vmatpush1.msra.mxu0 0.0
    %6799 = vmatprep.subr.mxu0 0.0
    %6800 = vmatpush1.msra.mxu0 0.0
    %6801 = vmatprep.subr.mxu0 0.0
    %6802 = vmatpush1.msra.mxu0 0.0
    %6803 = vmatprep.subr.mxu0 0.0
    %6804 = vmatpush1.msra.mxu0 0.0
    %6805 = vmatprep.subr.mxu0 0.0
    %6806 = vmatpush1.msra.mxu0 0.0
    %6807 = vmatprep.subr.mxu0 0.0
    %6808 = vmatpush1.msra.mxu0 0.0
    %6809 = vmatprep.subr.mxu0 0.0
    %6810 = vmatpush1.msra.mxu0 0.0
    %6811 = vmatprep.subr.mxu0 0.0
    %6812 = vmatpush1.msra.mxu0 0.0
    %6813 = vmatprep.subr.mxu0 0.0
    %6814 = vmatpush1.msra.mxu0 0.0
    %6815 = vmatprep.subr.mxu0 0.0
    %6816 = vmatpush1.msra.mxu0 0.0
    %6817 = vmatprep.subr.mxu0 0.0
    %6818 = vmatpush1.msra.mxu0 0.0
    %6819 = vmatprep.subr.mxu0 0.0
    %6820 = vmatpush1.msra.mxu0 0.0
    %6821 = vmatprep.subr.mxu0 0.0
    %6822 = vmatpush1.msra.mxu0 0.0
    %6823 = vmatprep.subr.mxu0 0.0
    %6824 = vmatpush1.msra.mxu0 0.0
    %6825 = vmatprep.subr.mxu0 0.0
    %6826 = vmatpush1.msra.mxu0 0.0
    %6827 = vmatprep.subr.mxu0 0.0
    %6828 = vmatpush1.msra.mxu0 0.0
    %6829 = vmatprep.mubr.f32.mxu0 0.0
    %6830 = vmatmul.mubr.f32.gmra.mrb[0].mxu0 %v6763
    %v6831 = vpop.f32.mrb[0].mxu0
    %v6832 = vadd.f32 0.0, %v6831
    %v6833 = vpop.f32.mrb[0].mxu0
    %v6834 = vadd.f32 0.0, %v6833
    %6835 = vdwg.mxu0
    %v6838 = vcombine.low %v6832, %v6834
    %v6840 = vunpack.c.l.s4 1966171168
    %v6841 = vunpack.c.0.s8 %v6840
    %v6842 = vlaneseq
    %v6843 = vshrl.u32 %v6842, 7
    %v6844 = vsub.s32 %v6841, %v6843
    %v6845 = vrot.slane %v6838, %v6844
    %v6847 = vunpack.c.l.s4 1966171168
    %v6848 = vunpack.c.0.s8 %v6847
    %v6849 = vlaneseq
    %v6850 = vshrl.u32 %v6849, 7
    %v6851 = vsub.s32 %v6848, %v6850
    %v6852 = vrot.slane %v6845, %v6851
    %v6854 = vadd.f32 %v6761, %v6852
    %v6855 = vxor.u32 %v6854, 2147483648
    %v6856 = vmul.f32 %v6855, 1.442695
    %v6857 = vpow.pop %v6856
    %v6858 = vadd.f32 %v6857, 1.0
    %v6859 = vrcp.pop %v6858
    %v6860 = vmul.f32 1.0, %v6859
    %6862 = vrot.lane.b32.xlu0 %v6854, 64
    %v6863 = vpop.permute.xlu0 %6862
    %v6864 = vrot.slane %v6863, 1
    %v6866 = vtanh.pop %v6864
    %v6867 = vmul.f32 %v6860, %v6750
    %v6868 = vmul.f32 %v6860, %v6866
    %6870 = vrot.lane.b32.xlu0 %v6868, 64
    %v6871 = vpop.permute.xlu0 %6870
    %v6873 = vadd.f32 %v6867, %v6871
    %v6874 = vtanh.pop %v6873
    %v6876 = vrot.slane %v6860, 1
    %6879 = vrot.lane.b32.xlu0 %v6874, 64
    %v6880 = vpop.permute.xlu0 %6879
    %v6882 = vmul.f32 %v6876, %v6880
    %s6883 = scalar_lea.vmem [#allocation5], 32
    %v6884 = vld [vmem:[%s6883] ss:$8 sm:$0x3]
    %v6886 = vsel %vm95, %v6882, 0
    %6888 = vmatprep.subr.mxu0 %v4901
    %6889 = vmatpush1.msra.mxu0 %v4900
    %6890 = vmatprep.subr.mxu0 %v4903
    %6891 = vmatpush1.msra.mxu0 %v4902
    %6892 = vmatprep.subr.mxu0 %v4905
    %6893 = vmatpush1.msra.mxu0 %v4904
    %6894 = vmatprep.subr.mxu0 %v4907
    %6895 = vmatpush1.msra.mxu0 %v4906
    %6896 = vmatprep.subr.mxu0 %v4909
    %6897 = vmatpush1.msra.mxu0 %v4908
    %6898 = vmatprep.subr.mxu0 %v4911
    %6899 = vmatpush1.msra.mxu0 %v4910
    %6900 = vmatprep.subr.mxu0 %v4913
    %6901 = vmatpush1.msra.mxu0 %v4912
    %6902 = vmatprep.subr.mxu0 %v4915
    %6903 = vmatpush1.msra.mxu0 %v4914
    %6904 = vmatprep.subr.mxu0 0.0
    %6905 = vmatpush1.msra.mxu0 0.0
    %6906 = vmatprep.subr.mxu0 0.0
    %6907 = vmatpush1.msra.mxu0 0.0
    %6908 = vmatprep.subr.mxu0 0.0
    %6909 = vmatpush1.msra.mxu0 0.0
    %6910 = vmatprep.subr.mxu0 0.0
    %6911 = vmatpush1.msra.mxu0 0.0
    %6912 = vmatprep.subr.mxu0 0.0
    %6913 = vmatpush1.msra.mxu0 0.0
    %6914 = vmatprep.subr.mxu0 0.0
    %6915 = vmatpush1.msra.mxu0 0.0
    %6916 = vmatprep.subr.mxu0 0.0
    %6917 = vmatpush1.msra.mxu0 0.0
    %6918 = vmatprep.subr.mxu0 0.0
    %6919 = vmatpush1.msra.mxu0 0.0
    %6920 = vmatprep.subr.mxu0 0.0
    %6921 = vmatpush1.msra.mxu0 0.0
    %6922 = vmatprep.subr.mxu0 0.0
    %6923 = vmatpush1.msra.mxu0 0.0
    %6924 = vmatprep.subr.mxu0 0.0
    %6925 = vmatpush1.msra.mxu0 0.0
    %6926 = vmatprep.subr.mxu0 0.0
    %6927 = vmatpush1.msra.mxu0 0.0
    %6928 = vmatprep.subr.mxu0 0.0
    %6929 = vmatpush1.msra.mxu0 0.0
    %6930 = vmatprep.subr.mxu0 0.0
    %6931 = vmatpush1.msra.mxu0 0.0
    %6932 = vmatprep.subr.mxu0 0.0
    %6933 = vmatpush1.msra.mxu0 0.0
    %6934 = vmatprep.subr.mxu0 0.0
    %6935 = vmatpush1.msra.mxu0 0.0
    %6936 = vmatprep.subr.mxu0 0.0
    %6937 = vmatpush1.msra.mxu0 0.0
    %6938 = vmatprep.subr.mxu0 0.0
    %6939 = vmatpush1.msra.mxu0 0.0
    %6940 = vmatprep.subr.mxu0 0.0
    %6941 = vmatpush1.msra.mxu0 0.0
    %6942 = vmatprep.subr.mxu0 0.0
    %6943 = vmatpush1.msra.mxu0 0.0
    %6944 = vmatprep.subr.mxu0 0.0
    %6945 = vmatpush1.msra.mxu0 0.0
    %6946 = vmatprep.subr.mxu0 0.0
    %6947 = vmatpush1.msra.mxu0 0.0
    %6948 = vmatprep.subr.mxu0 0.0
    %6949 = vmatpush1.msra.mxu0 0.0
    %6950 = vmatprep.subr.mxu0 0.0
    %6951 = vmatpush1.msra.mxu0 0.0
    %6952 = vmatprep.mubr.f32.mxu0 0.0
    %6953 = vmatmul.mubr.f32.gmra.mrb[0].mxu0 %v6886
    %v6954 = vpop.f32.mrb[0].mxu0
    %v6955 = vadd.f32 0.0, %v6954
    %v6956 = vpop.f32.mrb[0].mxu0
    %v6957 = vadd.f32 0.0, %v6956
    %6958 = vdwg.mxu0
    %v6961 = vcombine.low %v6955, %v6957
    %v6963 = vunpack.c.l.s4 1966171168
    %v6964 = vunpack.c.0.s8 %v6963
    %v6965 = vlaneseq
    %v6966 = vshrl.u32 %v6965, 7
    %v6967 = vsub.s32 %v6964, %v6966
    %v6968 = vrot.slane %v6961, %v6967
    %v6970 = vunpack.c.l.s4 1966171168
    %v6971 = vunpack.c.0.s8 %v6970
    %v6972 = vlaneseq
    %v6973 = vshrl.u32 %v6972, 7
    %v6974 = vsub.s32 %v6971, %v6973
    %v6975 = vrot.slane %v6968, %v6974
    %v6977 = vadd.f32 %v6884, %v6975
    %v6978 = vxor.u32 %v6977, 2147483648
    %v6979 = vmul.f32 %v6978, 1.442695
    %v6980 = vpow.pop %v6979
    %v6981 = vadd.f32 %v6980, 1.0
    %v6982 = vrcp.pop %v6981
    %v6983 = vmul.f32 1.0, %v6982
    %6985 = vrot.lane.b32.xlu0 %v6977, 64
    %v6986 = vpop.permute.xlu0 %6985
    %v6987 = vrot.slane %v6986, 1
    %v6989 = vtanh.pop %v6987
    %v6990 = vmul.f32 %v6983, %v6873
    %v6991 = vmul.f32 %v6983, %v6989
    %6993 = vrot.lane.b32.xlu0 %v6991, 64
    %v6994 = vpop.permute.xlu0 %6993
    %v6996 = vadd.f32 %v6990, %v6994
    %v6997 = vtanh.pop %v6996
    %v6999 = vrot.slane %v6983, 1
    %7002 = vrot.lane.b32.xlu0 %v6997, 64
    %v7003 = vpop.permute.xlu0 %7002
    %v7005 = vmul.f32 %v6999, %v7003
    %s7006 = scalar_lea.vmem [#allocation5], 33
    %v7007 = vld [vmem:[%s7006] ss:$8 sm:$0x3]
    %v7009 = vsel %vm95, %v7005, 0
    %7011 = vmatprep.subr.mxu0 %v4901
    %7012 = vmatpush1.msra.mxu0 %v4900
    %7013 = vmatprep.subr.mxu0 %v4903
    %7014 = vmatpush1.msra.mxu0 %v4902
    %7015 = vmatprep.subr.mxu0 %v4905
    %7016 = vmatpush1.msra.mxu0 %v4904
    %7017 = vmatprep.subr.mxu0 %v4907
    %7018 = vmatpush1.msra.mxu0 %v4906
    %7019 = vmatprep.subr.mxu0 %v4909
    %7020 = vmatpush1.msra.mxu0 %v4908
    %7021 = vmatprep.subr.mxu0 %v4911
    %7022 = vmatpush1.msra.mxu0 %v4910
    %7023 = vmatprep.subr.mxu0 %v4913
    %7024 = vmatpush1.msra.mxu0 %v4912
    %7025 = vmatprep.subr.mxu0 %v4915
    %7026 = vmatpush1.msra.mxu0 %v4914
    %7027 = vmatprep.subr.mxu0 0.0
    %7028 = vmatpush1.msra.mxu0 0.0
    %7029 = vmatprep.subr.mxu0 0.0
    %7030 = vmatpush1.msra.mxu0 0.0
    %7031 = vmatprep.subr.mxu0 0.0
    %7032 = vmatpush1.msra.mxu0 0.0
    %7033 = vmatprep.subr.mxu0 0.0
    %7034 = vmatpush1.msra.mxu0 0.0
    %7035 = vmatprep.subr.mxu0 0.0
    %7036 = vmatpush1.msra.mxu0 0.0
    %7037 = vmatprep.subr.mxu0 0.0
    %7038 = vmatpush1.msra.mxu0 0.0
    %7039 = vmatprep.subr.mxu0 0.0
    %7040 = vmatpush1.msra.mxu0 0.0
    %7041 = vmatprep.subr.mxu0 0.0
    %7042 = vmatpush1.msra.mxu0 0.0
    %7043 = vmatprep.subr.mxu0 0.0
    %7044 = vmatpush1.msra.mxu0 0.0
    %7045 = vmatprep.subr.mxu0 0.0
    %7046 = vmatpush1.msra.mxu0 0.0
    %7047 = vmatprep.subr.mxu0 0.0
    %7048 = vmatpush1.msra.mxu0 0.0
    %7049 = vmatprep.subr.mxu0 0.0
    %7050 = vmatpush1.msra.mxu0 0.0
    %7051 = vmatprep.subr.mxu0 0.0
    %7052 = vmatpush1.msra.mxu0 0.0
    %7053 = vmatprep.subr.mxu0 0.0
    %7054 = vmatpush1.msra.mxu0 0.0
    %7055 = vmatprep.subr.mxu0 0.0
    %7056 = vmatpush1.msra.mxu0 0.0
    %7057 = vmatprep.subr.mxu0 0.0
    %7058 = vmatpush1.msra.mxu0 0.0
    %7059 = vmatprep.subr.mxu0 0.0
    %7060 = vmatpush1.msra.mxu0 0.0
    %7061 = vmatprep.subr.mxu0 0.0
    %7062 = vmatpush1.msra.mxu0 0.0
    %7063 = vmatprep.subr.mxu0 0.0
    %7064 = vmatpush1.msra.mxu0 0.0
    %7065 = vmatprep.subr.mxu0 0.0
    %7066 = vmatpush1.msra.mxu0 0.0
    %7067 = vmatprep.subr.mxu0 0.0
    %7068 = vmatpush1.msra.mxu0 0.0
    %7069 = vmatprep.subr.mxu0 0.0
    %7070 = vmatpush1.msra.mxu0 0.0
    %7071 = vmatprep.subr.mxu0 0.0
    %7072 = vmatpush1.msra.mxu0 0.0
    %7073 = vmatprep.subr.mxu0 0.0
    %7074 = vmatpush1.msra.mxu0 0.0
    %7075 = vmatprep.mubr.f32.mxu0 0.0
    %7076 = vmatmul.mubr.f32.gmra.mrb[0].mxu0 %v7009
    %v7077 = vpop.f32.mrb[0].mxu0
    %v7078 = vadd.f32 0.0, %v7077
    %v7079 = vpop.f32.mrb[0].mxu0
    %v7080 = vadd.f32 0.0, %v7079
    %7081 = vdwg.mxu0
    %v7084 = vcombine.low %v7078, %v7080
    %v7086 = vunpack.c.l.s4 1966171168
    %v7087 = vunpack.c.0.s8 %v7086
    %v7088 = vlaneseq
    %v7089 = vshrl.u32 %v7088, 7
    %v7090 = vsub.s32 %v7087, %v7089
    %v7091 = vrot.slane %v7084, %v7090
    %v7093 = vunpack.c.l.s4 1966171168
    %v7094 = vunpack.c.0.s8 %v7093
    %v7095 = vlaneseq
    %v7096 = vshrl.u32 %v7095, 7
    %v7097 = vsub.s32 %v7094, %v7096
    %v7098 = vrot.slane %v7091, %v7097
    %v7100 = vadd.f32 %v7007, %v7098
    %v7101 = vxor.u32 %v7100, 2147483648
    %v7102 = vmul.f32 %v7101, 1.442695
    %v7103 = vpow.pop %v7102
    %v7104 = vadd.f32 %v7103, 1.0
    %v7105 = vrcp.pop %v7104
    %v7106 = vmul.f32 1.0, %v7105
    %7108 = vrot.lane.b32.xlu0 %v7100, 64
    %v7109 = vpop.permute.xlu0 %7108
    %v7110 = vrot.slane %v7109, 1
    %v7112 = vtanh.pop %v7110
    %v7113 = vmul.f32 %v7106, %v6996
    %v7114 = vmul.f32 %v7106, %v7112
    %7116 = vrot.lane.b32.xlu0 %v7114, 64
    %v7117 = vpop.permute.xlu0 %7116
    %v7119 = vadd.f32 %v7113, %v7117
    %v7120 = vtanh.pop %v7119
    %v7122 = vrot.slane %v7106, 1
    %7125 = vrot.lane.b32.xlu0 %v7120, 64
    %v7126 = vpop.permute.xlu0 %7125
    %v7128 = vmul.f32 %v7122, %v7126
    %s7129 = scalar_lea.vmem [#allocation5], 34
    %v7130 = vld [vmem:[%s7129] ss:$8 sm:$0x3]
    %v7132 = vsel %vm95, %v7128, 0
    %7134 = vmatprep.subr.mxu0 %v4901
    %7135 = vmatpush1.msra.mxu0 %v4900
    %7136 = vmatprep.subr.mxu0 %v4903
    %7137 = vmatpush1.msra.mxu0 %v4902
    %7138 = vmatprep.subr.mxu0 %v4905
    %7139 = vmatpush1.msra.mxu0 %v4904
    %7140 = vmatprep.subr.mxu0 %v4907
    %7141 = vmatpush1.msra.mxu0 %v4906
    %7142 = vmatprep.subr.mxu0 %v4909
    %7143 = vmatpush1.msra.mxu0 %v4908
    %7144 = vmatprep.subr.mxu0 %v4911
    %7145 = vmatpush1.msra.mxu0 %v4910
    %7146 = vmatprep.subr.mxu0 %v4913
    %7147 = vmatpush1.msra.mxu0 %v4912
    %7148 = vmatprep.subr.mxu0 %v4915
    %7149 = vmatpush1.msra.mxu0 %v4914
    %7150 = vmatprep.subr.mxu0 0.0
    %7151 = vmatpush1.msra.mxu0 0.0
    %7152 = vmatprep.subr.mxu0 0.0
    %7153 = vmatpush1.msra.mxu0 0.0
    %7154 = vmatprep.subr.mxu0 0.0
    %7155 = vmatpush1.msra.mxu0 0.0
    %7156 = vmatprep.subr.mxu0 0.0
    %7157 = vmatpush1.msra.mxu0 0.0
    %7158 = vmatprep.subr.mxu0 0.0
    %7159 = vmatpush1.msra.mxu0 0.0
    %7160 = vmatprep.subr.mxu0 0.0
    %7161 = vmatpush1.msra.mxu0 0.0
    %7162 = vmatprep.subr.mxu0 0.0
    %7163 = vmatpush1.msra.mxu0 0.0
    %7164 = vmatprep.subr.mxu0 0.0
    %7165 = vmatpush1.msra.mxu0 0.0
    %7166 = vmatprep.subr.mxu0 0.0
    %7167 = vmatpush1.msra.mxu0 0.0
    %7168 = vmatprep.subr.mxu0 0.0
    %7169 = vmatpush1.msra.mxu0 0.0
    %7170 = vmatprep.subr.mxu0 0.0
    %7171 = vmatpush1.msra.mxu0 0.0
    %7172 = vmatprep.subr.mxu0 0.0
    %7173 = vmatpush1.msra.mxu0 0.0
    %7174 = vmatprep.subr.mxu0 0.0
    %7175 = vmatpush1.msra.mxu0 0.0
    %7176 = vmatprep.subr.mxu0 0.0
    %7177 = vmatpush1.msra.mxu0 0.0
    %7178 = vmatprep.subr.mxu0 0.0
    %7179 = vmatpush1.msra.mxu0 0.0
    %7180 = vmatprep.subr.mxu0 0.0
    %7181 = vmatpush1.msra.mxu0 0.0
    %7182 = vmatprep.subr.mxu0 0.0
    %7183 = vmatpush1.msra.mxu0 0.0
    %7184 = vmatprep.subr.mxu0 0.0
    %7185 = vmatpush1.msra.mxu0 0.0
    %7186 = vmatprep.subr.mxu0 0.0
    %7187 = vmatpush1.msra.mxu0 0.0
    %7188 = vmatprep.subr.mxu0 0.0
    %7189 = vmatpush1.msra.mxu0 0.0
    %7190 = vmatprep.subr.mxu0 0.0
    %7191 = vmatpush1.msra.mxu0 0.0
    %7192 = vmatprep.subr.mxu0 0.0
    %7193 = vmatpush1.msra.mxu0 0.0
    %7194 = vmatprep.subr.mxu0 0.0
    %7195 = vmatpush1.msra.mxu0 0.0
    %7196 = vmatprep.subr.mxu0 0.0
    %7197 = vmatpush1.msra.mxu0 0.0
    %7198 = vmatprep.mubr.f32.mxu0 0.0
    %7199 = vmatmul.mubr.f32.gmra.mrb[0].mxu0 %v7132
    %v7200 = vpop.f32.mrb[0].mxu0
    %v7201 = vadd.f32 0.0, %v7200
    %v7202 = vpop.f32.mrb[0].mxu0
    %v7203 = vadd.f32 0.0, %v7202
    %7204 = vdwg.mxu0
    %v7207 = vcombine.low %v7201, %v7203
    %v7209 = vunpack.c.l.s4 1966171168
    %v7210 = vunpack.c.0.s8 %v7209
    %v7211 = vlaneseq
    %v7212 = vshrl.u32 %v7211, 7
    %v7213 = vsub.s32 %v7210, %v7212
    %v7214 = vrot.slane %v7207, %v7213
    %v7216 = vunpack.c.l.s4 1966171168
    %v7217 = vunpack.c.0.s8 %v7216
    %v7218 = vlaneseq
    %v7219 = vshrl.u32 %v7218, 7
    %v7220 = vsub.s32 %v7217, %v7219
    %v7221 = vrot.slane %v7214, %v7220
    %v7223 = vadd.f32 %v7130, %v7221
    %v7224 = vxor.u32 %v7223, 2147483648
    %v7225 = vmul.f32 %v7224, 1.442695
    %v7226 = vpow.pop %v7225
    %v7227 = vadd.f32 %v7226, 1.0
    %v7228 = vrcp.pop %v7227
    %v7229 = vmul.f32 1.0, %v7228
    %7231 = vrot.lane.b32.xlu0 %v7223, 64
    %v7232 = vpop.permute.xlu0 %7231
    %v7233 = vrot.slane %v7232, 1
    %v7235 = vtanh.pop %v7233
    %v7236 = vmul.f32 %v7229, %v7119
    %v7237 = vmul.f32 %v7229, %v7235
    %7239 = vrot.lane.b32.xlu0 %v7237, 64
    %v7240 = vpop.permute.xlu0 %7239
    %v7242 = vadd.f32 %v7236, %v7240
    %v7243 = vtanh.pop %v7242
    %v7245 = vrot.slane %v7229, 1
    %7248 = vrot.lane.b32.xlu0 %v7243, 64
    %v7249 = vpop.permute.xlu0 %7248
    %v7251 = vmul.f32 %v7245, %v7249
    %s7252 = scalar_lea.vmem [#allocation5], 35
    %v7253 = vld [vmem:[%s7252] ss:$8 sm:$0x3]
    %v7255 = vsel %vm95, %v7251, 0
    %7257 = vmatprep.subr.mxu0 %v4901
    %7258 = vmatpush1.msra.mxu0 %v4900
    %7259 = vmatprep.subr.mxu0 %v4903
    %7260 = vmatpush1.msra.mxu0 %v4902
    %7261 = vmatprep.subr.mxu0 %v4905
    %7262 = vmatpush1.msra.mxu0 %v4904
    %7263 = vmatprep.subr.mxu0 %v4907
    %7264 = vmatpush1.msra.mxu0 %v4906
    %7265 = vmatprep.subr.mxu0 %v4909
    %7266 = vmatpush1.msra.mxu0 %v4908
    %7267 = vmatprep.subr.mxu0 %v4911
    %7268 = vmatpush1.msra.mxu0 %v4910
    %7269 = vmatprep.subr.mxu0 %v4913
    %7270 = vmatpush1.msra.mxu0 %v4912
    %7271 = vmatprep.subr.mxu0 %v4915
    %7272 = vmatpush1.msra.mxu0 %v4914
    %7273 = vmatprep.subr.mxu0 0.0
    %7274 = vmatpush1.msra.mxu0 0.0
    %7275 = vmatprep.subr.mxu0 0.0
    %7276 = vmatpush1.msra.mxu0 0.0
    %7277 = vmatprep.subr.mxu0 0.0
    %7278 = vmatpush1.msra.mxu0 0.0
    %7279 = vmatprep.subr.mxu0 0.0
    %7280 = vmatpush1.msra.mxu0 0.0
    %7281 = vmatprep.subr.mxu0 0.0
    %7282 = vmatpush1.msra.mxu0 0.0
    %7283 = vmatprep.subr.mxu0 0.0
    %7284 = vmatpush1.msra.mxu0 0.0
    %7285 = vmatprep.subr.mxu0 0.0
    %7286 = vmatpush1.msra.mxu0 0.0
    %7287 = vmatprep.subr.mxu0 0.0
    %7288 = vmatpush1.msra.mxu0 0.0
    %7289 = vmatprep.subr.mxu0 0.0
    %7290 = vmatpush1.msra.mxu0 0.0
    %7291 = vmatprep.subr.mxu0 0.0
    %7292 = vmatpush1.msra.mxu0 0.0
    %7293 = vmatprep.subr.mxu0 0.0
    %7294 = vmatpush1.msra.mxu0 0.0
    %7295 = vmatprep.subr.mxu0 0.0
    %7296 = vmatpush1.msra.mxu0 0.0
    %7297 = vmatprep.subr.mxu0 0.0
    %7298 = vmatpush1.msra.mxu0 0.0
    %7299 = vmatprep.subr.mxu0 0.0
    %7300 = vmatpush1.msra.mxu0 0.0
    %7301 = vmatprep.subr.mxu0 0.0
    %7302 = vmatpush1.msra.mxu0 0.0
    %7303 = vmatprep.subr.mxu0 0.0
    %7304 = vmatpush1.msra.mxu0 0.0
    %7305 = vmatprep.subr.mxu0 0.0
    %7306 = vmatpush1.msra.mxu0 0.0
    %7307 = vmatprep.subr.mxu0 0.0
    %7308 = vmatpush1.msra.mxu0 0.0
    %7309 = vmatprep.subr.mxu0 0.0
    %7310 = vmatpush1.msra.mxu0 0.0
    %7311 = vmatprep.subr.mxu0 0.0
    %7312 = vmatpush1.msra.mxu0 0.0
    %7313 = vmatprep.subr.mxu0 0.0
    %7314 = vmatpush1.msra.mxu0 0.0
    %7315 = vmatprep.subr.mxu0 0.0
    %7316 = vmatpush1.msra.mxu0 0.0
    %7317 = vmatprep.subr.mxu0 0.0
    %7318 = vmatpush1.msra.mxu0 0.0
    %7319 = vmatprep.subr.mxu0 0.0
    %7320 = vmatpush1.msra.mxu0 0.0
    %7321 = vmatprep.mubr.f32.mxu0 0.0
    %7322 = vmatmul.mubr.f32.gmra.mrb[0].mxu0 %v7255
    %v7323 = vpop.f32.mrb[0].mxu0
    %v7324 = vadd.f32 0.0, %v7323
    %v7325 = vpop.f32.mrb[0].mxu0
    %v7326 = vadd.f32 0.0, %v7325
    %7327 = vdwg.mxu0
    %v7330 = vcombine.low %v7324, %v7326
    %v7332 = vunpack.c.l.s4 1966171168
    %v7333 = vunpack.c.0.s8 %v7332
    %v7334 = vlaneseq
    %v7335 = vshrl.u32 %v7334, 7
    %v7336 = vsub.s32 %v7333, %v7335
    %v7337 = vrot.slane %v7330, %v7336
    %v7339 = vunpack.c.l.s4 1966171168
    %v7340 = vunpack.c.0.s8 %v7339
    %v7341 = vlaneseq
    %v7342 = vshrl.u32 %v7341, 7
    %v7343 = vsub.s32 %v7340, %v7342
    %v7344 = vrot.slane %v7337, %v7343
    %v7346 = vadd.f32 %v7253, %v7344
    %v7347 = vxor.u32 %v7346, 2147483648
    %v7348 = vmul.f32 %v7347, 1.442695
    %v7349 = vpow.pop %v7348
    %v7350 = vadd.f32 %v7349, 1.0
    %v7351 = vrcp.pop %v7350
    %v7352 = vmul.f32 1.0, %v7351
    %7354 = vrot.lane.b32.xlu0 %v7346, 64
    %v7355 = vpop.permute.xlu0 %7354
    %v7356 = vrot.slane %v7355, 1
    %v7358 = vtanh.pop %v7356
    %v7359 = vmul.f32 %v7352, %v7242
    %v7360 = vmul.f32 %v7352, %v7358
    %7362 = vrot.lane.b32.xlu0 %v7360, 64
    %v7363 = vpop.permute.xlu0 %7362
    %v7365 = vadd.f32 %v7359, %v7363
    %v7366 = vtanh.pop %v7365
    %v7368 = vrot.slane %v7352, 1
    %7371 = vrot.lane.b32.xlu0 %v7366, 64
    %v7372 = vpop.permute.xlu0 %7371
    %v7374 = vmul.f32 %v7368, %v7372
    %s7375 = scalar_lea.vmem [#allocation5], 36
    %v7376 = vld [vmem:[%s7375] ss:$8 sm:$0x3]
    %v7378 = vsel %vm95, %v7374, 0
    %7380 = vmatprep.subr.mxu0 %v4901
    %7381 = vmatpush1.msra.mxu0 %v4900
    %7382 = vmatprep.subr.mxu0 %v4903
    %7383 = vmatpush1.msra.mxu0 %v4902
    %7384 = vmatprep.subr.mxu0 %v4905
    %7385 = vmatpush1.msra.mxu0 %v4904
    %7386 = vmatprep.subr.mxu0 %v4907
    %7387 = vmatpush1.msra.mxu0 %v4906
    %7388 = vmatprep.subr.mxu0 %v4909
    %7389 = vmatpush1.msra.mxu0 %v4908
    %7390 = vmatprep.subr.mxu0 %v4911
    %7391 = vmatpush1.msra.mxu0 %v4910
    %7392 = vmatprep.subr.mxu0 %v4913
    %7393 = vmatpush1.msra.mxu0 %v4912
    %7394 = vmatprep.subr.mxu0 %v4915
    %7395 = vmatpush1.msra.mxu0 %v4914
    %7396 = vmatprep.subr.mxu0 0.0
    %7397 = vmatpush1.msra.mxu0 0.0
    %7398 = vmatprep.subr.mxu0 0.0
    %7399 = vmatpush1.msra.mxu0 0.0
    %7400 = vmatprep.subr.mxu0 0.0
    %7401 = vmatpush1.msra.mxu0 0.0
    %7402 = vmatprep.subr.mxu0 0.0
    %7403 = vmatpush1.msra.mxu0 0.0
    %7404 = vmatprep.subr.mxu0 0.0
    %7405 = vmatpush1.msra.mxu0 0.0
    %7406 = vmatprep.subr.mxu0 0.0
    %7407 = vmatpush1.msra.mxu0 0.0
    %7408 = vmatprep.subr.mxu0 0.0
    %7409 = vmatpush1.msra.mxu0 0.0
    %7410 = vmatprep.subr.mxu0 0.0
    %7411 = vmatpush1.msra.mxu0 0.0
    %7412 = vmatprep.subr.mxu0 0.0
    %7413 = vmatpush1.msra.mxu0 0.0
    %7414 = vmatprep.subr.mxu0 0.0
    %7415 = vmatpush1.msra.mxu0 0.0
    %7416 = vmatprep.subr.mxu0 0.0
    %7417 = vmatpush1.msra.mxu0 0.0
    %7418 = vmatprep.subr.mxu0 0.0
    %7419 = vmatpush1.msra.mxu0 0.0
    %7420 = vmatprep.subr.mxu0 0.0
    %7421 = vmatpush1.msra.mxu0 0.0
    %7422 = vmatprep.subr.mxu0 0.0
    %7423 = vmatpush1.msra.mxu0 0.0
    %7424 = vmatprep.subr.mxu0 0.0
    %7425 = vmatpush1.msra.mxu0 0.0
    %7426 = vmatprep.subr.mxu0 0.0
    %7427 = vmatpush1.msra.mxu0 0.0
    %7428 = vmatprep.subr.mxu0 0.0
    %7429 = vmatpush1.msra.mxu0 0.0
    %7430 = vmatprep.subr.mxu0 0.0
    %7431 = vmatpush1.msra.mxu0 0.0
    %7432 = vmatprep.subr.mxu0 0.0
    %7433 = vmatpush1.msra.mxu0 0.0
    %7434 = vmatprep.subr.mxu0 0.0
    %7435 = vmatpush1.msra.mxu0 0.0
    %7436 = vmatprep.subr.mxu0 0.0
    %7437 = vmatpush1.msra.mxu0 0.0
    %7438 = vmatprep.subr.mxu0 0.0
    %7439 = vmatpush1.msra.mxu0 0.0
    %7440 = vmatprep.subr.mxu0 0.0
    %7441 = vmatpush1.msra.mxu0 0.0
    %7442 = vmatprep.subr.mxu0 0.0
    %7443 = vmatpush1.msra.mxu0 0.0
    %7444 = vmatprep.mubr.f32.mxu0 0.0
    %7445 = vmatmul.mubr.f32.gmra.mrb[0].mxu0 %v7378
    %v7446 = vpop.f32.mrb[0].mxu0
    %v7447 = vadd.f32 0.0, %v7446
    %v7448 = vpop.f32.mrb[0].mxu0
    %v7449 = vadd.f32 0.0, %v7448
    %7450 = vdwg.mxu0
    %v7453 = vcombine.low %v7447, %v7449
    %v7455 = vunpack.c.l.s4 1966171168
    %v7456 = vunpack.c.0.s8 %v7455
    %v7457 = vlaneseq
    %v7458 = vshrl.u32 %v7457, 7
    %v7459 = vsub.s32 %v7456, %v7458
    %v7460 = vrot.slane %v7453, %v7459
    %v7462 = vunpack.c.l.s4 1966171168
    %v7463 = vunpack.c.0.s8 %v7462
    %v7464 = vlaneseq
    %v7465 = vshrl.u32 %v7464, 7
    %v7466 = vsub.s32 %v7463, %v7465
    %v7467 = vrot.slane %v7460, %v7466
    %v7469 = vadd.f32 %v7376, %v7467
    %v7470 = vxor.u32 %v7469, 2147483648
    %v7471 = vmul.f32 %v7470, 1.442695
    %v7472 = vpow.pop %v7471
    %v7473 = vadd.f32 %v7472, 1.0
    %v7474 = vrcp.pop %v7473
    %v7475 = vmul.f32 1.0, %v7474
    %7477 = vrot.lane.b32.xlu0 %v7469, 64
    %v7478 = vpop.permute.xlu0 %7477
    %v7479 = vrot.slane %v7478, 1
    %v7481 = vtanh.pop %v7479
    %v7482 = vmul.f32 %v7475, %v7365
    %v7483 = vmul.f32 %v7475, %v7481
    %7485 = vrot.lane.b32.xlu0 %v7483, 64
    %v7486 = vpop.permute.xlu0 %7485
    %v7488 = vadd.f32 %v7482, %v7486
    %v7489 = vtanh.pop %v7488
    %v7491 = vrot.slane %v7475, 1
    %7494 = vrot.lane.b32.xlu0 %v7489, 64
    %v7495 = vpop.permute.xlu0 %7494
    %v7497 = vmul.f32 %v7491, %v7495
    %s7498 = scalar_lea.vmem [#allocation5], 37
    %v7499 = vld [vmem:[%s7498] ss:$8 sm:$0x3]
    %v7501 = vsel %vm95, %v7497, 0
    %7503 = vmatprep.subr.mxu0 %v4901
    %7504 = vmatpush1.msra.mxu0 %v4900
    %7505 = vmatprep.subr.mxu0 %v4903
    %7506 = vmatpush1.msra.mxu0 %v4902
    %7507 = vmatprep.subr.mxu0 %v4905
    %7508 = vmatpush1.msra.mxu0 %v4904
    %7509 = vmatprep.subr.mxu0 %v4907
    %7510 = vmatpush1.msra.mxu0 %v4906
    %7511 = vmatprep.subr.mxu0 %v4909
    %7512 = vmatpush1.msra.mxu0 %v4908
    %7513 = vmatprep.subr.mxu0 %v4911
    %7514 = vmatpush1.msra.mxu0 %v4910
    %7515 = vmatprep.subr.mxu0 %v4913
    %7516 = vmatpush1.msra.mxu0 %v4912
    %7517 = vmatprep.subr.mxu0 %v4915
    %7518 = vmatpush1.msra.mxu0 %v4914
    %7519 = vmatprep.subr.mxu0 0.0
    %7520 = vmatpush1.msra.mxu0 0.0
    %7521 = vmatprep.subr.mxu0 0.0
    %7522 = vmatpush1.msra.mxu0 0.0
    %7523 = vmatprep.subr.mxu0 0.0
    %7524 = vmatpush1.msra.mxu0 0.0
    %7525 = vmatprep.subr.mxu0 0.0
    %7526 = vmatpush1.msra.mxu0 0.0
    %7527 = vmatprep.subr.mxu0 0.0
    %7528 = vmatpush1.msra.mxu0 0.0
    %7529 = vmatprep.subr.mxu0 0.0
    %7530 = vmatpush1.msra.mxu0 0.0
    %7531 = vmatprep.subr.mxu0 0.0
    %7532 = vmatpush1.msra.mxu0 0.0
    %7533 = vmatprep.subr.mxu0 0.0
    %7534 = vmatpush1.msra.mxu0 0.0
    %7535 = vmatprep.subr.mxu0 0.0
    %7536 = vmatpush1.msra.mxu0 0.0
    %7537 = vmatprep.subr.mxu0 0.0
    %7538 = vmatpush1.msra.mxu0 0.0
    %7539 = vmatprep.subr.mxu0 0.0
    %7540 = vmatpush1.msra.mxu0 0.0
    %7541 = vmatprep.subr.mxu0 0.0
    %7542 = vmatpush1.msra.mxu0 0.0
    %7543 = vmatprep.subr.mxu0 0.0
    %7544 = vmatpush1.msra.mxu0 0.0
    %7545 = vmatprep.subr.mxu0 0.0
    %7546 = vmatpush1.msra.mxu0 0.0
    %7547 = vmatprep.subr.mxu0 0.0
    %7548 = vmatpush1.msra.mxu0 0.0
    %7549 = vmatprep.subr.mxu0 0.0
    %7550 = vmatpush1.msra.mxu0 0.0
    %7551 = vmatprep.subr.mxu0 0.0
    %7552 = vmatpush1.msra.mxu0 0.0
    %7553 = vmatprep.subr.mxu0 0.0
    %7554 = vmatpush1.msra.mxu0 0.0
    %7555 = vmatprep.subr.mxu0 0.0
    %7556 = vmatpush1.msra.mxu0 0.0
    %7557 = vmatprep.subr.mxu0 0.0
    %7558 = vmatpush1.msra.mxu0 0.0
    %7559 = vmatprep.subr.mxu0 0.0
    %7560 = vmatpush1.msra.mxu0 0.0
    %7561 = vmatprep.subr.mxu0 0.0
    %7562 = vmatpush1.msra.mxu0 0.0
    %7563 = vmatprep.subr.mxu0 0.0
    %7564 = vmatpush1.msra.mxu0 0.0
    %7565 = vmatprep.subr.mxu0 0.0
    %7566 = vmatpush1.msra.mxu0 0.0
    %7567 = vmatprep.mubr.f32.mxu0 0.0
    %7568 = vmatmul.mubr.f32.gmra.mrb[0].mxu0 %v7501
    %v7569 = vpop.f32.mrb[0].mxu0
    %v7570 = vadd.f32 0.0, %v7569
    %v7571 = vpop.f32.mrb[0].mxu0
    %v7572 = vadd.f32 0.0, %v7571
    %7573 = vdwg.mxu0
    %v7576 = vcombine.low %v7570, %v7572
    %v7578 = vunpack.c.l.s4 1966171168
    %v7579 = vunpack.c.0.s8 %v7578
    %v7580 = vlaneseq
    %v7581 = vshrl.u32 %v7580, 7
    %v7582 = vsub.s32 %v7579, %v7581
    %v7583 = vrot.slane %v7576, %v7582
    %v7585 = vunpack.c.l.s4 1966171168
    %v7586 = vunpack.c.0.s8 %v7585
    %v7587 = vlaneseq
    %v7588 = vshrl.u32 %v7587, 7
    %v7589 = vsub.s32 %v7586, %v7588
    %v7590 = vrot.slane %v7583, %v7589
    %v7592 = vadd.f32 %v7499, %v7590
    %v7593 = vxor.u32 %v7592, 2147483648
    %v7594 = vmul.f32 %v7593, 1.442695
    %v7595 = vpow.pop %v7594
    %v7596 = vadd.f32 %v7595, 1.0
    %v7597 = vrcp.pop %v7596
    %v7598 = vmul.f32 1.0, %v7597
    %7600 = vrot.lane.b32.xlu0 %v7592, 64
    %v7601 = vpop.permute.xlu0 %7600
    %v7602 = vrot.slane %v7601, 1
    %v7604 = vtanh.pop %v7602
    %v7605 = vmul.f32 %v7598, %v7488
    %v7606 = vmul.f32 %v7598, %v7604
    %7608 = vrot.lane.b32.xlu0 %v7606, 64
    %v7609 = vpop.permute.xlu0 %7608
    %v7611 = vadd.f32 %v7605, %v7609
    %v7612 = vtanh.pop %v7611
    %v7614 = vrot.slane %v7598, 1
    %7617 = vrot.lane.b32.xlu0 %v7612, 64
    %v7618 = vpop.permute.xlu0 %7617
    %v7620 = vmul.f32 %v7614, %v7618
    %s7621 = scalar_lea.vmem [#allocation5], 38
    %v7622 = vld [vmem:[%s7621] ss:$8 sm:$0x3]
    %v7624 = vsel %vm95, %v7620, 0
    %7626 = vmatprep.subr.mxu0 %v4901
    %7627 = vmatpush1.msra.mxu0 %v4900
    %7628 = vmatprep.subr.mxu0 %v4903
    %7629 = vmatpush1.msra.mxu0 %v4902
    %7630 = vmatprep.subr.mxu0 %v4905
    %7631 = vmatpush1.msra.mxu0 %v4904
    %7632 = vmatprep.subr.mxu0 %v4907
    %7633 = vmatpush1.msra.mxu0 %v4906
    %7634 = vmatprep.subr.mxu0 %v4909
    %7635 = vmatpush1.msra.mxu0 %v4908
    %7636 = vmatprep.subr.mxu0 %v4911
    %7637 = vmatpush1.msra.mxu0 %v4910
    %7638 = vmatprep.subr.mxu0 %v4913
    %7639 = vmatpush1.msra.mxu0 %v4912
    %7640 = vmatprep.subr.mxu0 %v4915
    %7641 = vmatpush1.msra.mxu0 %v4914
    %7642 = vmatprep.subr.mxu0 0.0
    %7643 = vmatpush1.msra.mxu0 0.0
    %7644 = vmatprep.subr.mxu0 0.0
    %7645 = vmatpush1.msra.mxu0 0.0
    %7646 = vmatprep.subr.mxu0 0.0
    %7647 = vmatpush1.msra.mxu0 0.0
    %7648 = vmatprep.subr.mxu0 0.0
    %7649 = vmatpush1.msra.mxu0 0.0
    %7650 = vmatprep.subr.mxu0 0.0
    %7651 = vmatpush1.msra.mxu0 0.0
    %7652 = vmatprep.subr.mxu0 0.0
    %7653 = vmatpush1.msra.mxu0 0.0
    %7654 = vmatprep.subr.mxu0 0.0
    %7655 = vmatpush1.msra.mxu0 0.0
    %7656 = vmatprep.subr.mxu0 0.0
    %7657 = vmatpush1.msra.mxu0 0.0
    %7658 = vmatprep.subr.mxu0 0.0
    %7659 = vmatpush1.msra.mxu0 0.0
    %7660 = vmatprep.subr.mxu0 0.0
    %7661 = vmatpush1.msra.mxu0 0.0
    %7662 = vmatprep.subr.mxu0 0.0
    %7663 = vmatpush1.msra.mxu0 0.0
    %7664 = vmatprep.subr.mxu0 0.0
    %7665 = vmatpush1.msra.mxu0 0.0
    %7666 = vmatprep.subr.mxu0 0.0
    %7667 = vmatpush1.msra.mxu0 0.0
    %7668 = vmatprep.subr.mxu0 0.0
    %7669 = vmatpush1.msra.mxu0 0.0
    %7670 = vmatprep.subr.mxu0 0.0
    %7671 = vmatpush1.msra.mxu0 0.0
    %7672 = vmatprep.subr.mxu0 0.0
    %7673 = vmatpush1.msra.mxu0 0.0
    %7674 = vmatprep.subr.mxu0 0.0
    %7675 = vmatpush1.msra.mxu0 0.0
    %7676 = vmatprep.subr.mxu0 0.0
    %7677 = vmatpush1.msra.mxu0 0.0
    %7678 = vmatprep.subr.mxu0 0.0
    %7679 = vmatpush1.msra.mxu0 0.0
    %7680 = vmatprep.subr.mxu0 0.0
    %7681 = vmatpush1.msra.mxu0 0.0
    %7682 = vmatprep.subr.mxu0 0.0
    %7683 = vmatpush1.msra.mxu0 0.0
    %7684 = vmatprep.subr.mxu0 0.0
    %7685 = vmatpush1.msra.mxu0 0.0
    %7686 = vmatprep.subr.mxu0 0.0
    %7687 = vmatpush1.msra.mxu0 0.0
    %7688 = vmatprep.subr.mxu0 0.0
    %7689 = vmatpush1.msra.mxu0 0.0
    %7690 = vmatprep.mubr.f32.mxu0 0.0
    %7691 = vmatmul.mubr.f32.gmra.mrb[0].mxu0 %v7624
    %v7692 = vpop.f32.mrb[0].mxu0
    %v7693 = vadd.f32 0.0, %v7692
    %v7694 = vpop.f32.mrb[0].mxu0
    %v7695 = vadd.f32 0.0, %v7694
    %7696 = vdwg.mxu0
    %v7699 = vcombine.low %v7693, %v7695
    %v7701 = vunpack.c.l.s4 1966171168
    %v7702 = vunpack.c.0.s8 %v7701
    %v7703 = vlaneseq
    %v7704 = vshrl.u32 %v7703, 7
    %v7705 = vsub.s32 %v7702, %v7704
    %v7706 = vrot.slane %v7699, %v7705
    %v7708 = vunpack.c.l.s4 1966171168
    %v7709 = vunpack.c.0.s8 %v7708
    %v7710 = vlaneseq
    %v7711 = vshrl.u32 %v7710, 7
    %v7712 = vsub.s32 %v7709, %v7711
    %v7713 = vrot.slane %v7706, %v7712
    %v7715 = vadd.f32 %v7622, %v7713
    %v7716 = vxor.u32 %v7715, 2147483648
    %v7717 = vmul.f32 %v7716, 1.442695
    %v7718 = vpow.pop %v7717
    %v7719 = vadd.f32 %v7718, 1.0
    %v7720 = vrcp.pop %v7719
    %v7721 = vmul.f32 1.0, %v7720
    %7723 = vrot.lane.b32.xlu0 %v7715, 64
    %v7724 = vpop.permute.xlu0 %7723
    %v7725 = vrot.slane %v7724, 1
    %v7727 = vtanh.pop %v7725
    %v7728 = vmul.f32 %v7721, %v7611
    %v7729 = vmul.f32 %v7721, %v7727
    %7731 = vrot.lane.b32.xlu0 %v7729, 64
    %v7732 = vpop.permute.xlu0 %7731
    %v7734 = vadd.f32 %v7728, %v7732
    %v7735 = vtanh.pop %v7734
    %v7737 = vrot.slane %v7721, 1
    %7740 = vrot.lane.b32.xlu0 %v7735, 64
    %v7741 = vpop.permute.xlu0 %7740
    %v7743 = vmul.f32 %v7737, %v7741
    %s7744 = scalar_lea.vmem [#allocation5], 39
    %v7745 = vld [vmem:[%s7744] ss:$8 sm:$0x3]
    %v7747 = vsel %vm95, %v7743, 0
    %7749 = vmatprep.subr.mxu0 %v4901
    %7750 = vmatpush1.msra.mxu0 %v4900
    %7751 = vmatprep.subr.mxu0 %v4903
    %7752 = vmatpush1.msra.mxu0 %v4902
    %7753 = vmatprep.subr.mxu0 %v4905
    %7754 = vmatpush1.msra.mxu0 %v4904
    %7755 = vmatprep.subr.mxu0 %v4907
    %7756 = vmatpush1.msra.mxu0 %v4906
    %7757 = vmatprep.subr.mxu0 %v4909
    %7758 = vmatpush1.msra.mxu0 %v4908
    %7759 = vmatprep.subr.mxu0 %v4911
    %7760 = vmatpush1.msra.mxu0 %v4910
    %7761 = vmatprep.subr.mxu0 %v4913
    %7762 = vmatpush1.msra.mxu0 %v4912
    %7763 = vmatprep.subr.mxu0 %v4915
    %7764 = vmatpush1.msra.mxu0 %v4914
    %7765 = vmatprep.subr.mxu0 0.0
    %7766 = vmatpush1.msra.mxu0 0.0
    %7767 = vmatprep.subr.mxu0 0.0
    %7768 = vmatpush1.msra.mxu0 0.0
    %7769 = vmatprep.subr.mxu0 0.0
    %7770 = vmatpush1.msra.mxu0 0.0
    %7771 = vmatprep.subr.mxu0 0.0
    %7772 = vmatpush1.msra.mxu0 0.0
    %7773 = vmatprep.subr.mxu0 0.0
    %7774 = vmatpush1.msra.mxu0 0.0
    %7775 = vmatprep.subr.mxu0 0.0
    %7776 = vmatpush1.msra.mxu0 0.0
    %7777 = vmatprep.subr.mxu0 0.0
    %7778 = vmatpush1.msra.mxu0 0.0
    %7779 = vmatprep.subr.mxu0 0.0
    %7780 = vmatpush1.msra.mxu0 0.0
    %7781 = vmatprep.subr.mxu0 0.0
    %7782 = vmatpush1.msra.mxu0 0.0
    %7783 = vmatprep.subr.mxu0 0.0
    %7784 = vmatpush1.msra.mxu0 0.0
    %7785 = vmatprep.subr.mxu0 0.0
    %7786 = vmatpush1.msra.mxu0 0.0
    %7787 = vmatprep.subr.mxu0 0.0
    %7788 = vmatpush1.msra.mxu0 0.0
    %7789 = vmatprep.subr.mxu0 0.0
    %7790 = vmatpush1.msra.mxu0 0.0
    %7791 = vmatprep.subr.mxu0 0.0
    %7792 = vmatpush1.msra.mxu0 0.0
    %7793 = vmatprep.subr.mxu0 0.0
    %7794 = vmatpush1.msra.mxu0 0.0
    %7795 = vmatprep.subr.mxu0 0.0
    %7796 = vmatpush1.msra.mxu0 0.0
    %7797 = vmatprep.subr.mxu0 0.0
    %7798 = vmatpush1.msra.mxu0 0.0
    %7799 = vmatprep.subr.mxu0 0.0
    %7800 = vmatpush1.msra.mxu0 0.0
    %7801 = vmatprep.subr.mxu0 0.0
    %7802 = vmatpush1.msra.mxu0 0.0
    %7803 = vmatprep.subr.mxu0 0.0
    %7804 = vmatpush1.msra.mxu0 0.0
    %7805 = vmatprep.subr.mxu0 0.0
    %7806 = vmatpush1.msra.mxu0 0.0
    %7807 = vmatprep.subr.mxu0 0.0
    %7808 = vmatpush1.msra.mxu0 0.0
    %7809 = vmatprep.subr.mxu0 0.0
    %7810 = vmatpush1.msra.mxu0 0.0
    %7811 = vmatprep.subr.mxu0 0.0
    %7812 = vmatpush1.msra.mxu0 0.0
    %7813 = vmatprep.mubr.f32.mxu0 0.0
    %7814 = vmatmul.mubr.f32.gmra.mrb[0].mxu0 %v7747
    %v7815 = vpop.f32.mrb[0].mxu0
    %v7816 = vadd.f32 0.0, %v7815
    %v7817 = vpop.f32.mrb[0].mxu0
    %v7818 = vadd.f32 0.0, %v7817
    %7819 = vdwg.mxu0
    %v7822 = vcombine.low %v7816, %v7818
    %v7824 = vunpack.c.l.s4 1966171168
    %v7825 = vunpack.c.0.s8 %v7824
    %v7826 = vlaneseq
    %v7827 = vshrl.u32 %v7826, 7
    %v7828 = vsub.s32 %v7825, %v7827
    %v7829 = vrot.slane %v7822, %v7828
    %v7831 = vunpack.c.l.s4 1966171168
    %v7832 = vunpack.c.0.s8 %v7831
    %v7833 = vlaneseq
    %v7834 = vshrl.u32 %v7833, 7
    %v7835 = vsub.s32 %v7832, %v7834
    %v7836 = vrot.slane %v7829, %v7835
    %v7838 = vadd.f32 %v7745, %v7836
    %v7839 = vxor.u32 %v7838, 2147483648
    %v7840 = vmul.f32 %v7839, 1.442695
    %v7841 = vpow.pop %v7840
    %v7842 = vadd.f32 %v7841, 1.0
    %v7843 = vrcp.pop %v7842
    %v7844 = vmul.f32 1.0, %v7843
    %7846 = vrot.lane.b32.xlu0 %v7838, 64
    %v7847 = vpop.permute.xlu0 %7846
    %v7848 = vrot.slane %v7847, 1
    %v7850 = vtanh.pop %v7848
    %v7851 = vmul.f32 %v7844, %v7734
    %v7852 = vmul.f32 %v7844, %v7850
    %7854 = vrot.lane.b32.xlu0 %v7852, 64
    %v7855 = vpop.permute.xlu0 %7854
    %v7857 = vadd.f32 %v7851, %v7855
    %v7858 = vtanh.pop %v7857
    %v7860 = vrot.slane %v7844, 1
    %7863 = vrot.lane.b32.xlu0 %v7858, 64
    %v7864 = vpop.permute.xlu0 %7863
    %v7866 = vmul.f32 %v7860, %v7864
    %v7867 = vld [vmem:[%s11] sm:$0xff]
    %v7868 = vld [vmem:[%s11 + $0x8] sm:$0xff]
    %v7869 = vld [vmem:[%s11 + $0x10] sm:$0xff]
    %v7870 = vld [vmem:[%s11 + $0x18] sm:$0xff]
    %v7871 = vld [vmem:[%s11 + $0x20] sm:$0xff]
    %v7872 = vld [vmem:[%s11 + $0x28] sm:$0xff]
    %v7873 = vld [vmem:[%s11 + $0x30] sm:$0xff]
    %v7874 = vld [vmem:[%s11 + $0x38] sm:$0xff]
    %v7875 = vld [vmem:[#allocation6] sm:$0x1]
    %v7877 = vsel %vm95, %v7866, 0
    %7879 = vmatprep.subr.mxu0 0.0
    %7880 = vmatpush1.msra.mxu0 %v7867
    %7881 = vmatprep.subr.mxu0 0.0
    %7882 = vmatpush1.msra.mxu0 %v7868
    %7883 = vmatprep.subr.mxu0 0.0
    %7884 = vmatpush1.msra.mxu0 %v7869
    %7885 = vmatprep.subr.mxu0 0.0
    %7886 = vmatpush1.msra.mxu0 %v7870
    %7887 = vmatprep.subr.mxu0 0.0
    %7888 = vmatpush1.msra.mxu0 %v7871
    %7889 = vmatprep.subr.mxu0 0.0
    %7890 = vmatpush1.msra.mxu0 %v7872
    %7891 = vmatprep.subr.mxu0 0.0
    %7892 = vmatpush1.msra.mxu0 %v7873
    %7893 = vmatprep.subr.mxu0 0.0
    %7894 = vmatpush1.msra.mxu0 %v7874
    %7895 = vmatprep.subr.mxu0 0.0
    %7896 = vmatpush1.msra.mxu0 0.0
    %7897 = vmatprep.subr.mxu0 0.0
    %7898 = vmatpush1.msra.mxu0 0.0
    %7899 = vmatprep.subr.mxu0 0.0
    %7900 = vmatpush1.msra.mxu0 0.0
    %7901 = vmatprep.subr.mxu0 0.0
    %7902 = vmatpush1.msra.mxu0 0.0
    %7903 = vmatprep.subr.mxu0 0.0
    %7904 = vmatpush1.msra.mxu0 0.0
    %7905 = vmatprep.subr.mxu0 0.0
    %7906 = vmatpush1.msra.mxu0 0.0
    %7907 = vmatprep.subr.mxu0 0.0
    %7908 = vmatpush1.msra.mxu0 0.0
    %7909 = vmatprep.subr.mxu0 0.0
    %7910 = vmatpush1.msra.mxu0 0.0
    %7911 = vmatprep.subr.mxu0 0.0
    %7912 = vmatpush1.msra.mxu0 0.0
    %7913 = vmatprep.subr.mxu0 0.0
    %7914 = vmatpush1.msra.mxu0 0.0
    %7915 = vmatprep.subr.mxu0 0.0
    %7916 = vmatpush1.msra.mxu0 0.0
    %7917 = vmatprep.subr.mxu0 0.0
    %7918 = vmatpush1.msra.mxu0 0.0
    %7919 = vmatprep.subr.mxu0 0.0
    %7920 = vmatpush1.msra.mxu0 0.0
    %7921 = vmatprep.subr.mxu0 0.0
    %7922 = vmatpush1.msra.mxu0 0.0
    %7923 = vmatprep.subr.mxu0 0.0
    %7924 = vmatpush1.msra.mxu0 0.0
    %7925 = vmatprep.subr.mxu0 0.0
    %7926 = vmatpush1.msra.mxu0 0.0
    %7927 = vmatprep.subr.mxu0 0.0
    %7928 = vmatpush1.msra.mxu0 0.0
    %7929 = vmatprep.subr.mxu0 0.0
    %7930 = vmatpush1.msra.mxu0 0.0
    %7931 = vmatprep.subr.mxu0 0.0
    %7932 = vmatpush1.msra.mxu0 0.0
    %7933 = vmatprep.subr.mxu0 0.0
    %7934 = vmatpush1.msra.mxu0 0.0
    %7935 = vmatprep.subr.mxu0 0.0
    %7936 = vmatpush1.msra.mxu0 0.0
    %7937 = vmatprep.subr.mxu0 0.0
    %7938 = vmatpush1.msra.mxu0 0.0
    %7939 = vmatprep.subr.mxu0 0.0
    %7940 = vmatpush1.msra.mxu0 0.0
    %7941 = vmatprep.subr.mxu0 0.0
    %7942 = vmatpush1.msra.mxu0 0.0
    %7943 = vmatprep.mubr.f32.mxu0 0.0
    %7944 = vmatmul.mubr.f32.gmra.mrb[0].mxu0 %v7877
    %v7945 = vpop.f32.mrb[0].mxu0
    %v7946 = vadd.f32 %v7875, %v7945
    %v7947 = vpop.f32.mrb[0].mxu0
    %7948 = vdwg.mxu0
    %vm7949 = vcmask 0
    %7950 = vst.msk [vmem:[#allocation7] sm:$0x1] %vm7949, %v7946
    // Predicated region
    $region54: #{gcn_informer_forward.1} parent=1 // pred_check
      _
    $region55: #{gcn_informer_forward.1} parent=1 // pred_check_branch
      %7952 = sbr.rel (0) target = $region57
    $region56: #{gcn_informer_forward.1} parent=1 // pred_region
      %s7954 = ssub.s32 16, 16
      %7955 = vsyncadd [#allocation8], %s7954
      %s7957 = sshll.u32 [#allocation7], 4
      %s7958 = int_to_ptr.vmem [resolvable:$true] %s7957
      %7960 = dma.vmem_to_hbm [thread:$0]  %s7958, 16, %s13, [#allocation8]
    $region57: #{gcn_informer_forward.1} parent=1 // pred_fallthru
      _
    // Predicated region
    $region58: #{gcn_informer_forward.1} parent=1 // pred_check
      _
    $region59: #{gcn_informer_forward.1} parent=1 // pred_check_branch
      %7962 = sbr.rel (0) target = $region61
    $region60: #{gcn_informer_forward.1} parent=1 // pred_region
      %s7964 = ssub.s32 3840, 3840
      %7965 = vsyncadd [#allocation10], %s7964
      %s7966 = sshll.u32 [#allocation9], 4
      %s7967 = int_to_ptr.vmem [resolvable:$true] %s7966
      %7972 = dma.vmem_to_hbm [thread:$0]  %s7967, 3840, %s14, [#allocation10], 128, 128, 8
    $region61: #{gcn_informer_forward.1} parent=1 // pred_fallthru
      _
    // Predicated region
    $region62: #{gcn_informer_forward.1} parent=1 // pred_check
      _
    $region63: #{gcn_informer_forward.1} parent=1 // pred_check_branch
      %7974 = sbr.rel (0) target = $region65
    $region64: #{gcn_informer_forward.1} parent=1 // pred_region
      %7975 = dma.done [#allocation8], 16
    $region65: #{gcn_informer_forward.1} parent=1 // pred_fallthru
      _
    // Predicated region
    $region66: #{gcn_informer_forward.1} parent=1 // pred_check
      _
    $region67: #{gcn_informer_forward.1} parent=1 // pred_check_branch
      %7977 = sbr.rel (0) target = $region69
    $region68: #{gcn_informer_forward.1} parent=1 // pred_region
      %7978 = dma.done [#allocation10], 3840
    $region69: #{gcn_informer_forward.1} parent=1 // pred_fallthru
      _
    %7979 = vsyncpa [#allocation8], 1
    %7980 = vsyncpa [#allocation10], 1

</llo_original>
